<compile_context>
chip_gen: v6e
topology: v6e:2x2x1
jax: 0.10.0
libtpu: 0.0.40
codegen_flags: <defaults>
</compile_context>

<pallas_src>
import functools

import jax
import jax.numpy as jnp
from jax.experimental import pallas as pl
from jax.experimental.pallas import tpu as pltpu

HIDDEN = 400            # fixed by nn.Linear(800, 400) in the module
CAT_HIDDEN = 2 * HIDDEN
HP = 512                # lane-padded hidden (multiple of 128)
HP2 = 2 * HP
SPAD = 128              # lane-dense width of the memory bank / attention output


# ----------------------------------------------------------------------------
# Fused forward kernel (single grid step, whole batch):
#   encoders:     proj = tanh(emb @ W_enc + b_enc)     (batch-flattened M)
#   h_trans:      enc_h = mn_h @ W_h[:HP] + bd_h @ W_h[HP:] + b_h
#   dec query:    q = tanh(dec_proj + enc_h)
#   attention:    padded (SPAD, HP) bank, masked softmax, ctx, output proj
# ----------------------------------------------------------------------------
def _fused_forward_kernel(B, MN_LEN, BD_LEN, T,
                          mn_len_ref, bd_len_ref,                # SMEM scalars
                          mn_emb_ref, bd_emb_ref, dec_emb_ref,   # (B*L, HP) bf16
                          w_mn_ref, b_mn_ref, w_bd_ref, b_bd_ref,
                          w_h_ref, b_h_ref, w_q_ref, b_q_ref,
                          w_o_ref, b_o_ref,
                          out_ref, attn_ref,                     # (B,T,HP) (B,T,SPAD)
                          bank_ref):                             # (SPAD, HP) f32
    f32, bf16 = jnp.float32, jnp.bfloat16
    S = MN_LEN + BD_LEN

    # --- batch-flattened projections: M = B*L rows per MXU dot ---------------
    mn_all = jnp.tanh(
        jnp.dot(mn_emb_ref[...], w_mn_ref[...], preferred_element_type=f32)
        + b_mn_ref[...])                                        # (B*MN_LEN, HP) f32
    bd_all = jnp.tanh(
        jnp.dot(bd_emb_ref[...], w_bd_ref[...], preferred_element_type=f32)
        + b_bd_ref[...])                                        # (B*BD_LEN, HP) f32
    dq_all = (jnp.dot(dec_emb_ref[...], w_q_ref[...], preferred_element_type=f32)
              + b_q_ref[...])                                   # (B*T, HP) f32

    # Zero the padded memory-bank slab once; rows [S:SPAD] stay zero across
    # the per-batch loop so masked columns can never pick up NaNs/garbage.
    bank_ref[...] = jnp.zeros_like(bank_ref)

    dn = (((1,), (1,)), ((), ()))                               # contract on HP
    col = jax.lax.broadcasted_iota(jnp.int32, (T, SPAD), 1)     # hoisted

    for b in range(B):                                          # B is tiny & static
        mn_len = jnp.maximum(mn_len_ref[b], 1)                  # guard len >= 1
        bd_len = jnp.maximum(bd_len_ref[b], 1)

        # memory bank slab: mn rows at [0:MN_LEN], bd rows at [MN_LEN:S]
        bank_ref[0:MN_LEN, :] = mn_all[b * MN_LEN:(b + 1) * MN_LEN]
        bank_ref[MN_LEN:S, :] = bd_all[b * BD_LEN:(b + 1) * BD_LEN]

        # encoder final hidden states = last VALID timestep (dynamic row read)
        mn_h = bank_ref[pl.ds(mn_len - 1, 1), :]                # (1, HP)
        bd_h = bank_ref[pl.ds(MN_LEN + bd_len - 1, 1), :]

        # h_trans == Linear(800, 400) as two K=HP dots (no lane-axis concat)
        enc_h = (jnp.dot(mn_h.astype(bf16), w_h_ref[0:HP, :],
                         preferred_element_type=f32)
                 + jnp.dot(bd_h.astype(bf16), w_h_ref[HP:HP2, :],
                           preferred_element_type=f32)
                 + b_h_ref[...])                                # (1, HP)
        # TODO(synk): c_trans / enc_c would seed a real decoder LSTM cell state;
        # the stateless stand-in decoder has no consumer, so it is omitted.

        # decoder query conditioned on translated enc_h (fused add + tanh)
        q = jnp.tanh(dq_all[b * T:(b + 1) * T] + enc_h)         # (T, HP) f32
        q_bf = q.astype(bf16)

        # attention: one score dot and one context dot against the padded bank
        bank_bf = bank_ref[...].astype(bf16)                    # (SPAD, HP)
        s = jax.lax.dot_general(q_bf, bank_bf, dn,
                                preferred_element_type=f32)     # (T, SPAD)
        valid = (col < mn_len) | ((col >= MN_LEN) & (col < MN_LEN + bd_len))
        s = jnp.where(valid, s, -1e30)
        m = jnp.max(s, axis=-1, keepdims=True)
        p = jnp.exp(s - m)
        p = p / jnp.sum(p, axis=-1, keepdims=True)              # exact softmax

        ctx = jnp.dot(p.astype(bf16), bank_bf,
                      preferred_element_type=f32)               # (T, HP)

        # output projection over [q ; ctx] as two K=HP dots, fused tanh
        out_ref[b] = jnp.tanh(
            jnp.dot(q_bf, w_o_ref[0:HP, :], preferred_element_type=f32)
            + jnp.dot(ctx.astype(bf16), w_o_ref[HP:HP2, :],
                      preferred_element_type=f32)
            + b_o_ref[...])                                     # (T, HP)
        attn_ref[b] = p                                         # lane-dense store


def fused_code_summary_forward(mn_len, bd_len, mn_emb, bd_emb, dec_emb, p,
                               *, B, MN_LEN, BD_LEN, T):
    """Single pallas_call / single grid step for the whole forward pass.

    mn_emb/bd_emb/dec_emb: (B*L, HP) bf16, batch-flattened, lane-padded.
    Returns (dec_out (B, T, HP) f32, attn (B, T, SPAD) f32).
    """
    S = MN_LEN + BD_LEN
    assert S <= SPAD, "concatenated source length must fit the padded bank width"

    def full2(K):
        return pl.BlockSpec((K, HP), lambda i, ml, bl: (0, 0))

    b_spec = pl.BlockSpec((1, HP), lambda i, ml, bl: (0, 0))

    kernel = functools.partial(_fused_forward_kernel, B, MN_LEN, BD_LEN, T)

    grid_spec = pltpu.PrefetchScalarGridSpec(
        num_scalar_prefetch=2,
        grid=(1,),                       # single step: weights DMA'd exactly once
        in_specs=[
            full2(B * MN_LEN), full2(B * BD_LEN), full2(B * T),
            full2(HP), b_spec,           # encoder mn projection
            full2(HP), b_spec,           # encoder bd projection
            full2(HP2), b_spec,          # h_trans (Linear(800, 400))
            full2(HP), b_spec,           # decoder query projection
            full2(HP2), b_spec,          # attention output projection [q ; ctx]
        ],
        out_specs=[
            pl.BlockSpec((B, T, HP), lambda i, ml, bl: (0, 0, 0)),
            pl.BlockSpec((B, T, SPAD), lambda i, ml, bl: (0, 0, 0)),
        ],
        scratch_shapes=[pltpu.VMEM((SPAD, HP), jnp.float32)],   # memory-bank slab
    )
    return pl.pallas_call(
        kernel,
        out_shape=(jax.ShapeDtypeStruct((B, T, HP), jnp.float32),
                   jax.ShapeDtypeStruct((B, T, SPAD), jnp.float32)),
        grid_spec=grid_spec,
        compiler_params=pltpu.CompilerParams(
            dimension_semantics=("arbitrary",)),
    )(mn_len.astype(jnp.int32), bd_len.astype(jnp.int32),
      mn_emb, bd_emb, dec_emb,
      p["w_mn"], p["b_mn"], p["w_bd"], p["b_bd"],
      p["w_h"], p["b_h"], p["w_q"], p["b_q"], p["w_o"], p["b_o"])


# ----------------------------------------------------------------------------
# Model
# ----------------------------------------------------------------------------
class CodeSummaryModelPallas:
    def __init__(self, key, vocab=50):
        ks = jax.random.split(key, 10)
        s = 0.02

        def w(k, shape):
            return (s * jax.random.normal(k, shape)).astype(jnp.float32)

        def pad_sq(m):       # (400, 400) -> (512, 512), zero padding
            return jnp.zeros((HP, HP), jnp.float32).at[:HIDDEN, :HIDDEN].set(m)

        def pad_cat(m):      # (800, 400) -> (1024, 512): first half at 0, second at HP
            out = jnp.zeros((HP2, HP), jnp.float32)
            out = out.at[:HIDDEN, :HIDDEN].set(m[:HIDDEN])
            out = out.at[HP:HP + HIDDEN, :HIDDEN].set(m[HIDDEN:])
            return out

        def pad_bias(v):     # (400,) -> (1, 512)
            return jnp.zeros((1, HP), jnp.float32).at[0, :HIDDEN].set(v)

        emb = w(ks[0], (vocab, HIDDEN))
        self.embedding = (jnp.zeros((vocab, HP), jnp.float32)
                          .at[:, :HIDDEN].set(emb).astype(jnp.bfloat16))

        # Stand-in encoder projections and decoder projections.
        # TODO(synk): real OpenNMT encoders/decoder are injected dependencies,
        # not defined by this module; deterministic stand-ins are used here.
        self.params = {
            "w_mn": pad_sq(w(ks[1], (HIDDEN, HIDDEN))).astype(jnp.bfloat16),
            "b_mn": pad_bias(w(ks[2], (HIDDEN,))),
            "w_bd": pad_sq(w(ks[3], (HIDDEN, HIDDEN))).astype(jnp.bfloat16),
            "b_bd": pad_bias(w(ks[4], (HIDDEN,))),
            # h_trans == nn.Linear(800, 400); stored transposed (K, N)
            "w_h": pad_cat(w(ks[5], (CAT_HIDDEN, HIDDEN))).astype(jnp.bfloat16),
            "b_h": pad_bias(w(ks[6], (HIDDEN,))),
            "w_q": pad_sq(w(ks[7], (HIDDEN, HIDDEN))).astype(jnp.bfloat16),
            "b_q": pad_bias(w(ks[8], (HIDDEN,))),
            "w_o": pad_cat(w(ks[9], (CAT_HIDDEN, HIDDEN))).astype(jnp.bfloat16),
            "b_o": pad_bias(jnp.zeros((HIDDEN,), jnp.float32)),
        }

    # --- forward (mirrors CodeSummaryModel.forward) ---------------------------
    def forward(self, src, tgt, lengths, bptt=False, with_align=False):
        dec_in = tgt[:-1]                                   # (tgt_len-1, B, 1)

        # Tiny int32 token transposes; gathers produce batch-flattened bf16 slabs.
        mn_tok = src[0][:, :, 0].T                          # (B, MN_LEN)
        bd_tok = src[1][:, :, 0].T                          # (B, BD_LEN)
        dec_tok = dec_in[:, :, 0].T                         # (B, T)
        B, MN_LEN = mn_tok.shape
        _, BD_LEN = bd_tok.shape
        _, T = dec_tok.shape
        S = MN_LEN + BD_LEN

        mn_emb = self.embedding[mn_tok.reshape(-1)]         # (B*MN_LEN, HP)
        bd_emb = self.embedding[bd_tok.reshape(-1)]         # (B*BD_LEN, HP)
        dec_emb = self.embedding[dec_tok.reshape(-1)]       # (B*T, HP)

        out_pad, attn_pad = fused_code_summary_forward(
            lengths[0], lengths[1], mn_emb, bd_emb, dec_emb, self.params,
            B=B, MN_LEN=MN_LEN, BD_LEN=BD_LEN, T=T)

        # Strip lane padding and return the (len, batch, feat) layout the
        # original module promises (only these two tiny output transposes remain).
        dec_out = jnp.transpose(out_pad, (1, 0, 2))[:, :, :HIDDEN]     # (T, B, 400)
        attns = {"std": jnp.transpose(attn_pad, (1, 0, 2))[:, :, :S]}  # (T, B, S)
        return dec_out, attns


# ----------------------------------------------------------------------------
if __name__ == "__main__":
    key = jax.random.PRNGKey(0)
    k_model, k_mn, k_bd, k_tgt = jax.random.split(key, 4)

    B = 2
    MN_LEN, BD_LEN = 6, 10
    TGT_LEN = 6
    VOCAB = 50

    model = CodeSummaryModelPallas(k_model, vocab=VOCAB)

    mn_src = jax.random.randint(k_mn, (MN_LEN, B, 1), 0, VOCAB, dtype=jnp.int32)
    bd_src = jax.random.randint(k_bd, (BD_LEN, B, 1), 0, VOCAB, dtype=jnp.int32)
    tgt = jax.random.randint(k_tgt, (TGT_LEN, B, 1), 0, VOCAB, dtype=jnp.int32)
    mn_lengths = jnp.array([MN_LEN, 4], dtype=jnp.int32)
    bd_lengths = jnp.array([BD_LEN, 7], dtype=jnp.int32)

    src = (mn_src, bd_src)
    lengths = (mn_lengths, bd_lengths)

    fwd = jax.jit(model.forward)
    dec_out, attns = fwd(src, tgt, lengths)
    jax.block_until_ready(dec_out)
    jax.block_until_ready(attns["std"])

    assert dec_out.shape == (TGT_LEN - 1, B, HIDDEN)
    assert attns["std"].shape == (TGT_LEN - 1, B, MN_LEN + BD_LEN)
    assert bool(jnp.all(jnp.isfinite(dec_out)))
    # masked softmax rows over the (non-contiguous) valid positions sum to 1
    assert bool(jnp.all(jnp.abs(jnp.sum(attns["std"], axis=-1) - 1.0) < 1e-3))
    print("KERNEL_OK")
</pallas_src>

<mosaic_0001>
module attributes {stable_mosaic.version = 11 : i64} {
  func.func @_fused_forward_kernel(%arg0: i32, %arg1: memref<2xi32, #tpu.memory_space<smem>>, %arg2: memref<2xi32, #tpu.memory_space<smem>>, %arg3: memref<12x512xbf16, #tpu.memory_space<vmem>>, %arg4: memref<20x512xbf16, #tpu.memory_space<vmem>>, %arg5: memref<10x512xbf16, #tpu.memory_space<vmem>>, %arg6: memref<512x512xbf16, #tpu.memory_space<vmem>>, %arg7: memref<1x512xf32, #tpu.memory_space<vmem>>, %arg8: memref<512x512xbf16, #tpu.memory_space<vmem>>, %arg9: memref<1x512xf32, #tpu.memory_space<vmem>>, %arg10: memref<1024x512xbf16, #tpu.memory_space<vmem>>, %arg11: memref<1x512xf32, #tpu.memory_space<vmem>>, %arg12: memref<512x512xbf16, #tpu.memory_space<vmem>>, %arg13: memref<1x512xf32, #tpu.memory_space<vmem>>, %arg14: memref<1024x512xbf16, #tpu.memory_space<vmem>>, %arg15: memref<1x512xf32, #tpu.memory_space<vmem>>, %arg16: memref<2x5x512xf32, #tpu.memory_space<vmem>>, %arg17: memref<2x5x128xf32, #tpu.memory_space<vmem>>, %arg18: memref<128x512xf32, #tpu.memory_space<vmem>>) attributes {dimension_semantics = [#tpu.dimension_semantics<arbitrary>], iteration_bounds = array<i64: 1>, scalar_prefetch = 2 : i64, scratch_operands = 1 : i64, tpu.core_type = #tpu.core_type<tc>, window_params = [{pipeline_mode = #tpu.pipeline_mode<synchronous>, transform_indices = @transform_0, window_bounds = array<i64: 12, 512>}, {pipeline_mode = #tpu.pipeline_mode<synchronous>, transform_indices = @transform_1, window_bounds = array<i64: 20, 512>}, {pipeline_mode = #tpu.pipeline_mode<synchronous>, transform_indices = @transform_2, window_bounds = array<i64: 10, 512>}, {pipeline_mode = #tpu.pipeline_mode<synchronous>, transform_indices = @transform_3, window_bounds = array<i64: 512, 512>}, {pipeline_mode = #tpu.pipeline_mode<synchronous>, transform_indices = @transform_4, window_bounds = array<i64: 1, 512>}, {pipeline_mode = #tpu.pipeline_mode<synchronous>, transform_indices = @transform_5, window_bounds = array<i64: 512, 512>}, {pipeline_mode = #tpu.pipeline_mode<synchronous>, transform_indices = @transform_6, window_bounds = array<i64: 1, 512>}, {pipeline_mode = #tpu.pipeline_mode<synchronous>, transform_indices = @transform_7, window_bounds = array<i64: 1024, 512>}, {pipeline_mode = #tpu.pipeline_mode<synchronous>, transform_indices = @transform_8, window_bounds = array<i64: 1, 512>}, {pipeline_mode = #tpu.pipeline_mode<synchronous>, transform_indices = @transform_9, window_bounds = array<i64: 512, 512>}, {pipeline_mode = #tpu.pipeline_mode<synchronous>, transform_indices = @transform_10, window_bounds = array<i64: 1, 512>}, {pipeline_mode = #tpu.pipeline_mode<synchronous>, transform_indices = @transform_11, window_bounds = array<i64: 1024, 512>}, {pipeline_mode = #tpu.pipeline_mode<synchronous>, transform_indices = @transform_12, window_bounds = array<i64: 1, 512>}, {pipeline_mode = #tpu.pipeline_mode<synchronous>, transform_indices = @transform_13, window_bounds = array<i64: 2, 5, 512>}, {pipeline_mode = #tpu.pipeline_mode<synchronous>, transform_indices = @transform_14, window_bounds = array<i64: 2, 5, 128>}]} {
    %c0 = arith.constant 0 : index
    %c0_0 = arith.constant 0 : index
    %0 = vector.load %arg3[%c0, %c0_0] : memref<12x512xbf16, #tpu.memory_space<vmem>>, vector<12x512xbf16>
    %c0_1 = arith.constant 0 : index
    %c0_2 = arith.constant 0 : index
    %1 = vector.load %arg6[%c0_1, %c0_2] : memref<512x512xbf16, #tpu.memory_space<vmem>>, vector<512x512xbf16>
    %cst = arith.constant dense<0.000000e+00> : vector<12x512xf32>
    %2 = tpu.matmul %0, %1, %cst {dimension_numbers = #tpu.dot_dimension_numbers<[1], [0], [0], [1], [0, 0, 1, 1], [], []>} : vector<12x512xbf16>, vector<512x512xbf16>, vector<12x512xf32> -> vector<12x512xf32>
    %c0_3 = arith.constant 0 : index
    %c0_4 = arith.constant 0 : index
    %3 = vector.load %arg7[%c0_3, %c0_4] : memref<1x512xf32, #tpu.memory_space<vmem>>, vector<1x512xf32>
    %4 = vector.broadcast %3 : vector<1x512xf32> to vector<12x512xf32>
    %5 = arith.addf %2, %4 : vector<12x512xf32>
    %6 = math.tanh %5 : vector<12x512xf32>
    %c0_5 = arith.constant 0 : index
    %c0_6 = arith.constant 0 : index
    %7 = vector.load %arg4[%c0_5, %c0_6] : memref<20x512xbf16, #tpu.memory_space<vmem>>, vector<20x512xbf16>
    %c0_7 = arith.constant 0 : index
    %c0_8 = arith.constant 0 : index
    %8 = vector.load %arg8[%c0_7, %c0_8] : memref<512x512xbf16, #tpu.memory_space<vmem>>, vector<512x512xbf16>
    %cst_9 = arith.constant dense<0.000000e+00> : vector<20x512xf32>
    %9 = tpu.matmul %7, %8, %cst_9 {dimension_numbers = #tpu.dot_dimension_numbers<[1], [0], [0], [1], [0, 0, 1, 1], [], []>} : vector<20x512xbf16>, vector<512x512xbf16>, vector<20x512xf32> -> vector<20x512xf32>
    %c0_10 = arith.constant 0 : index
    %c0_11 = arith.constant 0 : index
    %10 = vector.load %arg9[%c0_10, %c0_11] : memref<1x512xf32, #tpu.memory_space<vmem>>, vector<1x512xf32>
    %11 = vector.broadcast %10 : vector<1x512xf32> to vector<20x512xf32>
    %12 = arith.addf %9, %11 : vector<20x512xf32>
    %13 = math.tanh %12 : vector<20x512xf32>
    %c0_12 = arith.constant 0 : index
    %c0_13 = arith.constant 0 : index
    %14 = vector.load %arg5[%c0_12, %c0_13] : memref<10x512xbf16, #tpu.memory_space<vmem>>, vector<10x512xbf16>
    %c0_14 = arith.constant 0 : index
    %c0_15 = arith.constant 0 : index
    %15 = vector.load %arg12[%c0_14, %c0_15] : memref<512x512xbf16, #tpu.memory_space<vmem>>, vector<512x512xbf16>
    %cst_16 = arith.constant dense<0.000000e+00> : vector<10x512xf32>
    %16 = tpu.matmul %14, %15, %cst_16 {dimension_numbers = #tpu.dot_dimension_numbers<[1], [0], [0], [1], [0, 0, 1, 1], [], []>} : vector<10x512xbf16>, vector<512x512xbf16>, vector<10x512xf32> -> vector<10x512xf32>
    %c0_17 = arith.constant 0 : index
    %c0_18 = arith.constant 0 : index
    %17 = vector.load %arg13[%c0_17, %c0_18] : memref<1x512xf32, #tpu.memory_space<vmem>>, vector<1x512xf32>
    %18 = vector.broadcast %17 : vector<1x512xf32> to vector<10x512xf32>
    %19 = arith.addf %16, %18 : vector<10x512xf32>
    %cst_19 = arith.constant 0.000000e+00 : f32
    %20 = vector.broadcast %cst_19 : f32 to vector<128x512xf32>
    %c0_20 = arith.constant 0 : index
    %c0_21 = arith.constant 0 : index
    %21 = vector.load %arg18[%c0_20, %c0_21] : memref<128x512xf32, #tpu.memory_space<vmem>>, vector<128x512xf32>
    tpu.vector_store %arg18[%c0_20, %c0_21], %20 {strides = array<i32>} : memref<128x512xf32, #tpu.memory_space<vmem>>, vector<128x512xf32>,
    %22 = tpu.iota {dimensions = array<i32: 1>} : vector<5x128xi32>
    %c0_22 = arith.constant 0 : index
    %23 = memref.load %arg1[%c0_22] : memref<2xi32, #tpu.memory_space<smem>>
    %c1_i32 = arith.constant 1 : i32
    %24 = arith.maxsi %23, %c1_i32 : i32
    %c0_23 = arith.constant 0 : index
    %25 = memref.load %arg2[%c0_23] : memref<2xi32, #tpu.memory_space<smem>>
    %c1_i32_24 = arith.constant 1 : i32
    %26 = arith.maxsi %25, %c1_i32_24 : i32
    %27 = vector.extract_strided_slice %6 {offsets = [0, 0], sizes = [6, 512], strides = [1, 1]} : vector<12x512xf32> to vector<6x512xf32>
    %c0_25 = arith.constant 0 : index
    %c0_26 = arith.constant 0 : index
    %28 = vector.load %arg18[%c0_25, %c0_26] : memref<128x512xf32, #tpu.memory_space<vmem>>, vector<6x512xf32>
    tpu.vector_store %arg18[%c0_25, %c0_26], %27 {strides = array<i32>} : memref<128x512xf32, #tpu.memory_space<vmem>>, vector<6x512xf32>,
    %29 = vector.extract_strided_slice %13 {offsets = [0, 0], sizes = [10, 512], strides = [1, 1]} : vector<20x512xf32> to vector<10x512xf32>
    %c6 = arith.constant 6 : index
    %c0_27 = arith.constant 0 : index
    %30 = vector.load %arg18[%c6, %c0_27] : memref<128x512xf32, #tpu.memory_space<vmem>>, vector<10x512xf32>
    tpu.vector_store %arg18[%c6, %c0_27], %29 {strides = array<i32>} : memref<128x512xf32, #tpu.memory_space<vmem>>, vector<10x512xf32>,
    %c1_i32_28 = arith.constant 1 : i32
    %31 = arith.subi %24, %c1_i32_28 : i32
    %32 = arith.index_cast %31 : i32 to index
    %c0_29 = arith.constant 0 : index
    %33 = vector.load %arg18[%32, %c0_29] : memref<128x512xf32, #tpu.memory_space<vmem>>, vector<1x512xf32>
    %c6_i32 = arith.constant 6 : i32
    %34 = arith.addi %c6_i32, %26 : i32
    %c1_i32_30 = arith.constant 1 : i32
    %35 = arith.subi %34, %c1_i32_30 : i32
    %36 = arith.index_cast %35 : i32 to index
    %c0_31 = arith.constant 0 : index
    %37 = vector.load %arg18[%36, %c0_31] : memref<128x512xf32, #tpu.memory_space<vmem>>, vector<1x512xf32>
    %38 = arith.truncf %33 : vector<1x512xf32> to vector<1x512xbf16>
    %c0_32 = arith.constant 0 : index
    %c0_33 = arith.constant 0 : index
    %39 = vector.load %arg10[%c0_32, %c0_33] : memref<1024x512xbf16, #tpu.memory_space<vmem>>, vector<512x512xbf16>
    %cst_34 = arith.constant dense<0.000000e+00> : vector<1x512xf32>
    %40 = tpu.matmul %38, %39, %cst_34 {dimension_numbers = #tpu.dot_dimension_numbers<[1], [0], [0], [1], [0, 0, 1, 1], [], []>} : vector<1x512xbf16>, vector<512x512xbf16>, vector<1x512xf32> -> vector<1x512xf32>
    %41 = arith.truncf %37 : vector<1x512xf32> to vector<1x512xbf16>
    %c512 = arith.constant 512 : index
    %c0_35 = arith.constant 0 : index
    %42 = vector.load %arg10[%c512, %c0_35] : memref<1024x512xbf16, #tpu.memory_space<vmem>>, vector<512x512xbf16>
    %cst_36 = arith.constant dense<0.000000e+00> : vector<1x512xf32>
    %43 = tpu.matmul %41, %42, %cst_36 {dimension_numbers = #tpu.dot_dimension_numbers<[1], [0], [0], [1], [0, 0, 1, 1], [], []>} : vector<1x512xbf16>, vector<512x512xbf16>, vector<1x512xf32> -> vector<1x512xf32>
    %44 = arith.addf %40, %43 : vector<1x512xf32>
    %c0_37 = arith.constant 0 : index
    %c0_38 = arith.constant 0 : index
    %45 = vector.load %arg11[%c0_37, %c0_38] : memref<1x512xf32, #tpu.memory_space<vmem>>, vector<1x512xf32>
    %46 = arith.addf %44, %45 : vector<1x512xf32>
    %47 = vector.extract_strided_slice %19 {offsets = [0, 0], sizes = [5, 512], strides = [1, 1]} : vector<10x512xf32> to vector<5x512xf32>
    %48 = vector.broadcast %46 : vector<1x512xf32> to vector<5x512xf32>
    %49 = arith.addf %47, %48 : vector<5x512xf32>
    %50 = math.tanh %49 : vector<5x512xf32>
    %51 = arith.truncf %50 : vector<5x512xf32> to vector<5x512xbf16>
    %c0_39 = arith.constant 0 : index
    %c0_40 = arith.constant 0 : index
    %52 = vector.load %arg18[%c0_39, %c0_40] : memref<128x512xf32, #tpu.memory_space<vmem>>, vector<128x512xf32>
    %53 = arith.truncf %52 : vector<128x512xf32> to vector<128x512xbf16>
    %cst_41 = arith.constant dense<0.000000e+00> : vector<5x128xf32>
    %54 = tpu.matmul %51, %53, %cst_41 {dimension_numbers = #tpu.dot_dimension_numbers<[1], [1], [0], [0], [0, 0, 1, 0], [], []>} : vector<5x512xbf16>, vector<128x512xbf16>, vector<5x128xf32> -> vector<5x128xf32>
    %55 = vector.broadcast %24 : i32 to vector<5x128xi32>
    %56 = arith.cmpi slt, %22, %55 : vector<5x128xi32>
    %c6_i32_42 = arith.constant 6 : i32
    %57 = vector.broadcast %c6_i32_42 : i32 to vector<5x128xi32>
    %58 = arith.cmpi sge, %22, %57 : vector<5x128xi32>
    %c6_i32_43 = arith.constant 6 : i32
    %59 = arith.addi %c6_i32_43, %26 : i32
    %60 = vector.broadcast %59 : i32 to vector<5x128xi32>
    %61 = arith.cmpi slt, %22, %60 : vector<5x128xi32>
    %62 = arith.andi %58, %61 : vector<5x128xi1>
    %63 = arith.ori %56, %62 : vector<5x128xi1>
    %cst_44 = arith.constant -1.000000e+30 : f32
    %64 = vector.broadcast %cst_44 : f32 to vector<5x128xf32>
    %65 = arith.select %63, %54, %64 : vector<5x128xi1>, vector<5x128xf32>
    %cst_45 = arith.constant dense<0xFF800000> : vector<5xf32>
    %66 = vector.multi_reduction <maximumf>, %65, %cst_45 [1] : vector<5x128xf32> to vector<5xf32>
    %67 = vector.shape_cast %66 : vector<5xf32> to vector<5x1xf32>
    %68 = vector.broadcast %67 : vector<5x1xf32> to vector<5x128xf32>
    %69 = arith.subf %65, %68 : vector<5x128xf32>
    %70 = math.exp %69 : vector<5x128xf32>
    %cst_46 = arith.constant dense<0.000000e+00> : vector<5xf32>
    %71 = vector.multi_reduction <add>, %70, %cst_46 [1] : vector<5x128xf32> to vector<5xf32>
    %72 = vector.shape_cast %71 : vector<5xf32> to vector<5x1xf32>
    %73 = vector.broadcast %72 : vector<5x1xf32> to vector<5x128xf32>
    %74 = arith.divf %70, %73 : vector<5x128xf32>
    %75 = arith.truncf %74 : vector<5x128xf32> to vector<5x128xbf16>
    %cst_47 = arith.constant dense<0.000000e+00> : vector<5x512xf32>
    %76 = tpu.matmul %75, %53, %cst_47 {dimension_numbers = #tpu.dot_dimension_numbers<[1], [0], [0], [1], [0, 0, 1, 1], [], []>} : vector<5x128xbf16>, vector<128x512xbf16>, vector<5x512xf32> -> vector<5x512xf32>
    %c0_48 = arith.constant 0 : index
    %c0_49 = arith.constant 0 : index
    %77 = vector.load %arg14[%c0_48, %c0_49] : memref<1024x512xbf16, #tpu.memory_space<vmem>>, vector<512x512xbf16>
    %cst_50 = arith.constant dense<0.000000e+00> : vector<5x512xf32>
    %78 = tpu.matmul %51, %77, %cst_50 {dimension_numbers = #tpu.dot_dimension_numbers<[1], [0], [0], [1], [0, 0, 1, 1], [], []>} : vector<5x512xbf16>, vector<512x512xbf16>, vector<5x512xf32> -> vector<5x512xf32>
    %79 = arith.truncf %76 : vector<5x512xf32> to vector<5x512xbf16>
    %c512_51 = arith.constant 512 : index
    %c0_52 = arith.constant 0 : index
    %80 = vector.load %arg14[%c512_51, %c0_52] : memref<1024x512xbf16, #tpu.memory_space<vmem>>, vector<512x512xbf16>
    %cst_53 = arith.constant dense<0.000000e+00> : vector<5x512xf32>
    %81 = tpu.matmul %79, %80, %cst_53 {dimension_numbers = #tpu.dot_dimension_numbers<[1], [0], [0], [1], [0, 0, 1, 1], [], []>} : vector<5x512xbf16>, vector<512x512xbf16>, vector<5x512xf32> -> vector<5x512xf32>
    %82 = arith.addf %78, %81 : vector<5x512xf32>
    %c0_54 = arith.constant 0 : index
    %c0_55 = arith.constant 0 : index
    %83 = vector.load %arg15[%c0_54, %c0_55] : memref<1x512xf32, #tpu.memory_space<vmem>>, vector<1x512xf32>
    %84 = vector.broadcast %83 : vector<1x512xf32> to vector<5x512xf32>
    %85 = arith.addf %82, %84 : vector<5x512xf32>
    %86 = math.tanh %85 : vector<5x512xf32>
    %c0_56 = arith.constant 0 : index
    %c0_57 = arith.constant 0 : index
    %c0_58 = arith.constant 0 : index
    %87 = vector.load %arg16[%c0_56, %c0_57, %c0_58] : memref<2x5x512xf32, #tpu.memory_space<vmem>>, vector<1x5x512xf32>
    %88 = vector.shape_cast %87 : vector<1x5x512xf32> to vector<5x512xf32>
    %89 = vector.shape_cast %86 : vector<5x512xf32> to vector<1x5x512xf32>
    tpu.vector_store %arg16[%c0_56, %c0_57, %c0_58], %89 {strides = array<i32>} : memref<2x5x512xf32, #tpu.memory_space<vmem>>, vector<1x5x512xf32>,
    %c0_59 = arith.constant 0 : index
    %c0_60 = arith.constant 0 : index
    %c0_61 = arith.constant 0 : index
    %90 = vector.load %arg17[%c0_59, %c0_60, %c0_61] : memref<2x5x128xf32, #tpu.memory_space<vmem>>, vector<1x5x128xf32>
    %91 = vector.shape_cast %90 : vector<1x5x128xf32> to vector<5x128xf32>
    %92 = vector.shape_cast %74 : vector<5x128xf32> to vector<1x5x128xf32>
    tpu.vector_store %arg17[%c0_59, %c0_60, %c0_61], %92 {strides = array<i32>} : memref<2x5x128xf32, #tpu.memory_space<vmem>>, vector<1x5x128xf32>,
    %c1 = arith.constant 1 : index
    %93 = memref.load %arg1[%c1] : memref<2xi32, #tpu.memory_space<smem>>
    %c1_i32_62 = arith.constant 1 : i32
    %94 = arith.maxsi %93, %c1_i32_62 : i32
    %c1_63 = arith.constant 1 : index
    %95 = memref.load %arg2[%c1_63] : memref<2xi32, #tpu.memory_space<smem>>
    %c1_i32_64 = arith.constant 1 : i32
    %96 = arith.maxsi %95, %c1_i32_64 : i32
    %97 = vector.extract_strided_slice %6 {offsets = [6, 0], sizes = [6, 512], strides = [1, 1]} : vector<12x512xf32> to vector<6x512xf32>
    %c0_65 = arith.constant 0 : index
    %c0_66 = arith.constant 0 : index
    %98 = vector.load %arg18[%c0_65, %c0_66] : memref<128x512xf32, #tpu.memory_space<vmem>>, vector<6x512xf32>
    tpu.vector_store %arg18[%c0_65, %c0_66], %97 {strides = array<i32>} : memref<128x512xf32, #tpu.memory_space<vmem>>, vector<6x512xf32>,
    %99 = vector.extract_strided_slice %13 {offsets = [10, 0], sizes = [10, 512], strides = [1, 1]} : vector<20x512xf32> to vector<10x512xf32>
    %c6_67 = arith.constant 6 : index
    %c0_68 = arith.constant 0 : index
    %100 = vector.load %arg18[%c6_67, %c0_68] : memref<128x512xf32, #tpu.memory_space<vmem>>, vector<10x512xf32>
    tpu.vector_store %arg18[%c6_67, %c0_68], %99 {strides = array<i32>} : memref<128x512xf32, #tpu.memory_space<vmem>>, vector<10x512xf32>,
    %c1_i32_69 = arith.constant 1 : i32
    %101 = arith.subi %94, %c1_i32_69 : i32
    %102 = arith.index_cast %101 : i32 to index
    %c0_70 = arith.constant 0 : index
    %103 = vector.load %arg18[%102, %c0_70] : memref<128x512xf32, #tpu.memory_space<vmem>>, vector<1x512xf32>
    %c6_i32_71 = arith.constant 6 : i32
    %104 = arith.addi %c6_i32_71, %96 : i32
    %c1_i32_72 = arith.constant 1 : i32
    %105 = arith.subi %104, %c1_i32_72 : i32
    %106 = arith.index_cast %105 : i32 to index
    %c0_73 = arith.constant 0 : index
    %107 = vector.load %arg18[%106, %c0_73] : memref<128x512xf32, #tpu.memory_space<vmem>>, vector<1x512xf32>
    %108 = arith.truncf %103 : vector<1x512xf32> to vector<1x512xbf16>
    %c0_74 = arith.constant 0 : index
    %c0_75 = arith.constant 0 : index
    %109 = vector.load %arg10[%c0_74, %c0_75] : memref<1024x512xbf16, #tpu.memory_space<vmem>>, vector<512x512xbf16>
    %cst_76 = arith.constant dense<0.000000e+00> : vector<1x512xf32>
    %110 = tpu.matmul %108, %109, %cst_76 {dimension_numbers = #tpu.dot_dimension_numbers<[1], [0], [0], [1], [0, 0, 1, 1], [], []>} : vector<1x512xbf16>, vector<512x512xbf16>, vector<1x512xf32> -> vector<1x512xf32>
    %111 = arith.truncf %107 : vector<1x512xf32> to vector<1x512xbf16>
    %c512_77 = arith.constant 512 : index
    %c0_78 = arith.constant 0 : index
    %112 = vector.load %arg10[%c512_77, %c0_78] : memref<1024x512xbf16, #tpu.memory_space<vmem>>, vector<512x512xbf16>
    %cst_79 = arith.constant dense<0.000000e+00> : vector<1x512xf32>
    %113 = tpu.matmul %111, %112, %cst_79 {dimension_numbers = #tpu.dot_dimension_numbers<[1], [0], [0], [1], [0, 0, 1, 1], [], []>} : vector<1x512xbf16>, vector<512x512xbf16>, vector<1x512xf32> -> vector<1x512xf32>
    %114 = arith.addf %110, %113 : vector<1x512xf32>
    %c0_80 = arith.constant 0 : index
    %c0_81 = arith.constant 0 : index
    %115 = vector.load %arg11[%c0_80, %c0_81] : memref<1x512xf32, #tpu.memory_space<vmem>>, vector<1x512xf32>
    %116 = arith.addf %114, %115 : vector<1x512xf32>
    %117 = vector.extract_strided_slice %19 {offsets = [5, 0], sizes = [5, 512], strides = [1, 1]} : vector<10x512xf32> to vector<5x512xf32>
    %118 = vector.broadcast %116 : vector<1x512xf32> to vector<5x512xf32>
    %119 = arith.addf %117, %118 : vector<5x512xf32>
    %120 = math.tanh %119 : vector<5x512xf32>
    %121 = arith.truncf %120 : vector<5x512xf32> to vector<5x512xbf16>
    %c0_82 = arith.constant 0 : index
    %c0_83 = arith.constant 0 : index
    %122 = vector.load %arg18[%c0_82, %c0_83] : memref<128x512xf32, #tpu.memory_space<vmem>>, vector<128x512xf32>
    %123 = arith.truncf %122 : vector<128x512xf32> to vector<128x512xbf16>
    %cst_84 = arith.constant dense<0.000000e+00> : vector<5x128xf32>
    %124 = tpu.matmul %121, %123, %cst_84 {dimension_numbers = #tpu.dot_dimension_numbers<[1], [1], [0], [0], [0, 0, 1, 0], [], []>} : vector<5x512xbf16>, vector<128x512xbf16>, vector<5x128xf32> -> vector<5x128xf32>
    %125 = vector.broadcast %94 : i32 to vector<5x128xi32>
    %126 = arith.cmpi slt, %22, %125 : vector<5x128xi32>
    %c6_i32_85 = arith.constant 6 : i32
    %127 = vector.broadcast %c6_i32_85 : i32 to vector<5x128xi32>
    %128 = arith.cmpi sge, %22, %127 : vector<5x128xi32>
    %c6_i32_86 = arith.constant 6 : i32
    %129 = arith.addi %c6_i32_86, %96 : i32
    %130 = vector.broadcast %129 : i32 to vector<5x128xi32>
    %131 = arith.cmpi slt, %22, %130 : vector<5x128xi32>
    %132 = arith.andi %128, %131 : vector<5x128xi1>
    %133 = arith.ori %126, %132 : vector<5x128xi1>
    %cst_87 = arith.constant -1.000000e+30 : f32
    %134 = vector.broadcast %cst_87 : f32 to vector<5x128xf32>
    %135 = arith.select %133, %124, %134 : vector<5x128xi1>, vector<5x128xf32>
    %cst_88 = arith.constant dense<0xFF800000> : vector<5xf32>
    %136 = vector.multi_reduction <maximumf>, %135, %cst_88 [1] : vector<5x128xf32> to vector<5xf32>
    %137 = vector.shape_cast %136 : vector<5xf32> to vector<5x1xf32>
    %138 = vector.broadcast %137 : vector<5x1xf32> to vector<5x128xf32>
    %139 = arith.subf %135, %138 : vector<5x128xf32>
    %140 = math.exp %139 : vector<5x128xf32>
    %cst_89 = arith.constant dense<0.000000e+00> : vector<5xf32>
    %141 = vector.multi_reduction <add>, %140, %cst_89 [1] : vector<5x128xf32> to vector<5xf32>
    %142 = vector.shape_cast %141 : vector<5xf32> to vector<5x1xf32>
    %143 = vector.broadcast %142 : vector<5x1xf32> to vector<5x128xf32>
    %144 = arith.divf %140, %143 : vector<5x128xf32>
    %145 = arith.truncf %144 : vector<5x128xf32> to vector<5x128xbf16>
    %cst_90 = arith.constant dense<0.000000e+00> : vector<5x512xf32>
    %146 = tpu.matmul %145, %123, %cst_90 {dimension_numbers = #tpu.dot_dimension_numbers<[1], [0], [0], [1], [0, 0, 1, 1], [], []>} : vector<5x128xbf16>, vector<128x512xbf16>, vector<5x512xf32> -> vector<5x512xf32>
    %c0_91 = arith.constant 0 : index
    %c0_92 = arith.constant 0 : index
    %147 = vector.load %arg14[%c0_91, %c0_92] : memref<1024x512xbf16, #tpu.memory_space<vmem>>, vector<512x512xbf16>
    %cst_93 = arith.constant dense<0.000000e+00> : vector<5x512xf32>
    %148 = tpu.matmul %121, %147, %cst_93 {dimension_numbers = #tpu.dot_dimension_numbers<[1], [0], [0], [1], [0, 0, 1, 1], [], []>} : vector<5x512xbf16>, vector<512x512xbf16>, vector<5x512xf32> -> vector<5x512xf32>
    %149 = arith.truncf %146 : vector<5x512xf32> to vector<5x512xbf16>
    %c512_94 = arith.constant 512 : index
    %c0_95 = arith.constant 0 : index
    %150 = vector.load %arg14[%c512_94, %c0_95] : memref<1024x512xbf16, #tpu.memory_space<vmem>>, vector<512x512xbf16>
    %cst_96 = arith.constant dense<0.000000e+00> : vector<5x512xf32>
    %151 = tpu.matmul %149, %150, %cst_96 {dimension_numbers = #tpu.dot_dimension_numbers<[1], [0], [0], [1], [0, 0, 1, 1], [], []>} : vector<5x512xbf16>, vector<512x512xbf16>, vector<5x512xf32> -> vector<5x512xf32>
    %152 = arith.addf %148, %151 : vector<5x512xf32>
    %c0_97 = arith.constant 0 : index
    %c0_98 = arith.constant 0 : index
    %153 = vector.load %arg15[%c0_97, %c0_98] : memref<1x512xf32, #tpu.memory_space<vmem>>, vector<1x512xf32>
    %154 = vector.broadcast %153 : vector<1x512xf32> to vector<5x512xf32>
    %155 = arith.addf %152, %154 : vector<5x512xf32>
    %156 = math.tanh %155 : vector<5x512xf32>
    %c1_99 = arith.constant 1 : index
    %c0_100 = arith.constant 0 : index
    %c0_101 = arith.constant 0 : index
    %157 = vector.load %arg16[%c1_99, %c0_100, %c0_101] : memref<2x5x512xf32, #tpu.memory_space<vmem>>, vector<1x5x512xf32>
    %158 = vector.shape_cast %157 : vector<1x5x512xf32> to vector<5x512xf32>
    %159 = vector.shape_cast %156 : vector<5x512xf32> to vector<1x5x512xf32>
    tpu.vector_store %arg16[%c1_99, %c0_100, %c0_101], %159 {strides = array<i32>} : memref<2x5x512xf32, #tpu.memory_space<vmem>>, vector<1x5x512xf32>,
    %c1_102 = arith.constant 1 : index
    %c0_103 = arith.constant 0 : index
    %c0_104 = arith.constant 0 : index
    %160 = vector.load %arg17[%c1_102, %c0_103, %c0_104] : memref<2x5x128xf32, #tpu.memory_space<vmem>>, vector<1x5x128xf32>
    %161 = vector.shape_cast %160 : vector<1x5x128xf32> to vector<5x128xf32>
    %162 = vector.shape_cast %144 : vector<5x128xf32> to vector<1x5x128xf32>
    tpu.vector_store %arg17[%c1_102, %c0_103, %c0_104], %162 {strides = array<i32>} : memref<2x5x128xf32, #tpu.memory_space<vmem>>, vector<1x5x128xf32>,
    return
  }
  func.func @transform_0(%arg0: i32, %arg1: memref<2xi32, #tpu.memory_space<smem>>, %arg2: memref<2xi32, #tpu.memory_space<smem>>) -> (i32, i32) {
    %c0_i32 = arith.constant 0 : i32
    %c0_i32_0 = arith.constant 0 : i32
    %c0_i32_1 = arith.constant 0 : i32
    return %c0_i32, %c0_i32_0 : i32, i32
  }
  func.func @transform_1(%arg0: i32, %arg1: memref<2xi32, #tpu.memory_space<smem>>, %arg2: memref<2xi32, #tpu.memory_space<smem>>) -> (i32, i32) {
    %c0_i32 = arith.constant 0 : i32
    %c0_i32_0 = arith.constant 0 : i32
    %c0_i32_1 = arith.constant 0 : i32
    return %c0_i32, %c0_i32_0 : i32, i32
  }
  func.func @transform_2(%arg0: i32, %arg1: memref<2xi32, #tpu.memory_space<smem>>, %arg2: memref<2xi32, #tpu.memory_space<smem>>) -> (i32, i32) {
    %c0_i32 = arith.constant 0 : i32
    %c0_i32_0 = arith.constant 0 : i32
    %c0_i32_1 = arith.constant 0 : i32
    return %c0_i32, %c0_i32_0 : i32, i32
  }
  func.func @transform_3(%arg0: i32, %arg1: memref<2xi32, #tpu.memory_space<smem>>, %arg2: memref<2xi32, #tpu.memory_space<smem>>) -> (i32, i32) {
    %c0_i32 = arith.constant 0 : i32
    %c0_i32_0 = arith.constant 0 : i32
    %c0_i32_1 = arith.constant 0 : i32
    return %c0_i32, %c0_i32_0 : i32, i32
  }
  func.func @transform_4(%arg0: i32, %arg1: memref<2xi32, #tpu.memory_space<smem>>, %arg2: memref<2xi32, #tpu.memory_space<smem>>) -> (i32, i32) {
    %c0_i32 = arith.constant 0 : i32
    %c0_i32_0 = arith.constant 0 : i32
    %c0_i32_1 = arith.constant 0 : i32
    return %c0_i32, %c0_i32_0 : i32, i32
  }
  func.func @transform_5(%arg0: i32, %arg1: memref<2xi32, #tpu.memory_space<smem>>, %arg2: memref<2xi32, #tpu.memory_space<smem>>) -> (i32, i32) {
    %c0_i32 = arith.constant 0 : i32
    %c0_i32_0 = arith.constant 0 : i32
    %c0_i32_1 = arith.constant 0 : i32
    return %c0_i32, %c0_i32_0 : i32, i32
  }
  func.func @transform_6(%arg0: i32, %arg1: memref<2xi32, #tpu.memory_space<smem>>, %arg2: memref<2xi32, #tpu.memory_space<smem>>) -> (i32, i32) {
    %c0_i32 = arith.constant 0 : i32
    %c0_i32_0 = arith.constant 0 : i32
    %c0_i32_1 = arith.constant 0 : i32
    return %c0_i32, %c0_i32_0 : i32, i32
  }
  func.func @transform_7(%arg0: i32, %arg1: memref<2xi32, #tpu.memory_space<smem>>, %arg2: memref<2xi32, #tpu.memory_space<smem>>) -> (i32, i32) {
    %c0_i32 = arith.constant 0 : i32
    %c0_i32_0 = arith.constant 0 : i32
    %c0_i32_1 = arith.constant 0 : i32
    return %c0_i32, %c0_i32_0 : i32, i32
  }
  func.func @transform_8(%arg0: i32, %arg1: memref<2xi32, #tpu.memory_space<smem>>, %arg2: memref<2xi32, #tpu.memory_space<smem>>) -> (i32, i32) {
    %c0_i32 = arith.constant 0 : i32
    %c0_i32_0 = arith.constant 0 : i32
    %c0_i32_1 = arith.constant 0 : i32
    return %c0_i32, %c0_i32_0 : i32, i32
  }
  func.func @transform_9(%arg0: i32, %arg1: memref<2xi32, #tpu.memory_space<smem>>, %arg2: memref<2xi32, #tpu.memory_space<smem>>) -> (i32, i32) {
    %c0_i32 = arith.constant 0 : i32
    %c0_i32_0 = arith.constant 0 : i32
    %c0_i32_1 = arith.constant 0 : i32
    return %c0_i32, %c0_i32_0 : i32, i32
  }
  func.func @transform_10(%arg0: i32, %arg1: memref<2xi32, #tpu.memory_space<smem>>, %arg2: memref<2xi32, #tpu.memory_space<smem>>) -> (i32, i32) {
    %c0_i32 = arith.constant 0 : i32
    %c0_i32_0 = arith.constant 0 : i32
    %c0_i32_1 = arith.constant 0 : i32
    return %c0_i32, %c0_i32_0 : i32, i32
  }
  func.func @transform_11(%arg0: i32, %arg1: memref<2xi32, #tpu.memory_space<smem>>, %arg2: memref<2xi32, #tpu.memory_space<smem>>) -> (i32, i32) {
    %c0_i32 = arith.constant 0 : i32
    %c0_i32_0 = arith.constant 0 : i32
    %c0_i32_1 = arith.constant 0 : i32
    return %c0_i32, %c0_i32_0 : i32, i32
  }
  func.func @transform_12(%arg0: i32, %arg1: memref<2xi32, #tpu.memory_space<smem>>, %arg2: memref<2xi32, #tpu.memory_space<smem>>) -> (i32, i32) {
    %c0_i32 = arith.constant 0 : i32
    %c0_i32_0 = arith.constant 0 : i32
    %c0_i32_1 = arith.constant 0 : i32
    return %c0_i32, %c0_i32_0 : i32, i32
  }
  func.func @transform_13(%arg0: i32, %arg1: memref<2xi32, #tpu.memory_space<smem>>, %arg2: memref<2xi32, #tpu.memory_space<smem>>) -> (i32, i32, i32) {
    %c0_i32 = arith.constant 0 : i32
    %c0_i32_0 = arith.constant 0 : i32
    %c0_i32_1 = arith.constant 0 : i32
    %c0_i32_2 = arith.constant 0 : i32
    return %c0_i32, %c0_i32_0, %c0_i32_1 : i32, i32, i32
  }
  func.func @transform_14(%arg0: i32, %arg1: memref<2xi32, #tpu.memory_space<smem>>, %arg2: memref<2xi32, #tpu.memory_space<smem>>) -> (i32, i32, i32) {
    %c0_i32 = arith.constant 0 : i32
    %c0_i32_0 = arith.constant 0 : i32
    %c0_i32_1 = arith.constant 0 : i32
    %c0_i32_2 = arith.constant 0 : i32
    return %c0_i32, %c0_i32_0, %c0_i32_1 : i32, i32, i32
  }
}

</mosaic_0001>

<llo_original>
// kernel: forward.1
$region0: #{forward.1}
  #allocation0 [shape = 'u32[]', space=smem, size = 0x4, offset = 0x4, fixed_abs, tag = 'smem constant byte address 0x4 - core index']
  #allocation1 [shape = 'u32[144,128]{1,0:T(1,128)}', space=vmem, size = 0x12000, scoped, tag = 'internal scratch']
  #allocation2 [shape = 'f32[128,512]{1,0:T(8,128)}', space=vmem, size = 0x40000, scoped, tag = 'scratch operand']
  #allocation3 [shape = 's32[1]{0}', space=sflag, size = 0x4, scoped, tag = 'scoped memory for forward.1']
  #allocation4 [shape = 'u8[512]{0}', space=smem, size = 0x200, scoped, tag = 'prefetched SMEM operand 0']
  #allocation5 [shape = 'u8[512]{0}', space=smem, size = 0x200, scoped, tag = 'prefetched SMEM operand 1']
  %s0 = inlined_call_operand.vmem [shape: s32[2], index: 0, kind: input, shape index: {}]
  %s1 = inlined_call_operand.vmem [shape: s32[2], index: 1, kind: input, shape index: {}]
  %s2 = inlined_call_operand.vmem [shape: bf16[12,512], index: 2, kind: input, shape index: {}]
  %s3 = inlined_call_operand.vmem [shape: bf16[20,512], index: 3, kind: input, shape index: {}]
  %s4 = inlined_call_operand.vmem [shape: bf16[10,512], index: 4, kind: input, shape index: {}]
  %s5 = inlined_call_operand.hbm [shape: bf16[512,512], index: 5, kind: input, shape index: {}]
  %s6 = inlined_call_operand.vmem [shape: f32[1,512], index: 6, kind: input, shape index: {}]
  %s7 = inlined_call_operand.hbm [shape: bf16[512,512], index: 7, kind: input, shape index: {}]
  %s8 = inlined_call_operand.vmem [shape: f32[1,512], index: 8, kind: input, shape index: {}]
  %s9 = inlined_call_operand.hbm [shape: bf16[1024,512], index: 9, kind: input, shape index: {}]
  %s10 = inlined_call_operand.vmem [shape: f32[1,512], index: 10, kind: input, shape index: {}]
  %s11 = inlined_call_operand.hbm [shape: bf16[512,512], index: 11, kind: input, shape index: {}]
  %s12 = inlined_call_operand.vmem [shape: f32[1,512], index: 12, kind: input, shape index: {}]
  %s13 = inlined_call_operand.hbm [shape: bf16[1024,512], index: 13, kind: input, shape index: {}]
  %s14 = inlined_call_operand.vmem [shape: f32[1,512], index: 14, kind: input, shape index: {}]
  %s15 = inlined_call_operand.vmem [shape: f32[2,5,512], index: 15, kind: output, shape index: {0}]
  %s16 = inlined_call_operand.vmem [shape: f32[2,5,128], index: 16, kind: output, shape index: {1}]
  %17 = xla_tuple %s15, %s16
  %s18 = sld [smem:[#allocation0]]
  $region90: #{forward.1} parent=0
    _
  %s20 = ssub.s32 1, %s18
  %s21 = scalar_select 0, %s20, %s18
  %s22 = sshll.u32 %s0, 4
  %s23 = int_to_ptr.vmem [resolvable:$true] %s22
  %25 = dma.vmem_to_smem %s23, 16, [#allocation4], [#allocation3]
  %s26 = sshll.u32 %s1, 4
  %s27 = int_to_ptr.vmem [resolvable:$true] %s26
  %29 = dma.vmem_to_smem %s27, 16, [#allocation5], [#allocation3]
  %30 = dma.done [#allocation3], 32
  %31 = sfence
  $region1: #{forward.1} parent=0
    #allocation6 [shape = 'u8[524288]{0}', space=vmem, size = 0x80000, scoped, tag = 'input window, operand 5, single buffered']
    #allocation7 [shape = 's32[1]{0}', space=sflag, size = 0x4, scoped, tag = 'scoped memory for forward.1']
    #allocation8 [shape = 'u8[524288]{0}', space=vmem, size = 0x80000, scoped, tag = 'input window, operand 7, single buffered']
    #allocation9 [shape = 's32[1]{0}', space=sflag, size = 0x4, scoped, tag = 'scoped memory for forward.1']
    #allocation10 [shape = 'u8[1048576]{0}', space=vmem, size = 0x100000, scoped, tag = 'input window, operand 9, single buffered']
    #allocation11 [shape = 'u8[524288]{0}', space=vmem, size = 0x80000, scoped, tag = 'input window, operand 11, single buffered']
    #allocation12 [shape = 's32[1]{0}', space=sflag, size = 0x4, scoped, tag = 'scoped memory for forward.1']
    #allocation13 [shape = 'u8[1048576]{0}', space=vmem, size = 0x100000, scoped, tag = 'input window, operand 13, single buffered']
    %32 = vsyncpa [#allocation7], 0
    %33 = vsyncpa [#allocation9], 0
    %34 = vsyncpa [#allocation12], 0
    // Predicated region
    $region2: #{forward.1} parent=1 // pred_check
      _
    $region3: #{forward.1} parent=1 // pred_check_branch
      %36 = sbr.rel (0) target = $region5
    $region4: #{forward.1} parent=1 // pred_region
      _
    $region5: #{forward.1} parent=1 // pred_fallthru
      _
    // Predicated region
    $region6: #{forward.1} parent=1 // pred_check
      _
    $region7: #{forward.1} parent=1 // pred_check_branch
      %38 = sbr.rel (0) target = $region9
    $region8: #{forward.1} parent=1 // pred_region
      _
    $region9: #{forward.1} parent=1 // pred_fallthru
      _
    // Predicated region
    $region10: #{forward.1} parent=1 // pred_check
      _
    $region11: #{forward.1} parent=1 // pred_check_branch
      %40 = sbr.rel (0) target = $region13
    $region12: #{forward.1} parent=1 // pred_region
      _
    $region13: #{forward.1} parent=1 // pred_fallthru
      _
    // Predicated region
    $region14: #{forward.1} parent=1 // pred_check
      _
    $region15: #{forward.1} parent=1 // pred_check_branch
      %42 = sbr.rel (0) target = $region17
    $region16: #{forward.1} parent=1 // pred_region
      %s44 = ssub.s32 16384, 16384
      %45 = vsyncadd [#allocation7], %s44
      %s46 = sshll.u32 [#allocation6], 4
      %s47 = int_to_ptr.vmem [resolvable:$true] %s46
      %52 = dma.hbm_to_vmem [thread:$0]  %s5, 16384, %s47, [#allocation7], 256, 256, 16
    $region17: #{forward.1} parent=1 // pred_fallthru
      _
    // Predicated region
    $region18: #{forward.1} parent=1 // pred_check
      _
    $region19: #{forward.1} parent=1 // pred_check_branch
      %54 = sbr.rel (0) target = $region21
    $region20: #{forward.1} parent=1 // pred_region
      _
    $region21: #{forward.1} parent=1 // pred_fallthru
      _
    // Predicated region
    $region22: #{forward.1} parent=1 // pred_check
      _
    $region23: #{forward.1} parent=1 // pred_check_branch
      %56 = sbr.rel (0) target = $region25
    $region24: #{forward.1} parent=1 // pred_region
      %s58 = ssub.s32 16384, 16384
      %59 = vsyncadd [#allocation9], %s58
      %s60 = sshll.u32 [#allocation8], 4
      %s61 = int_to_ptr.vmem [resolvable:$true] %s60
      %66 = dma.hbm_to_vmem [thread:$0]  %s7, 16384, %s61, [#allocation9], 256, 256, 16
    $region25: #{forward.1} parent=1 // pred_fallthru
      _
    // Predicated region
    $region26: #{forward.1} parent=1 // pred_check
      _
    $region27: #{forward.1} parent=1 // pred_check_branch
      %68 = sbr.rel (0) target = $region29
    $region28: #{forward.1} parent=1 // pred_region
      _
    $region29: #{forward.1} parent=1 // pred_fallthru
      _
    // Predicated region
    $region30: #{forward.1} parent=1 // pred_check
      _
    $region31: #{forward.1} parent=1 // pred_check_branch
      %70 = sbr.rel (0) target = $region33
    $region32: #{forward.1} parent=1 // pred_region
      %s72 = ssub.s32 32768, 32768
      %73 = vsyncadd [#allocation9], %s72
      %s74 = sshll.u32 [#allocation10], 4
      %s75 = int_to_ptr.vmem [resolvable:$true] %s74
      %80 = dma.hbm_to_vmem [thread:$0]  %s9, 32768, %s75, [#allocation9], 256, 256, 16
    $region33: #{forward.1} parent=1 // pred_fallthru
      _
    // Predicated region
    $region34: #{forward.1} parent=1 // pred_check
      _
    $region35: #{forward.1} parent=1 // pred_check_branch
      %82 = sbr.rel (0) target = $region37
    $region36: #{forward.1} parent=1 // pred_region
      _
    $region37: #{forward.1} parent=1 // pred_fallthru
      _
    // Predicated region
    $region38: #{forward.1} parent=1 // pred_check
      _
    $region39: #{forward.1} parent=1 // pred_check_branch
      %84 = sbr.rel (0) target = $region41
    $region40: #{forward.1} parent=1 // pred_region
      %s86 = ssub.s32 16384, 16384
      %87 = vsyncadd [#allocation12], %s86
      %s88 = sshll.u32 [#allocation11], 4
      %s89 = int_to_ptr.vmem [resolvable:$true] %s88
      %94 = dma.hbm_to_vmem [thread:$0]  %s11, 16384, %s89, [#allocation12], 256, 256, 16
    $region41: #{forward.1} parent=1 // pred_fallthru
      _
    // Predicated region
    $region42: #{forward.1} parent=1 // pred_check
      _
    $region43: #{forward.1} parent=1 // pred_check_branch
      %96 = sbr.rel (0) target = $region45
    $region44: #{forward.1} parent=1 // pred_region
      _
    $region45: #{forward.1} parent=1 // pred_fallthru
      _
    // Predicated region
    $region46: #{forward.1} parent=1 // pred_check
      _
    $region47: #{forward.1} parent=1 // pred_check_branch
      %98 = sbr.rel (0) target = $region49
    $region48: #{forward.1} parent=1 // pred_region
      %s100 = ssub.s32 32768, 32768
      %101 = vsyncadd [#allocation12], %s100
      %s102 = sshll.u32 [#allocation13], 4
      %s103 = int_to_ptr.vmem [resolvable:$true] %s102
      %108 = dma.hbm_to_vmem [thread:$0]  %s13, 32768, %s103, [#allocation12], 256, 256, 16
    $region49: #{forward.1} parent=1 // pred_fallthru
      _
    // Predicated region
    $region50: #{forward.1} parent=1 // pred_check
      _
    $region51: #{forward.1} parent=1 // pred_check_branch
      %110 = sbr.rel (0) target = $region53
    $region52: #{forward.1} parent=1 // pred_region
      _
    $region53: #{forward.1} parent=1 // pred_fallthru
      _
    // Predicated region
    $region54: #{forward.1} parent=1 // pred_check
      _
    $region55: #{forward.1} parent=1 // pred_check_branch
      %112 = sbr.rel (0) target = $region57
    $region56: #{forward.1} parent=1 // pred_region
      %113 = dma.done [#allocation7], 16384
    $region57: #{forward.1} parent=1 // pred_fallthru
      _
    // Predicated region
    $region58: #{forward.1} parent=1 // pred_check
      _
    $region59: #{forward.1} parent=1 // pred_check_branch
      %115 = sbr.rel (0) target = $region61
    $region60: #{forward.1} parent=1 // pred_region
      %116 = dma.done [#allocation9], 16384
    $region61: #{forward.1} parent=1 // pred_fallthru
      _
    // Predicated region
    $region62: #{forward.1} parent=1 // pred_check
      _
    $region63: #{forward.1} parent=1 // pred_check_branch
      %118 = sbr.rel (0) target = $region65
    $region64: #{forward.1} parent=1 // pred_region
      %119 = dma.done [#allocation9], 32768
    $region65: #{forward.1} parent=1 // pred_fallthru
      _
    // Predicated region
    $region66: #{forward.1} parent=1 // pred_check
      _
    $region67: #{forward.1} parent=1 // pred_check_branch
      %121 = sbr.rel (0) target = $region69
    $region68: #{forward.1} parent=1 // pred_region
      %122 = dma.done [#allocation12], 16384
    $region69: #{forward.1} parent=1 // pred_fallthru
      _
    // Predicated region
    $region70: #{forward.1} parent=1 // pred_check
      _
    $region71: #{forward.1} parent=1 // pred_check_branch
      %124 = sbr.rel (0) target = $region73
    $region72: #{forward.1} parent=1 // pred_region
      %125 = dma.done [#allocation12], 32768
    $region73: #{forward.1} parent=1 // pred_fallthru
      _
    %v127 = vld [vmem:[%s2] sm:$0xff]
    %v128 = vld [vmem:[%s2 + $0x8] sm:$0xff]
    %v129 = vld [vmem:[%s2 + $0x10] sm:$0x33]
    %v130 = vld [vmem:[%s2 + $0x18] sm:$0x33]
    %v131 = vld [vmem:[#allocation6] sm:$0xff]
    %v132 = vld [vmem:[#allocation6 + $0x8] sm:$0xff]
    %v133 = vld [vmem:[#allocation6 + $0x10] sm:$0xff]
    %v134 = vld [vmem:[#allocation6 + $0x18] sm:$0xff]
    %v135 = vld [vmem:[#allocation6 + $0x20] sm:$0xff]
    %v136 = vld [vmem:[#allocation6 + $0x28] sm:$0xff]
    %v137 = vld [vmem:[#allocation6 + $0x30] sm:$0xff]
    %v138 = vld [vmem:[#allocation6 + $0x38] sm:$0xff]
    %v139 = vld [vmem:[#allocation6 + $0x40] sm:$0xff]
    %v140 = vld [vmem:[#allocation6 + $0x48] sm:$0xff]
    %v141 = vld [vmem:[#allocation6 + $0x50] sm:$0xff]
    %v142 = vld [vmem:[#allocation6 + $0x58] sm:$0xff]
    %v143 = vld [vmem:[#allocation6 + $0x60] sm:$0xff]
    %v144 = vld [vmem:[#allocation6 + $0x68] sm:$0xff]
    %v145 = vld [vmem:[#allocation6 + $0x70] sm:$0xff]
    %v146 = vld [vmem:[#allocation6 + $0x78] sm:$0xff]
    %v147 = vld [vmem:[#allocation6 + $0x80] sm:$0xff]
    %v148 = vld [vmem:[#allocation6 + $0x88] sm:$0xff]
    %v149 = vld [vmem:[#allocation6 + $0x90] sm:$0xff]
    %v150 = vld [vmem:[#allocation6 + $0x98] sm:$0xff]
    %v151 = vld [vmem:[#allocation6 + $0xa0] sm:$0xff]
    %v152 = vld [vmem:[#allocation6 + $0xa8] sm:$0xff]
    %v153 = vld [vmem:[#allocation6 + $0xb0] sm:$0xff]
    %v154 = vld [vmem:[#allocation6 + $0xb8] sm:$0xff]
    %v155 = vld [vmem:[#allocation6 + $0xc0] sm:$0xff]
    %v156 = vld [vmem:[#allocation6 + $0xc8] sm:$0xff]
    %v157 = vld [vmem:[#allocation6 + $0xd0] sm:$0xff]
    %v158 = vld [vmem:[#allocation6 + $0xd8] sm:$0xff]
    %v159 = vld [vmem:[#allocation6 + $0xe0] sm:$0xff]
    %v160 = vld [vmem:[#allocation6 + $0xe8] sm:$0xff]
    %v161 = vld [vmem:[#allocation6 + $0xf0] sm:$0xff]
    %v162 = vld [vmem:[#allocation6 + $0xf8] sm:$0xff]
    %v163 = vld [vmem:[#allocation6 + $0x100] sm:$0xff]
    %v164 = vld [vmem:[#allocation6 + $0x108] sm:$0xff]
    %v165 = vld [vmem:[#allocation6 + $0x110] sm:$0xff]
    %v166 = vld [vmem:[#allocation6 + $0x118] sm:$0xff]
    %v167 = vld [vmem:[#allocation6 + $0x120] sm:$0xff]
    %v168 = vld [vmem:[#allocation6 + $0x128] sm:$0xff]
    %v169 = vld [vmem:[#allocation6 + $0x130] sm:$0xff]
    %v170 = vld [vmem:[#allocation6 + $0x138] sm:$0xff]
    %v171 = vld [vmem:[#allocation6 + $0x140] sm:$0xff]
    %v172 = vld [vmem:[#allocation6 + $0x148] sm:$0xff]
    %v173 = vld [vmem:[#allocation6 + $0x150] sm:$0xff]
    %v174 = vld [vmem:[#allocation6 + $0x158] sm:$0xff]
    %v175 = vld [vmem:[#allocation6 + $0x160] sm:$0xff]
    %v176 = vld [vmem:[#allocation6 + $0x168] sm:$0xff]
    %v177 = vld [vmem:[#allocation6 + $0x170] sm:$0xff]
    %v178 = vld [vmem:[#allocation6 + $0x178] sm:$0xff]
    %v179 = vld [vmem:[#allocation6 + $0x180] sm:$0xff]
    %v180 = vld [vmem:[#allocation6 + $0x188] sm:$0xff]
    %v181 = vld [vmem:[#allocation6 + $0x190] sm:$0xff]
    %v182 = vld [vmem:[#allocation6 + $0x198] sm:$0xff]
    %v183 = vld [vmem:[#allocation6 + $0x1a0] sm:$0xff]
    %v184 = vld [vmem:[#allocation6 + $0x1a8] sm:$0xff]
    %v185 = vld [vmem:[#allocation6 + $0x1b0] sm:$0xff]
    %v186 = vld [vmem:[#allocation6 + $0x1b8] sm:$0xff]
    %v187 = vld [vmem:[#allocation6 + $0x1c0] sm:$0xff]
    %v188 = vld [vmem:[#allocation6 + $0x1c8] sm:$0xff]
    %v189 = vld [vmem:[#allocation6 + $0x1d0] sm:$0xff]
    %v190 = vld [vmem:[#allocation6 + $0x1d8] sm:$0xff]
    %v191 = vld [vmem:[#allocation6 + $0x1e0] sm:$0xff]
    %v192 = vld [vmem:[#allocation6 + $0x1e8] sm:$0xff]
    %v193 = vld [vmem:[#allocation6 + $0x1f0] sm:$0xff]
    %v194 = vld [vmem:[#allocation6 + $0x1f8] sm:$0xff]
    %v195 = vld [vmem:[#allocation6 + $0x200] sm:$0xff]
    %v196 = vld [vmem:[#allocation6 + $0x208] sm:$0xff]
    %v197 = vld [vmem:[#allocation6 + $0x210] sm:$0xff]
    %v198 = vld [vmem:[#allocation6 + $0x218] sm:$0xff]
    %v199 = vld [vmem:[#allocation6 + $0x220] sm:$0xff]
    %v200 = vld [vmem:[#allocation6 + $0x228] sm:$0xff]
    %v201 = vld [vmem:[#allocation6 + $0x230] sm:$0xff]
    %v202 = vld [vmem:[#allocation6 + $0x238] sm:$0xff]
    %v203 = vld [vmem:[#allocation6 + $0x240] sm:$0xff]
    %v204 = vld [vmem:[#allocation6 + $0x248] sm:$0xff]
    %v205 = vld [vmem:[#allocation6 + $0x250] sm:$0xff]
    %v206 = vld [vmem:[#allocation6 + $0x258] sm:$0xff]
    %v207 = vld [vmem:[#allocation6 + $0x260] sm:$0xff]
    %v208 = vld [vmem:[#allocation6 + $0x268] sm:$0xff]
    %v209 = vld [vmem:[#allocation6 + $0x270] sm:$0xff]
    %v210 = vld [vmem:[#allocation6 + $0x278] sm:$0xff]
    %v211 = vld [vmem:[#allocation6 + $0x280] sm:$0xff]
    %v212 = vld [vmem:[#allocation6 + $0x288] sm:$0xff]
    %v213 = vld [vmem:[#allocation6 + $0x290] sm:$0xff]
    %v214 = vld [vmem:[#allocation6 + $0x298] sm:$0xff]
    %v215 = vld [vmem:[#allocation6 + $0x2a0] sm:$0xff]
    %v216 = vld [vmem:[#allocation6 + $0x2a8] sm:$0xff]
    %v217 = vld [vmem:[#allocation6 + $0x2b0] sm:$0xff]
    %v218 = vld [vmem:[#allocation6 + $0x2b8] sm:$0xff]
    %v219 = vld [vmem:[#allocation6 + $0x2c0] sm:$0xff]
    %v220 = vld [vmem:[#allocation6 + $0x2c8] sm:$0xff]
    %v221 = vld [vmem:[#allocation6 + $0x2d0] sm:$0xff]
    %v222 = vld [vmem:[#allocation6 + $0x2d8] sm:$0xff]
    %v223 = vld [vmem:[#allocation6 + $0x2e0] sm:$0xff]
    %v224 = vld [vmem:[#allocation6 + $0x2e8] sm:$0xff]
    %v225 = vld [vmem:[#allocation6 + $0x2f0] sm:$0xff]
    %v226 = vld [vmem:[#allocation6 + $0x2f8] sm:$0xff]
    %v227 = vld [vmem:[#allocation6 + $0x300] sm:$0xff]
    %v228 = vld [vmem:[#allocation6 + $0x308] sm:$0xff]
    %v229 = vld [vmem:[#allocation6 + $0x310] sm:$0xff]
    %v230 = vld [vmem:[#allocation6 + $0x318] sm:$0xff]
    %v231 = vld [vmem:[#allocation6 + $0x320] sm:$0xff]
    %v232 = vld [vmem:[#allocation6 + $0x328] sm:$0xff]
    %v233 = vld [vmem:[#allocation6 + $0x330] sm:$0xff]
    %v234 = vld [vmem:[#allocation6 + $0x338] sm:$0xff]
    %v235 = vld [vmem:[#allocation6 + $0x340] sm:$0xff]
    %v236 = vld [vmem:[#allocation6 + $0x348] sm:$0xff]
    %v237 = vld [vmem:[#allocation6 + $0x350] sm:$0xff]
    %v238 = vld [vmem:[#allocation6 + $0x358] sm:$0xff]
    %v239 = vld [vmem:[#allocation6 + $0x360] sm:$0xff]
    %v240 = vld [vmem:[#allocation6 + $0x368] sm:$0xff]
    %v241 = vld [vmem:[#allocation6 + $0x370] sm:$0xff]
    %v242 = vld [vmem:[#allocation6 + $0x378] sm:$0xff]
    %v243 = vld [vmem:[#allocation6 + $0x380] sm:$0xff]
    %v244 = vld [vmem:[#allocation6 + $0x388] sm:$0xff]
    %v245 = vld [vmem:[#allocation6 + $0x390] sm:$0xff]
    %v246 = vld [vmem:[#allocation6 + $0x398] sm:$0xff]
    %v247 = vld [vmem:[#allocation6 + $0x3a0] sm:$0xff]
    %v248 = vld [vmem:[#allocation6 + $0x3a8] sm:$0xff]
    %v249 = vld [vmem:[#allocation6 + $0x3b0] sm:$0xff]
    %v250 = vld [vmem:[#allocation6 + $0x3b8] sm:$0xff]
    %v251 = vld [vmem:[#allocation6 + $0x3c0] sm:$0xff]
    %v252 = vld [vmem:[#allocation6 + $0x3c8] sm:$0xff]
    %v253 = vld [vmem:[#allocation6 + $0x3d0] sm:$0xff]
    %v254 = vld [vmem:[#allocation6 + $0x3d8] sm:$0xff]
    %v255 = vld [vmem:[#allocation6 + $0x3e0] sm:$0xff]
    %v256 = vld [vmem:[#allocation6 + $0x3e8] sm:$0xff]
    %v257 = vld [vmem:[#allocation6 + $0x3f0] sm:$0xff]
    %v258 = vld [vmem:[#allocation6 + $0x3f8] sm:$0xff]
    %v259 = vld [vmem:[%s6] sm:$0xf]
    %v261 = vlaneseq
    %v262 = vshrl.u32 %v261, 7
    %v263 = vsub.s32 0, %v262
    %v264 = vrot.slane %v259, %v263
    %v265 = vlaneseq
    %v266 = vshrl.u32 %v265, 7
    %v267 = vsub.s32 1, %v266
    %v268 = vrot.slane %v259, %v267
    %v269 = vlaneseq
    %v270 = vshrl.u32 %v269, 7
    %v271 = vsub.s32 2, %v270
    %v272 = vrot.slane %v259, %v271
    %v273 = vlaneseq
    %v274 = vshrl.u32 %v273, 7
    %v275 = vsub.s32 3, %v274
    %v276 = vrot.slane %v259, %v275
    %v285 = vunpack.c.l.b16 %v127
    %v286 = vunpack.c.h.b16 %v127
    %v287 = vunpack.c.l.b16 %v128
    %v288 = vunpack.c.h.b16 %v128
    %v289 = vunpack.c.l.b16 %v129
    %v290 = vunpack.c.h.b16 %v129
    %v291 = vunpack.c.l.b16 %v130
    %v292 = vunpack.c.h.b16 %v130
    %v293 = vpack.c.b16 %v289, %v285
    %v294 = vpack.c.b16 %v290, %v286
    %v295 = vpack.c.b16 %v291, %v287
    %v296 = vpack.c.b16 %v292, %v288
    %v429 = vunpack.c.l.b16 %v131
    %v430 = vunpack.c.h.b16 %v131
    %v431 = vunpack.c.l.b16 %v132
    %v432 = vunpack.c.h.b16 %v132
    %v433 = vunpack.c.l.b16 %v133
    %v434 = vunpack.c.h.b16 %v133
    %v435 = vunpack.c.l.b16 %v134
    %v436 = vunpack.c.h.b16 %v134
    %v437 = vunpack.c.l.b16 %v135
    %v438 = vunpack.c.h.b16 %v135
    %v439 = vunpack.c.l.b16 %v136
    %v440 = vunpack.c.h.b16 %v136
    %v441 = vunpack.c.l.b16 %v137
    %v442 = vunpack.c.h.b16 %v137
    %v443 = vunpack.c.l.b16 %v138
    %v444 = vunpack.c.h.b16 %v138
    %v445 = vunpack.c.l.b16 %v139
    %v446 = vunpack.c.h.b16 %v139
    %v447 = vunpack.c.l.b16 %v140
    %v448 = vunpack.c.h.b16 %v140
    %v449 = vunpack.c.l.b16 %v141
    %v450 = vunpack.c.h.b16 %v141
    %v451 = vunpack.c.l.b16 %v142
    %v452 = vunpack.c.h.b16 %v142
    %v453 = vunpack.c.l.b16 %v143
    %v454 = vunpack.c.h.b16 %v143
    %v455 = vunpack.c.l.b16 %v144
    %v456 = vunpack.c.h.b16 %v144
    %v457 = vunpack.c.l.b16 %v145
    %v458 = vunpack.c.h.b16 %v145
    %v459 = vunpack.c.l.b16 %v146
    %v460 = vunpack.c.h.b16 %v146
    %v461 = vunpack.c.l.b16 %v147
    %v462 = vunpack.c.h.b16 %v147
    %v463 = vunpack.c.l.b16 %v148
    %v464 = vunpack.c.h.b16 %v148
    %v465 = vunpack.c.l.b16 %v149
    %v466 = vunpack.c.h.b16 %v149
    %v467 = vunpack.c.l.b16 %v150
    %v468 = vunpack.c.h.b16 %v150
    %v469 = vunpack.c.l.b16 %v151
    %v470 = vunpack.c.h.b16 %v151
    %v471 = vunpack.c.l.b16 %v152
    %v472 = vunpack.c.h.b16 %v152
    %v473 = vunpack.c.l.b16 %v153
    %v474 = vunpack.c.h.b16 %v153
    %v475 = vunpack.c.l.b16 %v154
    %v476 = vunpack.c.h.b16 %v154
    %v477 = vunpack.c.l.b16 %v155
    %v478 = vunpack.c.h.b16 %v155
    %v479 = vunpack.c.l.b16 %v156
    %v480 = vunpack.c.h.b16 %v156
    %v481 = vunpack.c.l.b16 %v157
    %v482 = vunpack.c.h.b16 %v157
    %v483 = vunpack.c.l.b16 %v158
    %v484 = vunpack.c.h.b16 %v158
    %v485 = vunpack.c.l.b16 %v159
    %v486 = vunpack.c.h.b16 %v159
    %v487 = vunpack.c.l.b16 %v160
    %v488 = vunpack.c.h.b16 %v160
    %v489 = vunpack.c.l.b16 %v161
    %v490 = vunpack.c.h.b16 %v161
    %v491 = vunpack.c.l.b16 %v162
    %v492 = vunpack.c.h.b16 %v162
    %v493 = vunpack.c.l.b16 %v163
    %v494 = vunpack.c.h.b16 %v163
    %v495 = vunpack.c.l.b16 %v164
    %v496 = vunpack.c.h.b16 %v164
    %v497 = vunpack.c.l.b16 %v165
    %v498 = vunpack.c.h.b16 %v165
    %v499 = vunpack.c.l.b16 %v166
    %v500 = vunpack.c.h.b16 %v166
    %v501 = vunpack.c.l.b16 %v167
    %v502 = vunpack.c.h.b16 %v167
    %v503 = vunpack.c.l.b16 %v168
    %v504 = vunpack.c.h.b16 %v168
    %v505 = vunpack.c.l.b16 %v169
    %v506 = vunpack.c.h.b16 %v169
    %v507 = vunpack.c.l.b16 %v170
    %v508 = vunpack.c.h.b16 %v170
    %v509 = vunpack.c.l.b16 %v171
    %v510 = vunpack.c.h.b16 %v171
    %v511 = vunpack.c.l.b16 %v172
    %v512 = vunpack.c.h.b16 %v172
    %v513 = vunpack.c.l.b16 %v173
    %v514 = vunpack.c.h.b16 %v173
    %v515 = vunpack.c.l.b16 %v174
    %v516 = vunpack.c.h.b16 %v174
    %v517 = vunpack.c.l.b16 %v175
    %v518 = vunpack.c.h.b16 %v175
    %v519 = vunpack.c.l.b16 %v176
    %v520 = vunpack.c.h.b16 %v176
    %v521 = vunpack.c.l.b16 %v177
    %v522 = vunpack.c.h.b16 %v177
    %v523 = vunpack.c.l.b16 %v178
    %v524 = vunpack.c.h.b16 %v178
    %v525 = vunpack.c.l.b16 %v179
    %v526 = vunpack.c.h.b16 %v179
    %v527 = vunpack.c.l.b16 %v180
    %v528 = vunpack.c.h.b16 %v180
    %v529 = vunpack.c.l.b16 %v181
    %v530 = vunpack.c.h.b16 %v181
    %v531 = vunpack.c.l.b16 %v182
    %v532 = vunpack.c.h.b16 %v182
    %v533 = vunpack.c.l.b16 %v183
    %v534 = vunpack.c.h.b16 %v183
    %v535 = vunpack.c.l.b16 %v184
    %v536 = vunpack.c.h.b16 %v184
    %v537 = vunpack.c.l.b16 %v185
    %v538 = vunpack.c.h.b16 %v185
    %v539 = vunpack.c.l.b16 %v186
    %v540 = vunpack.c.h.b16 %v186
    %v541 = vunpack.c.l.b16 %v187
    %v542 = vunpack.c.h.b16 %v187
    %v543 = vunpack.c.l.b16 %v188
    %v544 = vunpack.c.h.b16 %v188
    %v545 = vunpack.c.l.b16 %v189
    %v546 = vunpack.c.h.b16 %v189
    %v547 = vunpack.c.l.b16 %v190
    %v548 = vunpack.c.h.b16 %v190
    %v549 = vunpack.c.l.b16 %v191
    %v550 = vunpack.c.h.b16 %v191
    %v551 = vunpack.c.l.b16 %v192
    %v552 = vunpack.c.h.b16 %v192
    %v553 = vunpack.c.l.b16 %v193
    %v554 = vunpack.c.h.b16 %v193
    %v555 = vunpack.c.l.b16 %v194
    %v556 = vunpack.c.h.b16 %v194
    %v557 = vunpack.c.l.b16 %v195
    %v558 = vunpack.c.h.b16 %v195
    %v559 = vunpack.c.l.b16 %v196
    %v560 = vunpack.c.h.b16 %v196
    %v561 = vunpack.c.l.b16 %v197
    %v562 = vunpack.c.h.b16 %v197
    %v563 = vunpack.c.l.b16 %v198
    %v564 = vunpack.c.h.b16 %v198
    %v565 = vunpack.c.l.b16 %v199
    %v566 = vunpack.c.h.b16 %v199
    %v567 = vunpack.c.l.b16 %v200
    %v568 = vunpack.c.h.b16 %v200
    %v569 = vunpack.c.l.b16 %v201
    %v570 = vunpack.c.h.b16 %v201
    %v571 = vunpack.c.l.b16 %v202
    %v572 = vunpack.c.h.b16 %v202
    %v573 = vunpack.c.l.b16 %v203
    %v574 = vunpack.c.h.b16 %v203
    %v575 = vunpack.c.l.b16 %v204
    %v576 = vunpack.c.h.b16 %v204
    %v577 = vunpack.c.l.b16 %v205
    %v578 = vunpack.c.h.b16 %v205
    %v579 = vunpack.c.l.b16 %v206
    %v580 = vunpack.c.h.b16 %v206
    %v581 = vunpack.c.l.b16 %v207
    %v582 = vunpack.c.h.b16 %v207
    %v583 = vunpack.c.l.b16 %v208
    %v584 = vunpack.c.h.b16 %v208
    %v585 = vunpack.c.l.b16 %v209
    %v586 = vunpack.c.h.b16 %v209
    %v587 = vunpack.c.l.b16 %v210
    %v588 = vunpack.c.h.b16 %v210
    %v589 = vunpack.c.l.b16 %v211
    %v590 = vunpack.c.h.b16 %v211
    %v591 = vunpack.c.l.b16 %v212
    %v592 = vunpack.c.h.b16 %v212
    %v593 = vunpack.c.l.b16 %v213
    %v594 = vunpack.c.h.b16 %v213
    %v595 = vunpack.c.l.b16 %v214
    %v596 = vunpack.c.h.b16 %v214
    %v597 = vunpack.c.l.b16 %v215
    %v598 = vunpack.c.h.b16 %v215
    %v599 = vunpack.c.l.b16 %v216
    %v600 = vunpack.c.h.b16 %v216
    %v601 = vunpack.c.l.b16 %v217
    %v602 = vunpack.c.h.b16 %v217
    %v603 = vunpack.c.l.b16 %v218
    %v604 = vunpack.c.h.b16 %v218
    %v605 = vunpack.c.l.b16 %v219
    %v606 = vunpack.c.h.b16 %v219
    %v607 = vunpack.c.l.b16 %v220
    %v608 = vunpack.c.h.b16 %v220
    %v609 = vunpack.c.l.b16 %v221
    %v610 = vunpack.c.h.b16 %v221
    %v611 = vunpack.c.l.b16 %v222
    %v612 = vunpack.c.h.b16 %v222
    %v613 = vunpack.c.l.b16 %v223
    %v614 = vunpack.c.h.b16 %v223
    %v615 = vunpack.c.l.b16 %v224
    %v616 = vunpack.c.h.b16 %v224
    %v617 = vunpack.c.l.b16 %v225
    %v618 = vunpack.c.h.b16 %v225
    %v619 = vunpack.c.l.b16 %v226
    %v620 = vunpack.c.h.b16 %v226
    %v621 = vunpack.c.l.b16 %v227
    %v622 = vunpack.c.h.b16 %v227
    %v623 = vunpack.c.l.b16 %v228
    %v624 = vunpack.c.h.b16 %v228
    %v625 = vunpack.c.l.b16 %v229
    %v626 = vunpack.c.h.b16 %v229
    %v627 = vunpack.c.l.b16 %v230
    %v628 = vunpack.c.h.b16 %v230
    %v629 = vunpack.c.l.b16 %v231
    %v630 = vunpack.c.h.b16 %v231
    %v631 = vunpack.c.l.b16 %v232
    %v632 = vunpack.c.h.b16 %v232
    %v633 = vunpack.c.l.b16 %v233
    %v634 = vunpack.c.h.b16 %v233
    %v635 = vunpack.c.l.b16 %v234
    %v636 = vunpack.c.h.b16 %v234
    %v637 = vunpack.c.l.b16 %v235
    %v638 = vunpack.c.h.b16 %v235
    %v639 = vunpack.c.l.b16 %v236
    %v640 = vunpack.c.h.b16 %v236
    %v641 = vunpack.c.l.b16 %v237
    %v642 = vunpack.c.h.b16 %v237
    %v643 = vunpack.c.l.b16 %v238
    %v644 = vunpack.c.h.b16 %v238
    %v645 = vunpack.c.l.b16 %v239
    %v646 = vunpack.c.h.b16 %v239
    %v647 = vunpack.c.l.b16 %v240
    %v648 = vunpack.c.h.b16 %v240
    %v649 = vunpack.c.l.b16 %v241
    %v650 = vunpack.c.h.b16 %v241
    %v651 = vunpack.c.l.b16 %v242
    %v652 = vunpack.c.h.b16 %v242
    %v653 = vunpack.c.l.b16 %v243
    %v654 = vunpack.c.h.b16 %v243
    %v655 = vunpack.c.l.b16 %v244
    %v656 = vunpack.c.h.b16 %v244
    %v657 = vunpack.c.l.b16 %v245
    %v658 = vunpack.c.h.b16 %v245
    %v659 = vunpack.c.l.b16 %v246
    %v660 = vunpack.c.h.b16 %v246
    %v661 = vunpack.c.l.b16 %v247
    %v662 = vunpack.c.h.b16 %v247
    %v663 = vunpack.c.l.b16 %v248
    %v664 = vunpack.c.h.b16 %v248
    %v665 = vunpack.c.l.b16 %v249
    %v666 = vunpack.c.h.b16 %v249
    %v667 = vunpack.c.l.b16 %v250
    %v668 = vunpack.c.h.b16 %v250
    %v669 = vunpack.c.l.b16 %v251
    %v670 = vunpack.c.h.b16 %v251
    %v671 = vunpack.c.l.b16 %v252
    %v672 = vunpack.c.h.b16 %v252
    %v673 = vunpack.c.l.b16 %v253
    %v674 = vunpack.c.h.b16 %v253
    %v675 = vunpack.c.l.b16 %v254
    %v676 = vunpack.c.h.b16 %v254
    %v677 = vunpack.c.l.b16 %v255
    %v678 = vunpack.c.h.b16 %v255
    %v679 = vunpack.c.l.b16 %v256
    %v680 = vunpack.c.h.b16 %v256
    %v681 = vunpack.c.l.b16 %v257
    %v682 = vunpack.c.h.b16 %v257
    %v683 = vunpack.c.l.b16 %v258
    %v684 = vunpack.c.h.b16 %v258
    %v685 = vpack.c.b16 %v433, %v429
    %v686 = vpack.c.b16 %v434, %v430
    %v687 = vpack.c.b16 %v435, %v431
    %v688 = vpack.c.b16 %v436, %v432
    %v689 = vpack.c.b16 %v441, %v437
    %v690 = vpack.c.b16 %v442, %v438
    %v691 = vpack.c.b16 %v443, %v439
    %v692 = vpack.c.b16 %v444, %v440
    %v693 = vpack.c.b16 %v449, %v445
    %v694 = vpack.c.b16 %v450, %v446
    %v695 = vpack.c.b16 %v451, %v447
    %v696 = vpack.c.b16 %v452, %v448
    %v697 = vpack.c.b16 %v457, %v453
    %v698 = vpack.c.b16 %v458, %v454
    %v699 = vpack.c.b16 %v459, %v455
    %v700 = vpack.c.b16 %v460, %v456
    %v701 = vpack.c.b16 %v465, %v461
    %v702 = vpack.c.b16 %v466, %v462
    %v703 = vpack.c.b16 %v467, %v463
    %v704 = vpack.c.b16 %v468, %v464
    %v705 = vpack.c.b16 %v473, %v469
    %v706 = vpack.c.b16 %v474, %v470
    %v707 = vpack.c.b16 %v475, %v471
    %v708 = vpack.c.b16 %v476, %v472
    %v709 = vpack.c.b16 %v481, %v477
    %v710 = vpack.c.b16 %v482, %v478
    %v711 = vpack.c.b16 %v483, %v479
    %v712 = vpack.c.b16 %v484, %v480
    %v713 = vpack.c.b16 %v489, %v485
    %v714 = vpack.c.b16 %v490, %v486
    %v715 = vpack.c.b16 %v491, %v487
    %v716 = vpack.c.b16 %v492, %v488
    %v717 = vpack.c.b16 %v497, %v493
    %v718 = vpack.c.b16 %v498, %v494
    %v719 = vpack.c.b16 %v499, %v495
    %v720 = vpack.c.b16 %v500, %v496
    %v721 = vpack.c.b16 %v505, %v501
    %v722 = vpack.c.b16 %v506, %v502
    %v723 = vpack.c.b16 %v507, %v503
    %v724 = vpack.c.b16 %v508, %v504
    %v725 = vpack.c.b16 %v513, %v509
    %v726 = vpack.c.b16 %v514, %v510
    %v727 = vpack.c.b16 %v515, %v511
    %v728 = vpack.c.b16 %v516, %v512
    %v729 = vpack.c.b16 %v521, %v517
    %v730 = vpack.c.b16 %v522, %v518
    %v731 = vpack.c.b16 %v523, %v519
    %v732 = vpack.c.b16 %v524, %v520
    %v733 = vpack.c.b16 %v529, %v525
    %v734 = vpack.c.b16 %v530, %v526
    %v735 = vpack.c.b16 %v531, %v527
    %v736 = vpack.c.b16 %v532, %v528
    %v737 = vpack.c.b16 %v537, %v533
    %v738 = vpack.c.b16 %v538, %v534
    %v739 = vpack.c.b16 %v539, %v535
    %v740 = vpack.c.b16 %v540, %v536
    %v741 = vpack.c.b16 %v545, %v541
    %v742 = vpack.c.b16 %v546, %v542
    %v743 = vpack.c.b16 %v547, %v543
    %v744 = vpack.c.b16 %v548, %v544
    %v745 = vpack.c.b16 %v553, %v549
    %v746 = vpack.c.b16 %v554, %v550
    %v747 = vpack.c.b16 %v555, %v551
    %v748 = vpack.c.b16 %v556, %v552
    %v749 = vpack.c.b16 %v561, %v557
    %v750 = vpack.c.b16 %v562, %v558
    %v751 = vpack.c.b16 %v563, %v559
    %v752 = vpack.c.b16 %v564, %v560
    %v753 = vpack.c.b16 %v569, %v565
    %v754 = vpack.c.b16 %v570, %v566
    %v755 = vpack.c.b16 %v571, %v567
    %v756 = vpack.c.b16 %v572, %v568
    %v757 = vpack.c.b16 %v577, %v573
    %v758 = vpack.c.b16 %v578, %v574
    %v759 = vpack.c.b16 %v579, %v575
    %v760 = vpack.c.b16 %v580, %v576
    %v761 = vpack.c.b16 %v585, %v581
    %v762 = vpack.c.b16 %v586, %v582
    %v763 = vpack.c.b16 %v587, %v583
    %v764 = vpack.c.b16 %v588, %v584
    %v765 = vpack.c.b16 %v593, %v589
    %v766 = vpack.c.b16 %v594, %v590
    %v767 = vpack.c.b16 %v595, %v591
    %v768 = vpack.c.b16 %v596, %v592
    %v769 = vpack.c.b16 %v601, %v597
    %v770 = vpack.c.b16 %v602, %v598
    %v771 = vpack.c.b16 %v603, %v599
    %v772 = vpack.c.b16 %v604, %v600
    %v773 = vpack.c.b16 %v609, %v605
    %v774 = vpack.c.b16 %v610, %v606
    %v775 = vpack.c.b16 %v611, %v607
    %v776 = vpack.c.b16 %v612, %v608
    %v777 = vpack.c.b16 %v617, %v613
    %v778 = vpack.c.b16 %v618, %v614
    %v779 = vpack.c.b16 %v619, %v615
    %v780 = vpack.c.b16 %v620, %v616
    %v781 = vpack.c.b16 %v625, %v621
    %v782 = vpack.c.b16 %v626, %v622
    %v783 = vpack.c.b16 %v627, %v623
    %v784 = vpack.c.b16 %v628, %v624
    %v785 = vpack.c.b16 %v633, %v629
    %v786 = vpack.c.b16 %v634, %v630
    %v787 = vpack.c.b16 %v635, %v631
    %v788 = vpack.c.b16 %v636, %v632
    %v789 = vpack.c.b16 %v641, %v637
    %v790 = vpack.c.b16 %v642, %v638
    %v791 = vpack.c.b16 %v643, %v639
    %v792 = vpack.c.b16 %v644, %v640
    %v793 = vpack.c.b16 %v649, %v645
    %v794 = vpack.c.b16 %v650, %v646
    %v795 = vpack.c.b16 %v651, %v647
    %v796 = vpack.c.b16 %v652, %v648
    %v797 = vpack.c.b16 %v657, %v653
    %v798 = vpack.c.b16 %v658, %v654
    %v799 = vpack.c.b16 %v659, %v655
    %v800 = vpack.c.b16 %v660, %v656
    %v801 = vpack.c.b16 %v665, %v661
    %v802 = vpack.c.b16 %v666, %v662
    %v803 = vpack.c.b16 %v667, %v663
    %v804 = vpack.c.b16 %v668, %v664
    %v805 = vpack.c.b16 %v673, %v669
    %v806 = vpack.c.b16 %v674, %v670
    %v807 = vpack.c.b16 %v675, %v671
    %v808 = vpack.c.b16 %v676, %v672
    %v809 = vpack.c.b16 %v681, %v677
    %v810 = vpack.c.b16 %v682, %v678
    %v811 = vpack.c.b16 %v683, %v679
    %v812 = vpack.c.b16 %v684, %v680
    %941 = vmatprep.subr.bf16.mxu0 %v714
    %942 = vmatpush1.bf16.msra.mxu0 %v713
    %943 = vmatprep.subr.bf16.mxu0 %v710
    %944 = vmatpush1.bf16.msra.mxu0 %v709
    %945 = vmatprep.subr.bf16.mxu0 %v706
    %946 = vmatpush1.bf16.msra.mxu0 %v705
    %947 = vmatprep.subr.bf16.mxu0 %v702
    %948 = vmatpush1.bf16.msra.mxu0 %v701
    %949 = vmatprep.subr.bf16.mxu0 %v698
    %950 = vmatpush1.bf16.msra.mxu0 %v697
    %951 = vmatprep.subr.bf16.mxu0 %v694
    %952 = vmatpush1.bf16.msra.mxu0 %v693
    %953 = vmatprep.subr.bf16.mxu0 %v690
    %954 = vmatpush1.bf16.msra.mxu0 %v689
    %955 = vmatprep.subr.bf16.mxu0 %v686
    %956 = vmatpush1.bf16.msra.mxu0 %v685
    %957 = vmatprep.subr.bf16.mxu0 %v746
    %958 = vmatpush2.bf16.msra.mxu0 %v745
    %959 = vmatprep.subr.bf16.mxu0 %v742
    %960 = vmatpush2.bf16.msra.mxu0 %v741
    %961 = vmatprep.subr.bf16.mxu0 %v738
    %962 = vmatpush2.bf16.msra.mxu0 %v737
    %963 = vmatprep.subr.bf16.mxu0 %v734
    %964 = vmatpush2.bf16.msra.mxu0 %v733
    %965 = vmatprep.subr.bf16.mxu0 %v730
    %966 = vmatpush2.bf16.msra.mxu0 %v729
    %967 = vmatprep.subr.bf16.mxu0 %v726
    %968 = vmatpush2.bf16.msra.mxu0 %v725
    %969 = vmatprep.subr.bf16.mxu0 %v722
    %970 = vmatpush2.bf16.msra.mxu0 %v721
    %971 = vmatprep.subr.bf16.mxu0 %v718
    %972 = vmatpush2.bf16.msra.mxu0 %v717
    %973 = vmatprep.mubr.bf16.mxu0 %v294
    %974 = vmatmul.mubr.bf16.gmra.mxu0 %v293
    %v975 = vpop.f32.mrf.mxu0
    %v976 = vadd.f32 %v264, %v975
    %v977 = vpop.f32.mrf.mxu0
    %v978 = vadd.f32 %v268, %v977
    %v979 = vpop.f32.mrf.mxu0
    %v980 = vadd.f32 %v264, %v979
    %v981 = vpop.f32.mrf.mxu0
    %v982 = vadd.f32 %v268, %v981
    %983 = vdwg.mxu0
    %984 = vmatprep.subr.bf16.mxu0 %v778
    %985 = vmatpush1.bf16.msra.mxu0 %v777
    %986 = vmatprep.subr.bf16.mxu0 %v774
    %987 = vmatpush1.bf16.msra.mxu0 %v773
    %988 = vmatprep.subr.bf16.mxu0 %v770
    %989 = vmatpush1.bf16.msra.mxu0 %v769
    %990 = vmatprep.subr.bf16.mxu0 %v766
    %991 = vmatpush1.bf16.msra.mxu0 %v765
    %992 = vmatprep.subr.bf16.mxu0 %v762
    %993 = vmatpush1.bf16.msra.mxu0 %v761
    %994 = vmatprep.subr.bf16.mxu0 %v758
    %995 = vmatpush1.bf16.msra.mxu0 %v757
    %996 = vmatprep.subr.bf16.mxu0 %v754
    %997 = vmatpush1.bf16.msra.mxu0 %v753
    %998 = vmatprep.subr.bf16.mxu0 %v750
    %999 = vmatpush1.bf16.msra.mxu0 %v749
    %1000 = vmatprep.subr.bf16.mxu0 %v810
    %1001 = vmatpush2.bf16.msra.mxu0 %v809
    %1002 = vmatprep.subr.bf16.mxu0 %v806
    %1003 = vmatpush2.bf16.msra.mxu0 %v805
    %1004 = vmatprep.subr.bf16.mxu0 %v802
    %1005 = vmatpush2.bf16.msra.mxu0 %v801
    %1006 = vmatprep.subr.bf16.mxu0 %v798
    %1007 = vmatpush2.bf16.msra.mxu0 %v797
    %1008 = vmatprep.subr.bf16.mxu0 %v794
    %1009 = vmatpush2.bf16.msra.mxu0 %v793
    %1010 = vmatprep.subr.bf16.mxu0 %v790
    %1011 = vmatpush2.bf16.msra.mxu0 %v789
    %1012 = vmatprep.subr.bf16.mxu0 %v786
    %1013 = vmatpush2.bf16.msra.mxu0 %v785
    %1014 = vmatprep.subr.bf16.mxu0 %v782
    %1015 = vmatpush2.bf16.msra.mxu0 %v781
    %1016 = vmatprep.mubr.bf16.mxu0 %v296
    %1017 = vmatmul.mubr.bf16.gmra.mxu0 %v295
    %v1018 = vpop.f32.mrf.mxu0
    %v1019 = vadd.f32 %v976, %v1018
    %v1020 = vpop.f32.mrf.mxu0
    %v1021 = vadd.f32 %v978, %v1020
    %v1022 = vpop.f32.mrf.mxu0
    %v1023 = vadd.f32 %v980, %v1022
    %v1024 = vpop.f32.mrf.mxu0
    %v1025 = vadd.f32 %v982, %v1024
    %1026 = vdwg.mxu0
    %1027 = vmatprep.subr.bf16.mxu0 %v716
    %1028 = vmatpush1.bf16.msra.mxu0 %v715
    %1029 = vmatprep.subr.bf16.mxu0 %v712
    %1030 = vmatpush1.bf16.msra.mxu0 %v711
    %1031 = vmatprep.subr.bf16.mxu0 %v708
    %1032 = vmatpush1.bf16.msra.mxu0 %v707
    %1033 = vmatprep.subr.bf16.mxu0 %v704
    %1034 = vmatpush1.bf16.msra.mxu0 %v703
    %1035 = vmatprep.subr.bf16.mxu0 %v700
    %1036 = vmatpush1.bf16.msra.mxu0 %v699
    %1037 = vmatprep.subr.bf16.mxu0 %v696
    %1038 = vmatpush1.bf16.msra.mxu0 %v695
    %1039 = vmatprep.subr.bf16.mxu0 %v692
    %1040 = vmatpush1.bf16.msra.mxu0 %v691
    %1041 = vmatprep.subr.bf16.mxu0 %v688
    %1042 = vmatpush1.bf16.msra.mxu0 %v687
    %1043 = vmatprep.subr.bf16.mxu0 %v748
    %1044 = vmatpush2.bf16.msra.mxu0 %v747
    %1045 = vmatprep.subr.bf16.mxu0 %v744
    %1046 = vmatpush2.bf16.msra.mxu0 %v743
    %1047 = vmatprep.subr.bf16.mxu0 %v740
    %1048 = vmatpush2.bf16.msra.mxu0 %v739
    %1049 = vmatprep.subr.bf16.mxu0 %v736
    %1050 = vmatpush2.bf16.msra.mxu0 %v735
    %1051 = vmatprep.subr.bf16.mxu0 %v732
    %1052 = vmatpush2.bf16.msra.mxu0 %v731
    %1053 = vmatprep.subr.bf16.mxu0 %v728
    %1054 = vmatpush2.bf16.msra.mxu0 %v727
    %1055 = vmatprep.subr.bf16.mxu0 %v724
    %1056 = vmatpush2.bf16.msra.mxu0 %v723
    %1057 = vmatprep.subr.bf16.mxu0 %v720
    %1058 = vmatpush2.bf16.msra.mxu0 %v719
    %1059 = vmatprep.mubr.bf16.mxu0 %v294
    %1060 = vmatmul.mubr.bf16.gmra.mxu0 %v293
    %v1061 = vpop.f32.mrf.mxu0
    %v1062 = vadd.f32 %v272, %v1061
    %v1063 = vpop.f32.mrf.mxu0
    %v1064 = vadd.f32 %v276, %v1063
    %v1065 = vpop.f32.mrf.mxu0
    %v1066 = vadd.f32 %v272, %v1065
    %v1067 = vpop.f32.mrf.mxu0
    %v1068 = vadd.f32 %v276, %v1067
    %1069 = vdwg.mxu0
    %1070 = vmatprep.subr.bf16.mxu0 %v780
    %1071 = vmatpush1.bf16.msra.mxu0 %v779
    %1072 = vmatprep.subr.bf16.mxu0 %v776
    %1073 = vmatpush1.bf16.msra.mxu0 %v775
    %1074 = vmatprep.subr.bf16.mxu0 %v772
    %1075 = vmatpush1.bf16.msra.mxu0 %v771
    %1076 = vmatprep.subr.bf16.mxu0 %v768
    %1077 = vmatpush1.bf16.msra.mxu0 %v767
    %1078 = vmatprep.subr.bf16.mxu0 %v764
    %1079 = vmatpush1.bf16.msra.mxu0 %v763
    %1080 = vmatprep.subr.bf16.mxu0 %v760
    %1081 = vmatpush1.bf16.msra.mxu0 %v759
    %1082 = vmatprep.subr.bf16.mxu0 %v756
    %1083 = vmatpush1.bf16.msra.mxu0 %v755
    %1084 = vmatprep.subr.bf16.mxu0 %v752
    %1085 = vmatpush1.bf16.msra.mxu0 %v751
    %1086 = vmatprep.subr.bf16.mxu0 %v812
    %1087 = vmatpush2.bf16.msra.mxu0 %v811
    %1088 = vmatprep.subr.bf16.mxu0 %v808
    %1089 = vmatpush2.bf16.msra.mxu0 %v807
    %1090 = vmatprep.subr.bf16.mxu0 %v804
    %1091 = vmatpush2.bf16.msra.mxu0 %v803
    %1092 = vmatprep.subr.bf16.mxu0 %v800
    %1093 = vmatpush2.bf16.msra.mxu0 %v799
    %1094 = vmatprep.subr.bf16.mxu0 %v796
    %1095 = vmatpush2.bf16.msra.mxu0 %v795
    %1096 = vmatprep.subr.bf16.mxu0 %v792
    %1097 = vmatpush2.bf16.msra.mxu0 %v791
    %1098 = vmatprep.subr.bf16.mxu0 %v788
    %1099 = vmatpush2.bf16.msra.mxu0 %v787
    %1100 = vmatprep.subr.bf16.mxu0 %v784
    %1101 = vmatpush2.bf16.msra.mxu0 %v783
    %1102 = vmatprep.mubr.bf16.mxu0 %v296
    %1103 = vmatmul.mubr.bf16.gmra.mxu0 %v295
    %v1104 = vpop.f32.mrf.mxu0
    %v1105 = vadd.f32 %v1062, %v1104
    %v1106 = vpop.f32.mrf.mxu0
    %v1107 = vadd.f32 %v1064, %v1106
    %v1108 = vpop.f32.mrf.mxu0
    %v1109 = vadd.f32 %v1066, %v1108
    %v1110 = vpop.f32.mrf.mxu0
    %v1111 = vadd.f32 %v1068, %v1110
    %1112 = vdwg.mxu0
    %v1113 = vtanh.pop %v1019
    %v1114 = vtanh.pop %v1021
    %v1115 = vtanh.pop %v1105
    %v1116 = vtanh.pop %v1107
    %v1117 = vtanh.pop %v1023
    %v1118 = vtanh.pop %v1025
    %v1119 = vtanh.pop %v1109
    %v1120 = vtanh.pop %v1111
    %v1121 = vld [vmem:[%s3] sm:$0xff]
    %v1122 = vld [vmem:[%s3 + $0x8] sm:$0xff]
    %v1123 = vld [vmem:[%s3 + $0x10] sm:$0xff]
    %v1124 = vld [vmem:[%s3 + $0x18] sm:$0xff]
    %v1125 = vld [vmem:[%s3 + $0x20] sm:$0x33]
    %v1126 = vld [vmem:[%s3 + $0x28] sm:$0x33]
    %v1127 = vld [vmem:[#allocation8] sm:$0xff]
    %v1128 = vld [vmem:[#allocation8 + $0x8] sm:$0xff]
    %v1129 = vld [vmem:[#allocation8 + $0x10] sm:$0xff]
    %v1130 = vld [vmem:[#allocation8 + $0x18] sm:$0xff]
    %v1131 = vld [vmem:[#allocation8 + $0x20] sm:$0xff]
    %v1132 = vld [vmem:[#allocation8 + $0x28] sm:$0xff]
    %v1133 = vld [vmem:[#allocation8 + $0x30] sm:$0xff]
    %v1134 = vld [vmem:[#allocation8 + $0x38] sm:$0xff]
    %v1135 = vld [vmem:[#allocation8 + $0x40] sm:$0xff]
    %v1136 = vld [vmem:[#allocation8 + $0x48] sm:$0xff]
    %v1137 = vld [vmem:[#allocation8 + $0x50] sm:$0xff]
    %v1138 = vld [vmem:[#allocation8 + $0x58] sm:$0xff]
    %v1139 = vld [vmem:[#allocation8 + $0x60] sm:$0xff]
    %v1140 = vld [vmem:[#allocation8 + $0x68] sm:$0xff]
    %v1141 = vld [vmem:[#allocation8 + $0x70] sm:$0xff]
    %v1142 = vld [vmem:[#allocation8 + $0x78] sm:$0xff]
    %v1143 = vld [vmem:[#allocation8 + $0x80] sm:$0xff]
    %v1144 = vld [vmem:[#allocation8 + $0x88] sm:$0xff]
    %v1145 = vld [vmem:[#allocation8 + $0x90] sm:$0xff]
    %v1146 = vld [vmem:[#allocation8 + $0x98] sm:$0xff]
    %v1147 = vld [vmem:[#allocation8 + $0xa0] sm:$0xff]
    %v1148 = vld [vmem:[#allocation8 + $0xa8] sm:$0xff]
    %v1149 = vld [vmem:[#allocation8 + $0xb0] sm:$0xff]
    %v1150 = vld [vmem:[#allocation8 + $0xb8] sm:$0xff]
    %v1151 = vld [vmem:[#allocation8 + $0xc0] sm:$0xff]
    %v1152 = vld [vmem:[#allocation8 + $0xc8] sm:$0xff]
    %v1153 = vld [vmem:[#allocation8 + $0xd0] sm:$0xff]
    %v1154 = vld [vmem:[#allocation8 + $0xd8] sm:$0xff]
    %v1155 = vld [vmem:[#allocation8 + $0xe0] sm:$0xff]
    %v1156 = vld [vmem:[#allocation8 + $0xe8] sm:$0xff]
    %v1157 = vld [vmem:[#allocation8 + $0xf0] sm:$0xff]
    %v1158 = vld [vmem:[#allocation8 + $0xf8] sm:$0xff]
    %v1159 = vld [vmem:[#allocation8 + $0x100] sm:$0xff]
    %v1160 = vld [vmem:[#allocation8 + $0x108] sm:$0xff]
    %v1161 = vld [vmem:[#allocation8 + $0x110] sm:$0xff]
    %v1162 = vld [vmem:[#allocation8 + $0x118] sm:$0xff]
    %v1163 = vld [vmem:[#allocation8 + $0x120] sm:$0xff]
    %v1164 = vld [vmem:[#allocation8 + $0x128] sm:$0xff]
    %v1165 = vld [vmem:[#allocation8 + $0x130] sm:$0xff]
    %v1166 = vld [vmem:[#allocation8 + $0x138] sm:$0xff]
    %v1167 = vld [vmem:[#allocation8 + $0x140] sm:$0xff]
    %v1168 = vld [vmem:[#allocation8 + $0x148] sm:$0xff]
    %v1169 = vld [vmem:[#allocation8 + $0x150] sm:$0xff]
    %v1170 = vld [vmem:[#allocation8 + $0x158] sm:$0xff]
    %v1171 = vld [vmem:[#allocation8 + $0x160] sm:$0xff]
    %v1172 = vld [vmem:[#allocation8 + $0x168] sm:$0xff]
    %v1173 = vld [vmem:[#allocation8 + $0x170] sm:$0xff]
    %v1174 = vld [vmem:[#allocation8 + $0x178] sm:$0xff]
    %v1175 = vld [vmem:[#allocation8 + $0x180] sm:$0xff]
    %v1176 = vld [vmem:[#allocation8 + $0x188] sm:$0xff]
    %v1177 = vld [vmem:[#allocation8 + $0x190] sm:$0xff]
    %v1178 = vld [vmem:[#allocation8 + $0x198] sm:$0xff]
    %v1179 = vld [vmem:[#allocation8 + $0x1a0] sm:$0xff]
    %v1180 = vld [vmem:[#allocation8 + $0x1a8] sm:$0xff]
    %v1181 = vld [vmem:[#allocation8 + $0x1b0] sm:$0xff]
    %v1182 = vld [vmem:[#allocation8 + $0x1b8] sm:$0xff]
    %v1183 = vld [vmem:[#allocation8 + $0x1c0] sm:$0xff]
    %v1184 = vld [vmem:[#allocation8 + $0x1c8] sm:$0xff]
    %v1185 = vld [vmem:[#allocation8 + $0x1d0] sm:$0xff]
    %v1186 = vld [vmem:[#allocation8 + $0x1d8] sm:$0xff]
    %v1187 = vld [vmem:[#allocation8 + $0x1e0] sm:$0xff]
    %v1188 = vld [vmem:[#allocation8 + $0x1e8] sm:$0xff]
    %v1189 = vld [vmem:[#allocation8 + $0x1f0] sm:$0xff]
    %v1190 = vld [vmem:[#allocation8 + $0x1f8] sm:$0xff]
    %v1191 = vld [vmem:[#allocation8 + $0x200] sm:$0xff]
    %v1192 = vld [vmem:[#allocation8 + $0x208] sm:$0xff]
    %v1193 = vld [vmem:[#allocation8 + $0x210] sm:$0xff]
    %v1194 = vld [vmem:[#allocation8 + $0x218] sm:$0xff]
    %v1195 = vld [vmem:[#allocation8 + $0x220] sm:$0xff]
    %v1196 = vld [vmem:[#allocation8 + $0x228] sm:$0xff]
    %v1197 = vld [vmem:[#allocation8 + $0x230] sm:$0xff]
    %v1198 = vld [vmem:[#allocation8 + $0x238] sm:$0xff]
    %v1199 = vld [vmem:[#allocation8 + $0x240] sm:$0xff]
    %v1200 = vld [vmem:[#allocation8 + $0x248] sm:$0xff]
    %v1201 = vld [vmem:[#allocation8 + $0x250] sm:$0xff]
    %v1202 = vld [vmem:[#allocation8 + $0x258] sm:$0xff]
    %v1203 = vld [vmem:[#allocation8 + $0x260] sm:$0xff]
    %v1204 = vld [vmem:[#allocation8 + $0x268] sm:$0xff]
    %v1205 = vld [vmem:[#allocation8 + $0x270] sm:$0xff]
    %v1206 = vld [vmem:[#allocation8 + $0x278] sm:$0xff]
    %v1207 = vld [vmem:[#allocation8 + $0x280] sm:$0xff]
    %v1208 = vld [vmem:[#allocation8 + $0x288] sm:$0xff]
    %v1209 = vld [vmem:[#allocation8 + $0x290] sm:$0xff]
    %v1210 = vld [vmem:[#allocation8 + $0x298] sm:$0xff]
    %v1211 = vld [vmem:[#allocation8 + $0x2a0] sm:$0xff]
    %v1212 = vld [vmem:[#allocation8 + $0x2a8] sm:$0xff]
    %v1213 = vld [vmem:[#allocation8 + $0x2b0] sm:$0xff]
    %v1214 = vld [vmem:[#allocation8 + $0x2b8] sm:$0xff]
    %v1215 = vld [vmem:[#allocation8 + $0x2c0] sm:$0xff]
    %v1216 = vld [vmem:[#allocation8 + $0x2c8] sm:$0xff]
    %v1217 = vld [vmem:[#allocation8 + $0x2d0] sm:$0xff]
    %v1218 = vld [vmem:[#allocation8 + $0x2d8] sm:$0xff]
    %v1219 = vld [vmem:[#allocation8 + $0x2e0] sm:$0xff]
    %v1220 = vld [vmem:[#allocation8 + $0x2e8] sm:$0xff]
    %v1221 = vld [vmem:[#allocation8 + $0x2f0] sm:$0xff]
    %v1222 = vld [vmem:[#allocation8 + $0x2f8] sm:$0xff]
    %v1223 = vld [vmem:[#allocation8 + $0x300] sm:$0xff]
    %v1224 = vld [vmem:[#allocation8 + $0x308] sm:$0xff]
    %v1225 = vld [vmem:[#allocation8 + $0x310] sm:$0xff]
    %v1226 = vld [vmem:[#allocation8 + $0x318] sm:$0xff]
    %v1227 = vld [vmem:[#allocation8 + $0x320] sm:$0xff]
    %v1228 = vld [vmem:[#allocation8 + $0x328] sm:$0xff]
    %v1229 = vld [vmem:[#allocation8 + $0x330] sm:$0xff]
    %v1230 = vld [vmem:[#allocation8 + $0x338] sm:$0xff]
    %v1231 = vld [vmem:[#allocation8 + $0x340] sm:$0xff]
    %v1232 = vld [vmem:[#allocation8 + $0x348] sm:$0xff]
    %v1233 = vld [vmem:[#allocation8 + $0x350] sm:$0xff]
    %v1234 = vld [vmem:[#allocation8 + $0x358] sm:$0xff]
    %v1235 = vld [vmem:[#allocation8 + $0x360] sm:$0xff]
    %v1236 = vld [vmem:[#allocation8 + $0x368] sm:$0xff]
    %v1237 = vld [vmem:[#allocation8 + $0x370] sm:$0xff]
    %v1238 = vld [vmem:[#allocation8 + $0x378] sm:$0xff]
    %v1239 = vld [vmem:[#allocation8 + $0x380] sm:$0xff]
    %v1240 = vld [vmem:[#allocation8 + $0x388] sm:$0xff]
    %v1241 = vld [vmem:[#allocation8 + $0x390] sm:$0xff]
    %v1242 = vld [vmem:[#allocation8 + $0x398] sm:$0xff]
    %v1243 = vld [vmem:[#allocation8 + $0x3a0] sm:$0xff]
    %v1244 = vld [vmem:[#allocation8 + $0x3a8] sm:$0xff]
    %v1245 = vld [vmem:[#allocation8 + $0x3b0] sm:$0xff]
    %v1246 = vld [vmem:[#allocation8 + $0x3b8] sm:$0xff]
    %v1247 = vld [vmem:[#allocation8 + $0x3c0] sm:$0xff]
    %v1248 = vld [vmem:[#allocation8 + $0x3c8] sm:$0xff]
    %v1249 = vld [vmem:[#allocation8 + $0x3d0] sm:$0xff]
    %v1250 = vld [vmem:[#allocation8 + $0x3d8] sm:$0xff]
    %v1251 = vld [vmem:[#allocation8 + $0x3e0] sm:$0xff]
    %v1252 = vld [vmem:[#allocation8 + $0x3e8] sm:$0xff]
    %v1253 = vld [vmem:[#allocation8 + $0x3f0] sm:$0xff]
    %v1254 = vld [vmem:[#allocation8 + $0x3f8] sm:$0xff]
    %v1255 = vld [vmem:[%s8] sm:$0xf]
    %v1257 = vlaneseq
    %v1258 = vshrl.u32 %v1257, 7
    %v1259 = vsub.s32 0, %v1258
    %v1260 = vrot.slane %v1255, %v1259
    %v1261 = vlaneseq
    %v1262 = vshrl.u32 %v1261, 7
    %v1263 = vsub.s32 1, %v1262
    %v1264 = vrot.slane %v1255, %v1263
    %v1265 = vlaneseq
    %v1266 = vshrl.u32 %v1265, 7
    %v1267 = vsub.s32 2, %v1266
    %v1268 = vrot.slane %v1255, %v1267
    %v1269 = vlaneseq
    %v1270 = vshrl.u32 %v1269, 7
    %v1271 = vsub.s32 3, %v1270
    %v1272 = vrot.slane %v1255, %v1271
    %v1283 = vunpack.c.l.b16 %v1121
    %v1284 = vunpack.c.h.b16 %v1121
    %v1285 = vunpack.c.l.b16 %v1122
    %v1286 = vunpack.c.h.b16 %v1122
    %v1287 = vunpack.c.l.b16 %v1123
    %v1288 = vunpack.c.h.b16 %v1123
    %v1289 = vunpack.c.l.b16 %v1124
    %v1290 = vunpack.c.h.b16 %v1124
    %v1291 = vunpack.c.l.b16 %v1125
    %v1292 = vunpack.c.h.b16 %v1125
    %v1293 = vunpack.c.l.b16 %v1126
    %v1294 = vunpack.c.h.b16 %v1126
    %v1295 = vpack.c.b16 %v1287, %v1283
    %v1296 = vpack.c.b16 %v1288, %v1284
    %v1297 = vpack.c.b16 %v1289, %v1285
    %v1298 = vpack.c.b16 %v1290, %v1286
    %v1299 = vpack.c.b16 %v1291, %v1291
    %v1300 = vpack.c.b16 %v1292, %v1292
    %v1301 = vpack.c.b16 %v1293, %v1293
    %v1302 = vpack.c.b16 %v1294, %v1294
    %v1439 = vunpack.c.l.b16 %v1127
    %v1440 = vunpack.c.h.b16 %v1127
    %v1441 = vunpack.c.l.b16 %v1128
    %v1442 = vunpack.c.h.b16 %v1128
    %v1443 = vunpack.c.l.b16 %v1129
    %v1444 = vunpack.c.h.b16 %v1129
    %v1445 = vunpack.c.l.b16 %v1130
    %v1446 = vunpack.c.h.b16 %v1130
    %v1447 = vunpack.c.l.b16 %v1131
    %v1448 = vunpack.c.h.b16 %v1131
    %v1449 = vunpack.c.l.b16 %v1132
    %v1450 = vunpack.c.h.b16 %v1132
    %v1451 = vunpack.c.l.b16 %v1133
    %v1452 = vunpack.c.h.b16 %v1133
    %v1453 = vunpack.c.l.b16 %v1134
    %v1454 = vunpack.c.h.b16 %v1134
    %v1455 = vunpack.c.l.b16 %v1135
    %v1456 = vunpack.c.h.b16 %v1135
    %v1457 = vunpack.c.l.b16 %v1136
    %v1458 = vunpack.c.h.b16 %v1136
    %v1459 = vunpack.c.l.b16 %v1137
    %v1460 = vunpack.c.h.b16 %v1137
    %v1461 = vunpack.c.l.b16 %v1138
    %v1462 = vunpack.c.h.b16 %v1138
    %v1463 = vunpack.c.l.b16 %v1139
    %v1464 = vunpack.c.h.b16 %v1139
    %v1465 = vunpack.c.l.b16 %v1140
    %v1466 = vunpack.c.h.b16 %v1140
    %v1467 = vunpack.c.l.b16 %v1141
    %v1468 = vunpack.c.h.b16 %v1141
    %v1469 = vunpack.c.l.b16 %v1142
    %v1470 = vunpack.c.h.b16 %v1142
    %v1471 = vunpack.c.l.b16 %v1143
    %v1472 = vunpack.c.h.b16 %v1143
    %v1473 = vunpack.c.l.b16 %v1144
    %v1474 = vunpack.c.h.b16 %v1144
    %v1475 = vunpack.c.l.b16 %v1145
    %v1476 = vunpack.c.h.b16 %v1145
    %v1477 = vunpack.c.l.b16 %v1146
    %v1478 = vunpack.c.h.b16 %v1146
    %v1479 = vunpack.c.l.b16 %v1147
    %v1480 = vunpack.c.h.b16 %v1147
    %v1481 = vunpack.c.l.b16 %v1148
    %v1482 = vunpack.c.h.b16 %v1148
    %v1483 = vunpack.c.l.b16 %v1149
    %v1484 = vunpack.c.h.b16 %v1149
    %v1485 = vunpack.c.l.b16 %v1150
    %v1486 = vunpack.c.h.b16 %v1150
    %v1487 = vunpack.c.l.b16 %v1151
    %v1488 = vunpack.c.h.b16 %v1151
    %v1489 = vunpack.c.l.b16 %v1152
    %v1490 = vunpack.c.h.b16 %v1152
    %v1491 = vunpack.c.l.b16 %v1153
    %v1492 = vunpack.c.h.b16 %v1153
    %v1493 = vunpack.c.l.b16 %v1154
    %v1494 = vunpack.c.h.b16 %v1154
    %v1495 = vunpack.c.l.b16 %v1155
    %v1496 = vunpack.c.h.b16 %v1155
    %v1497 = vunpack.c.l.b16 %v1156
    %v1498 = vunpack.c.h.b16 %v1156
    %v1499 = vunpack.c.l.b16 %v1157
    %v1500 = vunpack.c.h.b16 %v1157
    %v1501 = vunpack.c.l.b16 %v1158
    %v1502 = vunpack.c.h.b16 %v1158
    %v1503 = vunpack.c.l.b16 %v1159
    %v1504 = vunpack.c.h.b16 %v1159
    %v1505 = vunpack.c.l.b16 %v1160
    %v1506 = vunpack.c.h.b16 %v1160
    %v1507 = vunpack.c.l.b16 %v1161
    %v1508 = vunpack.c.h.b16 %v1161
    %v1509 = vunpack.c.l.b16 %v1162
    %v1510 = vunpack.c.h.b16 %v1162
    %v1511 = vunpack.c.l.b16 %v1163
    %v1512 = vunpack.c.h.b16 %v1163
    %v1513 = vunpack.c.l.b16 %v1164
    %v1514 = vunpack.c.h.b16 %v1164
    %v1515 = vunpack.c.l.b16 %v1165
    %v1516 = vunpack.c.h.b16 %v1165
    %v1517 = vunpack.c.l.b16 %v1166
    %v1518 = vunpack.c.h.b16 %v1166
    %v1519 = vunpack.c.l.b16 %v1167
    %v1520 = vunpack.c.h.b16 %v1167
    %v1521 = vunpack.c.l.b16 %v1168
    %v1522 = vunpack.c.h.b16 %v1168
    %v1523 = vunpack.c.l.b16 %v1169
    %v1524 = vunpack.c.h.b16 %v1169
    %v1525 = vunpack.c.l.b16 %v1170
    %v1526 = vunpack.c.h.b16 %v1170
    %v1527 = vunpack.c.l.b16 %v1171
    %v1528 = vunpack.c.h.b16 %v1171
    %v1529 = vunpack.c.l.b16 %v1172
    %v1530 = vunpack.c.h.b16 %v1172
    %v1531 = vunpack.c.l.b16 %v1173
    %v1532 = vunpack.c.h.b16 %v1173
    %v1533 = vunpack.c.l.b16 %v1174
    %v1534 = vunpack.c.h.b16 %v1174
    %v1535 = vunpack.c.l.b16 %v1175
    %v1536 = vunpack.c.h.b16 %v1175
    %v1537 = vunpack.c.l.b16 %v1176
    %v1538 = vunpack.c.h.b16 %v1176
    %v1539 = vunpack.c.l.b16 %v1177
    %v1540 = vunpack.c.h.b16 %v1177
    %v1541 = vunpack.c.l.b16 %v1178
    %v1542 = vunpack.c.h.b16 %v1178
    %v1543 = vunpack.c.l.b16 %v1179
    %v1544 = vunpack.c.h.b16 %v1179
    %v1545 = vunpack.c.l.b16 %v1180
    %v1546 = vunpack.c.h.b16 %v1180
    %v1547 = vunpack.c.l.b16 %v1181
    %v1548 = vunpack.c.h.b16 %v1181
    %v1549 = vunpack.c.l.b16 %v1182
    %v1550 = vunpack.c.h.b16 %v1182
    %v1551 = vunpack.c.l.b16 %v1183
    %v1552 = vunpack.c.h.b16 %v1183
    %v1553 = vunpack.c.l.b16 %v1184
    %v1554 = vunpack.c.h.b16 %v1184
    %v1555 = vunpack.c.l.b16 %v1185
    %v1556 = vunpack.c.h.b16 %v1185
    %v1557 = vunpack.c.l.b16 %v1186
    %v1558 = vunpack.c.h.b16 %v1186
    %v1559 = vunpack.c.l.b16 %v1187
    %v1560 = vunpack.c.h.b16 %v1187
    %v1561 = vunpack.c.l.b16 %v1188
    %v1562 = vunpack.c.h.b16 %v1188
    %v1563 = vunpack.c.l.b16 %v1189
    %v1564 = vunpack.c.h.b16 %v1189
    %v1565 = vunpack.c.l.b16 %v1190
    %v1566 = vunpack.c.h.b16 %v1190
    %v1567 = vunpack.c.l.b16 %v1191
    %v1568 = vunpack.c.h.b16 %v1191
    %v1569 = vunpack.c.l.b16 %v1192
    %v1570 = vunpack.c.h.b16 %v1192
    %v1571 = vunpack.c.l.b16 %v1193
    %v1572 = vunpack.c.h.b16 %v1193
    %v1573 = vunpack.c.l.b16 %v1194
    %v1574 = vunpack.c.h.b16 %v1194
    %v1575 = vunpack.c.l.b16 %v1195
    %v1576 = vunpack.c.h.b16 %v1195
    %v1577 = vunpack.c.l.b16 %v1196
    %v1578 = vunpack.c.h.b16 %v1196
    %v1579 = vunpack.c.l.b16 %v1197
    %v1580 = vunpack.c.h.b16 %v1197
    %v1581 = vunpack.c.l.b16 %v1198
    %v1582 = vunpack.c.h.b16 %v1198
    %v1583 = vunpack.c.l.b16 %v1199
    %v1584 = vunpack.c.h.b16 %v1199
    %v1585 = vunpack.c.l.b16 %v1200
    %v1586 = vunpack.c.h.b16 %v1200
    %v1587 = vunpack.c.l.b16 %v1201
    %v1588 = vunpack.c.h.b16 %v1201
    %v1589 = vunpack.c.l.b16 %v1202
    %v1590 = vunpack.c.h.b16 %v1202
    %v1591 = vunpack.c.l.b16 %v1203
    %v1592 = vunpack.c.h.b16 %v1203
    %v1593 = vunpack.c.l.b16 %v1204
    %v1594 = vunpack.c.h.b16 %v1204
    %v1595 = vunpack.c.l.b16 %v1205
    %v1596 = vunpack.c.h.b16 %v1205
    %v1597 = vunpack.c.l.b16 %v1206
    %v1598 = vunpack.c.h.b16 %v1206
    %v1599 = vunpack.c.l.b16 %v1207
    %v1600 = vunpack.c.h.b16 %v1207
    %v1601 = vunpack.c.l.b16 %v1208
    %v1602 = vunpack.c.h.b16 %v1208
    %v1603 = vunpack.c.l.b16 %v1209
    %v1604 = vunpack.c.h.b16 %v1209
    %v1605 = vunpack.c.l.b16 %v1210
    %v1606 = vunpack.c.h.b16 %v1210
    %v1607 = vunpack.c.l.b16 %v1211
    %v1608 = vunpack.c.h.b16 %v1211
    %v1609 = vunpack.c.l.b16 %v1212
    %v1610 = vunpack.c.h.b16 %v1212
    %v1611 = vunpack.c.l.b16 %v1213
    %v1612 = vunpack.c.h.b16 %v1213
    %v1613 = vunpack.c.l.b16 %v1214
    %v1614 = vunpack.c.h.b16 %v1214
    %v1615 = vunpack.c.l.b16 %v1215
    %v1616 = vunpack.c.h.b16 %v1215
    %v1617 = vunpack.c.l.b16 %v1216
    %v1618 = vunpack.c.h.b16 %v1216
    %v1619 = vunpack.c.l.b16 %v1217
    %v1620 = vunpack.c.h.b16 %v1217
    %v1621 = vunpack.c.l.b16 %v1218
    %v1622 = vunpack.c.h.b16 %v1218
    %v1623 = vunpack.c.l.b16 %v1219
    %v1624 = vunpack.c.h.b16 %v1219
    %v1625 = vunpack.c.l.b16 %v1220
    %v1626 = vunpack.c.h.b16 %v1220
    %v1627 = vunpack.c.l.b16 %v1221
    %v1628 = vunpack.c.h.b16 %v1221
    %v1629 = vunpack.c.l.b16 %v1222
    %v1630 = vunpack.c.h.b16 %v1222
    %v1631 = vunpack.c.l.b16 %v1223
    %v1632 = vunpack.c.h.b16 %v1223
    %v1633 = vunpack.c.l.b16 %v1224
    %v1634 = vunpack.c.h.b16 %v1224
    %v1635 = vunpack.c.l.b16 %v1225
    %v1636 = vunpack.c.h.b16 %v1225
    %v1637 = vunpack.c.l.b16 %v1226
    %v1638 = vunpack.c.h.b16 %v1226
    %v1639 = vunpack.c.l.b16 %v1227
    %v1640 = vunpack.c.h.b16 %v1227
    %v1641 = vunpack.c.l.b16 %v1228
    %v1642 = vunpack.c.h.b16 %v1228
    %v1643 = vunpack.c.l.b16 %v1229
    %v1644 = vunpack.c.h.b16 %v1229
    %v1645 = vunpack.c.l.b16 %v1230
    %v1646 = vunpack.c.h.b16 %v1230
    %v1647 = vunpack.c.l.b16 %v1231
    %v1648 = vunpack.c.h.b16 %v1231
    %v1649 = vunpack.c.l.b16 %v1232
    %v1650 = vunpack.c.h.b16 %v1232
    %v1651 = vunpack.c.l.b16 %v1233
    %v1652 = vunpack.c.h.b16 %v1233
    %v1653 = vunpack.c.l.b16 %v1234
    %v1654 = vunpack.c.h.b16 %v1234
    %v1655 = vunpack.c.l.b16 %v1235
    %v1656 = vunpack.c.h.b16 %v1235
    %v1657 = vunpack.c.l.b16 %v1236
    %v1658 = vunpack.c.h.b16 %v1236
    %v1659 = vunpack.c.l.b16 %v1237
    %v1660 = vunpack.c.h.b16 %v1237
    %v1661 = vunpack.c.l.b16 %v1238
    %v1662 = vunpack.c.h.b16 %v1238
    %v1663 = vunpack.c.l.b16 %v1239
    %v1664 = vunpack.c.h.b16 %v1239
    %v1665 = vunpack.c.l.b16 %v1240
    %v1666 = vunpack.c.h.b16 %v1240
    %v1667 = vunpack.c.l.b16 %v1241
    %v1668 = vunpack.c.h.b16 %v1241
    %v1669 = vunpack.c.l.b16 %v1242
    %v1670 = vunpack.c.h.b16 %v1242
    %v1671 = vunpack.c.l.b16 %v1243
    %v1672 = vunpack.c.h.b16 %v1243
    %v1673 = vunpack.c.l.b16 %v1244
    %v1674 = vunpack.c.h.b16 %v1244
    %v1675 = vunpack.c.l.b16 %v1245
    %v1676 = vunpack.c.h.b16 %v1245
    %v1677 = vunpack.c.l.b16 %v1246
    %v1678 = vunpack.c.h.b16 %v1246
    %v1679 = vunpack.c.l.b16 %v1247
    %v1680 = vunpack.c.h.b16 %v1247
    %v1681 = vunpack.c.l.b16 %v1248
    %v1682 = vunpack.c.h.b16 %v1248
    %v1683 = vunpack.c.l.b16 %v1249
    %v1684 = vunpack.c.h.b16 %v1249
    %v1685 = vunpack.c.l.b16 %v1250
    %v1686 = vunpack.c.h.b16 %v1250
    %v1687 = vunpack.c.l.b16 %v1251
    %v1688 = vunpack.c.h.b16 %v1251
    %v1689 = vunpack.c.l.b16 %v1252
    %v1690 = vunpack.c.h.b16 %v1252
    %v1691 = vunpack.c.l.b16 %v1253
    %v1692 = vunpack.c.h.b16 %v1253
    %v1693 = vunpack.c.l.b16 %v1254
    %v1694 = vunpack.c.h.b16 %v1254
    %v1695 = vpack.c.b16 %v1443, %v1439
    %v1696 = vpack.c.b16 %v1444, %v1440
    %v1697 = vpack.c.b16 %v1445, %v1441
    %v1698 = vpack.c.b16 %v1446, %v1442
    %v1699 = vpack.c.b16 %v1451, %v1447
    %v1700 = vpack.c.b16 %v1452, %v1448
    %v1701 = vpack.c.b16 %v1453, %v1449
    %v1702 = vpack.c.b16 %v1454, %v1450
    %v1703 = vpack.c.b16 %v1459, %v1455
    %v1704 = vpack.c.b16 %v1460, %v1456
    %v1705 = vpack.c.b16 %v1461, %v1457
    %v1706 = vpack.c.b16 %v1462, %v1458
    %v1707 = vpack.c.b16 %v1467, %v1463
    %v1708 = vpack.c.b16 %v1468, %v1464
    %v1709 = vpack.c.b16 %v1469, %v1465
    %v1710 = vpack.c.b16 %v1470, %v1466
    %v1711 = vpack.c.b16 %v1475, %v1471
    %v1712 = vpack.c.b16 %v1476, %v1472
    %v1713 = vpack.c.b16 %v1477, %v1473
    %v1714 = vpack.c.b16 %v1478, %v1474
    %v1715 = vpack.c.b16 %v1483, %v1479
    %v1716 = vpack.c.b16 %v1484, %v1480
    %v1717 = vpack.c.b16 %v1485, %v1481
    %v1718 = vpack.c.b16 %v1486, %v1482
    %v1719 = vpack.c.b16 %v1491, %v1487
    %v1720 = vpack.c.b16 %v1492, %v1488
    %v1721 = vpack.c.b16 %v1493, %v1489
    %v1722 = vpack.c.b16 %v1494, %v1490
    %v1723 = vpack.c.b16 %v1499, %v1495
    %v1724 = vpack.c.b16 %v1500, %v1496
    %v1725 = vpack.c.b16 %v1501, %v1497
    %v1726 = vpack.c.b16 %v1502, %v1498
    %v1727 = vpack.c.b16 %v1507, %v1503
    %v1728 = vpack.c.b16 %v1508, %v1504
    %v1729 = vpack.c.b16 %v1509, %v1505
    %v1730 = vpack.c.b16 %v1510, %v1506
    %v1731 = vpack.c.b16 %v1515, %v1511
    %v1732 = vpack.c.b16 %v1516, %v1512
    %v1733 = vpack.c.b16 %v1517, %v1513
    %v1734 = vpack.c.b16 %v1518, %v1514
    %v1735 = vpack.c.b16 %v1523, %v1519
    %v1736 = vpack.c.b16 %v1524, %v1520
    %v1737 = vpack.c.b16 %v1525, %v1521
    %v1738 = vpack.c.b16 %v1526, %v1522
    %v1739 = vpack.c.b16 %v1531, %v1527
    %v1740 = vpack.c.b16 %v1532, %v1528
    %v1741 = vpack.c.b16 %v1533, %v1529
    %v1742 = vpack.c.b16 %v1534, %v1530
    %v1743 = vpack.c.b16 %v1539, %v1535
    %v1744 = vpack.c.b16 %v1540, %v1536
    %v1745 = vpack.c.b16 %v1541, %v1537
    %v1746 = vpack.c.b16 %v1542, %v1538
    %v1747 = vpack.c.b16 %v1547, %v1543
    %v1748 = vpack.c.b16 %v1548, %v1544
    %v1749 = vpack.c.b16 %v1549, %v1545
    %v1750 = vpack.c.b16 %v1550, %v1546
    %v1751 = vpack.c.b16 %v1555, %v1551
    %v1752 = vpack.c.b16 %v1556, %v1552
    %v1753 = vpack.c.b16 %v1557, %v1553
    %v1754 = vpack.c.b16 %v1558, %v1554
    %v1755 = vpack.c.b16 %v1563, %v1559
    %v1756 = vpack.c.b16 %v1564, %v1560
    %v1757 = vpack.c.b16 %v1565, %v1561
    %v1758 = vpack.c.b16 %v1566, %v1562
    %v1759 = vpack.c.b16 %v1571, %v1567
    %v1760 = vpack.c.b16 %v1572, %v1568
    %v1761 = vpack.c.b16 %v1573, %v1569
    %v1762 = vpack.c.b16 %v1574, %v1570
    %v1763 = vpack.c.b16 %v1579, %v1575
    %v1764 = vpack.c.b16 %v1580, %v1576
    %v1765 = vpack.c.b16 %v1581, %v1577
    %v1766 = vpack.c.b16 %v1582, %v1578
    %v1767 = vpack.c.b16 %v1587, %v1583
    %v1768 = vpack.c.b16 %v1588, %v1584
    %v1769 = vpack.c.b16 %v1589, %v1585
    %v1770 = vpack.c.b16 %v1590, %v1586
    %v1771 = vpack.c.b16 %v1595, %v1591
    %v1772 = vpack.c.b16 %v1596, %v1592
    %v1773 = vpack.c.b16 %v1597, %v1593
    %v1774 = vpack.c.b16 %v1598, %v1594
    %v1775 = vpack.c.b16 %v1603, %v1599
    %v1776 = vpack.c.b16 %v1604, %v1600
    %v1777 = vpack.c.b16 %v1605, %v1601
    %v1778 = vpack.c.b16 %v1606, %v1602
    %v1779 = vpack.c.b16 %v1611, %v1607
    %v1780 = vpack.c.b16 %v1612, %v1608
    %v1781 = vpack.c.b16 %v1613, %v1609
    %v1782 = vpack.c.b16 %v1614, %v1610
    %v1783 = vpack.c.b16 %v1619, %v1615
    %v1784 = vpack.c.b16 %v1620, %v1616
    %v1785 = vpack.c.b16 %v1621, %v1617
    %v1786 = vpack.c.b16 %v1622, %v1618
    %v1787 = vpack.c.b16 %v1627, %v1623
    %v1788 = vpack.c.b16 %v1628, %v1624
    %v1789 = vpack.c.b16 %v1629, %v1625
    %v1790 = vpack.c.b16 %v1630, %v1626
    %v1791 = vpack.c.b16 %v1635, %v1631
    %v1792 = vpack.c.b16 %v1636, %v1632
    %v1793 = vpack.c.b16 %v1637, %v1633
    %v1794 = vpack.c.b16 %v1638, %v1634
    %v1795 = vpack.c.b16 %v1643, %v1639
    %v1796 = vpack.c.b16 %v1644, %v1640
    %v1797 = vpack.c.b16 %v1645, %v1641
    %v1798 = vpack.c.b16 %v1646, %v1642
    %v1799 = vpack.c.b16 %v1651, %v1647
    %v1800 = vpack.c.b16 %v1652, %v1648
    %v1801 = vpack.c.b16 %v1653, %v1649
    %v1802 = vpack.c.b16 %v1654, %v1650
    %v1803 = vpack.c.b16 %v1659, %v1655
    %v1804 = vpack.c.b16 %v1660, %v1656
    %v1805 = vpack.c.b16 %v1661, %v1657
    %v1806 = vpack.c.b16 %v1662, %v1658
    %v1807 = vpack.c.b16 %v1667, %v1663
    %v1808 = vpack.c.b16 %v1668, %v1664
    %v1809 = vpack.c.b16 %v1669, %v1665
    %v1810 = vpack.c.b16 %v1670, %v1666
    %v1811 = vpack.c.b16 %v1675, %v1671
    %v1812 = vpack.c.b16 %v1676, %v1672
    %v1813 = vpack.c.b16 %v1677, %v1673
    %v1814 = vpack.c.b16 %v1678, %v1674
    %v1815 = vpack.c.b16 %v1683, %v1679
    %v1816 = vpack.c.b16 %v1684, %v1680
    %v1817 = vpack.c.b16 %v1685, %v1681
    %v1818 = vpack.c.b16 %v1686, %v1682
    %v1819 = vpack.c.b16 %v1691, %v1687
    %v1820 = vpack.c.b16 %v1692, %v1688
    %v1821 = vpack.c.b16 %v1693, %v1689
    %v1822 = vpack.c.b16 %v1694, %v1690
    %1951 = vmatprep.subr.bf16.mxu0 %v1724
    %1952 = vmatpush1.bf16.msra.mxu0 %v1723
    %1953 = vmatprep.subr.bf16.mxu0 %v1720
    %1954 = vmatpush1.bf16.msra.mxu0 %v1719
    %1955 = vmatprep.subr.bf16.mxu0 %v1716
    %1956 = vmatpush1.bf16.msra.mxu0 %v1715
    %1957 = vmatprep.subr.bf16.mxu0 %v1712
    %1958 = vmatpush1.bf16.msra.mxu0 %v1711
    %1959 = vmatprep.subr.bf16.mxu0 %v1708
    %1960 = vmatpush1.bf16.msra.mxu0 %v1707
    %1961 = vmatprep.subr.bf16.mxu0 %v1704
    %1962 = vmatpush1.bf16.msra.mxu0 %v1703
    %1963 = vmatprep.subr.bf16.mxu0 %v1700
    %1964 = vmatpush1.bf16.msra.mxu0 %v1699
    %1965 = vmatprep.subr.bf16.mxu0 %v1696
    %1966 = vmatpush1.bf16.msra.mxu0 %v1695
    %1967 = vmatprep.subr.bf16.mxu0 %v1756
    %1968 = vmatpush2.bf16.msra.mxu0 %v1755
    %1969 = vmatprep.subr.bf16.mxu0 %v1752
    %1970 = vmatpush2.bf16.msra.mxu0 %v1751
    %1971 = vmatprep.subr.bf16.mxu0 %v1748
    %1972 = vmatpush2.bf16.msra.mxu0 %v1747
    %1973 = vmatprep.subr.bf16.mxu0 %v1744
    %1974 = vmatpush2.bf16.msra.mxu0 %v1743
    %1975 = vmatprep.subr.bf16.mxu0 %v1740
    %1976 = vmatpush2.bf16.msra.mxu0 %v1739
    %1977 = vmatprep.subr.bf16.mxu0 %v1736
    %1978 = vmatpush2.bf16.msra.mxu0 %v1735
    %1979 = vmatprep.subr.bf16.mxu0 %v1732
    %1980 = vmatpush2.bf16.msra.mxu0 %v1731
    %1981 = vmatprep.subr.bf16.mxu0 %v1728
    %1982 = vmatpush2.bf16.msra.mxu0 %v1727
    %1983 = vmatprep.mubr.bf16.mxu0 %v1296
    %1984 = vmatmul.mubr.bf16.gmra.mxu0 %v1295
    %v1985 = vpop.f32.mrf.mxu0
    %v1986 = vadd.f32 %v1260, %v1985
    %v1987 = vpop.f32.mrf.mxu0
    %v1988 = vadd.f32 %v1264, %v1987
    %v1989 = vpop.f32.mrf.mxu0
    %v1990 = vadd.f32 %v1260, %v1989
    %v1991 = vpop.f32.mrf.mxu0
    %v1992 = vadd.f32 %v1264, %v1991
    %1993 = vmatprep.mubr.bf16.mxu0 %v1300
    %1994 = vmatmul.mubr.bf16.gmra.mxu0 %v1299
    %v1995 = vpop.f32.mrf.mxu0
    %v1996 = vadd.f32 %v1260, %v1995
    %v1997 = vpop.f32.mrf.mxu0
    %v1998 = vadd.f32 %v1264, %v1997
    %v1999 = vpop.f32.mrf.mxu0
    %v2000 = vpop.f32.mrf.mxu0
    %2001 = vdwg.mxu0
    %2002 = vmatprep.subr.bf16.mxu0 %v1788
    %2003 = vmatpush1.bf16.msra.mxu0 %v1787
    %2004 = vmatprep.subr.bf16.mxu0 %v1784
    %2005 = vmatpush1.bf16.msra.mxu0 %v1783
    %2006 = vmatprep.subr.bf16.mxu0 %v1780
    %2007 = vmatpush1.bf16.msra.mxu0 %v1779
    %2008 = vmatprep.subr.bf16.mxu0 %v1776
    %2009 = vmatpush1.bf16.msra.mxu0 %v1775
    %2010 = vmatprep.subr.bf16.mxu0 %v1772
    %2011 = vmatpush1.bf16.msra.mxu0 %v1771
    %2012 = vmatprep.subr.bf16.mxu0 %v1768
    %2013 = vmatpush1.bf16.msra.mxu0 %v1767
    %2014 = vmatprep.subr.bf16.mxu0 %v1764
    %2015 = vmatpush1.bf16.msra.mxu0 %v1763
    %2016 = vmatprep.subr.bf16.mxu0 %v1760
    %2017 = vmatpush1.bf16.msra.mxu0 %v1759
    %2018 = vmatprep.subr.bf16.mxu0 %v1820
    %2019 = vmatpush2.bf16.msra.mxu0 %v1819
    %2020 = vmatprep.subr.bf16.mxu0 %v1816
    %2021 = vmatpush2.bf16.msra.mxu0 %v1815
    %2022 = vmatprep.subr.bf16.mxu0 %v1812
    %2023 = vmatpush2.bf16.msra.mxu0 %v1811
    %2024 = vmatprep.subr.bf16.mxu0 %v1808
    %2025 = vmatpush2.bf16.msra.mxu0 %v1807
    %2026 = vmatprep.subr.bf16.mxu0 %v1804
    %2027 = vmatpush2.bf16.msra.mxu0 %v1803
    %2028 = vmatprep.subr.bf16.mxu0 %v1800
    %2029 = vmatpush2.bf16.msra.mxu0 %v1799
    %2030 = vmatprep.subr.bf16.mxu0 %v1796
    %2031 = vmatpush2.bf16.msra.mxu0 %v1795
    %2032 = vmatprep.subr.bf16.mxu0 %v1792
    %2033 = vmatpush2.bf16.msra.mxu0 %v1791
    %2034 = vmatprep.mubr.bf16.mxu0 %v1298
    %2035 = vmatmul.mubr.bf16.gmra.mxu0 %v1297
    %v2036 = vpop.f32.mrf.mxu0
    %v2037 = vadd.f32 %v1986, %v2036
    %v2038 = vpop.f32.mrf.mxu0
    %v2039 = vadd.f32 %v1988, %v2038
    %v2040 = vpop.f32.mrf.mxu0
    %v2041 = vadd.f32 %v1990, %v2040
    %v2042 = vpop.f32.mrf.mxu0
    %v2043 = vadd.f32 %v1992, %v2042
    %2044 = vmatprep.mubr.bf16.mxu0 %v1302
    %2045 = vmatmul.mubr.bf16.gmra.mxu0 %v1301
    %v2046 = vpop.f32.mrf.mxu0
    %v2047 = vadd.f32 %v1996, %v2046
    %v2048 = vpop.f32.mrf.mxu0
    %v2049 = vadd.f32 %v1998, %v2048
    %v2050 = vpop.f32.mrf.mxu0
    %v2051 = vpop.f32.mrf.mxu0
    %2052 = vdwg.mxu0
    %2053 = vmatprep.subr.bf16.mxu0 %v1726
    %2054 = vmatpush1.bf16.msra.mxu0 %v1725
    %2055 = vmatprep.subr.bf16.mxu0 %v1722
    %2056 = vmatpush1.bf16.msra.mxu0 %v1721
    %2057 = vmatprep.subr.bf16.mxu0 %v1718
    %2058 = vmatpush1.bf16.msra.mxu0 %v1717
    %2059 = vmatprep.subr.bf16.mxu0 %v1714
    %2060 = vmatpush1.bf16.msra.mxu0 %v1713
    %2061 = vmatprep.subr.bf16.mxu0 %v1710
    %2062 = vmatpush1.bf16.msra.mxu0 %v1709
    %2063 = vmatprep.subr.bf16.mxu0 %v1706
    %2064 = vmatpush1.bf16.msra.mxu0 %v1705
    %2065 = vmatprep.subr.bf16.mxu0 %v1702
    %2066 = vmatpush1.bf16.msra.mxu0 %v1701
    %2067 = vmatprep.subr.bf16.mxu0 %v1698
    %2068 = vmatpush1.bf16.msra.mxu0 %v1697
    %2069 = vmatprep.subr.bf16.mxu0 %v1758
    %2070 = vmatpush2.bf16.msra.mxu0 %v1757
    %2071 = vmatprep.subr.bf16.mxu0 %v1754
    %2072 = vmatpush2.bf16.msra.mxu0 %v1753
    %2073 = vmatprep.subr.bf16.mxu0 %v1750
    %2074 = vmatpush2.bf16.msra.mxu0 %v1749
    %2075 = vmatprep.subr.bf16.mxu0 %v1746
    %2076 = vmatpush2.bf16.msra.mxu0 %v1745
    %2077 = vmatprep.subr.bf16.mxu0 %v1742
    %2078 = vmatpush2.bf16.msra.mxu0 %v1741
    %2079 = vmatprep.subr.bf16.mxu0 %v1738
    %2080 = vmatpush2.bf16.msra.mxu0 %v1737
    %2081 = vmatprep.subr.bf16.mxu0 %v1734
    %2082 = vmatpush2.bf16.msra.mxu0 %v1733
    %2083 = vmatprep.subr.bf16.mxu0 %v1730
    %2084 = vmatpush2.bf16.msra.mxu0 %v1729
    %2085 = vmatprep.mubr.bf16.mxu0 %v1296
    %2086 = vmatmul.mubr.bf16.gmra.mxu0 %v1295
    %v2087 = vpop.f32.mrf.mxu0
    %v2088 = vadd.f32 %v1268, %v2087
    %v2089 = vpop.f32.mrf.mxu0
    %v2090 = vadd.f32 %v1272, %v2089
    %v2091 = vpop.f32.mrf.mxu0
    %v2092 = vadd.f32 %v1268, %v2091
    %v2093 = vpop.f32.mrf.mxu0
    %v2094 = vadd.f32 %v1272, %v2093
    %2095 = vmatprep.mubr.bf16.mxu0 %v1300
    %2096 = vmatmul.mubr.bf16.gmra.mxu0 %v1299
    %v2097 = vpop.f32.mrf.mxu0
    %v2098 = vadd.f32 %v1268, %v2097
    %v2099 = vpop.f32.mrf.mxu0
    %v2100 = vadd.f32 %v1272, %v2099
    %v2101 = vpop.f32.mrf.mxu0
    %v2102 = vpop.f32.mrf.mxu0
    %2103 = vdwg.mxu0
    %2104 = vmatprep.subr.bf16.mxu0 %v1790
    %2105 = vmatpush1.bf16.msra.mxu0 %v1789
    %2106 = vmatprep.subr.bf16.mxu0 %v1786
    %2107 = vmatpush1.bf16.msra.mxu0 %v1785
    %2108 = vmatprep.subr.bf16.mxu0 %v1782
    %2109 = vmatpush1.bf16.msra.mxu0 %v1781
    %2110 = vmatprep.subr.bf16.mxu0 %v1778
    %2111 = vmatpush1.bf16.msra.mxu0 %v1777
    %2112 = vmatprep.subr.bf16.mxu0 %v1774
    %2113 = vmatpush1.bf16.msra.mxu0 %v1773
    %2114 = vmatprep.subr.bf16.mxu0 %v1770
    %2115 = vmatpush1.bf16.msra.mxu0 %v1769
    %2116 = vmatprep.subr.bf16.mxu0 %v1766
    %2117 = vmatpush1.bf16.msra.mxu0 %v1765
    %2118 = vmatprep.subr.bf16.mxu0 %v1762
    %2119 = vmatpush1.bf16.msra.mxu0 %v1761
    %2120 = vmatprep.subr.bf16.mxu0 %v1822
    %2121 = vmatpush2.bf16.msra.mxu0 %v1821
    %2122 = vmatprep.subr.bf16.mxu0 %v1818
    %2123 = vmatpush2.bf16.msra.mxu0 %v1817
    %2124 = vmatprep.subr.bf16.mxu0 %v1814
    %2125 = vmatpush2.bf16.msra.mxu0 %v1813
    %2126 = vmatprep.subr.bf16.mxu0 %v1810
    %2127 = vmatpush2.bf16.msra.mxu0 %v1809
    %2128 = vmatprep.subr.bf16.mxu0 %v1806
    %2129 = vmatpush2.bf16.msra.mxu0 %v1805
    %2130 = vmatprep.subr.bf16.mxu0 %v1802
    %2131 = vmatpush2.bf16.msra.mxu0 %v1801
    %2132 = vmatprep.subr.bf16.mxu0 %v1798
    %2133 = vmatpush2.bf16.msra.mxu0 %v1797
    %2134 = vmatprep.subr.bf16.mxu0 %v1794
    %2135 = vmatpush2.bf16.msra.mxu0 %v1793
    %2136 = vmatprep.mubr.bf16.mxu0 %v1298
    %2137 = vmatmul.mubr.bf16.gmra.mxu0 %v1297
    %v2138 = vpop.f32.mrf.mxu0
    %v2139 = vadd.f32 %v2088, %v2138
    %v2140 = vpop.f32.mrf.mxu0
    %v2141 = vadd.f32 %v2090, %v2140
    %v2142 = vpop.f32.mrf.mxu0
    %v2143 = vadd.f32 %v2092, %v2142
    %v2144 = vpop.f32.mrf.mxu0
    %v2145 = vadd.f32 %v2094, %v2144
    %2146 = vmatprep.mubr.bf16.mxu0 %v1302
    %2147 = vmatmul.mubr.bf16.gmra.mxu0 %v1301
    %v2148 = vpop.f32.mrf.mxu0
    %v2149 = vadd.f32 %v2098, %v2148
    %v2150 = vpop.f32.mrf.mxu0
    %v2151 = vadd.f32 %v2100, %v2150
    %v2152 = vpop.f32.mrf.mxu0
    %v2153 = vpop.f32.mrf.mxu0
    %2154 = vdwg.mxu0
    %v2155 = vtanh.pop %v2037
    %v2156 = vtanh.pop %v2039
    %v2157 = vtanh.pop %v2139
    %v2158 = vtanh.pop %v2141
    %v2159 = vtanh.pop %v2041
    %v2160 = vtanh.pop %v2043
    %v2161 = vtanh.pop %v2143
    %v2162 = vtanh.pop %v2145
    %v2163 = vtanh.pop %v2047
    %v2164 = vtanh.pop %v2049
    %v2165 = vtanh.pop %v2149
    %v2166 = vtanh.pop %v2151
    %v2167 = vld [vmem:[%s4] sm:$0xff]
    %v2168 = vld [vmem:[%s4 + $0x8] sm:$0xff]
    %v2169 = vld [vmem:[%s4 + $0x10] sm:$0x11]
    %v2170 = vld [vmem:[%s4 + $0x18] sm:$0x11]
    %v2171 = vld [vmem:[#allocation11] sm:$0xff]
    %v2172 = vld [vmem:[#allocation11 + $0x8] sm:$0xff]
    %v2173 = vld [vmem:[#allocation11 + $0x10] sm:$0xff]
    %v2174 = vld [vmem:[#allocation11 + $0x18] sm:$0xff]
    %v2175 = vld [vmem:[#allocation11 + $0x20] sm:$0xff]
    %v2176 = vld [vmem:[#allocation11 + $0x28] sm:$0xff]
    %v2177 = vld [vmem:[#allocation11 + $0x30] sm:$0xff]
    %v2178 = vld [vmem:[#allocation11 + $0x38] sm:$0xff]
    %v2179 = vld [vmem:[#allocation11 + $0x40] sm:$0xff]
    %v2180 = vld [vmem:[#allocation11 + $0x48] sm:$0xff]
    %v2181 = vld [vmem:[#allocation11 + $0x50] sm:$0xff]
    %v2182 = vld [vmem:[#allocation11 + $0x58] sm:$0xff]
    %v2183 = vld [vmem:[#allocation11 + $0x60] sm:$0xff]
    %v2184 = vld [vmem:[#allocation11 + $0x68] sm:$0xff]
    %v2185 = vld [vmem:[#allocation11 + $0x70] sm:$0xff]
    %v2186 = vld [vmem:[#allocation11 + $0x78] sm:$0xff]
    %v2187 = vld [vmem:[#allocation11 + $0x80] sm:$0xff]
    %v2188 = vld [vmem:[#allocation11 + $0x88] sm:$0xff]
    %v2189 = vld [vmem:[#allocation11 + $0x90] sm:$0xff]
    %v2190 = vld [vmem:[#allocation11 + $0x98] sm:$0xff]
    %v2191 = vld [vmem:[#allocation11 + $0xa0] sm:$0xff]
    %v2192 = vld [vmem:[#allocation11 + $0xa8] sm:$0xff]
    %v2193 = vld [vmem:[#allocation11 + $0xb0] sm:$0xff]
    %v2194 = vld [vmem:[#allocation11 + $0xb8] sm:$0xff]
    %v2195 = vld [vmem:[#allocation11 + $0xc0] sm:$0xff]
    %v2196 = vld [vmem:[#allocation11 + $0xc8] sm:$0xff]
    %v2197 = vld [vmem:[#allocation11 + $0xd0] sm:$0xff]
    %v2198 = vld [vmem:[#allocation11 + $0xd8] sm:$0xff]
    %v2199 = vld [vmem:[#allocation11 + $0xe0] sm:$0xff]
    %v2200 = vld [vmem:[#allocation11 + $0xe8] sm:$0xff]
    %v2201 = vld [vmem:[#allocation11 + $0xf0] sm:$0xff]
    %v2202 = vld [vmem:[#allocation11 + $0xf8] sm:$0xff]
    %v2203 = vld [vmem:[#allocation11 + $0x100] sm:$0xff]
    %v2204 = vld [vmem:[#allocation11 + $0x108] sm:$0xff]
    %v2205 = vld [vmem:[#allocation11 + $0x110] sm:$0xff]
    %v2206 = vld [vmem:[#allocation11 + $0x118] sm:$0xff]
    %v2207 = vld [vmem:[#allocation11 + $0x120] sm:$0xff]
    %v2208 = vld [vmem:[#allocation11 + $0x128] sm:$0xff]
    %v2209 = vld [vmem:[#allocation11 + $0x130] sm:$0xff]
    %v2210 = vld [vmem:[#allocation11 + $0x138] sm:$0xff]
    %v2211 = vld [vmem:[#allocation11 + $0x140] sm:$0xff]
    %v2212 = vld [vmem:[#allocation11 + $0x148] sm:$0xff]
    %v2213 = vld [vmem:[#allocation11 + $0x150] sm:$0xff]
    %v2214 = vld [vmem:[#allocation11 + $0x158] sm:$0xff]
    %v2215 = vld [vmem:[#allocation11 + $0x160] sm:$0xff]
    %v2216 = vld [vmem:[#allocation11 + $0x168] sm:$0xff]
    %v2217 = vld [vmem:[#allocation11 + $0x170] sm:$0xff]
    %v2218 = vld [vmem:[#allocation11 + $0x178] sm:$0xff]
    %v2219 = vld [vmem:[#allocation11 + $0x180] sm:$0xff]
    %v2220 = vld [vmem:[#allocation11 + $0x188] sm:$0xff]
    %v2221 = vld [vmem:[#allocation11 + $0x190] sm:$0xff]
    %v2222 = vld [vmem:[#allocation11 + $0x198] sm:$0xff]
    %v2223 = vld [vmem:[#allocation11 + $0x1a0] sm:$0xff]
    %v2224 = vld [vmem:[#allocation11 + $0x1a8] sm:$0xff]
    %v2225 = vld [vmem:[#allocation11 + $0x1b0] sm:$0xff]
    %v2226 = vld [vmem:[#allocation11 + $0x1b8] sm:$0xff]
    %v2227 = vld [vmem:[#allocation11 + $0x1c0] sm:$0xff]
    %v2228 = vld [vmem:[#allocation11 + $0x1c8] sm:$0xff]
    %v2229 = vld [vmem:[#allocation11 + $0x1d0] sm:$0xff]
    %v2230 = vld [vmem:[#allocation11 + $0x1d8] sm:$0xff]
    %v2231 = vld [vmem:[#allocation11 + $0x1e0] sm:$0xff]
    %v2232 = vld [vmem:[#allocation11 + $0x1e8] sm:$0xff]
    %v2233 = vld [vmem:[#allocation11 + $0x1f0] sm:$0xff]
    %v2234 = vld [vmem:[#allocation11 + $0x1f8] sm:$0xff]
    %v2235 = vld [vmem:[#allocation11 + $0x200] sm:$0xff]
    %v2236 = vld [vmem:[#allocation11 + $0x208] sm:$0xff]
    %v2237 = vld [vmem:[#allocation11 + $0x210] sm:$0xff]
    %v2238 = vld [vmem:[#allocation11 + $0x218] sm:$0xff]
    %v2239 = vld [vmem:[#allocation11 + $0x220] sm:$0xff]
    %v2240 = vld [vmem:[#allocation11 + $0x228] sm:$0xff]
    %v2241 = vld [vmem:[#allocation11 + $0x230] sm:$0xff]
    %v2242 = vld [vmem:[#allocation11 + $0x238] sm:$0xff]
    %v2243 = vld [vmem:[#allocation11 + $0x240] sm:$0xff]
    %v2244 = vld [vmem:[#allocation11 + $0x248] sm:$0xff]
    %v2245 = vld [vmem:[#allocation11 + $0x250] sm:$0xff]
    %v2246 = vld [vmem:[#allocation11 + $0x258] sm:$0xff]
    %v2247 = vld [vmem:[#allocation11 + $0x260] sm:$0xff]
    %v2248 = vld [vmem:[#allocation11 + $0x268] sm:$0xff]
    %v2249 = vld [vmem:[#allocation11 + $0x270] sm:$0xff]
    %v2250 = vld [vmem:[#allocation11 + $0x278] sm:$0xff]
    %v2251 = vld [vmem:[#allocation11 + $0x280] sm:$0xff]
    %v2252 = vld [vmem:[#allocation11 + $0x288] sm:$0xff]
    %v2253 = vld [vmem:[#allocation11 + $0x290] sm:$0xff]
    %v2254 = vld [vmem:[#allocation11 + $0x298] sm:$0xff]
    %v2255 = vld [vmem:[#allocation11 + $0x2a0] sm:$0xff]
    %v2256 = vld [vmem:[#allocation11 + $0x2a8] sm:$0xff]
    %v2257 = vld [vmem:[#allocation11 + $0x2b0] sm:$0xff]
    %v2258 = vld [vmem:[#allocation11 + $0x2b8] sm:$0xff]
    %v2259 = vld [vmem:[#allocation11 + $0x2c0] sm:$0xff]
    %v2260 = vld [vmem:[#allocation11 + $0x2c8] sm:$0xff]
    %v2261 = vld [vmem:[#allocation11 + $0x2d0] sm:$0xff]
    %v2262 = vld [vmem:[#allocation11 + $0x2d8] sm:$0xff]
    %v2263 = vld [vmem:[#allocation11 + $0x2e0] sm:$0xff]
    %v2264 = vld [vmem:[#allocation11 + $0x2e8] sm:$0xff]
    %v2265 = vld [vmem:[#allocation11 + $0x2f0] sm:$0xff]
    %v2266 = vld [vmem:[#allocation11 + $0x2f8] sm:$0xff]
    %v2267 = vld [vmem:[#allocation11 + $0x300] sm:$0xff]
    %v2268 = vld [vmem:[#allocation11 + $0x308] sm:$0xff]
    %v2269 = vld [vmem:[#allocation11 + $0x310] sm:$0xff]
    %v2270 = vld [vmem:[#allocation11 + $0x318] sm:$0xff]
    %v2271 = vld [vmem:[#allocation11 + $0x320] sm:$0xff]
    %v2272 = vld [vmem:[#allocation11 + $0x328] sm:$0xff]
    %v2273 = vld [vmem:[#allocation11 + $0x330] sm:$0xff]
    %v2274 = vld [vmem:[#allocation11 + $0x338] sm:$0xff]
    %v2275 = vld [vmem:[#allocation11 + $0x340] sm:$0xff]
    %v2276 = vld [vmem:[#allocation11 + $0x348] sm:$0xff]
    %v2277 = vld [vmem:[#allocation11 + $0x350] sm:$0xff]
    %v2278 = vld [vmem:[#allocation11 + $0x358] sm:$0xff]
    %v2279 = vld [vmem:[#allocation11 + $0x360] sm:$0xff]
    %v2280 = vld [vmem:[#allocation11 + $0x368] sm:$0xff]
    %v2281 = vld [vmem:[#allocation11 + $0x370] sm:$0xff]
    %v2282 = vld [vmem:[#allocation11 + $0x378] sm:$0xff]
    %v2283 = vld [vmem:[#allocation11 + $0x380] sm:$0xff]
    %v2284 = vld [vmem:[#allocation11 + $0x388] sm:$0xff]
    %v2285 = vld [vmem:[#allocation11 + $0x390] sm:$0xff]
    %v2286 = vld [vmem:[#allocation11 + $0x398] sm:$0xff]
    %v2287 = vld [vmem:[#allocation11 + $0x3a0] sm:$0xff]
    %v2288 = vld [vmem:[#allocation11 + $0x3a8] sm:$0xff]
    %v2289 = vld [vmem:[#allocation11 + $0x3b0] sm:$0xff]
    %v2290 = vld [vmem:[#allocation11 + $0x3b8] sm:$0xff]
    %v2291 = vld [vmem:[#allocation11 + $0x3c0] sm:$0xff]
    %v2292 = vld [vmem:[#allocation11 + $0x3c8] sm:$0xff]
    %v2293 = vld [vmem:[#allocation11 + $0x3d0] sm:$0xff]
    %v2294 = vld [vmem:[#allocation11 + $0x3d8] sm:$0xff]
    %v2295 = vld [vmem:[#allocation11 + $0x3e0] sm:$0xff]
    %v2296 = vld [vmem:[#allocation11 + $0x3e8] sm:$0xff]
    %v2297 = vld [vmem:[#allocation11 + $0x3f0] sm:$0xff]
    %v2298 = vld [vmem:[#allocation11 + $0x3f8] sm:$0xff]
    %v2299 = vld [vmem:[%s12] sm:$0xf]
    %v2301 = vlaneseq
    %v2302 = vshrl.u32 %v2301, 7
    %v2303 = vsub.s32 0, %v2302
    %v2304 = vrot.slane %v2299, %v2303
    %v2305 = vlaneseq
    %v2306 = vshrl.u32 %v2305, 7
    %v2307 = vsub.s32 1, %v2306
    %v2308 = vrot.slane %v2299, %v2307
    %v2309 = vlaneseq
    %v2310 = vshrl.u32 %v2309, 7
    %v2311 = vsub.s32 2, %v2310
    %v2312 = vrot.slane %v2299, %v2311
    %v2313 = vlaneseq
    %v2314 = vshrl.u32 %v2313, 7
    %v2315 = vsub.s32 3, %v2314
    %v2316 = vrot.slane %v2299, %v2315
    %v2325 = vunpack.c.l.b16 %v2167
    %v2326 = vunpack.c.h.b16 %v2167
    %v2327 = vunpack.c.l.b16 %v2168
    %v2328 = vunpack.c.h.b16 %v2168
    %v2329 = vunpack.c.l.b16 %v2169
    %v2330 = vunpack.c.h.b16 %v2169
    %v2331 = vunpack.c.l.b16 %v2170
    %v2332 = vunpack.c.h.b16 %v2170
    %v2333 = vpack.c.b16 %v2329, %v2325
    %v2334 = vpack.c.b16 %v2330, %v2326
    %v2335 = vpack.c.b16 %v2331, %v2327
    %v2336 = vpack.c.b16 %v2332, %v2328
    %v2469 = vunpack.c.l.b16 %v2171
    %v2470 = vunpack.c.h.b16 %v2171
    %v2471 = vunpack.c.l.b16 %v2172
    %v2472 = vunpack.c.h.b16 %v2172
    %v2473 = vunpack.c.l.b16 %v2173
    %v2474 = vunpack.c.h.b16 %v2173
    %v2475 = vunpack.c.l.b16 %v2174
    %v2476 = vunpack.c.h.b16 %v2174
    %v2477 = vunpack.c.l.b16 %v2175
    %v2478 = vunpack.c.h.b16 %v2175
    %v2479 = vunpack.c.l.b16 %v2176
    %v2480 = vunpack.c.h.b16 %v2176
    %v2481 = vunpack.c.l.b16 %v2177
    %v2482 = vunpack.c.h.b16 %v2177
    %v2483 = vunpack.c.l.b16 %v2178
    %v2484 = vunpack.c.h.b16 %v2178
    %v2485 = vunpack.c.l.b16 %v2179
    %v2486 = vunpack.c.h.b16 %v2179
    %v2487 = vunpack.c.l.b16 %v2180
    %v2488 = vunpack.c.h.b16 %v2180
    %v2489 = vunpack.c.l.b16 %v2181
    %v2490 = vunpack.c.h.b16 %v2181
    %v2491 = vunpack.c.l.b16 %v2182
    %v2492 = vunpack.c.h.b16 %v2182
    %v2493 = vunpack.c.l.b16 %v2183
    %v2494 = vunpack.c.h.b16 %v2183
    %v2495 = vunpack.c.l.b16 %v2184
    %v2496 = vunpack.c.h.b16 %v2184
    %v2497 = vunpack.c.l.b16 %v2185
    %v2498 = vunpack.c.h.b16 %v2185
    %v2499 = vunpack.c.l.b16 %v2186
    %v2500 = vunpack.c.h.b16 %v2186
    %v2501 = vunpack.c.l.b16 %v2187
    %v2502 = vunpack.c.h.b16 %v2187
    %v2503 = vunpack.c.l.b16 %v2188
    %v2504 = vunpack.c.h.b16 %v2188
    %v2505 = vunpack.c.l.b16 %v2189
    %v2506 = vunpack.c.h.b16 %v2189
    %v2507 = vunpack.c.l.b16 %v2190
    %v2508 = vunpack.c.h.b16 %v2190
    %v2509 = vunpack.c.l.b16 %v2191
    %v2510 = vunpack.c.h.b16 %v2191
    %v2511 = vunpack.c.l.b16 %v2192
    %v2512 = vunpack.c.h.b16 %v2192
    %v2513 = vunpack.c.l.b16 %v2193
    %v2514 = vunpack.c.h.b16 %v2193
    %v2515 = vunpack.c.l.b16 %v2194
    %v2516 = vunpack.c.h.b16 %v2194
    %v2517 = vunpack.c.l.b16 %v2195
    %v2518 = vunpack.c.h.b16 %v2195
    %v2519 = vunpack.c.l.b16 %v2196
    %v2520 = vunpack.c.h.b16 %v2196
    %v2521 = vunpack.c.l.b16 %v2197
    %v2522 = vunpack.c.h.b16 %v2197
    %v2523 = vunpack.c.l.b16 %v2198
    %v2524 = vunpack.c.h.b16 %v2198
    %v2525 = vunpack.c.l.b16 %v2199
    %v2526 = vunpack.c.h.b16 %v2199
    %v2527 = vunpack.c.l.b16 %v2200
    %v2528 = vunpack.c.h.b16 %v2200
    %v2529 = vunpack.c.l.b16 %v2201
    %v2530 = vunpack.c.h.b16 %v2201
    %v2531 = vunpack.c.l.b16 %v2202
    %v2532 = vunpack.c.h.b16 %v2202
    %v2533 = vunpack.c.l.b16 %v2203
    %v2534 = vunpack.c.h.b16 %v2203
    %v2535 = vunpack.c.l.b16 %v2204
    %v2536 = vunpack.c.h.b16 %v2204
    %v2537 = vunpack.c.l.b16 %v2205
    %v2538 = vunpack.c.h.b16 %v2205
    %v2539 = vunpack.c.l.b16 %v2206
    %v2540 = vunpack.c.h.b16 %v2206
    %v2541 = vunpack.c.l.b16 %v2207
    %v2542 = vunpack.c.h.b16 %v2207
    %v2543 = vunpack.c.l.b16 %v2208
    %v2544 = vunpack.c.h.b16 %v2208
    %v2545 = vunpack.c.l.b16 %v2209
    %v2546 = vunpack.c.h.b16 %v2209
    %v2547 = vunpack.c.l.b16 %v2210
    %v2548 = vunpack.c.h.b16 %v2210
    %v2549 = vunpack.c.l.b16 %v2211
    %v2550 = vunpack.c.h.b16 %v2211
    %v2551 = vunpack.c.l.b16 %v2212
    %v2552 = vunpack.c.h.b16 %v2212
    %v2553 = vunpack.c.l.b16 %v2213
    %v2554 = vunpack.c.h.b16 %v2213
    %v2555 = vunpack.c.l.b16 %v2214
    %v2556 = vunpack.c.h.b16 %v2214
    %v2557 = vunpack.c.l.b16 %v2215
    %v2558 = vunpack.c.h.b16 %v2215
    %v2559 = vunpack.c.l.b16 %v2216
    %v2560 = vunpack.c.h.b16 %v2216
    %v2561 = vunpack.c.l.b16 %v2217
    %v2562 = vunpack.c.h.b16 %v2217
    %v2563 = vunpack.c.l.b16 %v2218
    %v2564 = vunpack.c.h.b16 %v2218
    %v2565 = vunpack.c.l.b16 %v2219
    %v2566 = vunpack.c.h.b16 %v2219
    %v2567 = vunpack.c.l.b16 %v2220
    %v2568 = vunpack.c.h.b16 %v2220
    %v2569 = vunpack.c.l.b16 %v2221
    %v2570 = vunpack.c.h.b16 %v2221
    %v2571 = vunpack.c.l.b16 %v2222
    %v2572 = vunpack.c.h.b16 %v2222
    %v2573 = vunpack.c.l.b16 %v2223
    %v2574 = vunpack.c.h.b16 %v2223
    %v2575 = vunpack.c.l.b16 %v2224
    %v2576 = vunpack.c.h.b16 %v2224
    %v2577 = vunpack.c.l.b16 %v2225
    %v2578 = vunpack.c.h.b16 %v2225
    %v2579 = vunpack.c.l.b16 %v2226
    %v2580 = vunpack.c.h.b16 %v2226
    %v2581 = vunpack.c.l.b16 %v2227
    %v2582 = vunpack.c.h.b16 %v2227
    %v2583 = vunpack.c.l.b16 %v2228
    %v2584 = vunpack.c.h.b16 %v2228
    %v2585 = vunpack.c.l.b16 %v2229
    %v2586 = vunpack.c.h.b16 %v2229
    %v2587 = vunpack.c.l.b16 %v2230
    %v2588 = vunpack.c.h.b16 %v2230
    %v2589 = vunpack.c.l.b16 %v2231
    %v2590 = vunpack.c.h.b16 %v2231
    %v2591 = vunpack.c.l.b16 %v2232
    %v2592 = vunpack.c.h.b16 %v2232
    %v2593 = vunpack.c.l.b16 %v2233
    %v2594 = vunpack.c.h.b16 %v2233
    %v2595 = vunpack.c.l.b16 %v2234
    %v2596 = vunpack.c.h.b16 %v2234
    %v2597 = vunpack.c.l.b16 %v2235
    %v2598 = vunpack.c.h.b16 %v2235
    %v2599 = vunpack.c.l.b16 %v2236
    %v2600 = vunpack.c.h.b16 %v2236
    %v2601 = vunpack.c.l.b16 %v2237
    %v2602 = vunpack.c.h.b16 %v2237
    %v2603 = vunpack.c.l.b16 %v2238
    %v2604 = vunpack.c.h.b16 %v2238
    %v2605 = vunpack.c.l.b16 %v2239
    %v2606 = vunpack.c.h.b16 %v2239
    %v2607 = vunpack.c.l.b16 %v2240
    %v2608 = vunpack.c.h.b16 %v2240
    %v2609 = vunpack.c.l.b16 %v2241
    %v2610 = vunpack.c.h.b16 %v2241
    %v2611 = vunpack.c.l.b16 %v2242
    %v2612 = vunpack.c.h.b16 %v2242
    %v2613 = vunpack.c.l.b16 %v2243
    %v2614 = vunpack.c.h.b16 %v2243
    %v2615 = vunpack.c.l.b16 %v2244
    %v2616 = vunpack.c.h.b16 %v2244
    %v2617 = vunpack.c.l.b16 %v2245
    %v2618 = vunpack.c.h.b16 %v2245
    %v2619 = vunpack.c.l.b16 %v2246
    %v2620 = vunpack.c.h.b16 %v2246
    %v2621 = vunpack.c.l.b16 %v2247
    %v2622 = vunpack.c.h.b16 %v2247
    %v2623 = vunpack.c.l.b16 %v2248
    %v2624 = vunpack.c.h.b16 %v2248
    %v2625 = vunpack.c.l.b16 %v2249
    %v2626 = vunpack.c.h.b16 %v2249
    %v2627 = vunpack.c.l.b16 %v2250
    %v2628 = vunpack.c.h.b16 %v2250
    %v2629 = vunpack.c.l.b16 %v2251
    %v2630 = vunpack.c.h.b16 %v2251
    %v2631 = vunpack.c.l.b16 %v2252
    %v2632 = vunpack.c.h.b16 %v2252
    %v2633 = vunpack.c.l.b16 %v2253
    %v2634 = vunpack.c.h.b16 %v2253
    %v2635 = vunpack.c.l.b16 %v2254
    %v2636 = vunpack.c.h.b16 %v2254
    %v2637 = vunpack.c.l.b16 %v2255
    %v2638 = vunpack.c.h.b16 %v2255
    %v2639 = vunpack.c.l.b16 %v2256
    %v2640 = vunpack.c.h.b16 %v2256
    %v2641 = vunpack.c.l.b16 %v2257
    %v2642 = vunpack.c.h.b16 %v2257
    %v2643 = vunpack.c.l.b16 %v2258
    %v2644 = vunpack.c.h.b16 %v2258
    %v2645 = vunpack.c.l.b16 %v2259
    %v2646 = vunpack.c.h.b16 %v2259
    %v2647 = vunpack.c.l.b16 %v2260
    %v2648 = vunpack.c.h.b16 %v2260
    %v2649 = vunpack.c.l.b16 %v2261
    %v2650 = vunpack.c.h.b16 %v2261
    %v2651 = vunpack.c.l.b16 %v2262
    %v2652 = vunpack.c.h.b16 %v2262
    %v2653 = vunpack.c.l.b16 %v2263
    %v2654 = vunpack.c.h.b16 %v2263
    %v2655 = vunpack.c.l.b16 %v2264
    %v2656 = vunpack.c.h.b16 %v2264
    %v2657 = vunpack.c.l.b16 %v2265
    %v2658 = vunpack.c.h.b16 %v2265
    %v2659 = vunpack.c.l.b16 %v2266
    %v2660 = vunpack.c.h.b16 %v2266
    %v2661 = vunpack.c.l.b16 %v2267
    %v2662 = vunpack.c.h.b16 %v2267
    %v2663 = vunpack.c.l.b16 %v2268
    %v2664 = vunpack.c.h.b16 %v2268
    %v2665 = vunpack.c.l.b16 %v2269
    %v2666 = vunpack.c.h.b16 %v2269
    %v2667 = vunpack.c.l.b16 %v2270
    %v2668 = vunpack.c.h.b16 %v2270
    %v2669 = vunpack.c.l.b16 %v2271
    %v2670 = vunpack.c.h.b16 %v2271
    %v2671 = vunpack.c.l.b16 %v2272
    %v2672 = vunpack.c.h.b16 %v2272
    %v2673 = vunpack.c.l.b16 %v2273
    %v2674 = vunpack.c.h.b16 %v2273
    %v2675 = vunpack.c.l.b16 %v2274
    %v2676 = vunpack.c.h.b16 %v2274
    %v2677 = vunpack.c.l.b16 %v2275
    %v2678 = vunpack.c.h.b16 %v2275
    %v2679 = vunpack.c.l.b16 %v2276
    %v2680 = vunpack.c.h.b16 %v2276
    %v2681 = vunpack.c.l.b16 %v2277
    %v2682 = vunpack.c.h.b16 %v2277
    %v2683 = vunpack.c.l.b16 %v2278
    %v2684 = vunpack.c.h.b16 %v2278
    %v2685 = vunpack.c.l.b16 %v2279
    %v2686 = vunpack.c.h.b16 %v2279
    %v2687 = vunpack.c.l.b16 %v2280
    %v2688 = vunpack.c.h.b16 %v2280
    %v2689 = vunpack.c.l.b16 %v2281
    %v2690 = vunpack.c.h.b16 %v2281
    %v2691 = vunpack.c.l.b16 %v2282
    %v2692 = vunpack.c.h.b16 %v2282
    %v2693 = vunpack.c.l.b16 %v2283
    %v2694 = vunpack.c.h.b16 %v2283
    %v2695 = vunpack.c.l.b16 %v2284
    %v2696 = vunpack.c.h.b16 %v2284
    %v2697 = vunpack.c.l.b16 %v2285
    %v2698 = vunpack.c.h.b16 %v2285
    %v2699 = vunpack.c.l.b16 %v2286
    %v2700 = vunpack.c.h.b16 %v2286
    %v2701 = vunpack.c.l.b16 %v2287
    %v2702 = vunpack.c.h.b16 %v2287
    %v2703 = vunpack.c.l.b16 %v2288
    %v2704 = vunpack.c.h.b16 %v2288
    %v2705 = vunpack.c.l.b16 %v2289
    %v2706 = vunpack.c.h.b16 %v2289
    %v2707 = vunpack.c.l.b16 %v2290
    %v2708 = vunpack.c.h.b16 %v2290
    %v2709 = vunpack.c.l.b16 %v2291
    %v2710 = vunpack.c.h.b16 %v2291
    %v2711 = vunpack.c.l.b16 %v2292
    %v2712 = vunpack.c.h.b16 %v2292
    %v2713 = vunpack.c.l.b16 %v2293
    %v2714 = vunpack.c.h.b16 %v2293
    %v2715 = vunpack.c.l.b16 %v2294
    %v2716 = vunpack.c.h.b16 %v2294
    %v2717 = vunpack.c.l.b16 %v2295
    %v2718 = vunpack.c.h.b16 %v2295
    %v2719 = vunpack.c.l.b16 %v2296
    %v2720 = vunpack.c.h.b16 %v2296
    %v2721 = vunpack.c.l.b16 %v2297
    %v2722 = vunpack.c.h.b16 %v2297
    %v2723 = vunpack.c.l.b16 %v2298
    %v2724 = vunpack.c.h.b16 %v2298
    %v2725 = vpack.c.b16 %v2473, %v2469
    %v2726 = vpack.c.b16 %v2474, %v2470
    %v2727 = vpack.c.b16 %v2475, %v2471
    %v2728 = vpack.c.b16 %v2476, %v2472
    %v2729 = vpack.c.b16 %v2481, %v2477
    %v2730 = vpack.c.b16 %v2482, %v2478
    %v2731 = vpack.c.b16 %v2483, %v2479
    %v2732 = vpack.c.b16 %v2484, %v2480
    %v2733 = vpack.c.b16 %v2489, %v2485
    %v2734 = vpack.c.b16 %v2490, %v2486
    %v2735 = vpack.c.b16 %v2491, %v2487
    %v2736 = vpack.c.b16 %v2492, %v2488
    %v2737 = vpack.c.b16 %v2497, %v2493
    %v2738 = vpack.c.b16 %v2498, %v2494
    %v2739 = vpack.c.b16 %v2499, %v2495
    %v2740 = vpack.c.b16 %v2500, %v2496
    %v2741 = vpack.c.b16 %v2505, %v2501
    %v2742 = vpack.c.b16 %v2506, %v2502
    %v2743 = vpack.c.b16 %v2507, %v2503
    %v2744 = vpack.c.b16 %v2508, %v2504
    %v2745 = vpack.c.b16 %v2513, %v2509
    %v2746 = vpack.c.b16 %v2514, %v2510
    %v2747 = vpack.c.b16 %v2515, %v2511
    %v2748 = vpack.c.b16 %v2516, %v2512
    %v2749 = vpack.c.b16 %v2521, %v2517
    %v2750 = vpack.c.b16 %v2522, %v2518
    %v2751 = vpack.c.b16 %v2523, %v2519
    %v2752 = vpack.c.b16 %v2524, %v2520
    %v2753 = vpack.c.b16 %v2529, %v2525
    %v2754 = vpack.c.b16 %v2530, %v2526
    %v2755 = vpack.c.b16 %v2531, %v2527
    %v2756 = vpack.c.b16 %v2532, %v2528
    %v2757 = vpack.c.b16 %v2537, %v2533
    %v2758 = vpack.c.b16 %v2538, %v2534
    %v2759 = vpack.c.b16 %v2539, %v2535
    %v2760 = vpack.c.b16 %v2540, %v2536
    %v2761 = vpack.c.b16 %v2545, %v2541
    %v2762 = vpack.c.b16 %v2546, %v2542
    %v2763 = vpack.c.b16 %v2547, %v2543
    %v2764 = vpack.c.b16 %v2548, %v2544
    %v2765 = vpack.c.b16 %v2553, %v2549
    %v2766 = vpack.c.b16 %v2554, %v2550
    %v2767 = vpack.c.b16 %v2555, %v2551
    %v2768 = vpack.c.b16 %v2556, %v2552
    %v2769 = vpack.c.b16 %v2561, %v2557
    %v2770 = vpack.c.b16 %v2562, %v2558
    %v2771 = vpack.c.b16 %v2563, %v2559
    %v2772 = vpack.c.b16 %v2564, %v2560
    %v2773 = vpack.c.b16 %v2569, %v2565
    %v2774 = vpack.c.b16 %v2570, %v2566
    %v2775 = vpack.c.b16 %v2571, %v2567
    %v2776 = vpack.c.b16 %v2572, %v2568
    %v2777 = vpack.c.b16 %v2577, %v2573
    %v2778 = vpack.c.b16 %v2578, %v2574
    %v2779 = vpack.c.b16 %v2579, %v2575
    %v2780 = vpack.c.b16 %v2580, %v2576
    %v2781 = vpack.c.b16 %v2585, %v2581
    %v2782 = vpack.c.b16 %v2586, %v2582
    %v2783 = vpack.c.b16 %v2587, %v2583
    %v2784 = vpack.c.b16 %v2588, %v2584
    %v2785 = vpack.c.b16 %v2593, %v2589
    %v2786 = vpack.c.b16 %v2594, %v2590
    %v2787 = vpack.c.b16 %v2595, %v2591
    %v2788 = vpack.c.b16 %v2596, %v2592
    %v2789 = vpack.c.b16 %v2601, %v2597
    %v2790 = vpack.c.b16 %v2602, %v2598
    %v2791 = vpack.c.b16 %v2603, %v2599
    %v2792 = vpack.c.b16 %v2604, %v2600
    %v2793 = vpack.c.b16 %v2609, %v2605
    %v2794 = vpack.c.b16 %v2610, %v2606
    %v2795 = vpack.c.b16 %v2611, %v2607
    %v2796 = vpack.c.b16 %v2612, %v2608
    %v2797 = vpack.c.b16 %v2617, %v2613
    %v2798 = vpack.c.b16 %v2618, %v2614
    %v2799 = vpack.c.b16 %v2619, %v2615
    %v2800 = vpack.c.b16 %v2620, %v2616
    %v2801 = vpack.c.b16 %v2625, %v2621
    %v2802 = vpack.c.b16 %v2626, %v2622
    %v2803 = vpack.c.b16 %v2627, %v2623
    %v2804 = vpack.c.b16 %v2628, %v2624
    %v2805 = vpack.c.b16 %v2633, %v2629
    %v2806 = vpack.c.b16 %v2634, %v2630
    %v2807 = vpack.c.b16 %v2635, %v2631
    %v2808 = vpack.c.b16 %v2636, %v2632
    %v2809 = vpack.c.b16 %v2641, %v2637
    %v2810 = vpack.c.b16 %v2642, %v2638
    %v2811 = vpack.c.b16 %v2643, %v2639
    %v2812 = vpack.c.b16 %v2644, %v2640
    %v2813 = vpack.c.b16 %v2649, %v2645
    %v2814 = vpack.c.b16 %v2650, %v2646
    %v2815 = vpack.c.b16 %v2651, %v2647
    %v2816 = vpack.c.b16 %v2652, %v2648
    %v2817 = vpack.c.b16 %v2657, %v2653
    %v2818 = vpack.c.b16 %v2658, %v2654
    %v2819 = vpack.c.b16 %v2659, %v2655
    %v2820 = vpack.c.b16 %v2660, %v2656
    %v2821 = vpack.c.b16 %v2665, %v2661
    %v2822 = vpack.c.b16 %v2666, %v2662
    %v2823 = vpack.c.b16 %v2667, %v2663
    %v2824 = vpack.c.b16 %v2668, %v2664
    %v2825 = vpack.c.b16 %v2673, %v2669
    %v2826 = vpack.c.b16 %v2674, %v2670
    %v2827 = vpack.c.b16 %v2675, %v2671
    %v2828 = vpack.c.b16 %v2676, %v2672
    %v2829 = vpack.c.b16 %v2681, %v2677
    %v2830 = vpack.c.b16 %v2682, %v2678
    %v2831 = vpack.c.b16 %v2683, %v2679
    %v2832 = vpack.c.b16 %v2684, %v2680
    %v2833 = vpack.c.b16 %v2689, %v2685
    %v2834 = vpack.c.b16 %v2690, %v2686
    %v2835 = vpack.c.b16 %v2691, %v2687
    %v2836 = vpack.c.b16 %v2692, %v2688
    %v2837 = vpack.c.b16 %v2697, %v2693
    %v2838 = vpack.c.b16 %v2698, %v2694
    %v2839 = vpack.c.b16 %v2699, %v2695
    %v2840 = vpack.c.b16 %v2700, %v2696
    %v2841 = vpack.c.b16 %v2705, %v2701
    %v2842 = vpack.c.b16 %v2706, %v2702
    %v2843 = vpack.c.b16 %v2707, %v2703
    %v2844 = vpack.c.b16 %v2708, %v2704
    %v2845 = vpack.c.b16 %v2713, %v2709
    %v2846 = vpack.c.b16 %v2714, %v2710
    %v2847 = vpack.c.b16 %v2715, %v2711
    %v2848 = vpack.c.b16 %v2716, %v2712
    %v2849 = vpack.c.b16 %v2721, %v2717
    %v2850 = vpack.c.b16 %v2722, %v2718
    %v2851 = vpack.c.b16 %v2723, %v2719
    %v2852 = vpack.c.b16 %v2724, %v2720
    %2981 = vmatprep.subr.bf16.mxu0 %v2754
    %2982 = vmatpush1.bf16.msra.mxu0 %v2753
    %2983 = vmatprep.subr.bf16.mxu0 %v2750
    %2984 = vmatpush1.bf16.msra.mxu0 %v2749
    %2985 = vmatprep.subr.bf16.mxu0 %v2746
    %2986 = vmatpush1.bf16.msra.mxu0 %v2745
    %2987 = vmatprep.subr.bf16.mxu0 %v2742
    %2988 = vmatpush1.bf16.msra.mxu0 %v2741
    %2989 = vmatprep.subr.bf16.mxu0 %v2738
    %2990 = vmatpush1.bf16.msra.mxu0 %v2737
    %2991 = vmatprep.subr.bf16.mxu0 %v2734
    %2992 = vmatpush1.bf16.msra.mxu0 %v2733
    %2993 = vmatprep.subr.bf16.mxu0 %v2730
    %2994 = vmatpush1.bf16.msra.mxu0 %v2729
    %2995 = vmatprep.subr.bf16.mxu0 %v2726
    %2996 = vmatpush1.bf16.msra.mxu0 %v2725
    %2997 = vmatprep.subr.bf16.mxu0 %v2786
    %2998 = vmatpush2.bf16.msra.mxu0 %v2785
    %2999 = vmatprep.subr.bf16.mxu0 %v2782
    %3000 = vmatpush2.bf16.msra.mxu0 %v2781
    %3001 = vmatprep.subr.bf16.mxu0 %v2778
    %3002 = vmatpush2.bf16.msra.mxu0 %v2777
    %3003 = vmatprep.subr.bf16.mxu0 %v2774
    %3004 = vmatpush2.bf16.msra.mxu0 %v2773
    %3005 = vmatprep.subr.bf16.mxu0 %v2770
    %3006 = vmatpush2.bf16.msra.mxu0 %v2769
    %3007 = vmatprep.subr.bf16.mxu0 %v2766
    %3008 = vmatpush2.bf16.msra.mxu0 %v2765
    %3009 = vmatprep.subr.bf16.mxu0 %v2762
    %3010 = vmatpush2.bf16.msra.mxu0 %v2761
    %3011 = vmatprep.subr.bf16.mxu0 %v2758
    %3012 = vmatpush2.bf16.msra.mxu0 %v2757
    %3013 = vmatprep.mubr.bf16.mxu0 %v2334
    %3014 = vmatmul.mubr.bf16.gmra.mxu0 %v2333
    %v3015 = vpop.f32.mrf.mxu0
    %v3016 = vadd.f32 %v2304, %v3015
    %v3017 = vpop.f32.mrf.mxu0
    %v3018 = vadd.f32 %v2308, %v3017
    %v3019 = vpop.f32.mrf.mxu0
    %v3020 = vadd.f32 %v2304, %v3019
    %v3021 = vpop.f32.mrf.mxu0
    %v3022 = vadd.f32 %v2308, %v3021
    %3023 = vdwg.mxu0
    %3024 = vmatprep.subr.bf16.mxu0 %v2818
    %3025 = vmatpush1.bf16.msra.mxu0 %v2817
    %3026 = vmatprep.subr.bf16.mxu0 %v2814
    %3027 = vmatpush1.bf16.msra.mxu0 %v2813
    %3028 = vmatprep.subr.bf16.mxu0 %v2810
    %3029 = vmatpush1.bf16.msra.mxu0 %v2809
    %3030 = vmatprep.subr.bf16.mxu0 %v2806
    %3031 = vmatpush1.bf16.msra.mxu0 %v2805
    %3032 = vmatprep.subr.bf16.mxu0 %v2802
    %3033 = vmatpush1.bf16.msra.mxu0 %v2801
    %3034 = vmatprep.subr.bf16.mxu0 %v2798
    %3035 = vmatpush1.bf16.msra.mxu0 %v2797
    %3036 = vmatprep.subr.bf16.mxu0 %v2794
    %3037 = vmatpush1.bf16.msra.mxu0 %v2793
    %3038 = vmatprep.subr.bf16.mxu0 %v2790
    %3039 = vmatpush1.bf16.msra.mxu0 %v2789
    %3040 = vmatprep.subr.bf16.mxu0 %v2850
    %3041 = vmatpush2.bf16.msra.mxu0 %v2849
    %3042 = vmatprep.subr.bf16.mxu0 %v2846
    %3043 = vmatpush2.bf16.msra.mxu0 %v2845
    %3044 = vmatprep.subr.bf16.mxu0 %v2842
    %3045 = vmatpush2.bf16.msra.mxu0 %v2841
    %3046 = vmatprep.subr.bf16.mxu0 %v2838
    %3047 = vmatpush2.bf16.msra.mxu0 %v2837
    %3048 = vmatprep.subr.bf16.mxu0 %v2834
    %3049 = vmatpush2.bf16.msra.mxu0 %v2833
    %3050 = vmatprep.subr.bf16.mxu0 %v2830
    %3051 = vmatpush2.bf16.msra.mxu0 %v2829
    %3052 = vmatprep.subr.bf16.mxu0 %v2826
    %3053 = vmatpush2.bf16.msra.mxu0 %v2825
    %3054 = vmatprep.subr.bf16.mxu0 %v2822
    %3055 = vmatpush2.bf16.msra.mxu0 %v2821
    %3056 = vmatprep.mubr.bf16.mxu0 %v2336
    %3057 = vmatmul.mubr.bf16.gmra.mxu0 %v2335
    %v3058 = vpop.f32.mrf.mxu0
    %v3059 = vadd.f32 %v3016, %v3058
    %v3060 = vpop.f32.mrf.mxu0
    %v3061 = vadd.f32 %v3018, %v3060
    %v3062 = vpop.f32.mrf.mxu0
    %v3063 = vadd.f32 %v3020, %v3062
    %v3064 = vpop.f32.mrf.mxu0
    %v3065 = vadd.f32 %v3022, %v3064
    %3066 = vdwg.mxu0
    %3067 = vmatprep.subr.bf16.mxu0 %v2756
    %3068 = vmatpush1.bf16.msra.mxu0 %v2755
    %3069 = vmatprep.subr.bf16.mxu0 %v2752
    %3070 = vmatpush1.bf16.msra.mxu0 %v2751
    %3071 = vmatprep.subr.bf16.mxu0 %v2748
    %3072 = vmatpush1.bf16.msra.mxu0 %v2747
    %3073 = vmatprep.subr.bf16.mxu0 %v2744
    %3074 = vmatpush1.bf16.msra.mxu0 %v2743
    %3075 = vmatprep.subr.bf16.mxu0 %v2740
    %3076 = vmatpush1.bf16.msra.mxu0 %v2739
    %3077 = vmatprep.subr.bf16.mxu0 %v2736
    %3078 = vmatpush1.bf16.msra.mxu0 %v2735
    %3079 = vmatprep.subr.bf16.mxu0 %v2732
    %3080 = vmatpush1.bf16.msra.mxu0 %v2731
    %3081 = vmatprep.subr.bf16.mxu0 %v2728
    %3082 = vmatpush1.bf16.msra.mxu0 %v2727
    %3083 = vmatprep.subr.bf16.mxu0 %v2788
    %3084 = vmatpush2.bf16.msra.mxu0 %v2787
    %3085 = vmatprep.subr.bf16.mxu0 %v2784
    %3086 = vmatpush2.bf16.msra.mxu0 %v2783
    %3087 = vmatprep.subr.bf16.mxu0 %v2780
    %3088 = vmatpush2.bf16.msra.mxu0 %v2779
    %3089 = vmatprep.subr.bf16.mxu0 %v2776
    %3090 = vmatpush2.bf16.msra.mxu0 %v2775
    %3091 = vmatprep.subr.bf16.mxu0 %v2772
    %3092 = vmatpush2.bf16.msra.mxu0 %v2771
    %3093 = vmatprep.subr.bf16.mxu0 %v2768
    %3094 = vmatpush2.bf16.msra.mxu0 %v2767
    %3095 = vmatprep.subr.bf16.mxu0 %v2764
    %3096 = vmatpush2.bf16.msra.mxu0 %v2763
    %3097 = vmatprep.subr.bf16.mxu0 %v2760
    %3098 = vmatpush2.bf16.msra.mxu0 %v2759
    %3099 = vmatprep.mubr.bf16.mxu0 %v2334
    %3100 = vmatmul.mubr.bf16.gmra.mxu0 %v2333
    %v3101 = vpop.f32.mrf.mxu0
    %v3102 = vadd.f32 %v2312, %v3101
    %v3103 = vpop.f32.mrf.mxu0
    %v3104 = vadd.f32 %v2316, %v3103
    %v3105 = vpop.f32.mrf.mxu0
    %v3106 = vadd.f32 %v2312, %v3105
    %v3107 = vpop.f32.mrf.mxu0
    %v3108 = vadd.f32 %v2316, %v3107
    %3109 = vdwg.mxu0
    %3110 = vmatprep.subr.bf16.mxu0 %v2820
    %3111 = vmatpush1.bf16.msra.mxu0 %v2819
    %3112 = vmatprep.subr.bf16.mxu0 %v2816
    %3113 = vmatpush1.bf16.msra.mxu0 %v2815
    %3114 = vmatprep.subr.bf16.mxu0 %v2812
    %3115 = vmatpush1.bf16.msra.mxu0 %v2811
    %3116 = vmatprep.subr.bf16.mxu0 %v2808
    %3117 = vmatpush1.bf16.msra.mxu0 %v2807
    %3118 = vmatprep.subr.bf16.mxu0 %v2804
    %3119 = vmatpush1.bf16.msra.mxu0 %v2803
    %3120 = vmatprep.subr.bf16.mxu0 %v2800
    %3121 = vmatpush1.bf16.msra.mxu0 %v2799
    %3122 = vmatprep.subr.bf16.mxu0 %v2796
    %3123 = vmatpush1.bf16.msra.mxu0 %v2795
    %3124 = vmatprep.subr.bf16.mxu0 %v2792
    %3125 = vmatpush1.bf16.msra.mxu0 %v2791
    %3126 = vmatprep.subr.bf16.mxu0 %v2852
    %3127 = vmatpush2.bf16.msra.mxu0 %v2851
    %3128 = vmatprep.subr.bf16.mxu0 %v2848
    %3129 = vmatpush2.bf16.msra.mxu0 %v2847
    %3130 = vmatprep.subr.bf16.mxu0 %v2844
    %3131 = vmatpush2.bf16.msra.mxu0 %v2843
    %3132 = vmatprep.subr.bf16.mxu0 %v2840
    %3133 = vmatpush2.bf16.msra.mxu0 %v2839
    %3134 = vmatprep.subr.bf16.mxu0 %v2836
    %3135 = vmatpush2.bf16.msra.mxu0 %v2835
    %3136 = vmatprep.subr.bf16.mxu0 %v2832
    %3137 = vmatpush2.bf16.msra.mxu0 %v2831
    %3138 = vmatprep.subr.bf16.mxu0 %v2828
    %3139 = vmatpush2.bf16.msra.mxu0 %v2827
    %3140 = vmatprep.subr.bf16.mxu0 %v2824
    %3141 = vmatpush2.bf16.msra.mxu0 %v2823
    %3142 = vmatprep.mubr.bf16.mxu0 %v2336
    %3143 = vmatmul.mubr.bf16.gmra.mxu0 %v2335
    %v3144 = vpop.f32.mrf.mxu0
    %v3145 = vadd.f32 %v3102, %v3144
    %v3146 = vpop.f32.mrf.mxu0
    %v3147 = vadd.f32 %v3104, %v3146
    %v3148 = vpop.f32.mrf.mxu0
    %v3149 = vadd.f32 %v3106, %v3148
    %v3150 = vpop.f32.mrf.mxu0
    %v3151 = vadd.f32 %v3108, %v3150
    %3152 = vdwg.mxu0
    %3153 = vst [vmem:[#allocation2] sm:$0xff] 0.0
    %3154 = vst [vmem:[#allocation2 + $0x8] sm:$0xff] 0.0
    %3155 = vst [vmem:[#allocation2 + $0x10] sm:$0xff] 0.0
    %3156 = vst [vmem:[#allocation2 + $0x18] sm:$0xff] 0.0
    %3157 = vst [vmem:[#allocation2 + $0x20] sm:$0xff] 0.0
    %3158 = vst [vmem:[#allocation2 + $0x28] sm:$0xff] 0.0
    %3159 = vst [vmem:[#allocation2 + $0x30] sm:$0xff] 0.0
    %3160 = vst [vmem:[#allocation2 + $0x38] sm:$0xff] 0.0
    %3161 = vst [vmem:[#allocation2 + $0x40] sm:$0xff] 0.0
    %3162 = vst [vmem:[#allocation2 + $0x48] sm:$0xff] 0.0
    %3163 = vst [vmem:[#allocation2 + $0x50] sm:$0xff] 0.0
    %3164 = vst [vmem:[#allocation2 + $0x58] sm:$0xff] 0.0
    %3165 = vst [vmem:[#allocation2 + $0x60] sm:$0xff] 0.0
    %3166 = vst [vmem:[#allocation2 + $0x68] sm:$0xff] 0.0
    %3167 = vst [vmem:[#allocation2 + $0x70] sm:$0xff] 0.0
    %3168 = vst [vmem:[#allocation2 + $0x78] sm:$0xff] 0.0
    %3169 = vst [vmem:[#allocation2 + $0x80] sm:$0xff] 0.0
    %3170 = vst [vmem:[#allocation2 + $0x88] sm:$0xff] 0.0
    %3171 = vst [vmem:[#allocation2 + $0x90] sm:$0xff] 0.0
    %3172 = vst [vmem:[#allocation2 + $0x98] sm:$0xff] 0.0
    %3173 = vst [vmem:[#allocation2 + $0xa0] sm:$0xff] 0.0
    %3174 = vst [vmem:[#allocation2 + $0xa8] sm:$0xff] 0.0
    %3175 = vst [vmem:[#allocation2 + $0xb0] sm:$0xff] 0.0
    %3176 = vst [vmem:[#allocation2 + $0xb8] sm:$0xff] 0.0
    %3177 = vst [vmem:[#allocation2 + $0xc0] sm:$0xff] 0.0
    %3178 = vst [vmem:[#allocation2 + $0xc8] sm:$0xff] 0.0
    %3179 = vst [vmem:[#allocation2 + $0xd0] sm:$0xff] 0.0
    %3180 = vst [vmem:[#allocation2 + $0xd8] sm:$0xff] 0.0
    %3181 = vst [vmem:[#allocation2 + $0xe0] sm:$0xff] 0.0
    %3182 = vst [vmem:[#allocation2 + $0xe8] sm:$0xff] 0.0
    %3183 = vst [vmem:[#allocation2 + $0xf0] sm:$0xff] 0.0
    %3184 = vst [vmem:[#allocation2 + $0xf8] sm:$0xff] 0.0
    %3185 = vst [vmem:[#allocation2 + $0x100] sm:$0xff] 0.0
    %3186 = vst [vmem:[#allocation2 + $0x108] sm:$0xff] 0.0
    %3187 = vst [vmem:[#allocation2 + $0x110] sm:$0xff] 0.0
    %3188 = vst [vmem:[#allocation2 + $0x118] sm:$0xff] 0.0
    %3189 = vst [vmem:[#allocation2 + $0x120] sm:$0xff] 0.0
    %3190 = vst [vmem:[#allocation2 + $0x128] sm:$0xff] 0.0
    %3191 = vst [vmem:[#allocation2 + $0x130] sm:$0xff] 0.0
    %3192 = vst [vmem:[#allocation2 + $0x138] sm:$0xff] 0.0
    %3193 = vst [vmem:[#allocation2 + $0x140] sm:$0xff] 0.0
    %3194 = vst [vmem:[#allocation2 + $0x148] sm:$0xff] 0.0
    %3195 = vst [vmem:[#allocation2 + $0x150] sm:$0xff] 0.0
    %3196 = vst [vmem:[#allocation2 + $0x158] sm:$0xff] 0.0
    %3197 = vst [vmem:[#allocation2 + $0x160] sm:$0xff] 0.0
    %3198 = vst [vmem:[#allocation2 + $0x168] sm:$0xff] 0.0
    %3199 = vst [vmem:[#allocation2 + $0x170] sm:$0xff] 0.0
    %3200 = vst [vmem:[#allocation2 + $0x178] sm:$0xff] 0.0
    %3201 = vst [vmem:[#allocation2 + $0x180] sm:$0xff] 0.0
    %3202 = vst [vmem:[#allocation2 + $0x188] sm:$0xff] 0.0
    %3203 = vst [vmem:[#allocation2 + $0x190] sm:$0xff] 0.0
    %3204 = vst [vmem:[#allocation2 + $0x198] sm:$0xff] 0.0
    %3205 = vst [vmem:[#allocation2 + $0x1a0] sm:$0xff] 0.0
    %3206 = vst [vmem:[#allocation2 + $0x1a8] sm:$0xff] 0.0
    %3207 = vst [vmem:[#allocation2 + $0x1b0] sm:$0xff] 0.0
    %3208 = vst [vmem:[#allocation2 + $0x1b8] sm:$0xff] 0.0
    %3209 = vst [vmem:[#allocation2 + $0x1c0] sm:$0xff] 0.0
    %3210 = vst [vmem:[#allocation2 + $0x1c8] sm:$0xff] 0.0
    %3211 = vst [vmem:[#allocation2 + $0x1d0] sm:$0xff] 0.0
    %3212 = vst [vmem:[#allocation2 + $0x1d8] sm:$0xff] 0.0
    %3213 = vst [vmem:[#allocation2 + $0x1e0] sm:$0xff] 0.0
    %3214 = vst [vmem:[#allocation2 + $0x1e8] sm:$0xff] 0.0
    %3215 = vst [vmem:[#allocation2 + $0x1f0] sm:$0xff] 0.0
    %3216 = vst [vmem:[#allocation2 + $0x1f8] sm:$0xff] 0.0
    %v3217 = vlaneseq
    %v3218 = vand.u32 %v3217, 127
    %s3219 = sld [smem:[#allocation4]]
    %p3220 = scmp.gt.s32.totalorder %s3219, 1
    %s3221 = scalar_select %p3220, %s3219, 1
    %s3222 = sld [smem:[#allocation5]]
    %p3223 = scmp.gt.s32.totalorder %s3222, 1
    %s3224 = scalar_select %p3223, %s3222, 1
    %3225 = vst [vmem:[#allocation2] sm:$0x3f] %v1113
    %3226 = vst [vmem:[#allocation2 + $0x8] sm:$0x3f] %v1114
    %3227 = vst [vmem:[#allocation2 + $0x10] sm:$0x3f] %v1115
    %3228 = vst [vmem:[#allocation2 + $0x18] sm:$0x3f] %v1116
    %vm3237 = vcmask 1045504
    %v3238 = vrot.slane %v2155, 2
    %v3239 = vrot.slane %v2156, 2
    %v3240 = vrot.slane %v2157, 2
    %v3241 = vrot.slane %v2158, 2
    %v3242 = vrot.slane %v2159, 2
    %v3243 = vsel %vm3237, %v3238, %v3242
    %v3244 = vrot.slane %v2160, 2
    %v3245 = vsel %vm3237, %v3239, %v3244
    %v3246 = vrot.slane %v2161, 2
    %v3247 = vsel %vm3237, %v3240, %v3246
    %v3248 = vrot.slane %v2162, 2
    %v3249 = vsel %vm3237, %v3241, %v3248
    %3258 = vst [vmem:[#allocation2] sm:$0xc0] %v3238
    %3259 = vst [vmem:[#allocation2 + $0x8] sm:$0xc0] %v3239
    %3260 = vst [vmem:[#allocation2 + $0x10] sm:$0xc0] %v3240
    %3261 = vst [vmem:[#allocation2 + $0x18] sm:$0xc0] %v3241
    %3262 = vst [vmem:[#allocation2 + $0x20] sm:$0xff] %v3243
    %3263 = vst [vmem:[#allocation2 + $0x28] sm:$0xff] %v3245
    %3264 = vst [vmem:[#allocation2 + $0x30] sm:$0xff] %v3247
    %3265 = vst [vmem:[#allocation2 + $0x38] sm:$0xff] %v3249
    %s3266 = ssub.s32 %s3221, 1
    %s3267 = sshra.s32 %s3266, 3
    %s3268 = sand.u32 %s3266, 7
    %s3269 = sshra.s32 %s3266, 3
    %s3270 = sand.u32 %s3266, 7
    %s3271 = smul.u32 %s3267, 4
    %s3272 = smul.u32 %s3271, 8
    %s3273 = sadd.s32 %s3272, %s3270
    %s3274 = scalar_lea.vmem [#allocation2], %s3273
    %v3275 = vld [vmem:[%s3274] ss:$8 sm:$0xf]
    %s3276 = sadd.s32 %s3224, 5
    %s3277 = sshra.s32 %s3276, 3
    %s3278 = sand.u32 %s3276, 7
    %s3279 = sshra.s32 %s3276, 3
    %s3280 = sand.u32 %s3276, 7
    %s3281 = smul.u32 %s3277, 4
    %s3282 = smul.u32 %s3281, 8
    %s3283 = sadd.s32 %s3282, %s3280
    %s3284 = scalar_lea.vmem [#allocation2], %s3283
    %v3285 = vld [vmem:[%s3284] ss:$8 sm:$0xf]
    %v3287 = vlaneseq
    %v3288 = vshrl.u32 %v3287, 7
    %v3289 = vsub.s32 0, %v3288
    %v3290 = vrot.slane %v3275, %v3289
    %v3291 = vlaneseq
    %v3292 = vshrl.u32 %v3291, 7
    %v3293 = vsub.s32 1, %v3292
    %v3294 = vrot.slane %v3275, %v3293
    %v3295 = vlaneseq
    %v3296 = vshrl.u32 %v3295, 7
    %v3297 = vsub.s32 2, %v3296
    %v3298 = vrot.slane %v3275, %v3297
    %v3299 = vlaneseq
    %v3300 = vshrl.u32 %v3299, 7
    %v3301 = vsub.s32 3, %v3300
    %v3302 = vrot.slane %v3275, %v3301
    %v3307 = vpack.c.bf16 %v3290, %v3290
    %v3308 = vpack.c.bf16 %v3294, %v3294
    %v3309 = vpack.c.bf16 %v3298, %v3298
    %v3310 = vpack.c.bf16 %v3302, %v3302
    %v3311 = vld [vmem:[#allocation10] sm:$0xff]
    %v3312 = vld [vmem:[#allocation10 + $0x8] sm:$0xff]
    %v3313 = vld [vmem:[#allocation10 + $0x10] sm:$0xff]
    %v3314 = vld [vmem:[#allocation10 + $0x18] sm:$0xff]
    %v3315 = vld [vmem:[#allocation10 + $0x20] sm:$0xff]
    %v3316 = vld [vmem:[#allocation10 + $0x28] sm:$0xff]
    %v3317 = vld [vmem:[#allocation10 + $0x30] sm:$0xff]
    %v3318 = vld [vmem:[#allocation10 + $0x38] sm:$0xff]
    %v3319 = vld [vmem:[#allocation10 + $0x40] sm:$0xff]
    %v3320 = vld [vmem:[#allocation10 + $0x48] sm:$0xff]
    %v3321 = vld [vmem:[#allocation10 + $0x50] sm:$0xff]
    %v3322 = vld [vmem:[#allocation10 + $0x58] sm:$0xff]
    %v3323 = vld [vmem:[#allocation10 + $0x60] sm:$0xff]
    %v3324 = vld [vmem:[#allocation10 + $0x68] sm:$0xff]
    %v3325 = vld [vmem:[#allocation10 + $0x70] sm:$0xff]
    %v3326 = vld [vmem:[#allocation10 + $0x78] sm:$0xff]
    %v3327 = vld [vmem:[#allocation10 + $0x80] sm:$0xff]
    %v3328 = vld [vmem:[#allocation10 + $0x88] sm:$0xff]
    %v3329 = vld [vmem:[#allocation10 + $0x90] sm:$0xff]
    %v3330 = vld [vmem:[#allocation10 + $0x98] sm:$0xff]
    %v3331 = vld [vmem:[#allocation10 + $0xa0] sm:$0xff]
    %v3332 = vld [vmem:[#allocation10 + $0xa8] sm:$0xff]
    %v3333 = vld [vmem:[#allocation10 + $0xb0] sm:$0xff]
    %v3334 = vld [vmem:[#allocation10 + $0xb8] sm:$0xff]
    %v3335 = vld [vmem:[#allocation10 + $0xc0] sm:$0xff]
    %v3336 = vld [vmem:[#allocation10 + $0xc8] sm:$0xff]
    %v3337 = vld [vmem:[#allocation10 + $0xd0] sm:$0xff]
    %v3338 = vld [vmem:[#allocation10 + $0xd8] sm:$0xff]
    %v3339 = vld [vmem:[#allocation10 + $0xe0] sm:$0xff]
    %v3340 = vld [vmem:[#allocation10 + $0xe8] sm:$0xff]
    %v3341 = vld [vmem:[#allocation10 + $0xf0] sm:$0xff]
    %v3342 = vld [vmem:[#allocation10 + $0xf8] sm:$0xff]
    %v3343 = vld [vmem:[#allocation10 + $0x100] sm:$0xff]
    %v3344 = vld [vmem:[#allocation10 + $0x108] sm:$0xff]
    %v3345 = vld [vmem:[#allocation10 + $0x110] sm:$0xff]
    %v3346 = vld [vmem:[#allocation10 + $0x118] sm:$0xff]
    %v3347 = vld [vmem:[#allocation10 + $0x120] sm:$0xff]
    %v3348 = vld [vmem:[#allocation10 + $0x128] sm:$0xff]
    %v3349 = vld [vmem:[#allocation10 + $0x130] sm:$0xff]
    %v3350 = vld [vmem:[#allocation10 + $0x138] sm:$0xff]
    %v3351 = vld [vmem:[#allocation10 + $0x140] sm:$0xff]
    %v3352 = vld [vmem:[#allocation10 + $0x148] sm:$0xff]
    %v3353 = vld [vmem:[#allocation10 + $0x150] sm:$0xff]
    %v3354 = vld [vmem:[#allocation10 + $0x158] sm:$0xff]
    %v3355 = vld [vmem:[#allocation10 + $0x160] sm:$0xff]
    %v3356 = vld [vmem:[#allocation10 + $0x168] sm:$0xff]
    %v3357 = vld [vmem:[#allocation10 + $0x170] sm:$0xff]
    %v3358 = vld [vmem:[#allocation10 + $0x178] sm:$0xff]
    %v3359 = vld [vmem:[#allocation10 + $0x180] sm:$0xff]
    %v3360 = vld [vmem:[#allocation10 + $0x188] sm:$0xff]
    %v3361 = vld [vmem:[#allocation10 + $0x190] sm:$0xff]
    %v3362 = vld [vmem:[#allocation10 + $0x198] sm:$0xff]
    %v3363 = vld [vmem:[#allocation10 + $0x1a0] sm:$0xff]
    %v3364 = vld [vmem:[#allocation10 + $0x1a8] sm:$0xff]
    %v3365 = vld [vmem:[#allocation10 + $0x1b0] sm:$0xff]
    %v3366 = vld [vmem:[#allocation10 + $0x1b8] sm:$0xff]
    %v3367 = vld [vmem:[#allocation10 + $0x1c0] sm:$0xff]
    %v3368 = vld [vmem:[#allocation10 + $0x1c8] sm:$0xff]
    %v3369 = vld [vmem:[#allocation10 + $0x1d0] sm:$0xff]
    %v3370 = vld [vmem:[#allocation10 + $0x1d8] sm:$0xff]
    %v3371 = vld [vmem:[#allocation10 + $0x1e0] sm:$0xff]
    %v3372 = vld [vmem:[#allocation10 + $0x1e8] sm:$0xff]
    %v3373 = vld [vmem:[#allocation10 + $0x1f0] sm:$0xff]
    %v3374 = vld [vmem:[#allocation10 + $0x1f8] sm:$0xff]
    %v3375 = vld [vmem:[#allocation10 + $0x200] sm:$0xff]
    %v3376 = vld [vmem:[#allocation10 + $0x208] sm:$0xff]
    %v3377 = vld [vmem:[#allocation10 + $0x210] sm:$0xff]
    %v3378 = vld [vmem:[#allocation10 + $0x218] sm:$0xff]
    %v3379 = vld [vmem:[#allocation10 + $0x220] sm:$0xff]
    %v3380 = vld [vmem:[#allocation10 + $0x228] sm:$0xff]
    %v3381 = vld [vmem:[#allocation10 + $0x230] sm:$0xff]
    %v3382 = vld [vmem:[#allocation10 + $0x238] sm:$0xff]
    %v3383 = vld [vmem:[#allocation10 + $0x240] sm:$0xff]
    %v3384 = vld [vmem:[#allocation10 + $0x248] sm:$0xff]
    %v3385 = vld [vmem:[#allocation10 + $0x250] sm:$0xff]
    %v3386 = vld [vmem:[#allocation10 + $0x258] sm:$0xff]
    %v3387 = vld [vmem:[#allocation10 + $0x260] sm:$0xff]
    %v3388 = vld [vmem:[#allocation10 + $0x268] sm:$0xff]
    %v3389 = vld [vmem:[#allocation10 + $0x270] sm:$0xff]
    %v3390 = vld [vmem:[#allocation10 + $0x278] sm:$0xff]
    %v3391 = vld [vmem:[#allocation10 + $0x280] sm:$0xff]
    %v3392 = vld [vmem:[#allocation10 + $0x288] sm:$0xff]
    %v3393 = vld [vmem:[#allocation10 + $0x290] sm:$0xff]
    %v3394 = vld [vmem:[#allocation10 + $0x298] sm:$0xff]
    %v3395 = vld [vmem:[#allocation10 + $0x2a0] sm:$0xff]
    %v3396 = vld [vmem:[#allocation10 + $0x2a8] sm:$0xff]
    %v3397 = vld [vmem:[#allocation10 + $0x2b0] sm:$0xff]
    %v3398 = vld [vmem:[#allocation10 + $0x2b8] sm:$0xff]
    %v3399 = vld [vmem:[#allocation10 + $0x2c0] sm:$0xff]
    %v3400 = vld [vmem:[#allocation10 + $0x2c8] sm:$0xff]
    %v3401 = vld [vmem:[#allocation10 + $0x2d0] sm:$0xff]
    %v3402 = vld [vmem:[#allocation10 + $0x2d8] sm:$0xff]
    %v3403 = vld [vmem:[#allocation10 + $0x2e0] sm:$0xff]
    %v3404 = vld [vmem:[#allocation10 + $0x2e8] sm:$0xff]
    %v3405 = vld [vmem:[#allocation10 + $0x2f0] sm:$0xff]
    %v3406 = vld [vmem:[#allocation10 + $0x2f8] sm:$0xff]
    %v3407 = vld [vmem:[#allocation10 + $0x300] sm:$0xff]
    %v3408 = vld [vmem:[#allocation10 + $0x308] sm:$0xff]
    %v3409 = vld [vmem:[#allocation10 + $0x310] sm:$0xff]
    %v3410 = vld [vmem:[#allocation10 + $0x318] sm:$0xff]
    %v3411 = vld [vmem:[#allocation10 + $0x320] sm:$0xff]
    %v3412 = vld [vmem:[#allocation10 + $0x328] sm:$0xff]
    %v3413 = vld [vmem:[#allocation10 + $0x330] sm:$0xff]
    %v3414 = vld [vmem:[#allocation10 + $0x338] sm:$0xff]
    %v3415 = vld [vmem:[#allocation10 + $0x340] sm:$0xff]
    %v3416 = vld [vmem:[#allocation10 + $0x348] sm:$0xff]
    %v3417 = vld [vmem:[#allocation10 + $0x350] sm:$0xff]
    %v3418 = vld [vmem:[#allocation10 + $0x358] sm:$0xff]
    %v3419 = vld [vmem:[#allocation10 + $0x360] sm:$0xff]
    %v3420 = vld [vmem:[#allocation10 + $0x368] sm:$0xff]
    %v3421 = vld [vmem:[#allocation10 + $0x370] sm:$0xff]
    %v3422 = vld [vmem:[#allocation10 + $0x378] sm:$0xff]
    %v3423 = vld [vmem:[#allocation10 + $0x380] sm:$0xff]
    %v3424 = vld [vmem:[#allocation10 + $0x388] sm:$0xff]
    %v3425 = vld [vmem:[#allocation10 + $0x390] sm:$0xff]
    %v3426 = vld [vmem:[#allocation10 + $0x398] sm:$0xff]
    %v3427 = vld [vmem:[#allocation10 + $0x3a0] sm:$0xff]
    %v3428 = vld [vmem:[#allocation10 + $0x3a8] sm:$0xff]
    %v3429 = vld [vmem:[#allocation10 + $0x3b0] sm:$0xff]
    %v3430 = vld [vmem:[#allocation10 + $0x3b8] sm:$0xff]
    %v3431 = vld [vmem:[#allocation10 + $0x3c0] sm:$0xff]
    %v3432 = vld [vmem:[#allocation10 + $0x3c8] sm:$0xff]
    %v3433 = vld [vmem:[#allocation10 + $0x3d0] sm:$0xff]
    %v3434 = vld [vmem:[#allocation10 + $0x3d8] sm:$0xff]
    %v3435 = vld [vmem:[#allocation10 + $0x3e0] sm:$0xff]
    %v3436 = vld [vmem:[#allocation10 + $0x3e8] sm:$0xff]
    %v3437 = vld [vmem:[#allocation10 + $0x3f0] sm:$0xff]
    %v3438 = vld [vmem:[#allocation10 + $0x3f8] sm:$0xff]
    %v3440 = vlaneseq
    %v3441 = vshrl.u32 %v3440, 7
    %v3442 = vsub.s32 0, %v3441
    %v3443 = vrot.slane %v3285, %v3442
    %v3444 = vlaneseq
    %v3445 = vshrl.u32 %v3444, 7
    %v3446 = vsub.s32 1, %v3445
    %v3447 = vrot.slane %v3285, %v3446
    %v3448 = vlaneseq
    %v3449 = vshrl.u32 %v3448, 7
    %v3450 = vsub.s32 2, %v3449
    %v3451 = vrot.slane %v3285, %v3450
    %v3452 = vlaneseq
    %v3453 = vshrl.u32 %v3452, 7
    %v3454 = vsub.s32 3, %v3453
    %v3455 = vrot.slane %v3285, %v3454
    %v3460 = vpack.c.bf16 %v3443, %v3443
    %v3461 = vpack.c.bf16 %v3447, %v3447
    %v3462 = vpack.c.bf16 %v3451, %v3451
    %v3463 = vpack.c.bf16 %v3455, %v3455
    %v3464 = vld [vmem:[#allocation10 + $0x400] sm:$0xff]
    %v3465 = vld [vmem:[#allocation10 + $0x408] sm:$0xff]
    %v3466 = vld [vmem:[#allocation10 + $0x410] sm:$0xff]
    %v3467 = vld [vmem:[#allocation10 + $0x418] sm:$0xff]
    %v3468 = vld [vmem:[#allocation10 + $0x420] sm:$0xff]
    %v3469 = vld [vmem:[#allocation10 + $0x428] sm:$0xff]
    %v3470 = vld [vmem:[#allocation10 + $0x430] sm:$0xff]
    %v3471 = vld [vmem:[#allocation10 + $0x438] sm:$0xff]
    %v3472 = vld [vmem:[#allocation10 + $0x440] sm:$0xff]
    %v3473 = vld [vmem:[#allocation10 + $0x448] sm:$0xff]
    %v3474 = vld [vmem:[#allocation10 + $0x450] sm:$0xff]
    %v3475 = vld [vmem:[#allocation10 + $0x458] sm:$0xff]
    %v3476 = vld [vmem:[#allocation10 + $0x460] sm:$0xff]
    %v3477 = vld [vmem:[#allocation10 + $0x468] sm:$0xff]
    %v3478 = vld [vmem:[#allocation10 + $0x470] sm:$0xff]
    %v3479 = vld [vmem:[#allocation10 + $0x478] sm:$0xff]
    %v3480 = vld [vmem:[#allocation10 + $0x480] sm:$0xff]
    %v3481 = vld [vmem:[#allocation10 + $0x488] sm:$0xff]
    %v3482 = vld [vmem:[#allocation10 + $0x490] sm:$0xff]
    %v3483 = vld [vmem:[#allocation10 + $0x498] sm:$0xff]
    %v3484 = vld [vmem:[#allocation10 + $0x4a0] sm:$0xff]
    %v3485 = vld [vmem:[#allocation10 + $0x4a8] sm:$0xff]
    %v3486 = vld [vmem:[#allocation10 + $0x4b0] sm:$0xff]
    %v3487 = vld [vmem:[#allocation10 + $0x4b8] sm:$0xff]
    %v3488 = vld [vmem:[#allocation10 + $0x4c0] sm:$0xff]
    %v3489 = vld [vmem:[#allocation10 + $0x4c8] sm:$0xff]
    %v3490 = vld [vmem:[#allocation10 + $0x4d0] sm:$0xff]
    %v3491 = vld [vmem:[#allocation10 + $0x4d8] sm:$0xff]
    %v3492 = vld [vmem:[#allocation10 + $0x4e0] sm:$0xff]
    %v3493 = vld [vmem:[#allocation10 + $0x4e8] sm:$0xff]
    %v3494 = vld [vmem:[#allocation10 + $0x4f0] sm:$0xff]
    %v3495 = vld [vmem:[#allocation10 + $0x4f8] sm:$0xff]
    %v3496 = vld [vmem:[#allocation10 + $0x500] sm:$0xff]
    %v3497 = vld [vmem:[#allocation10 + $0x508] sm:$0xff]
    %v3498 = vld [vmem:[#allocation10 + $0x510] sm:$0xff]
    %v3499 = vld [vmem:[#allocation10 + $0x518] sm:$0xff]
    %v3500 = vld [vmem:[#allocation10 + $0x520] sm:$0xff]
    %v3501 = vld [vmem:[#allocation10 + $0x528] sm:$0xff]
    %v3502 = vld [vmem:[#allocation10 + $0x530] sm:$0xff]
    %v3503 = vld [vmem:[#allocation10 + $0x538] sm:$0xff]
    %v3504 = vld [vmem:[#allocation10 + $0x540] sm:$0xff]
    %v3505 = vld [vmem:[#allocation10 + $0x548] sm:$0xff]
    %v3506 = vld [vmem:[#allocation10 + $0x550] sm:$0xff]
    %v3507 = vld [vmem:[#allocation10 + $0x558] sm:$0xff]
    %v3508 = vld [vmem:[#allocation10 + $0x560] sm:$0xff]
    %v3509 = vld [vmem:[#allocation10 + $0x568] sm:$0xff]
    %v3510 = vld [vmem:[#allocation10 + $0x570] sm:$0xff]
    %v3511 = vld [vmem:[#allocation10 + $0x578] sm:$0xff]
    %v3512 = vld [vmem:[#allocation10 + $0x580] sm:$0xff]
    %v3513 = vld [vmem:[#allocation10 + $0x588] sm:$0xff]
    %v3514 = vld [vmem:[#allocation10 + $0x590] sm:$0xff]
    %v3515 = vld [vmem:[#allocation10 + $0x598] sm:$0xff]
    %v3516 = vld [vmem:[#allocation10 + $0x5a0] sm:$0xff]
    %v3517 = vld [vmem:[#allocation10 + $0x5a8] sm:$0xff]
    %v3518 = vld [vmem:[#allocation10 + $0x5b0] sm:$0xff]
    %v3519 = vld [vmem:[#allocation10 + $0x5b8] sm:$0xff]
    %v3520 = vld [vmem:[#allocation10 + $0x5c0] sm:$0xff]
    %v3521 = vld [vmem:[#allocation10 + $0x5c8] sm:$0xff]
    %v3522 = vld [vmem:[#allocation10 + $0x5d0] sm:$0xff]
    %v3523 = vld [vmem:[#allocation10 + $0x5d8] sm:$0xff]
    %v3524 = vld [vmem:[#allocation10 + $0x5e0] sm:$0xff]
    %v3525 = vld [vmem:[#allocation10 + $0x5e8] sm:$0xff]
    %v3526 = vld [vmem:[#allocation10 + $0x5f0] sm:$0xff]
    %v3527 = vld [vmem:[#allocation10 + $0x5f8] sm:$0xff]
    %v3528 = vld [vmem:[#allocation10 + $0x600] sm:$0xff]
    %v3529 = vld [vmem:[#allocation10 + $0x608] sm:$0xff]
    %v3530 = vld [vmem:[#allocation10 + $0x610] sm:$0xff]
    %v3531 = vld [vmem:[#allocation10 + $0x618] sm:$0xff]
    %v3532 = vld [vmem:[#allocation10 + $0x620] sm:$0xff]
    %v3533 = vld [vmem:[#allocation10 + $0x628] sm:$0xff]
    %v3534 = vld [vmem:[#allocation10 + $0x630] sm:$0xff]
    %v3535 = vld [vmem:[#allocation10 + $0x638] sm:$0xff]
    %v3536 = vld [vmem:[#allocation10 + $0x640] sm:$0xff]
    %v3537 = vld [vmem:[#allocation10 + $0x648] sm:$0xff]
    %v3538 = vld [vmem:[#allocation10 + $0x650] sm:$0xff]
    %v3539 = vld [vmem:[#allocation10 + $0x658] sm:$0xff]
    %v3540 = vld [vmem:[#allocation10 + $0x660] sm:$0xff]
    %v3541 = vld [vmem:[#allocation10 + $0x668] sm:$0xff]
    %v3542 = vld [vmem:[#allocation10 + $0x670] sm:$0xff]
    %v3543 = vld [vmem:[#allocation10 + $0x678] sm:$0xff]
    %v3544 = vld [vmem:[#allocation10 + $0x680] sm:$0xff]
    %v3545 = vld [vmem:[#allocation10 + $0x688] sm:$0xff]
    %v3546 = vld [vmem:[#allocation10 + $0x690] sm:$0xff]
    %v3547 = vld [vmem:[#allocation10 + $0x698] sm:$0xff]
    %v3548 = vld [vmem:[#allocation10 + $0x6a0] sm:$0xff]
    %v3549 = vld [vmem:[#allocation10 + $0x6a8] sm:$0xff]
    %v3550 = vld [vmem:[#allocation10 + $0x6b0] sm:$0xff]
    %v3551 = vld [vmem:[#allocation10 + $0x6b8] sm:$0xff]
    %v3552 = vld [vmem:[#allocation10 + $0x6c0] sm:$0xff]
    %v3553 = vld [vmem:[#allocation10 + $0x6c8] sm:$0xff]
    %v3554 = vld [vmem:[#allocation10 + $0x6d0] sm:$0xff]
    %v3555 = vld [vmem:[#allocation10 + $0x6d8] sm:$0xff]
    %v3556 = vld [vmem:[#allocation10 + $0x6e0] sm:$0xff]
    %v3557 = vld [vmem:[#allocation10 + $0x6e8] sm:$0xff]
    %v3558 = vld [vmem:[#allocation10 + $0x6f0] sm:$0xff]
    %v3559 = vld [vmem:[#allocation10 + $0x6f8] sm:$0xff]
    %v3560 = vld [vmem:[#allocation10 + $0x700] sm:$0xff]
    %v3561 = vld [vmem:[#allocation10 + $0x708] sm:$0xff]
    %v3562 = vld [vmem:[#allocation10 + $0x710] sm:$0xff]
    %v3563 = vld [vmem:[#allocation10 + $0x718] sm:$0xff]
    %v3564 = vld [vmem:[#allocation10 + $0x720] sm:$0xff]
    %v3565 = vld [vmem:[#allocation10 + $0x728] sm:$0xff]
    %v3566 = vld [vmem:[#allocation10 + $0x730] sm:$0xff]
    %v3567 = vld [vmem:[#allocation10 + $0x738] sm:$0xff]
    %v3568 = vld [vmem:[#allocation10 + $0x740] sm:$0xff]
    %v3569 = vld [vmem:[#allocation10 + $0x748] sm:$0xff]
    %v3570 = vld [vmem:[#allocation10 + $0x750] sm:$0xff]
    %v3571 = vld [vmem:[#allocation10 + $0x758] sm:$0xff]
    %v3572 = vld [vmem:[#allocation10 + $0x760] sm:$0xff]
    %v3573 = vld [vmem:[#allocation10 + $0x768] sm:$0xff]
    %v3574 = vld [vmem:[#allocation10 + $0x770] sm:$0xff]
    %v3575 = vld [vmem:[#allocation10 + $0x778] sm:$0xff]
    %v3576 = vld [vmem:[#allocation10 + $0x780] sm:$0xff]
    %v3577 = vld [vmem:[#allocation10 + $0x788] sm:$0xff]
    %v3578 = vld [vmem:[#allocation10 + $0x790] sm:$0xff]
    %v3579 = vld [vmem:[#allocation10 + $0x798] sm:$0xff]
    %v3580 = vld [vmem:[#allocation10 + $0x7a0] sm:$0xff]
    %v3581 = vld [vmem:[#allocation10 + $0x7a8] sm:$0xff]
    %v3582 = vld [vmem:[#allocation10 + $0x7b0] sm:$0xff]
    %v3583 = vld [vmem:[#allocation10 + $0x7b8] sm:$0xff]
    %v3584 = vld [vmem:[#allocation10 + $0x7c0] sm:$0xff]
    %v3585 = vld [vmem:[#allocation10 + $0x7c8] sm:$0xff]
    %v3586 = vld [vmem:[#allocation10 + $0x7d0] sm:$0xff]
    %v3587 = vld [vmem:[#allocation10 + $0x7d8] sm:$0xff]
    %v3588 = vld [vmem:[#allocation10 + $0x7e0] sm:$0xff]
    %v3589 = vld [vmem:[#allocation10 + $0x7e8] sm:$0xff]
    %v3590 = vld [vmem:[#allocation10 + $0x7f0] sm:$0xff]
    %v3591 = vld [vmem:[#allocation10 + $0x7f8] sm:$0xff]
    %v3720 = vunpack.c.l.b16 %v3464
    %v3721 = vunpack.c.h.b16 %v3464
    %v3722 = vunpack.c.l.b16 %v3465
    %v3723 = vunpack.c.h.b16 %v3465
    %v3724 = vunpack.c.l.b16 %v3466
    %v3725 = vunpack.c.h.b16 %v3466
    %v3726 = vunpack.c.l.b16 %v3467
    %v3727 = vunpack.c.h.b16 %v3467
    %v3728 = vunpack.c.l.b16 %v3468
    %v3729 = vunpack.c.h.b16 %v3468
    %v3730 = vunpack.c.l.b16 %v3469
    %v3731 = vunpack.c.h.b16 %v3469
    %v3732 = vunpack.c.l.b16 %v3470
    %v3733 = vunpack.c.h.b16 %v3470
    %v3734 = vunpack.c.l.b16 %v3471
    %v3735 = vunpack.c.h.b16 %v3471
    %v3736 = vunpack.c.l.b16 %v3472
    %v3737 = vunpack.c.h.b16 %v3472
    %v3738 = vunpack.c.l.b16 %v3473
    %v3739 = vunpack.c.h.b16 %v3473
    %v3740 = vunpack.c.l.b16 %v3474
    %v3741 = vunpack.c.h.b16 %v3474
    %v3742 = vunpack.c.l.b16 %v3475
    %v3743 = vunpack.c.h.b16 %v3475
    %v3744 = vunpack.c.l.b16 %v3476
    %v3745 = vunpack.c.h.b16 %v3476
    %v3746 = vunpack.c.l.b16 %v3477
    %v3747 = vunpack.c.h.b16 %v3477
    %v3748 = vunpack.c.l.b16 %v3478
    %v3749 = vunpack.c.h.b16 %v3478
    %v3750 = vunpack.c.l.b16 %v3479
    %v3751 = vunpack.c.h.b16 %v3479
    %v3752 = vunpack.c.l.b16 %v3480
    %v3753 = vunpack.c.h.b16 %v3480
    %v3754 = vunpack.c.l.b16 %v3481
    %v3755 = vunpack.c.h.b16 %v3481
    %v3756 = vunpack.c.l.b16 %v3482
    %v3757 = vunpack.c.h.b16 %v3482
    %v3758 = vunpack.c.l.b16 %v3483
    %v3759 = vunpack.c.h.b16 %v3483
    %v3760 = vunpack.c.l.b16 %v3484
    %v3761 = vunpack.c.h.b16 %v3484
    %v3762 = vunpack.c.l.b16 %v3485
    %v3763 = vunpack.c.h.b16 %v3485
    %v3764 = vunpack.c.l.b16 %v3486
    %v3765 = vunpack.c.h.b16 %v3486
    %v3766 = vunpack.c.l.b16 %v3487
    %v3767 = vunpack.c.h.b16 %v3487
    %v3768 = vunpack.c.l.b16 %v3488
    %v3769 = vunpack.c.h.b16 %v3488
    %v3770 = vunpack.c.l.b16 %v3489
    %v3771 = vunpack.c.h.b16 %v3489
    %v3772 = vunpack.c.l.b16 %v3490
    %v3773 = vunpack.c.h.b16 %v3490
    %v3774 = vunpack.c.l.b16 %v3491
    %v3775 = vunpack.c.h.b16 %v3491
    %v3776 = vunpack.c.l.b16 %v3492
    %v3777 = vunpack.c.h.b16 %v3492
    %v3778 = vunpack.c.l.b16 %v3493
    %v3779 = vunpack.c.h.b16 %v3493
    %v3780 = vunpack.c.l.b16 %v3494
    %v3781 = vunpack.c.h.b16 %v3494
    %v3782 = vunpack.c.l.b16 %v3495
    %v3783 = vunpack.c.h.b16 %v3495
    %v3784 = vunpack.c.l.b16 %v3496
    %v3785 = vunpack.c.h.b16 %v3496
    %v3786 = vunpack.c.l.b16 %v3497
    %v3787 = vunpack.c.h.b16 %v3497
    %v3788 = vunpack.c.l.b16 %v3498
    %v3789 = vunpack.c.h.b16 %v3498
    %v3790 = vunpack.c.l.b16 %v3499
    %v3791 = vunpack.c.h.b16 %v3499
    %v3792 = vunpack.c.l.b16 %v3500
    %v3793 = vunpack.c.h.b16 %v3500
    %v3794 = vunpack.c.l.b16 %v3501
    %v3795 = vunpack.c.h.b16 %v3501
    %v3796 = vunpack.c.l.b16 %v3502
    %v3797 = vunpack.c.h.b16 %v3502
    %v3798 = vunpack.c.l.b16 %v3503
    %v3799 = vunpack.c.h.b16 %v3503
    %v3800 = vunpack.c.l.b16 %v3504
    %v3801 = vunpack.c.h.b16 %v3504
    %v3802 = vunpack.c.l.b16 %v3505
    %v3803 = vunpack.c.h.b16 %v3505
    %v3804 = vunpack.c.l.b16 %v3506
    %v3805 = vunpack.c.h.b16 %v3506
    %v3806 = vunpack.c.l.b16 %v3507
    %v3807 = vunpack.c.h.b16 %v3507
    %v3808 = vunpack.c.l.b16 %v3508
    %v3809 = vunpack.c.h.b16 %v3508
    %v3810 = vunpack.c.l.b16 %v3509
    %v3811 = vunpack.c.h.b16 %v3509
    %v3812 = vunpack.c.l.b16 %v3510
    %v3813 = vunpack.c.h.b16 %v3510
    %v3814 = vunpack.c.l.b16 %v3511
    %v3815 = vunpack.c.h.b16 %v3511
    %v3816 = vunpack.c.l.b16 %v3512
    %v3817 = vunpack.c.h.b16 %v3512
    %v3818 = vunpack.c.l.b16 %v3513
    %v3819 = vunpack.c.h.b16 %v3513
    %v3820 = vunpack.c.l.b16 %v3514
    %v3821 = vunpack.c.h.b16 %v3514
    %v3822 = vunpack.c.l.b16 %v3515
    %v3823 = vunpack.c.h.b16 %v3515
    %v3824 = vunpack.c.l.b16 %v3516
    %v3825 = vunpack.c.h.b16 %v3516
    %v3826 = vunpack.c.l.b16 %v3517
    %v3827 = vunpack.c.h.b16 %v3517
    %v3828 = vunpack.c.l.b16 %v3518
    %v3829 = vunpack.c.h.b16 %v3518
    %v3830 = vunpack.c.l.b16 %v3519
    %v3831 = vunpack.c.h.b16 %v3519
    %v3832 = vunpack.c.l.b16 %v3520
    %v3833 = vunpack.c.h.b16 %v3520
    %v3834 = vunpack.c.l.b16 %v3521
    %v3835 = vunpack.c.h.b16 %v3521
    %v3836 = vunpack.c.l.b16 %v3522
    %v3837 = vunpack.c.h.b16 %v3522
    %v3838 = vunpack.c.l.b16 %v3523
    %v3839 = vunpack.c.h.b16 %v3523
    %v3840 = vunpack.c.l.b16 %v3524
    %v3841 = vunpack.c.h.b16 %v3524
    %v3842 = vunpack.c.l.b16 %v3525
    %v3843 = vunpack.c.h.b16 %v3525
    %v3844 = vunpack.c.l.b16 %v3526
    %v3845 = vunpack.c.h.b16 %v3526
    %v3846 = vunpack.c.l.b16 %v3527
    %v3847 = vunpack.c.h.b16 %v3527
    %v3848 = vunpack.c.l.b16 %v3528
    %v3849 = vunpack.c.h.b16 %v3528
    %v3850 = vunpack.c.l.b16 %v3529
    %v3851 = vunpack.c.h.b16 %v3529
    %v3852 = vunpack.c.l.b16 %v3530
    %v3853 = vunpack.c.h.b16 %v3530
    %v3854 = vunpack.c.l.b16 %v3531
    %v3855 = vunpack.c.h.b16 %v3531
    %v3856 = vunpack.c.l.b16 %v3532
    %v3857 = vunpack.c.h.b16 %v3532
    %v3858 = vunpack.c.l.b16 %v3533
    %v3859 = vunpack.c.h.b16 %v3533
    %v3860 = vunpack.c.l.b16 %v3534
    %v3861 = vunpack.c.h.b16 %v3534
    %v3862 = vunpack.c.l.b16 %v3535
    %v3863 = vunpack.c.h.b16 %v3535
    %v3864 = vunpack.c.l.b16 %v3536
    %v3865 = vunpack.c.h.b16 %v3536
    %v3866 = vunpack.c.l.b16 %v3537
    %v3867 = vunpack.c.h.b16 %v3537
    %v3868 = vunpack.c.l.b16 %v3538
    %v3869 = vunpack.c.h.b16 %v3538
    %v3870 = vunpack.c.l.b16 %v3539
    %v3871 = vunpack.c.h.b16 %v3539
    %v3872 = vunpack.c.l.b16 %v3540
    %v3873 = vunpack.c.h.b16 %v3540
    %v3874 = vunpack.c.l.b16 %v3541
    %v3875 = vunpack.c.h.b16 %v3541
    %v3876 = vunpack.c.l.b16 %v3542
    %v3877 = vunpack.c.h.b16 %v3542
    %v3878 = vunpack.c.l.b16 %v3543
    %v3879 = vunpack.c.h.b16 %v3543
    %v3880 = vunpack.c.l.b16 %v3544
    %v3881 = vunpack.c.h.b16 %v3544
    %v3882 = vunpack.c.l.b16 %v3545
    %v3883 = vunpack.c.h.b16 %v3545
    %v3884 = vunpack.c.l.b16 %v3546
    %v3885 = vunpack.c.h.b16 %v3546
    %v3886 = vunpack.c.l.b16 %v3547
    %v3887 = vunpack.c.h.b16 %v3547
    %v3888 = vunpack.c.l.b16 %v3548
    %v3889 = vunpack.c.h.b16 %v3548
    %v3890 = vunpack.c.l.b16 %v3549
    %v3891 = vunpack.c.h.b16 %v3549
    %v3892 = vunpack.c.l.b16 %v3550
    %v3893 = vunpack.c.h.b16 %v3550
    %v3894 = vunpack.c.l.b16 %v3551
    %v3895 = vunpack.c.h.b16 %v3551
    %v3896 = vunpack.c.l.b16 %v3552
    %v3897 = vunpack.c.h.b16 %v3552
    %v3898 = vunpack.c.l.b16 %v3553
    %v3899 = vunpack.c.h.b16 %v3553
    %v3900 = vunpack.c.l.b16 %v3554
    %v3901 = vunpack.c.h.b16 %v3554
    %v3902 = vunpack.c.l.b16 %v3555
    %v3903 = vunpack.c.h.b16 %v3555
    %v3904 = vunpack.c.l.b16 %v3556
    %v3905 = vunpack.c.h.b16 %v3556
    %v3906 = vunpack.c.l.b16 %v3557
    %v3907 = vunpack.c.h.b16 %v3557
    %v3908 = vunpack.c.l.b16 %v3558
    %v3909 = vunpack.c.h.b16 %v3558
    %v3910 = vunpack.c.l.b16 %v3559
    %v3911 = vunpack.c.h.b16 %v3559
    %v3912 = vunpack.c.l.b16 %v3560
    %v3913 = vunpack.c.h.b16 %v3560
    %v3914 = vunpack.c.l.b16 %v3561
    %v3915 = vunpack.c.h.b16 %v3561
    %v3916 = vunpack.c.l.b16 %v3562
    %v3917 = vunpack.c.h.b16 %v3562
    %v3918 = vunpack.c.l.b16 %v3563
    %v3919 = vunpack.c.h.b16 %v3563
    %v3920 = vunpack.c.l.b16 %v3564
    %v3921 = vunpack.c.h.b16 %v3564
    %v3922 = vunpack.c.l.b16 %v3565
    %v3923 = vunpack.c.h.b16 %v3565
    %v3924 = vunpack.c.l.b16 %v3566
    %v3925 = vunpack.c.h.b16 %v3566
    %v3926 = vunpack.c.l.b16 %v3567
    %v3927 = vunpack.c.h.b16 %v3567
    %v3928 = vunpack.c.l.b16 %v3568
    %v3929 = vunpack.c.h.b16 %v3568
    %v3930 = vunpack.c.l.b16 %v3569
    %v3931 = vunpack.c.h.b16 %v3569
    %v3932 = vunpack.c.l.b16 %v3570
    %v3933 = vunpack.c.h.b16 %v3570
    %v3934 = vunpack.c.l.b16 %v3571
    %v3935 = vunpack.c.h.b16 %v3571
    %v3936 = vunpack.c.l.b16 %v3572
    %v3937 = vunpack.c.h.b16 %v3572
    %v3938 = vunpack.c.l.b16 %v3573
    %v3939 = vunpack.c.h.b16 %v3573
    %v3940 = vunpack.c.l.b16 %v3574
    %v3941 = vunpack.c.h.b16 %v3574
    %v3942 = vunpack.c.l.b16 %v3575
    %v3943 = vunpack.c.h.b16 %v3575
    %v3944 = vunpack.c.l.b16 %v3576
    %v3945 = vunpack.c.h.b16 %v3576
    %v3946 = vunpack.c.l.b16 %v3577
    %v3947 = vunpack.c.h.b16 %v3577
    %v3948 = vunpack.c.l.b16 %v3578
    %v3949 = vunpack.c.h.b16 %v3578
    %v3950 = vunpack.c.l.b16 %v3579
    %v3951 = vunpack.c.h.b16 %v3579
    %v3952 = vunpack.c.l.b16 %v3580
    %v3953 = vunpack.c.h.b16 %v3580
    %v3954 = vunpack.c.l.b16 %v3581
    %v3955 = vunpack.c.h.b16 %v3581
    %v3956 = vunpack.c.l.b16 %v3582
    %v3957 = vunpack.c.h.b16 %v3582
    %v3958 = vunpack.c.l.b16 %v3583
    %v3959 = vunpack.c.h.b16 %v3583
    %v3960 = vunpack.c.l.b16 %v3584
    %v3961 = vunpack.c.h.b16 %v3584
    %v3962 = vunpack.c.l.b16 %v3585
    %v3963 = vunpack.c.h.b16 %v3585
    %v3964 = vunpack.c.l.b16 %v3586
    %v3965 = vunpack.c.h.b16 %v3586
    %v3966 = vunpack.c.l.b16 %v3587
    %v3967 = vunpack.c.h.b16 %v3587
    %v3968 = vunpack.c.l.b16 %v3588
    %v3969 = vunpack.c.h.b16 %v3588
    %v3970 = vunpack.c.l.b16 %v3589
    %v3971 = vunpack.c.h.b16 %v3589
    %v3972 = vunpack.c.l.b16 %v3590
    %v3973 = vunpack.c.h.b16 %v3590
    %v3974 = vunpack.c.l.b16 %v3591
    %v3975 = vunpack.c.h.b16 %v3591
    %v3976 = vpack.c.b16 %v3724, %v3720
    %v3977 = vpack.c.b16 %v3725, %v3721
    %v3978 = vpack.c.b16 %v3726, %v3722
    %v3979 = vpack.c.b16 %v3727, %v3723
    %v3980 = vpack.c.b16 %v3732, %v3728
    %v3981 = vpack.c.b16 %v3733, %v3729
    %v3982 = vpack.c.b16 %v3734, %v3730
    %v3983 = vpack.c.b16 %v3735, %v3731
    %v3984 = vpack.c.b16 %v3740, %v3736
    %v3985 = vpack.c.b16 %v3741, %v3737
    %v3986 = vpack.c.b16 %v3742, %v3738
    %v3987 = vpack.c.b16 %v3743, %v3739
    %v3988 = vpack.c.b16 %v3748, %v3744
    %v3989 = vpack.c.b16 %v3749, %v3745
    %v3990 = vpack.c.b16 %v3750, %v3746
    %v3991 = vpack.c.b16 %v3751, %v3747
    %v3992 = vpack.c.b16 %v3756, %v3752
    %v3993 = vpack.c.b16 %v3757, %v3753
    %v3994 = vpack.c.b16 %v3758, %v3754
    %v3995 = vpack.c.b16 %v3759, %v3755
    %v3996 = vpack.c.b16 %v3764, %v3760
    %v3997 = vpack.c.b16 %v3765, %v3761
    %v3998 = vpack.c.b16 %v3766, %v3762
    %v3999 = vpack.c.b16 %v3767, %v3763
    %v4000 = vpack.c.b16 %v3772, %v3768
    %v4001 = vpack.c.b16 %v3773, %v3769
    %v4002 = vpack.c.b16 %v3774, %v3770
    %v4003 = vpack.c.b16 %v3775, %v3771
    %v4004 = vpack.c.b16 %v3780, %v3776
    %v4005 = vpack.c.b16 %v3781, %v3777
    %v4006 = vpack.c.b16 %v3782, %v3778
    %v4007 = vpack.c.b16 %v3783, %v3779
    %v4008 = vpack.c.b16 %v3788, %v3784
    %v4009 = vpack.c.b16 %v3789, %v3785
    %v4010 = vpack.c.b16 %v3790, %v3786
    %v4011 = vpack.c.b16 %v3791, %v3787
    %v4012 = vpack.c.b16 %v3796, %v3792
    %v4013 = vpack.c.b16 %v3797, %v3793
    %v4014 = vpack.c.b16 %v3798, %v3794
    %v4015 = vpack.c.b16 %v3799, %v3795
    %v4016 = vpack.c.b16 %v3804, %v3800
    %v4017 = vpack.c.b16 %v3805, %v3801
    %v4018 = vpack.c.b16 %v3806, %v3802
    %v4019 = vpack.c.b16 %v3807, %v3803
    %v4020 = vpack.c.b16 %v3812, %v3808
    %v4021 = vpack.c.b16 %v3813, %v3809
    %v4022 = vpack.c.b16 %v3814, %v3810
    %v4023 = vpack.c.b16 %v3815, %v3811
    %v4024 = vpack.c.b16 %v3820, %v3816
    %v4025 = vpack.c.b16 %v3821, %v3817
    %v4026 = vpack.c.b16 %v3822, %v3818
    %v4027 = vpack.c.b16 %v3823, %v3819
    %v4028 = vpack.c.b16 %v3828, %v3824
    %v4029 = vpack.c.b16 %v3829, %v3825
    %v4030 = vpack.c.b16 %v3830, %v3826
    %v4031 = vpack.c.b16 %v3831, %v3827
    %v4032 = vpack.c.b16 %v3836, %v3832
    %v4033 = vpack.c.b16 %v3837, %v3833
    %v4034 = vpack.c.b16 %v3838, %v3834
    %v4035 = vpack.c.b16 %v3839, %v3835
    %v4036 = vpack.c.b16 %v3844, %v3840
    %v4037 = vpack.c.b16 %v3845, %v3841
    %v4038 = vpack.c.b16 %v3846, %v3842
    %v4039 = vpack.c.b16 %v3847, %v3843
    %v4040 = vpack.c.b16 %v3852, %v3848
    %v4041 = vpack.c.b16 %v3853, %v3849
    %v4042 = vpack.c.b16 %v3854, %v3850
    %v4043 = vpack.c.b16 %v3855, %v3851
    %v4044 = vpack.c.b16 %v3860, %v3856
    %v4045 = vpack.c.b16 %v3861, %v3857
    %v4046 = vpack.c.b16 %v3862, %v3858
    %v4047 = vpack.c.b16 %v3863, %v3859
    %v4048 = vpack.c.b16 %v3868, %v3864
    %v4049 = vpack.c.b16 %v3869, %v3865
    %v4050 = vpack.c.b16 %v3870, %v3866
    %v4051 = vpack.c.b16 %v3871, %v3867
    %v4052 = vpack.c.b16 %v3876, %v3872
    %v4053 = vpack.c.b16 %v3877, %v3873
    %v4054 = vpack.c.b16 %v3878, %v3874
    %v4055 = vpack.c.b16 %v3879, %v3875
    %v4056 = vpack.c.b16 %v3884, %v3880
    %v4057 = vpack.c.b16 %v3885, %v3881
    %v4058 = vpack.c.b16 %v3886, %v3882
    %v4059 = vpack.c.b16 %v3887, %v3883
    %v4060 = vpack.c.b16 %v3892, %v3888
    %v4061 = vpack.c.b16 %v3893, %v3889
    %v4062 = vpack.c.b16 %v3894, %v3890
    %v4063 = vpack.c.b16 %v3895, %v3891
    %v4064 = vpack.c.b16 %v3900, %v3896
    %v4065 = vpack.c.b16 %v3901, %v3897
    %v4066 = vpack.c.b16 %v3902, %v3898
    %v4067 = vpack.c.b16 %v3903, %v3899
    %v4068 = vpack.c.b16 %v3908, %v3904
    %v4069 = vpack.c.b16 %v3909, %v3905
    %v4070 = vpack.c.b16 %v3910, %v3906
    %v4071 = vpack.c.b16 %v3911, %v3907
    %v4072 = vpack.c.b16 %v3916, %v3912
    %v4073 = vpack.c.b16 %v3917, %v3913
    %v4074 = vpack.c.b16 %v3918, %v3914
    %v4075 = vpack.c.b16 %v3919, %v3915
    %v4076 = vpack.c.b16 %v3924, %v3920
    %v4077 = vpack.c.b16 %v3925, %v3921
    %v4078 = vpack.c.b16 %v3926, %v3922
    %v4079 = vpack.c.b16 %v3927, %v3923
    %v4080 = vpack.c.b16 %v3932, %v3928
    %v4081 = vpack.c.b16 %v3933, %v3929
    %v4082 = vpack.c.b16 %v3934, %v3930
    %v4083 = vpack.c.b16 %v3935, %v3931
    %v4084 = vpack.c.b16 %v3940, %v3936
    %v4085 = vpack.c.b16 %v3941, %v3937
    %v4086 = vpack.c.b16 %v3942, %v3938
    %v4087 = vpack.c.b16 %v3943, %v3939
    %v4088 = vpack.c.b16 %v3948, %v3944
    %v4089 = vpack.c.b16 %v3949, %v3945
    %v4090 = vpack.c.b16 %v3950, %v3946
    %v4091 = vpack.c.b16 %v3951, %v3947
    %v4092 = vpack.c.b16 %v3956, %v3952
    %v4093 = vpack.c.b16 %v3957, %v3953
    %v4094 = vpack.c.b16 %v3958, %v3954
    %v4095 = vpack.c.b16 %v3959, %v3955
    %v4096 = vpack.c.b16 %v3964, %v3960
    %v4097 = vpack.c.b16 %v3965, %v3961
    %v4098 = vpack.c.b16 %v3966, %v3962
    %v4099 = vpack.c.b16 %v3967, %v3963
    %v4100 = vpack.c.b16 %v3972, %v3968
    %v4101 = vpack.c.b16 %v3973, %v3969
    %v4102 = vpack.c.b16 %v3974, %v3970
    %v4103 = vpack.c.b16 %v3975, %v3971
    %4232 = vmatprep.subr.bf16.mxu0 %v4005
    %4233 = vmatpush1.bf16.msra.mxu0 %v4004
    %4234 = vmatprep.subr.bf16.mxu0 %v4001
    %4235 = vmatpush1.bf16.msra.mxu0 %v4000
    %4236 = vmatprep.subr.bf16.mxu0 %v3997
    %4237 = vmatpush1.bf16.msra.mxu0 %v3996
    %4238 = vmatprep.subr.bf16.mxu0 %v3993
    %4239 = vmatpush1.bf16.msra.mxu0 %v3992
    %4240 = vmatprep.subr.bf16.mxu0 %v3989
    %4241 = vmatpush1.bf16.msra.mxu0 %v3988
    %4242 = vmatprep.subr.bf16.mxu0 %v3985
    %4243 = vmatpush1.bf16.msra.mxu0 %v3984
    %4244 = vmatprep.subr.bf16.mxu0 %v3981
    %4245 = vmatpush1.bf16.msra.mxu0 %v3980
    %4246 = vmatprep.subr.bf16.mxu0 %v3977
    %4247 = vmatpush1.bf16.msra.mxu0 %v3976
    %4248 = vmatprep.subr.bf16.mxu0 %v4037
    %4249 = vmatpush2.bf16.msra.mxu0 %v4036
    %4250 = vmatprep.subr.bf16.mxu0 %v4033
    %4251 = vmatpush2.bf16.msra.mxu0 %v4032
    %4252 = vmatprep.subr.bf16.mxu0 %v4029
    %4253 = vmatpush2.bf16.msra.mxu0 %v4028
    %4254 = vmatprep.subr.bf16.mxu0 %v4025
    %4255 = vmatpush2.bf16.msra.mxu0 %v4024
    %4256 = vmatprep.subr.bf16.mxu0 %v4021
    %4257 = vmatpush2.bf16.msra.mxu0 %v4020
    %4258 = vmatprep.subr.bf16.mxu0 %v4017
    %4259 = vmatpush2.bf16.msra.mxu0 %v4016
    %4260 = vmatprep.subr.bf16.mxu0 %v4013
    %4261 = vmatpush2.bf16.msra.mxu0 %v4012
    %4262 = vmatprep.subr.bf16.mxu0 %v4009
    %4263 = vmatpush2.bf16.msra.mxu0 %v4008
    %4264 = vmatprep.mubr.bf16.mxu0 %v3461
    %4265 = vmatmul.mubr.bf16.gmra.mxu0 %v3460
    %v4266 = vpop.f32.mrf.mxu0
    %v4267 = vadd.f32 0.0, %v4266
    %v4268 = vpop.f32.mrf.mxu0
    %v4269 = vadd.f32 0.0, %v4268
    %v4270 = vpop.f32.mrf.mxu0
    %v4271 = vpop.f32.mrf.mxu0
    %4272 = vdwg.mxu0
    %4273 = vmatprep.subr.bf16.mxu0 %v4069
    %4274 = vmatpush1.bf16.msra.mxu0 %v4068
    %4275 = vmatprep.subr.bf16.mxu0 %v4065
    %4276 = vmatpush1.bf16.msra.mxu0 %v4064
    %4277 = vmatprep.subr.bf16.mxu0 %v4061
    %4278 = vmatpush1.bf16.msra.mxu0 %v4060
    %4279 = vmatprep.subr.bf16.mxu0 %v4057
    %4280 = vmatpush1.bf16.msra.mxu0 %v4056
    %4281 = vmatprep.subr.bf16.mxu0 %v4053
    %4282 = vmatpush1.bf16.msra.mxu0 %v4052
    %4283 = vmatprep.subr.bf16.mxu0 %v4049
    %4284 = vmatpush1.bf16.msra.mxu0 %v4048
    %4285 = vmatprep.subr.bf16.mxu0 %v4045
    %4286 = vmatpush1.bf16.msra.mxu0 %v4044
    %4287 = vmatprep.subr.bf16.mxu0 %v4041
    %4288 = vmatpush1.bf16.msra.mxu0 %v4040
    %4289 = vmatprep.subr.bf16.mxu0 %v4101
    %4290 = vmatpush2.bf16.msra.mxu0 %v4100
    %4291 = vmatprep.subr.bf16.mxu0 %v4097
    %4292 = vmatpush2.bf16.msra.mxu0 %v4096
    %4293 = vmatprep.subr.bf16.mxu0 %v4093
    %4294 = vmatpush2.bf16.msra.mxu0 %v4092
    %4295 = vmatprep.subr.bf16.mxu0 %v4089
    %4296 = vmatpush2.bf16.msra.mxu0 %v4088
    %4297 = vmatprep.subr.bf16.mxu0 %v4085
    %4298 = vmatpush2.bf16.msra.mxu0 %v4084
    %4299 = vmatprep.subr.bf16.mxu0 %v4081
    %4300 = vmatpush2.bf16.msra.mxu0 %v4080
    %4301 = vmatprep.subr.bf16.mxu0 %v4077
    %4302 = vmatpush2.bf16.msra.mxu0 %v4076
    %4303 = vmatprep.subr.bf16.mxu0 %v4073
    %4304 = vmatpush2.bf16.msra.mxu0 %v4072
    %4305 = vmatprep.mubr.bf16.mxu0 %v3463
    %4306 = vmatmul.mubr.bf16.gmra.mxu0 %v3462
    %v4307 = vpop.f32.mrf.mxu0
    %v4308 = vadd.f32 %v4267, %v4307
    %v4309 = vpop.f32.mrf.mxu0
    %v4310 = vadd.f32 %v4269, %v4309
    %v4311 = vpop.f32.mrf.mxu0
    %v4312 = vpop.f32.mrf.mxu0
    %4313 = vdwg.mxu0
    %4314 = vmatprep.subr.bf16.mxu0 %v4007
    %4315 = vmatpush1.bf16.msra.mxu0 %v4006
    %4316 = vmatprep.subr.bf16.mxu0 %v4003
    %4317 = vmatpush1.bf16.msra.mxu0 %v4002
    %4318 = vmatprep.subr.bf16.mxu0 %v3999
    %4319 = vmatpush1.bf16.msra.mxu0 %v3998
    %4320 = vmatprep.subr.bf16.mxu0 %v3995
    %4321 = vmatpush1.bf16.msra.mxu0 %v3994
    %4322 = vmatprep.subr.bf16.mxu0 %v3991
    %4323 = vmatpush1.bf16.msra.mxu0 %v3990
    %4324 = vmatprep.subr.bf16.mxu0 %v3987
    %4325 = vmatpush1.bf16.msra.mxu0 %v3986
    %4326 = vmatprep.subr.bf16.mxu0 %v3983
    %4327 = vmatpush1.bf16.msra.mxu0 %v3982
    %4328 = vmatprep.subr.bf16.mxu0 %v3979
    %4329 = vmatpush1.bf16.msra.mxu0 %v3978
    %4330 = vmatprep.subr.bf16.mxu0 %v4039
    %4331 = vmatpush2.bf16.msra.mxu0 %v4038
    %4332 = vmatprep.subr.bf16.mxu0 %v4035
    %4333 = vmatpush2.bf16.msra.mxu0 %v4034
    %4334 = vmatprep.subr.bf16.mxu0 %v4031
    %4335 = vmatpush2.bf16.msra.mxu0 %v4030
    %4336 = vmatprep.subr.bf16.mxu0 %v4027
    %4337 = vmatpush2.bf16.msra.mxu0 %v4026
    %4338 = vmatprep.subr.bf16.mxu0 %v4023
    %4339 = vmatpush2.bf16.msra.mxu0 %v4022
    %4340 = vmatprep.subr.bf16.mxu0 %v4019
    %4341 = vmatpush2.bf16.msra.mxu0 %v4018
    %4342 = vmatprep.subr.bf16.mxu0 %v4015
    %4343 = vmatpush2.bf16.msra.mxu0 %v4014
    %4344 = vmatprep.subr.bf16.mxu0 %v4011
    %4345 = vmatpush2.bf16.msra.mxu0 %v4010
    %4346 = vmatprep.mubr.bf16.mxu0 %v3461
    %4347 = vmatmul.mubr.bf16.gmra.mxu0 %v3460
    %v4348 = vpop.f32.mrf.mxu0
    %v4349 = vadd.f32 0.0, %v4348
    %v4350 = vpop.f32.mrf.mxu0
    %v4351 = vadd.f32 0.0, %v4350
    %v4352 = vpop.f32.mrf.mxu0
    %v4353 = vpop.f32.mrf.mxu0
    %4354 = vdwg.mxu0
    %4355 = vmatprep.subr.bf16.mxu0 %v4071
    %4356 = vmatpush1.bf16.msra.mxu0 %v4070
    %4357 = vmatprep.subr.bf16.mxu0 %v4067
    %4358 = vmatpush1.bf16.msra.mxu0 %v4066
    %4359 = vmatprep.subr.bf16.mxu0 %v4063
    %4360 = vmatpush1.bf16.msra.mxu0 %v4062
    %4361 = vmatprep.subr.bf16.mxu0 %v4059
    %4362 = vmatpush1.bf16.msra.mxu0 %v4058
    %4363 = vmatprep.subr.bf16.mxu0 %v4055
    %4364 = vmatpush1.bf16.msra.mxu0 %v4054
    %4365 = vmatprep.subr.bf16.mxu0 %v4051
    %4366 = vmatpush1.bf16.msra.mxu0 %v4050
    %4367 = vmatprep.subr.bf16.mxu0 %v4047
    %4368 = vmatpush1.bf16.msra.mxu0 %v4046
    %4369 = vmatprep.subr.bf16.mxu0 %v4043
    %4370 = vmatpush1.bf16.msra.mxu0 %v4042
    %4371 = vmatprep.subr.bf16.mxu0 %v4103
    %4372 = vmatpush2.bf16.msra.mxu0 %v4102
    %4373 = vmatprep.subr.bf16.mxu0 %v4099
    %4374 = vmatpush2.bf16.msra.mxu0 %v4098
    %4375 = vmatprep.subr.bf16.mxu0 %v4095
    %4376 = vmatpush2.bf16.msra.mxu0 %v4094
    %4377 = vmatprep.subr.bf16.mxu0 %v4091
    %4378 = vmatpush2.bf16.msra.mxu0 %v4090
    %4379 = vmatprep.subr.bf16.mxu0 %v4087
    %4380 = vmatpush2.bf16.msra.mxu0 %v4086
    %4381 = vmatprep.subr.bf16.mxu0 %v4083
    %4382 = vmatpush2.bf16.msra.mxu0 %v4082
    %4383 = vmatprep.subr.bf16.mxu0 %v4079
    %4384 = vmatpush2.bf16.msra.mxu0 %v4078
    %4385 = vmatprep.subr.bf16.mxu0 %v4075
    %4386 = vmatpush2.bf16.msra.mxu0 %v4074
    %4387 = vmatprep.mubr.bf16.mxu0 %v3463
    %4388 = vmatmul.mubr.bf16.gmra.mxu0 %v3462
    %v4389 = vpop.f32.mrf.mxu0
    %v4390 = vadd.f32 %v4349, %v4389
    %v4391 = vpop.f32.mrf.mxu0
    %v4392 = vadd.f32 %v4351, %v4391
    %v4393 = vpop.f32.mrf.mxu0
    %v4394 = vpop.f32.mrf.mxu0
    %4395 = vdwg.mxu0
    %v4524 = vunpack.c.l.b16 %v3311
    %v4525 = vunpack.c.h.b16 %v3311
    %v4526 = vunpack.c.l.b16 %v3312
    %v4527 = vunpack.c.h.b16 %v3312
    %v4528 = vunpack.c.l.b16 %v3313
    %v4529 = vunpack.c.h.b16 %v3313
    %v4530 = vunpack.c.l.b16 %v3314
    %v4531 = vunpack.c.h.b16 %v3314
    %v4532 = vunpack.c.l.b16 %v3315
    %v4533 = vunpack.c.h.b16 %v3315
    %v4534 = vunpack.c.l.b16 %v3316
    %v4535 = vunpack.c.h.b16 %v3316
    %v4536 = vunpack.c.l.b16 %v3317
    %v4537 = vunpack.c.h.b16 %v3317
    %v4538 = vunpack.c.l.b16 %v3318
    %v4539 = vunpack.c.h.b16 %v3318
    %v4540 = vunpack.c.l.b16 %v3319
    %v4541 = vunpack.c.h.b16 %v3319
    %v4542 = vunpack.c.l.b16 %v3320
    %v4543 = vunpack.c.h.b16 %v3320
    %v4544 = vunpack.c.l.b16 %v3321
    %v4545 = vunpack.c.h.b16 %v3321
    %v4546 = vunpack.c.l.b16 %v3322
    %v4547 = vunpack.c.h.b16 %v3322
    %v4548 = vunpack.c.l.b16 %v3323
    %v4549 = vunpack.c.h.b16 %v3323
    %v4550 = vunpack.c.l.b16 %v3324
    %v4551 = vunpack.c.h.b16 %v3324
    %v4552 = vunpack.c.l.b16 %v3325
    %v4553 = vunpack.c.h.b16 %v3325
    %v4554 = vunpack.c.l.b16 %v3326
    %v4555 = vunpack.c.h.b16 %v3326
    %v4556 = vunpack.c.l.b16 %v3327
    %v4557 = vunpack.c.h.b16 %v3327
    %v4558 = vunpack.c.l.b16 %v3328
    %v4559 = vunpack.c.h.b16 %v3328
    %v4560 = vunpack.c.l.b16 %v3329
    %v4561 = vunpack.c.h.b16 %v3329
    %v4562 = vunpack.c.l.b16 %v3330
    %v4563 = vunpack.c.h.b16 %v3330
    %v4564 = vunpack.c.l.b16 %v3331
    %v4565 = vunpack.c.h.b16 %v3331
    %v4566 = vunpack.c.l.b16 %v3332
    %v4567 = vunpack.c.h.b16 %v3332
    %v4568 = vunpack.c.l.b16 %v3333
    %v4569 = vunpack.c.h.b16 %v3333
    %v4570 = vunpack.c.l.b16 %v3334
    %v4571 = vunpack.c.h.b16 %v3334
    %v4572 = vunpack.c.l.b16 %v3335
    %v4573 = vunpack.c.h.b16 %v3335
    %v4574 = vunpack.c.l.b16 %v3336
    %v4575 = vunpack.c.h.b16 %v3336
    %v4576 = vunpack.c.l.b16 %v3337
    %v4577 = vunpack.c.h.b16 %v3337
    %v4578 = vunpack.c.l.b16 %v3338
    %v4579 = vunpack.c.h.b16 %v3338
    %v4580 = vunpack.c.l.b16 %v3339
    %v4581 = vunpack.c.h.b16 %v3339
    %v4582 = vunpack.c.l.b16 %v3340
    %v4583 = vunpack.c.h.b16 %v3340
    %v4584 = vunpack.c.l.b16 %v3341
    %v4585 = vunpack.c.h.b16 %v3341
    %v4586 = vunpack.c.l.b16 %v3342
    %v4587 = vunpack.c.h.b16 %v3342
    %v4588 = vunpack.c.l.b16 %v3343
    %v4589 = vunpack.c.h.b16 %v3343
    %v4590 = vunpack.c.l.b16 %v3344
    %v4591 = vunpack.c.h.b16 %v3344
    %v4592 = vunpack.c.l.b16 %v3345
    %v4593 = vunpack.c.h.b16 %v3345
    %v4594 = vunpack.c.l.b16 %v3346
    %v4595 = vunpack.c.h.b16 %v3346
    %v4596 = vunpack.c.l.b16 %v3347
    %v4597 = vunpack.c.h.b16 %v3347
    %v4598 = vunpack.c.l.b16 %v3348
    %v4599 = vunpack.c.h.b16 %v3348
    %v4600 = vunpack.c.l.b16 %v3349
    %v4601 = vunpack.c.h.b16 %v3349
    %v4602 = vunpack.c.l.b16 %v3350
    %v4603 = vunpack.c.h.b16 %v3350
    %v4604 = vunpack.c.l.b16 %v3351
    %v4605 = vunpack.c.h.b16 %v3351
    %v4606 = vunpack.c.l.b16 %v3352
    %v4607 = vunpack.c.h.b16 %v3352
    %v4608 = vunpack.c.l.b16 %v3353
    %v4609 = vunpack.c.h.b16 %v3353
    %v4610 = vunpack.c.l.b16 %v3354
    %v4611 = vunpack.c.h.b16 %v3354
    %v4612 = vunpack.c.l.b16 %v3355
    %v4613 = vunpack.c.h.b16 %v3355
    %v4614 = vunpack.c.l.b16 %v3356
    %v4615 = vunpack.c.h.b16 %v3356
    %v4616 = vunpack.c.l.b16 %v3357
    %v4617 = vunpack.c.h.b16 %v3357
    %v4618 = vunpack.c.l.b16 %v3358
    %v4619 = vunpack.c.h.b16 %v3358
    %v4620 = vunpack.c.l.b16 %v3359
    %v4621 = vunpack.c.h.b16 %v3359
    %v4622 = vunpack.c.l.b16 %v3360
    %v4623 = vunpack.c.h.b16 %v3360
    %v4624 = vunpack.c.l.b16 %v3361
    %v4625 = vunpack.c.h.b16 %v3361
    %v4626 = vunpack.c.l.b16 %v3362
    %v4627 = vunpack.c.h.b16 %v3362
    %v4628 = vunpack.c.l.b16 %v3363
    %v4629 = vunpack.c.h.b16 %v3363
    %v4630 = vunpack.c.l.b16 %v3364
    %v4631 = vunpack.c.h.b16 %v3364
    %v4632 = vunpack.c.l.b16 %v3365
    %v4633 = vunpack.c.h.b16 %v3365
    %v4634 = vunpack.c.l.b16 %v3366
    %v4635 = vunpack.c.h.b16 %v3366
    %v4636 = vunpack.c.l.b16 %v3367
    %v4637 = vunpack.c.h.b16 %v3367
    %v4638 = vunpack.c.l.b16 %v3368
    %v4639 = vunpack.c.h.b16 %v3368
    %v4640 = vunpack.c.l.b16 %v3369
    %v4641 = vunpack.c.h.b16 %v3369
    %v4642 = vunpack.c.l.b16 %v3370
    %v4643 = vunpack.c.h.b16 %v3370
    %v4644 = vunpack.c.l.b16 %v3371
    %v4645 = vunpack.c.h.b16 %v3371
    %v4646 = vunpack.c.l.b16 %v3372
    %v4647 = vunpack.c.h.b16 %v3372
    %v4648 = vunpack.c.l.b16 %v3373
    %v4649 = vunpack.c.h.b16 %v3373
    %v4650 = vunpack.c.l.b16 %v3374
    %v4651 = vunpack.c.h.b16 %v3374
    %v4652 = vunpack.c.l.b16 %v3375
    %v4653 = vunpack.c.h.b16 %v3375
    %v4654 = vunpack.c.l.b16 %v3376
    %v4655 = vunpack.c.h.b16 %v3376
    %v4656 = vunpack.c.l.b16 %v3377
    %v4657 = vunpack.c.h.b16 %v3377
    %v4658 = vunpack.c.l.b16 %v3378
    %v4659 = vunpack.c.h.b16 %v3378
    %v4660 = vunpack.c.l.b16 %v3379
    %v4661 = vunpack.c.h.b16 %v3379
    %v4662 = vunpack.c.l.b16 %v3380
    %v4663 = vunpack.c.h.b16 %v3380
    %v4664 = vunpack.c.l.b16 %v3381
    %v4665 = vunpack.c.h.b16 %v3381
    %v4666 = vunpack.c.l.b16 %v3382
    %v4667 = vunpack.c.h.b16 %v3382
    %v4668 = vunpack.c.l.b16 %v3383
    %v4669 = vunpack.c.h.b16 %v3383
    %v4670 = vunpack.c.l.b16 %v3384
    %v4671 = vunpack.c.h.b16 %v3384
    %v4672 = vunpack.c.l.b16 %v3385
    %v4673 = vunpack.c.h.b16 %v3385
    %v4674 = vunpack.c.l.b16 %v3386
    %v4675 = vunpack.c.h.b16 %v3386
    %v4676 = vunpack.c.l.b16 %v3387
    %v4677 = vunpack.c.h.b16 %v3387
    %v4678 = vunpack.c.l.b16 %v3388
    %v4679 = vunpack.c.h.b16 %v3388
    %v4680 = vunpack.c.l.b16 %v3389
    %v4681 = vunpack.c.h.b16 %v3389
    %v4682 = vunpack.c.l.b16 %v3390
    %v4683 = vunpack.c.h.b16 %v3390
    %v4684 = vunpack.c.l.b16 %v3391
    %v4685 = vunpack.c.h.b16 %v3391
    %v4686 = vunpack.c.l.b16 %v3392
    %v4687 = vunpack.c.h.b16 %v3392
    %v4688 = vunpack.c.l.b16 %v3393
    %v4689 = vunpack.c.h.b16 %v3393
    %v4690 = vunpack.c.l.b16 %v3394
    %v4691 = vunpack.c.h.b16 %v3394
    %v4692 = vunpack.c.l.b16 %v3395
    %v4693 = vunpack.c.h.b16 %v3395
    %v4694 = vunpack.c.l.b16 %v3396
    %v4695 = vunpack.c.h.b16 %v3396
    %v4696 = vunpack.c.l.b16 %v3397
    %v4697 = vunpack.c.h.b16 %v3397
    %v4698 = vunpack.c.l.b16 %v3398
    %v4699 = vunpack.c.h.b16 %v3398
    %v4700 = vunpack.c.l.b16 %v3399
    %v4701 = vunpack.c.h.b16 %v3399
    %v4702 = vunpack.c.l.b16 %v3400
    %v4703 = vunpack.c.h.b16 %v3400
    %v4704 = vunpack.c.l.b16 %v3401
    %v4705 = vunpack.c.h.b16 %v3401
    %v4706 = vunpack.c.l.b16 %v3402
    %v4707 = vunpack.c.h.b16 %v3402
    %v4708 = vunpack.c.l.b16 %v3403
    %v4709 = vunpack.c.h.b16 %v3403
    %v4710 = vunpack.c.l.b16 %v3404
    %v4711 = vunpack.c.h.b16 %v3404
    %v4712 = vunpack.c.l.b16 %v3405
    %v4713 = vunpack.c.h.b16 %v3405
    %v4714 = vunpack.c.l.b16 %v3406
    %v4715 = vunpack.c.h.b16 %v3406
    %v4716 = vunpack.c.l.b16 %v3407
    %v4717 = vunpack.c.h.b16 %v3407
    %v4718 = vunpack.c.l.b16 %v3408
    %v4719 = vunpack.c.h.b16 %v3408
    %v4720 = vunpack.c.l.b16 %v3409
    %v4721 = vunpack.c.h.b16 %v3409
    %v4722 = vunpack.c.l.b16 %v3410
    %v4723 = vunpack.c.h.b16 %v3410
    %v4724 = vunpack.c.l.b16 %v3411
    %v4725 = vunpack.c.h.b16 %v3411
    %v4726 = vunpack.c.l.b16 %v3412
    %v4727 = vunpack.c.h.b16 %v3412
    %v4728 = vunpack.c.l.b16 %v3413
    %v4729 = vunpack.c.h.b16 %v3413
    %v4730 = vunpack.c.l.b16 %v3414
    %v4731 = vunpack.c.h.b16 %v3414
    %v4732 = vunpack.c.l.b16 %v3415
    %v4733 = vunpack.c.h.b16 %v3415
    %v4734 = vunpack.c.l.b16 %v3416
    %v4735 = vunpack.c.h.b16 %v3416
    %v4736 = vunpack.c.l.b16 %v3417
    %v4737 = vunpack.c.h.b16 %v3417
    %v4738 = vunpack.c.l.b16 %v3418
    %v4739 = vunpack.c.h.b16 %v3418
    %v4740 = vunpack.c.l.b16 %v3419
    %v4741 = vunpack.c.h.b16 %v3419
    %v4742 = vunpack.c.l.b16 %v3420
    %v4743 = vunpack.c.h.b16 %v3420
    %v4744 = vunpack.c.l.b16 %v3421
    %v4745 = vunpack.c.h.b16 %v3421
    %v4746 = vunpack.c.l.b16 %v3422
    %v4747 = vunpack.c.h.b16 %v3422
    %v4748 = vunpack.c.l.b16 %v3423
    %v4749 = vunpack.c.h.b16 %v3423
    %v4750 = vunpack.c.l.b16 %v3424
    %v4751 = vunpack.c.h.b16 %v3424
    %v4752 = vunpack.c.l.b16 %v3425
    %v4753 = vunpack.c.h.b16 %v3425
    %v4754 = vunpack.c.l.b16 %v3426
    %v4755 = vunpack.c.h.b16 %v3426
    %v4756 = vunpack.c.l.b16 %v3427
    %v4757 = vunpack.c.h.b16 %v3427
    %v4758 = vunpack.c.l.b16 %v3428
    %v4759 = vunpack.c.h.b16 %v3428
    %v4760 = vunpack.c.l.b16 %v3429
    %v4761 = vunpack.c.h.b16 %v3429
    %v4762 = vunpack.c.l.b16 %v3430
    %v4763 = vunpack.c.h.b16 %v3430
    %v4764 = vunpack.c.l.b16 %v3431
    %v4765 = vunpack.c.h.b16 %v3431
    %v4766 = vunpack.c.l.b16 %v3432
    %v4767 = vunpack.c.h.b16 %v3432
    %v4768 = vunpack.c.l.b16 %v3433
    %v4769 = vunpack.c.h.b16 %v3433
    %v4770 = vunpack.c.l.b16 %v3434
    %v4771 = vunpack.c.h.b16 %v3434
    %v4772 = vunpack.c.l.b16 %v3435
    %v4773 = vunpack.c.h.b16 %v3435
    %v4774 = vunpack.c.l.b16 %v3436
    %v4775 = vunpack.c.h.b16 %v3436
    %v4776 = vunpack.c.l.b16 %v3437
    %v4777 = vunpack.c.h.b16 %v3437
    %v4778 = vunpack.c.l.b16 %v3438
    %v4779 = vunpack.c.h.b16 %v3438
    %v4780 = vpack.c.b16 %v4528, %v4524
    %v4781 = vpack.c.b16 %v4529, %v4525
    %v4782 = vpack.c.b16 %v4530, %v4526
    %v4783 = vpack.c.b16 %v4531, %v4527
    %v4784 = vpack.c.b16 %v4536, %v4532
    %v4785 = vpack.c.b16 %v4537, %v4533
    %v4786 = vpack.c.b16 %v4538, %v4534
    %v4787 = vpack.c.b16 %v4539, %v4535
    %v4788 = vpack.c.b16 %v4544, %v4540
    %v4789 = vpack.c.b16 %v4545, %v4541
    %v4790 = vpack.c.b16 %v4546, %v4542
    %v4791 = vpack.c.b16 %v4547, %v4543
    %v4792 = vpack.c.b16 %v4552, %v4548
    %v4793 = vpack.c.b16 %v4553, %v4549
    %v4794 = vpack.c.b16 %v4554, %v4550
    %v4795 = vpack.c.b16 %v4555, %v4551
    %v4796 = vpack.c.b16 %v4560, %v4556
    %v4797 = vpack.c.b16 %v4561, %v4557
    %v4798 = vpack.c.b16 %v4562, %v4558
    %v4799 = vpack.c.b16 %v4563, %v4559
    %v4800 = vpack.c.b16 %v4568, %v4564
    %v4801 = vpack.c.b16 %v4569, %v4565
    %v4802 = vpack.c.b16 %v4570, %v4566
    %v4803 = vpack.c.b16 %v4571, %v4567
    %v4804 = vpack.c.b16 %v4576, %v4572
    %v4805 = vpack.c.b16 %v4577, %v4573
    %v4806 = vpack.c.b16 %v4578, %v4574
    %v4807 = vpack.c.b16 %v4579, %v4575
    %v4808 = vpack.c.b16 %v4584, %v4580
    %v4809 = vpack.c.b16 %v4585, %v4581
    %v4810 = vpack.c.b16 %v4586, %v4582
    %v4811 = vpack.c.b16 %v4587, %v4583
    %v4812 = vpack.c.b16 %v4592, %v4588
    %v4813 = vpack.c.b16 %v4593, %v4589
    %v4814 = vpack.c.b16 %v4594, %v4590
    %v4815 = vpack.c.b16 %v4595, %v4591
    %v4816 = vpack.c.b16 %v4600, %v4596
    %v4817 = vpack.c.b16 %v4601, %v4597
    %v4818 = vpack.c.b16 %v4602, %v4598
    %v4819 = vpack.c.b16 %v4603, %v4599
    %v4820 = vpack.c.b16 %v4608, %v4604
    %v4821 = vpack.c.b16 %v4609, %v4605
    %v4822 = vpack.c.b16 %v4610, %v4606
    %v4823 = vpack.c.b16 %v4611, %v4607
    %v4824 = vpack.c.b16 %v4616, %v4612
    %v4825 = vpack.c.b16 %v4617, %v4613
    %v4826 = vpack.c.b16 %v4618, %v4614
    %v4827 = vpack.c.b16 %v4619, %v4615
    %v4828 = vpack.c.b16 %v4624, %v4620
    %v4829 = vpack.c.b16 %v4625, %v4621
    %v4830 = vpack.c.b16 %v4626, %v4622
    %v4831 = vpack.c.b16 %v4627, %v4623
    %v4832 = vpack.c.b16 %v4632, %v4628
    %v4833 = vpack.c.b16 %v4633, %v4629
    %v4834 = vpack.c.b16 %v4634, %v4630
    %v4835 = vpack.c.b16 %v4635, %v4631
    %v4836 = vpack.c.b16 %v4640, %v4636
    %v4837 = vpack.c.b16 %v4641, %v4637
    %v4838 = vpack.c.b16 %v4642, %v4638
    %v4839 = vpack.c.b16 %v4643, %v4639
    %v4840 = vpack.c.b16 %v4648, %v4644
    %v4841 = vpack.c.b16 %v4649, %v4645
    %v4842 = vpack.c.b16 %v4650, %v4646
    %v4843 = vpack.c.b16 %v4651, %v4647
    %v4844 = vpack.c.b16 %v4656, %v4652
    %v4845 = vpack.c.b16 %v4657, %v4653
    %v4846 = vpack.c.b16 %v4658, %v4654
    %v4847 = vpack.c.b16 %v4659, %v4655
    %v4848 = vpack.c.b16 %v4664, %v4660
    %v4849 = vpack.c.b16 %v4665, %v4661
    %v4850 = vpack.c.b16 %v4666, %v4662
    %v4851 = vpack.c.b16 %v4667, %v4663
    %v4852 = vpack.c.b16 %v4672, %v4668
    %v4853 = vpack.c.b16 %v4673, %v4669
    %v4854 = vpack.c.b16 %v4674, %v4670
    %v4855 = vpack.c.b16 %v4675, %v4671
    %v4856 = vpack.c.b16 %v4680, %v4676
    %v4857 = vpack.c.b16 %v4681, %v4677
    %v4858 = vpack.c.b16 %v4682, %v4678
    %v4859 = vpack.c.b16 %v4683, %v4679
    %v4860 = vpack.c.b16 %v4688, %v4684
    %v4861 = vpack.c.b16 %v4689, %v4685
    %v4862 = vpack.c.b16 %v4690, %v4686
    %v4863 = vpack.c.b16 %v4691, %v4687
    %v4864 = vpack.c.b16 %v4696, %v4692
    %v4865 = vpack.c.b16 %v4697, %v4693
    %v4866 = vpack.c.b16 %v4698, %v4694
    %v4867 = vpack.c.b16 %v4699, %v4695
    %v4868 = vpack.c.b16 %v4704, %v4700
    %v4869 = vpack.c.b16 %v4705, %v4701
    %v4870 = vpack.c.b16 %v4706, %v4702
    %v4871 = vpack.c.b16 %v4707, %v4703
    %v4872 = vpack.c.b16 %v4712, %v4708
    %v4873 = vpack.c.b16 %v4713, %v4709
    %v4874 = vpack.c.b16 %v4714, %v4710
    %v4875 = vpack.c.b16 %v4715, %v4711
    %v4876 = vpack.c.b16 %v4720, %v4716
    %v4877 = vpack.c.b16 %v4721, %v4717
    %v4878 = vpack.c.b16 %v4722, %v4718
    %v4879 = vpack.c.b16 %v4723, %v4719
    %v4880 = vpack.c.b16 %v4728, %v4724
    %v4881 = vpack.c.b16 %v4729, %v4725
    %v4882 = vpack.c.b16 %v4730, %v4726
    %v4883 = vpack.c.b16 %v4731, %v4727
    %v4884 = vpack.c.b16 %v4736, %v4732
    %v4885 = vpack.c.b16 %v4737, %v4733
    %v4886 = vpack.c.b16 %v4738, %v4734
    %v4887 = vpack.c.b16 %v4739, %v4735
    %v4888 = vpack.c.b16 %v4744, %v4740
    %v4889 = vpack.c.b16 %v4745, %v4741
    %v4890 = vpack.c.b16 %v4746, %v4742
    %v4891 = vpack.c.b16 %v4747, %v4743
    %v4892 = vpack.c.b16 %v4752, %v4748
    %v4893 = vpack.c.b16 %v4753, %v4749
    %v4894 = vpack.c.b16 %v4754, %v4750
    %v4895 = vpack.c.b16 %v4755, %v4751
    %v4896 = vpack.c.b16 %v4760, %v4756
    %v4897 = vpack.c.b16 %v4761, %v4757
    %v4898 = vpack.c.b16 %v4762, %v4758
    %v4899 = vpack.c.b16 %v4763, %v4759
    %v4900 = vpack.c.b16 %v4768, %v4764
    %v4901 = vpack.c.b16 %v4769, %v4765
    %v4902 = vpack.c.b16 %v4770, %v4766
    %v4903 = vpack.c.b16 %v4771, %v4767
    %v4904 = vpack.c.b16 %v4776, %v4772
    %v4905 = vpack.c.b16 %v4777, %v4773
    %v4906 = vpack.c.b16 %v4778, %v4774
    %v4907 = vpack.c.b16 %v4779, %v4775
    %5036 = vmatprep.subr.bf16.mxu0 %v4809
    %5037 = vmatpush1.bf16.msra.mxu0 %v4808
    %5038 = vmatprep.subr.bf16.mxu0 %v4805
    %5039 = vmatpush1.bf16.msra.mxu0 %v4804
    %5040 = vmatprep.subr.bf16.mxu0 %v4801
    %5041 = vmatpush1.bf16.msra.mxu0 %v4800
    %5042 = vmatprep.subr.bf16.mxu0 %v4797
    %5043 = vmatpush1.bf16.msra.mxu0 %v4796
    %5044 = vmatprep.subr.bf16.mxu0 %v4793
    %5045 = vmatpush1.bf16.msra.mxu0 %v4792
    %5046 = vmatprep.subr.bf16.mxu0 %v4789
    %5047 = vmatpush1.bf16.msra.mxu0 %v4788
    %5048 = vmatprep.subr.bf16.mxu0 %v4785
    %5049 = vmatpush1.bf16.msra.mxu0 %v4784
    %5050 = vmatprep.subr.bf16.mxu0 %v4781
    %5051 = vmatpush1.bf16.msra.mxu0 %v4780
    %5052 = vmatprep.subr.bf16.mxu0 %v4841
    %5053 = vmatpush2.bf16.msra.mxu0 %v4840
    %5054 = vmatprep.subr.bf16.mxu0 %v4837
    %5055 = vmatpush2.bf16.msra.mxu0 %v4836
    %5056 = vmatprep.subr.bf16.mxu0 %v4833
    %5057 = vmatpush2.bf16.msra.mxu0 %v4832
    %5058 = vmatprep.subr.bf16.mxu0 %v4829
    %5059 = vmatpush2.bf16.msra.mxu0 %v4828
    %5060 = vmatprep.subr.bf16.mxu0 %v4825
    %5061 = vmatpush2.bf16.msra.mxu0 %v4824
    %5062 = vmatprep.subr.bf16.mxu0 %v4821
    %5063 = vmatpush2.bf16.msra.mxu0 %v4820
    %5064 = vmatprep.subr.bf16.mxu0 %v4817
    %5065 = vmatpush2.bf16.msra.mxu0 %v4816
    %5066 = vmatprep.subr.bf16.mxu0 %v4813
    %5067 = vmatpush2.bf16.msra.mxu0 %v4812
    %5068 = vmatprep.mubr.bf16.mxu0 %v3308
    %5069 = vmatmul.mubr.bf16.gmra.mxu0 %v3307
    %v5070 = vpop.f32.mrf.mxu0
    %v5071 = vadd.f32 %v4308, %v5070
    %v5072 = vpop.f32.mrf.mxu0
    %v5073 = vadd.f32 %v4310, %v5072
    %v5074 = vpop.f32.mrf.mxu0
    %v5075 = vpop.f32.mrf.mxu0
    %5076 = vdwg.mxu0
    %5077 = vmatprep.subr.bf16.mxu0 %v4873
    %5078 = vmatpush1.bf16.msra.mxu0 %v4872
    %5079 = vmatprep.subr.bf16.mxu0 %v4869
    %5080 = vmatpush1.bf16.msra.mxu0 %v4868
    %5081 = vmatprep.subr.bf16.mxu0 %v4865
    %5082 = vmatpush1.bf16.msra.mxu0 %v4864
    %5083 = vmatprep.subr.bf16.mxu0 %v4861
    %5084 = vmatpush1.bf16.msra.mxu0 %v4860
    %5085 = vmatprep.subr.bf16.mxu0 %v4857
    %5086 = vmatpush1.bf16.msra.mxu0 %v4856
    %5087 = vmatprep.subr.bf16.mxu0 %v4853
    %5088 = vmatpush1.bf16.msra.mxu0 %v4852
    %5089 = vmatprep.subr.bf16.mxu0 %v4849
    %5090 = vmatpush1.bf16.msra.mxu0 %v4848
    %5091 = vmatprep.subr.bf16.mxu0 %v4845
    %5092 = vmatpush1.bf16.msra.mxu0 %v4844
    %5093 = vmatprep.subr.bf16.mxu0 %v4905
    %5094 = vmatpush2.bf16.msra.mxu0 %v4904
    %5095 = vmatprep.subr.bf16.mxu0 %v4901
    %5096 = vmatpush2.bf16.msra.mxu0 %v4900
    %5097 = vmatprep.subr.bf16.mxu0 %v4897
    %5098 = vmatpush2.bf16.msra.mxu0 %v4896
    %5099 = vmatprep.subr.bf16.mxu0 %v4893
    %5100 = vmatpush2.bf16.msra.mxu0 %v4892
    %5101 = vmatprep.subr.bf16.mxu0 %v4889
    %5102 = vmatpush2.bf16.msra.mxu0 %v4888
    %5103 = vmatprep.subr.bf16.mxu0 %v4885
    %5104 = vmatpush2.bf16.msra.mxu0 %v4884
    %5105 = vmatprep.subr.bf16.mxu0 %v4881
    %5106 = vmatpush2.bf16.msra.mxu0 %v4880
    %5107 = vmatprep.subr.bf16.mxu0 %v4877
    %5108 = vmatpush2.bf16.msra.mxu0 %v4876
    %5109 = vmatprep.mubr.bf16.mxu0 %v3310
    %5110 = vmatmul.mubr.bf16.gmra.mxu0 %v3309
    %v5111 = vpop.f32.mrf.mxu0
    %v5112 = vadd.f32 %v5071, %v5111
    %v5113 = vpop.f32.mrf.mxu0
    %v5114 = vadd.f32 %v5073, %v5113
    %v5115 = vpop.f32.mrf.mxu0
    %v5116 = vpop.f32.mrf.mxu0
    %5117 = vdwg.mxu0
    %5118 = vmatprep.subr.bf16.mxu0 %v4811
    %5119 = vmatpush1.bf16.msra.mxu0 %v4810
    %5120 = vmatprep.subr.bf16.mxu0 %v4807
    %5121 = vmatpush1.bf16.msra.mxu0 %v4806
    %5122 = vmatprep.subr.bf16.mxu0 %v4803
    %5123 = vmatpush1.bf16.msra.mxu0 %v4802
    %5124 = vmatprep.subr.bf16.mxu0 %v4799
    %5125 = vmatpush1.bf16.msra.mxu0 %v4798
    %5126 = vmatprep.subr.bf16.mxu0 %v4795
    %5127 = vmatpush1.bf16.msra.mxu0 %v4794
    %5128 = vmatprep.subr.bf16.mxu0 %v4791
    %5129 = vmatpush1.bf16.msra.mxu0 %v4790
    %5130 = vmatprep.subr.bf16.mxu0 %v4787
    %5131 = vmatpush1.bf16.msra.mxu0 %v4786
    %5132 = vmatprep.subr.bf16.mxu0 %v4783
    %5133 = vmatpush1.bf16.msra.mxu0 %v4782
    %5134 = vmatprep.subr.bf16.mxu0 %v4843
    %5135 = vmatpush2.bf16.msra.mxu0 %v4842
    %5136 = vmatprep.subr.bf16.mxu0 %v4839
    %5137 = vmatpush2.bf16.msra.mxu0 %v4838
    %5138 = vmatprep.subr.bf16.mxu0 %v4835
    %5139 = vmatpush2.bf16.msra.mxu0 %v4834
    %5140 = vmatprep.subr.bf16.mxu0 %v4831
    %5141 = vmatpush2.bf16.msra.mxu0 %v4830
    %5142 = vmatprep.subr.bf16.mxu0 %v4827
    %5143 = vmatpush2.bf16.msra.mxu0 %v4826
    %5144 = vmatprep.subr.bf16.mxu0 %v4823
    %5145 = vmatpush2.bf16.msra.mxu0 %v4822
    %5146 = vmatprep.subr.bf16.mxu0 %v4819
    %5147 = vmatpush2.bf16.msra.mxu0 %v4818
    %5148 = vmatprep.subr.bf16.mxu0 %v4815
    %5149 = vmatpush2.bf16.msra.mxu0 %v4814
    %5150 = vmatprep.mubr.bf16.mxu0 %v3308
    %5151 = vmatmul.mubr.bf16.gmra.mxu0 %v3307
    %v5152 = vpop.f32.mrf.mxu0
    %v5153 = vadd.f32 %v4390, %v5152
    %v5154 = vpop.f32.mrf.mxu0
    %v5155 = vadd.f32 %v4392, %v5154
    %v5156 = vpop.f32.mrf.mxu0
    %v5157 = vpop.f32.mrf.mxu0
    %5158 = vdwg.mxu0
    %5159 = vmatprep.subr.bf16.mxu0 %v4875
    %5160 = vmatpush1.bf16.msra.mxu0 %v4874
    %5161 = vmatprep.subr.bf16.mxu0 %v4871
    %5162 = vmatpush1.bf16.msra.mxu0 %v4870
    %5163 = vmatprep.subr.bf16.mxu0 %v4867
    %5164 = vmatpush1.bf16.msra.mxu0 %v4866
    %5165 = vmatprep.subr.bf16.mxu0 %v4863
    %5166 = vmatpush1.bf16.msra.mxu0 %v4862
    %5167 = vmatprep.subr.bf16.mxu0 %v4859
    %5168 = vmatpush1.bf16.msra.mxu0 %v4858
    %5169 = vmatprep.subr.bf16.mxu0 %v4855
    %5170 = vmatpush1.bf16.msra.mxu0 %v4854
    %5171 = vmatprep.subr.bf16.mxu0 %v4851
    %5172 = vmatpush1.bf16.msra.mxu0 %v4850
    %5173 = vmatprep.subr.bf16.mxu0 %v4847
    %5174 = vmatpush1.bf16.msra.mxu0 %v4846
    %5175 = vmatprep.subr.bf16.mxu0 %v4907
    %5176 = vmatpush2.bf16.msra.mxu0 %v4906
    %5177 = vmatprep.subr.bf16.mxu0 %v4903
    %5178 = vmatpush2.bf16.msra.mxu0 %v4902
    %5179 = vmatprep.subr.bf16.mxu0 %v4899
    %5180 = vmatpush2.bf16.msra.mxu0 %v4898
    %5181 = vmatprep.subr.bf16.mxu0 %v4895
    %5182 = vmatpush2.bf16.msra.mxu0 %v4894
    %5183 = vmatprep.subr.bf16.mxu0 %v4891
    %5184 = vmatpush2.bf16.msra.mxu0 %v4890
    %5185 = vmatprep.subr.bf16.mxu0 %v4887
    %5186 = vmatpush2.bf16.msra.mxu0 %v4886
    %5187 = vmatprep.subr.bf16.mxu0 %v4883
    %5188 = vmatpush2.bf16.msra.mxu0 %v4882
    %5189 = vmatprep.subr.bf16.mxu0 %v4879
    %5190 = vmatpush2.bf16.msra.mxu0 %v4878
    %5191 = vmatprep.mubr.bf16.mxu0 %v3310
    %5192 = vmatmul.mubr.bf16.gmra.mxu0 %v3309
    %v5193 = vpop.f32.mrf.mxu0
    %v5194 = vadd.f32 %v5153, %v5193
    %v5195 = vpop.f32.mrf.mxu0
    %v5196 = vadd.f32 %v5155, %v5195
    %v5197 = vpop.f32.mrf.mxu0
    %v5198 = vpop.f32.mrf.mxu0
    %5199 = vdwg.mxu0
    %v5200 = vld [vmem:[%s10] sm:$0xf]
    %v5202 = vlaneseq
    %v5203 = vshrl.u32 %v5202, 7
    %v5204 = vsub.s32 0, %v5203
    %v5205 = vrot.slane %v5200, %v5204
    %v5206 = vlaneseq
    %v5207 = vshrl.u32 %v5206, 7
    %v5208 = vsub.s32 1, %v5207
    %v5209 = vrot.slane %v5200, %v5208
    %v5210 = vlaneseq
    %v5211 = vshrl.u32 %v5210, 7
    %v5212 = vsub.s32 2, %v5211
    %v5213 = vrot.slane %v5200, %v5212
    %v5214 = vlaneseq
    %v5215 = vshrl.u32 %v5214, 7
    %v5216 = vsub.s32 3, %v5215
    %v5217 = vrot.slane %v5200, %v5216
    %v5222 = vadd.f32 %v5112, %v5205
    %v5223 = vadd.f32 %v5114, %v5209
    %v5224 = vadd.f32 %v5194, %v5213
    %v5225 = vadd.f32 %v5196, %v5217
    %v5226 = vlaneseq
    %v5227 = vshrl.u32 %v5226, 7
    %v5228 = vsub.s32 0, %v5227
    %v5229 = vrot.slane %v5222, %v5228
    %v5230 = vlaneseq
    %v5231 = vshrl.u32 %v5230, 7
    %v5232 = vsub.s32 0, %v5231
    %v5233 = vrot.slane %v5223, %v5232
    %v5234 = vlaneseq
    %v5235 = vshrl.u32 %v5234, 7
    %v5236 = vsub.s32 0, %v5235
    %v5237 = vrot.slane %v5224, %v5236
    %v5238 = vlaneseq
    %v5239 = vshrl.u32 %v5238, 7
    %v5240 = vsub.s32 0, %v5239
    %v5241 = vrot.slane %v5225, %v5240
    %v5242 = vadd.f32 %v3059, %v5229
    %v5243 = vadd.f32 %v3061, %v5233
    %v5244 = vadd.f32 %v3145, %v5237
    %v5245 = vadd.f32 %v3147, %v5241
    %v5246 = vtanh.pop %v5242
    %v5247 = vtanh.pop %v5243
    %v5248 = vtanh.pop %v5244
    %v5249 = vtanh.pop %v5245
    %v5250 = vpack.c.bf16 %v5246, %v5246
    %v5251 = vpack.c.bf16 %v5247, %v5247
    %v5252 = vpack.c.bf16 %v5248, %v5248
    %v5253 = vpack.c.bf16 %v5249, %v5249
    %v5254 = vld [vmem:[#allocation2] sm:$0xff]
    %v5255 = vld [vmem:[#allocation2 + $0x8] sm:$0xff]
    %v5256 = vld [vmem:[#allocation2 + $0x10] sm:$0xff]
    %v5257 = vld [vmem:[#allocation2 + $0x18] sm:$0xff]
    %v5258 = vld [vmem:[#allocation2 + $0x20] sm:$0xff]
    %v5259 = vld [vmem:[#allocation2 + $0x28] sm:$0xff]
    %v5260 = vld [vmem:[#allocation2 + $0x30] sm:$0xff]
    %v5261 = vld [vmem:[#allocation2 + $0x38] sm:$0xff]
    %v5262 = vld [vmem:[#allocation2 + $0x40] sm:$0xff]
    %v5263 = vld [vmem:[#allocation2 + $0x48] sm:$0xff]
    %v5264 = vld [vmem:[#allocation2 + $0x50] sm:$0xff]
    %v5265 = vld [vmem:[#allocation2 + $0x58] sm:$0xff]
    %v5266 = vld [vmem:[#allocation2 + $0x60] sm:$0xff]
    %v5267 = vld [vmem:[#allocation2 + $0x68] sm:$0xff]
    %v5268 = vld [vmem:[#allocation2 + $0x70] sm:$0xff]
    %v5269 = vld [vmem:[#allocation2 + $0x78] sm:$0xff]
    %v5270 = vld [vmem:[#allocation2 + $0x80] sm:$0xff]
    %v5271 = vld [vmem:[#allocation2 + $0x88] sm:$0xff]
    %v5272 = vld [vmem:[#allocation2 + $0x90] sm:$0xff]
    %v5273 = vld [vmem:[#allocation2 + $0x98] sm:$0xff]
    %v5274 = vld [vmem:[#allocation2 + $0xa0] sm:$0xff]
    %v5275 = vld [vmem:[#allocation2 + $0xa8] sm:$0xff]
    %v5276 = vld [vmem:[#allocation2 + $0xb0] sm:$0xff]
    %v5277 = vld [vmem:[#allocation2 + $0xb8] sm:$0xff]
    %v5278 = vld [vmem:[#allocation2 + $0xc0] sm:$0xff]
    %v5279 = vld [vmem:[#allocation2 + $0xc8] sm:$0xff]
    %v5280 = vld [vmem:[#allocation2 + $0xd0] sm:$0xff]
    %v5281 = vld [vmem:[#allocation2 + $0xd8] sm:$0xff]
    %v5282 = vld [vmem:[#allocation2 + $0xe0] sm:$0xff]
    %v5283 = vld [vmem:[#allocation2 + $0xe8] sm:$0xff]
    %v5284 = vld [vmem:[#allocation2 + $0xf0] sm:$0xff]
    %v5285 = vld [vmem:[#allocation2 + $0xf8] sm:$0xff]
    %v5286 = vld [vmem:[#allocation2 + $0x100] sm:$0xff]
    %v5287 = vld [vmem:[#allocation2 + $0x108] sm:$0xff]
    %v5288 = vld [vmem:[#allocation2 + $0x110] sm:$0xff]
    %v5289 = vld [vmem:[#allocation2 + $0x118] sm:$0xff]
    %v5290 = vld [vmem:[#allocation2 + $0x120] sm:$0xff]
    %v5291 = vld [vmem:[#allocation2 + $0x128] sm:$0xff]
    %v5292 = vld [vmem:[#allocation2 + $0x130] sm:$0xff]
    %v5293 = vld [vmem:[#allocation2 + $0x138] sm:$0xff]
    %v5294 = vld [vmem:[#allocation2 + $0x140] sm:$0xff]
    %v5295 = vld [vmem:[#allocation2 + $0x148] sm:$0xff]
    %v5296 = vld [vmem:[#allocation2 + $0x150] sm:$0xff]
    %v5297 = vld [vmem:[#allocation2 + $0x158] sm:$0xff]
    %v5298 = vld [vmem:[#allocation2 + $0x160] sm:$0xff]
    %v5299 = vld [vmem:[#allocation2 + $0x168] sm:$0xff]
    %v5300 = vld [vmem:[#allocation2 + $0x170] sm:$0xff]
    %v5301 = vld [vmem:[#allocation2 + $0x178] sm:$0xff]
    %v5302 = vld [vmem:[#allocation2 + $0x180] sm:$0xff]
    %v5303 = vld [vmem:[#allocation2 + $0x188] sm:$0xff]
    %v5304 = vld [vmem:[#allocation2 + $0x190] sm:$0xff]
    %v5305 = vld [vmem:[#allocation2 + $0x198] sm:$0xff]
    %v5306 = vld [vmem:[#allocation2 + $0x1a0] sm:$0xff]
    %v5307 = vld [vmem:[#allocation2 + $0x1a8] sm:$0xff]
    %v5308 = vld [vmem:[#allocation2 + $0x1b0] sm:$0xff]
    %v5309 = vld [vmem:[#allocation2 + $0x1b8] sm:$0xff]
    %v5310 = vld [vmem:[#allocation2 + $0x1c0] sm:$0xff]
    %v5311 = vld [vmem:[#allocation2 + $0x1c8] sm:$0xff]
    %v5312 = vld [vmem:[#allocation2 + $0x1d0] sm:$0xff]
    %v5313 = vld [vmem:[#allocation2 + $0x1d8] sm:$0xff]
    %v5314 = vld [vmem:[#allocation2 + $0x1e0] sm:$0xff]
    %v5315 = vld [vmem:[#allocation2 + $0x1e8] sm:$0xff]
    %v5316 = vld [vmem:[#allocation2 + $0x1f0] sm:$0xff]
    %v5317 = vld [vmem:[#allocation2 + $0x1f8] sm:$0xff]
    %v5318 = vpack.c.bf16 %v5258, %v5254
    %v5319 = vpack.c.bf16 %v5259, %v5255
    %v5320 = vpack.c.bf16 %v5260, %v5256
    %v5321 = vpack.c.bf16 %v5261, %v5257
    %v5322 = vpack.c.bf16 %v5266, %v5262
    %v5323 = vpack.c.bf16 %v5267, %v5263
    %v5324 = vpack.c.bf16 %v5268, %v5264
    %v5325 = vpack.c.bf16 %v5269, %v5265
    %v5326 = vpack.c.bf16 %v5274, %v5270
    %v5327 = vpack.c.bf16 %v5275, %v5271
    %v5328 = vpack.c.bf16 %v5276, %v5272
    %v5329 = vpack.c.bf16 %v5277, %v5273
    %v5330 = vpack.c.bf16 %v5282, %v5278
    %v5331 = vpack.c.bf16 %v5283, %v5279
    %v5332 = vpack.c.bf16 %v5284, %v5280
    %v5333 = vpack.c.bf16 %v5285, %v5281
    %v5334 = vpack.c.bf16 %v5290, %v5286
    %v5335 = vpack.c.bf16 %v5291, %v5287
    %v5336 = vpack.c.bf16 %v5292, %v5288
    %v5337 = vpack.c.bf16 %v5293, %v5289
    %v5338 = vpack.c.bf16 %v5298, %v5294
    %v5339 = vpack.c.bf16 %v5299, %v5295
    %v5340 = vpack.c.bf16 %v5300, %v5296
    %v5341 = vpack.c.bf16 %v5301, %v5297
    %v5342 = vpack.c.bf16 %v5306, %v5302
    %v5343 = vpack.c.bf16 %v5307, %v5303
    %v5344 = vpack.c.bf16 %v5308, %v5304
    %v5345 = vpack.c.bf16 %v5309, %v5305
    %v5346 = vpack.c.bf16 %v5314, %v5310
    %v5347 = vpack.c.bf16 %v5315, %v5311
    %v5348 = vpack.c.bf16 %v5316, %v5312
    %v5349 = vpack.c.bf16 %v5317, %v5313
    %5350 = vmatprep.subr.bf16.mxu0 %v5347
    %5351 = vmatpush1.bf16.xpose.msra.mxu0 %v5346
    %5352 = vmatprep.subr.bf16.mxu0 %v5343
    %5353 = vmatpush1.bf16.xpose.msra.mxu0 %v5342
    %5354 = vmatprep.subr.bf16.mxu0 %v5339
    %5355 = vmatpush1.bf16.xpose.msra.mxu0 %v5338
    %5356 = vmatprep.subr.bf16.mxu0 %v5335
    %5357 = vmatpush1.bf16.xpose.msra.mxu0 %v5334
    %5358 = vmatprep.subr.bf16.mxu0 %v5331
    %5359 = vmatpush1.bf16.xpose.msra.mxu0 %v5330
    %5360 = vmatprep.subr.bf16.mxu0 %v5327
    %5361 = vmatpush1.bf16.xpose.msra.mxu0 %v5326
    %5362 = vmatprep.subr.bf16.mxu0 %v5323
    %5363 = vmatpush1.bf16.xpose.msra.mxu0 %v5322
    %5364 = vmatprep.subr.bf16.mxu0 %v5319
    %5365 = vmatpush1.bf16.xpose.msra.mxu0 %v5318
    %5366 = vmatprep.subr.bf16.mxu0 0
    %5367 = vmatpush2.bf16.xpose.msra.mxu0 0
    %5368 = vmatprep.subr.bf16.mxu0 0
    %5369 = vmatpush2.bf16.xpose.msra.mxu0 0
    %5370 = vmatprep.subr.bf16.mxu0 0
    %5371 = vmatpush2.bf16.xpose.msra.mxu0 0
    %5372 = vmatprep.subr.bf16.mxu0 0
    %5373 = vmatpush2.bf16.xpose.msra.mxu0 0
    %5374 = vmatprep.subr.bf16.mxu0 0
    %5375 = vmatpush2.bf16.xpose.msra.mxu0 0
    %5376 = vmatprep.subr.bf16.mxu0 0
    %5377 = vmatpush2.bf16.xpose.msra.mxu0 0
    %5378 = vmatprep.subr.bf16.mxu0 0
    %5379 = vmatpush2.bf16.xpose.msra.mxu0 0
    %5380 = vmatprep.subr.bf16.mxu0 0
    %5381 = vmatpush2.bf16.xpose.msra.mxu0 0
    %5382 = vmatprep.mubr.bf16.mxu0 %v5251
    %5383 = vmatmul.mubr.bf16.gmra.mxu0 %v5250
    %v5384 = vpop.f32.mrf.mxu0
    %v5385 = vadd.f32 0.0, %v5384
    %v5386 = vpop.f32.mrf.mxu0
    %v5387 = vpop.f32.mrf.mxu0
    %v5388 = vpop.f32.mrf.mxu0
    %5389 = vdwg.mxu0
    %5390 = vmatprep.subr.bf16.mxu0 %v5349
    %5391 = vmatpush1.bf16.xpose.msra.mxu0 %v5348
    %5392 = vmatprep.subr.bf16.mxu0 %v5345
    %5393 = vmatpush1.bf16.xpose.msra.mxu0 %v5344
    %5394 = vmatprep.subr.bf16.mxu0 %v5341
    %5395 = vmatpush1.bf16.xpose.msra.mxu0 %v5340
    %5396 = vmatprep.subr.bf16.mxu0 %v5337
    %5397 = vmatpush1.bf16.xpose.msra.mxu0 %v5336
    %5398 = vmatprep.subr.bf16.mxu0 %v5333
    %5399 = vmatpush1.bf16.xpose.msra.mxu0 %v5332
    %5400 = vmatprep.subr.bf16.mxu0 %v5329
    %5401 = vmatpush1.bf16.xpose.msra.mxu0 %v5328
    %5402 = vmatprep.subr.bf16.mxu0 %v5325
    %5403 = vmatpush1.bf16.xpose.msra.mxu0 %v5324
    %5404 = vmatprep.subr.bf16.mxu0 %v5321
    %5405 = vmatpush1.bf16.xpose.msra.mxu0 %v5320
    %5406 = vmatprep.subr.bf16.mxu0 0
    %5407 = vmatpush2.bf16.xpose.msra.mxu0 0
    %5408 = vmatprep.subr.bf16.mxu0 0
    %5409 = vmatpush2.bf16.xpose.msra.mxu0 0
    %5410 = vmatprep.subr.bf16.mxu0 0
    %5411 = vmatpush2.bf16.xpose.msra.mxu0 0
    %5412 = vmatprep.subr.bf16.mxu0 0
    %5413 = vmatpush2.bf16.xpose.msra.mxu0 0
    %5414 = vmatprep.subr.bf16.mxu0 0
    %5415 = vmatpush2.bf16.xpose.msra.mxu0 0
    %5416 = vmatprep.subr.bf16.mxu0 0
    %5417 = vmatpush2.bf16.xpose.msra.mxu0 0
    %5418 = vmatprep.subr.bf16.mxu0 0
    %5419 = vmatpush2.bf16.xpose.msra.mxu0 0
    %5420 = vmatprep.subr.bf16.mxu0 0
    %5421 = vmatpush2.bf16.xpose.msra.mxu0 0
    %5422 = vmatprep.mubr.bf16.mxu0 %v5253
    %5423 = vmatmul.mubr.bf16.gmra.mxu0 %v5252
    %v5424 = vpop.f32.mrf.mxu0
    %v5425 = vadd.f32 %v5385, %v5424
    %v5426 = vpop.f32.mrf.mxu0
    %v5427 = vpop.f32.mrf.mxu0
    %v5428 = vpop.f32.mrf.mxu0
    %5429 = vdwg.mxu0
    %v5430 = vstv %s3221
    %vm5431 = vcmp.lt.s32.totalorder %v3218, %v5430
    %vm5432 = vcmp.ge.s32.totalorder %v3218, 6
    %s5433 = sadd.s32 %s3224, 6
    %v5434 = vstv %s5433
    %vm5435 = vcmp.lt.s32.totalorder %v3218, %v5434
    %vm5436 = vmand %vm5432, %vm5435
    %vm5437 = vmor %vm5431, %vm5436
    %v5438 = vsel %vm5437, %v5425, -1e+30
    %vm5439 = vcmask 1044480
    %v5440 = vsel %vm5439, %v5438, -inf
    %5441 = vmax.xlane.f32.xlu0 %v5440
    %v5442 = vpop.xlane.xlu0 %5441
    %v5443 = vsub.f32 %v5438, %v5442
    %v5444 = vmul.f32 %v5443, 1.442695
    %v5445 = vpow.pop %v5444
    %v5446 = vsel %vm5439, %v5445, 0.0
    %5447 = vadd.xlane.f32.xlu0 %v5446
    %v5448 = vpop.xlane.xlu0 %5447
    %v5449 = vrcp.pop %v5448
    %v5450 = vmul.f32 %v5445, %v5449
    %v5451 = vpack.c.bf16 %v5450, %v5450
    %5452 = vmatprep.subr.bf16.mxu0 %v5347
    %5453 = vmatpush1.bf16.msra.mxu0 %v5346
    %5454 = vmatprep.subr.bf16.mxu0 %v5343
    %5455 = vmatpush1.bf16.msra.mxu0 %v5342
    %5456 = vmatprep.subr.bf16.mxu0 %v5339
    %5457 = vmatpush1.bf16.msra.mxu0 %v5338
    %5458 = vmatprep.subr.bf16.mxu0 %v5335
    %5459 = vmatpush1.bf16.msra.mxu0 %v5334
    %5460 = vmatprep.subr.bf16.mxu0 %v5331
    %5461 = vmatpush1.bf16.msra.mxu0 %v5330
    %5462 = vmatprep.subr.bf16.mxu0 %v5327
    %5463 = vmatpush1.bf16.msra.mxu0 %v5326
    %5464 = vmatprep.subr.bf16.mxu0 %v5323
    %5465 = vmatpush1.bf16.msra.mxu0 %v5322
    %5466 = vmatprep.subr.bf16.mxu0 %v5319
    %5467 = vmatpush1.bf16.msra.mxu0 %v5318
    %5468 = vmatprep.subr.bf16.mxu0 0
    %5469 = vmatpush2.bf16.msra.mxu0 0
    %5470 = vmatprep.subr.bf16.mxu0 0
    %5471 = vmatpush2.bf16.msra.mxu0 0
    %5472 = vmatprep.subr.bf16.mxu0 0
    %5473 = vmatpush2.bf16.msra.mxu0 0
    %5474 = vmatprep.subr.bf16.mxu0 0
    %5475 = vmatpush2.bf16.msra.mxu0 0
    %5476 = vmatprep.subr.bf16.mxu0 0
    %5477 = vmatpush2.bf16.msra.mxu0 0
    %5478 = vmatprep.subr.bf16.mxu0 0
    %5479 = vmatpush2.bf16.msra.mxu0 0
    %5480 = vmatprep.subr.bf16.mxu0 0
    %5481 = vmatpush2.bf16.msra.mxu0 0
    %5482 = vmatprep.subr.bf16.mxu0 0
    %5483 = vmatpush2.bf16.msra.mxu0 0
    %5484 = vmatprep.mubr.bf16.mxu0 0
    %5485 = vmatmul.mubr.bf16.gmra.mxu0 %v5451
    %v5486 = vpop.f32.mrf.mxu0
    %v5487 = vadd.f32 0.0, %v5486
    %v5488 = vpop.f32.mrf.mxu0
    %v5489 = vadd.f32 0.0, %v5488
    %v5490 = vpop.f32.mrf.mxu0
    %v5491 = vpop.f32.mrf.mxu0
    %5492 = vdwg.mxu0
    %5493 = vmatprep.subr.bf16.mxu0 %v5349
    %5494 = vmatpush1.bf16.msra.mxu0 %v5348
    %5495 = vmatprep.subr.bf16.mxu0 %v5345
    %5496 = vmatpush1.bf16.msra.mxu0 %v5344
    %5497 = vmatprep.subr.bf16.mxu0 %v5341
    %5498 = vmatpush1.bf16.msra.mxu0 %v5340
    %5499 = vmatprep.subr.bf16.mxu0 %v5337
    %5500 = vmatpush1.bf16.msra.mxu0 %v5336
    %5501 = vmatprep.subr.bf16.mxu0 %v5333
    %5502 = vmatpush1.bf16.msra.mxu0 %v5332
    %5503 = vmatprep.subr.bf16.mxu0 %v5329
    %5504 = vmatpush1.bf16.msra.mxu0 %v5328
    %5505 = vmatprep.subr.bf16.mxu0 %v5325
    %5506 = vmatpush1.bf16.msra.mxu0 %v5324
    %5507 = vmatprep.subr.bf16.mxu0 %v5321
    %5508 = vmatpush1.bf16.msra.mxu0 %v5320
    %5509 = vmatprep.subr.bf16.mxu0 0
    %5510 = vmatpush2.bf16.msra.mxu0 0
    %5511 = vmatprep.subr.bf16.mxu0 0
    %5512 = vmatpush2.bf16.msra.mxu0 0
    %5513 = vmatprep.subr.bf16.mxu0 0
    %5514 = vmatpush2.bf16.msra.mxu0 0
    %5515 = vmatprep.subr.bf16.mxu0 0
    %5516 = vmatpush2.bf16.msra.mxu0 0
    %5517 = vmatprep.subr.bf16.mxu0 0
    %5518 = vmatpush2.bf16.msra.mxu0 0
    %5519 = vmatprep.subr.bf16.mxu0 0
    %5520 = vmatpush2.bf16.msra.mxu0 0
    %5521 = vmatprep.subr.bf16.mxu0 0
    %5522 = vmatpush2.bf16.msra.mxu0 0
    %5523 = vmatprep.subr.bf16.mxu0 0
    %5524 = vmatpush2.bf16.msra.mxu0 0
    %5525 = vmatprep.mubr.bf16.mxu0 0
    %5526 = vmatmul.mubr.bf16.gmra.mxu0 %v5451
    %v5527 = vpop.f32.mrf.mxu0
    %v5528 = vadd.f32 0.0, %v5527
    %v5529 = vpop.f32.mrf.mxu0
    %v5530 = vadd.f32 0.0, %v5529
    %v5531 = vpop.f32.mrf.mxu0
    %v5532 = vpop.f32.mrf.mxu0
    %5533 = vdwg.mxu0
    %v5534 = vld [vmem:[#allocation13] sm:$0xff]
    %v5535 = vld [vmem:[#allocation13 + $0x8] sm:$0xff]
    %v5536 = vld [vmem:[#allocation13 + $0x10] sm:$0xff]
    %v5537 = vld [vmem:[#allocation13 + $0x18] sm:$0xff]
    %v5538 = vld [vmem:[#allocation13 + $0x20] sm:$0xff]
    %v5539 = vld [vmem:[#allocation13 + $0x28] sm:$0xff]
    %v5540 = vld [vmem:[#allocation13 + $0x30] sm:$0xff]
    %v5541 = vld [vmem:[#allocation13 + $0x38] sm:$0xff]
    %v5542 = vld [vmem:[#allocation13 + $0x40] sm:$0xff]
    %v5543 = vld [vmem:[#allocation13 + $0x48] sm:$0xff]
    %v5544 = vld [vmem:[#allocation13 + $0x50] sm:$0xff]
    %v5545 = vld [vmem:[#allocation13 + $0x58] sm:$0xff]
    %v5546 = vld [vmem:[#allocation13 + $0x60] sm:$0xff]
    %v5547 = vld [vmem:[#allocation13 + $0x68] sm:$0xff]
    %v5548 = vld [vmem:[#allocation13 + $0x70] sm:$0xff]
    %v5549 = vld [vmem:[#allocation13 + $0x78] sm:$0xff]
    %v5550 = vld [vmem:[#allocation13 + $0x80] sm:$0xff]
    %v5551 = vld [vmem:[#allocation13 + $0x88] sm:$0xff]
    %v5552 = vld [vmem:[#allocation13 + $0x90] sm:$0xff]
    %v5553 = vld [vmem:[#allocation13 + $0x98] sm:$0xff]
    %v5554 = vld [vmem:[#allocation13 + $0xa0] sm:$0xff]
    %v5555 = vld [vmem:[#allocation13 + $0xa8] sm:$0xff]
    %v5556 = vld [vmem:[#allocation13 + $0xb0] sm:$0xff]
    %v5557 = vld [vmem:[#allocation13 + $0xb8] sm:$0xff]
    %v5558 = vld [vmem:[#allocation13 + $0xc0] sm:$0xff]
    %v5559 = vld [vmem:[#allocation13 + $0xc8] sm:$0xff]
    %v5560 = vld [vmem:[#allocation13 + $0xd0] sm:$0xff]
    %v5561 = vld [vmem:[#allocation13 + $0xd8] sm:$0xff]
    %v5562 = vld [vmem:[#allocation13 + $0xe0] sm:$0xff]
    %v5563 = vld [vmem:[#allocation13 + $0xe8] sm:$0xff]
    %v5564 = vld [vmem:[#allocation13 + $0xf0] sm:$0xff]
    %v5565 = vld [vmem:[#allocation13 + $0xf8] sm:$0xff]
    %v5566 = vld [vmem:[#allocation13 + $0x100] sm:$0xff]
    %v5567 = vld [vmem:[#allocation13 + $0x108] sm:$0xff]
    %v5568 = vld [vmem:[#allocation13 + $0x110] sm:$0xff]
    %v5569 = vld [vmem:[#allocation13 + $0x118] sm:$0xff]
    %v5570 = vld [vmem:[#allocation13 + $0x120] sm:$0xff]
    %v5571 = vld [vmem:[#allocation13 + $0x128] sm:$0xff]
    %v5572 = vld [vmem:[#allocation13 + $0x130] sm:$0xff]
    %v5573 = vld [vmem:[#allocation13 + $0x138] sm:$0xff]
    %v5574 = vld [vmem:[#allocation13 + $0x140] sm:$0xff]
    %v5575 = vld [vmem:[#allocation13 + $0x148] sm:$0xff]
    %v5576 = vld [vmem:[#allocation13 + $0x150] sm:$0xff]
    %v5577 = vld [vmem:[#allocation13 + $0x158] sm:$0xff]
    %v5578 = vld [vmem:[#allocation13 + $0x160] sm:$0xff]
    %v5579 = vld [vmem:[#allocation13 + $0x168] sm:$0xff]
    %v5580 = vld [vmem:[#allocation13 + $0x170] sm:$0xff]
    %v5581 = vld [vmem:[#allocation13 + $0x178] sm:$0xff]
    %v5582 = vld [vmem:[#allocation13 + $0x180] sm:$0xff]
    %v5583 = vld [vmem:[#allocation13 + $0x188] sm:$0xff]
    %v5584 = vld [vmem:[#allocation13 + $0x190] sm:$0xff]
    %v5585 = vld [vmem:[#allocation13 + $0x198] sm:$0xff]
    %v5586 = vld [vmem:[#allocation13 + $0x1a0] sm:$0xff]
    %v5587 = vld [vmem:[#allocation13 + $0x1a8] sm:$0xff]
    %v5588 = vld [vmem:[#allocation13 + $0x1b0] sm:$0xff]
    %v5589 = vld [vmem:[#allocation13 + $0x1b8] sm:$0xff]
    %v5590 = vld [vmem:[#allocation13 + $0x1c0] sm:$0xff]
    %v5591 = vld [vmem:[#allocation13 + $0x1c8] sm:$0xff]
    %v5592 = vld [vmem:[#allocation13 + $0x1d0] sm:$0xff]
    %v5593 = vld [vmem:[#allocation13 + $0x1d8] sm:$0xff]
    %v5594 = vld [vmem:[#allocation13 + $0x1e0] sm:$0xff]
    %v5595 = vld [vmem:[#allocation13 + $0x1e8] sm:$0xff]
    %v5596 = vld [vmem:[#allocation13 + $0x1f0] sm:$0xff]
    %v5597 = vld [vmem:[#allocation13 + $0x1f8] sm:$0xff]
    %v5598 = vld [vmem:[#allocation13 + $0x200] sm:$0xff]
    %v5599 = vld [vmem:[#allocation13 + $0x208] sm:$0xff]
    %v5600 = vld [vmem:[#allocation13 + $0x210] sm:$0xff]
    %v5601 = vld [vmem:[#allocation13 + $0x218] sm:$0xff]
    %v5602 = vld [vmem:[#allocation13 + $0x220] sm:$0xff]
    %v5603 = vld [vmem:[#allocation13 + $0x228] sm:$0xff]
    %v5604 = vld [vmem:[#allocation13 + $0x230] sm:$0xff]
    %v5605 = vld [vmem:[#allocation13 + $0x238] sm:$0xff]
    %v5606 = vld [vmem:[#allocation13 + $0x240] sm:$0xff]
    %v5607 = vld [vmem:[#allocation13 + $0x248] sm:$0xff]
    %v5608 = vld [vmem:[#allocation13 + $0x250] sm:$0xff]
    %v5609 = vld [vmem:[#allocation13 + $0x258] sm:$0xff]
    %v5610 = vld [vmem:[#allocation13 + $0x260] sm:$0xff]
    %v5611 = vld [vmem:[#allocation13 + $0x268] sm:$0xff]
    %v5612 = vld [vmem:[#allocation13 + $0x270] sm:$0xff]
    %v5613 = vld [vmem:[#allocation13 + $0x278] sm:$0xff]
    %v5614 = vld [vmem:[#allocation13 + $0x280] sm:$0xff]
    %v5615 = vld [vmem:[#allocation13 + $0x288] sm:$0xff]
    %v5616 = vld [vmem:[#allocation13 + $0x290] sm:$0xff]
    %v5617 = vld [vmem:[#allocation13 + $0x298] sm:$0xff]
    %v5618 = vld [vmem:[#allocation13 + $0x2a0] sm:$0xff]
    %v5619 = vld [vmem:[#allocation13 + $0x2a8] sm:$0xff]
    %v5620 = vld [vmem:[#allocation13 + $0x2b0] sm:$0xff]
    %v5621 = vld [vmem:[#allocation13 + $0x2b8] sm:$0xff]
    %v5622 = vld [vmem:[#allocation13 + $0x2c0] sm:$0xff]
    %v5623 = vld [vmem:[#allocation13 + $0x2c8] sm:$0xff]
    %v5624 = vld [vmem:[#allocation13 + $0x2d0] sm:$0xff]
    %v5625 = vld [vmem:[#allocation13 + $0x2d8] sm:$0xff]
    %v5626 = vld [vmem:[#allocation13 + $0x2e0] sm:$0xff]
    %v5627 = vld [vmem:[#allocation13 + $0x2e8] sm:$0xff]
    %v5628 = vld [vmem:[#allocation13 + $0x2f0] sm:$0xff]
    %v5629 = vld [vmem:[#allocation13 + $0x2f8] sm:$0xff]
    %v5630 = vld [vmem:[#allocation13 + $0x300] sm:$0xff]
    %v5631 = vld [vmem:[#allocation13 + $0x308] sm:$0xff]
    %v5632 = vld [vmem:[#allocation13 + $0x310] sm:$0xff]
    %v5633 = vld [vmem:[#allocation13 + $0x318] sm:$0xff]
    %v5634 = vld [vmem:[#allocation13 + $0x320] sm:$0xff]
    %v5635 = vld [vmem:[#allocation13 + $0x328] sm:$0xff]
    %v5636 = vld [vmem:[#allocation13 + $0x330] sm:$0xff]
    %v5637 = vld [vmem:[#allocation13 + $0x338] sm:$0xff]
    %v5638 = vld [vmem:[#allocation13 + $0x340] sm:$0xff]
    %v5639 = vld [vmem:[#allocation13 + $0x348] sm:$0xff]
    %v5640 = vld [vmem:[#allocation13 + $0x350] sm:$0xff]
    %v5641 = vld [vmem:[#allocation13 + $0x358] sm:$0xff]
    %v5642 = vld [vmem:[#allocation13 + $0x360] sm:$0xff]
    %v5643 = vld [vmem:[#allocation13 + $0x368] sm:$0xff]
    %v5644 = vld [vmem:[#allocation13 + $0x370] sm:$0xff]
    %v5645 = vld [vmem:[#allocation13 + $0x378] sm:$0xff]
    %v5646 = vld [vmem:[#allocation13 + $0x380] sm:$0xff]
    %v5647 = vld [vmem:[#allocation13 + $0x388] sm:$0xff]
    %v5648 = vld [vmem:[#allocation13 + $0x390] sm:$0xff]
    %v5649 = vld [vmem:[#allocation13 + $0x398] sm:$0xff]
    %v5650 = vld [vmem:[#allocation13 + $0x3a0] sm:$0xff]
    %v5651 = vld [vmem:[#allocation13 + $0x3a8] sm:$0xff]
    %v5652 = vld [vmem:[#allocation13 + $0x3b0] sm:$0xff]
    %v5653 = vld [vmem:[#allocation13 + $0x3b8] sm:$0xff]
    %v5654 = vld [vmem:[#allocation13 + $0x3c0] sm:$0xff]
    %v5655 = vld [vmem:[#allocation13 + $0x3c8] sm:$0xff]
    %v5656 = vld [vmem:[#allocation13 + $0x3d0] sm:$0xff]
    %v5657 = vld [vmem:[#allocation13 + $0x3d8] sm:$0xff]
    %v5658 = vld [vmem:[#allocation13 + $0x3e0] sm:$0xff]
    %v5659 = vld [vmem:[#allocation13 + $0x3e8] sm:$0xff]
    %v5660 = vld [vmem:[#allocation13 + $0x3f0] sm:$0xff]
    %v5661 = vld [vmem:[#allocation13 + $0x3f8] sm:$0xff]
    %v5662 = vpack.c.bf16 %v5487, %v5487
    %v5663 = vpack.c.bf16 %v5489, %v5489
    %v5664 = vpack.c.bf16 %v5528, %v5528
    %v5665 = vpack.c.bf16 %v5530, %v5530
    %v5666 = vld [vmem:[#allocation13 + $0x400] sm:$0xff]
    %v5667 = vld [vmem:[#allocation13 + $0x408] sm:$0xff]
    %v5668 = vld [vmem:[#allocation13 + $0x410] sm:$0xff]
    %v5669 = vld [vmem:[#allocation13 + $0x418] sm:$0xff]
    %v5670 = vld [vmem:[#allocation13 + $0x420] sm:$0xff]
    %v5671 = vld [vmem:[#allocation13 + $0x428] sm:$0xff]
    %v5672 = vld [vmem:[#allocation13 + $0x430] sm:$0xff]
    %v5673 = vld [vmem:[#allocation13 + $0x438] sm:$0xff]
    %v5674 = vld [vmem:[#allocation13 + $0x440] sm:$0xff]
    %v5675 = vld [vmem:[#allocation13 + $0x448] sm:$0xff]
    %v5676 = vld [vmem:[#allocation13 + $0x450] sm:$0xff]
    %v5677 = vld [vmem:[#allocation13 + $0x458] sm:$0xff]
    %v5678 = vld [vmem:[#allocation13 + $0x460] sm:$0xff]
    %v5679 = vld [vmem:[#allocation13 + $0x468] sm:$0xff]
    %v5680 = vld [vmem:[#allocation13 + $0x470] sm:$0xff]
    %v5681 = vld [vmem:[#allocation13 + $0x478] sm:$0xff]
    %v5682 = vld [vmem:[#allocation13 + $0x480] sm:$0xff]
    %v5683 = vld [vmem:[#allocation13 + $0x488] sm:$0xff]
    %v5684 = vld [vmem:[#allocation13 + $0x490] sm:$0xff]
    %v5685 = vld [vmem:[#allocation13 + $0x498] sm:$0xff]
    %v5686 = vld [vmem:[#allocation13 + $0x4a0] sm:$0xff]
    %v5687 = vld [vmem:[#allocation13 + $0x4a8] sm:$0xff]
    %v5688 = vld [vmem:[#allocation13 + $0x4b0] sm:$0xff]
    %v5689 = vld [vmem:[#allocation13 + $0x4b8] sm:$0xff]
    %v5690 = vld [vmem:[#allocation13 + $0x4c0] sm:$0xff]
    %v5691 = vld [vmem:[#allocation13 + $0x4c8] sm:$0xff]
    %v5692 = vld [vmem:[#allocation13 + $0x4d0] sm:$0xff]
    %v5693 = vld [vmem:[#allocation13 + $0x4d8] sm:$0xff]
    %v5694 = vld [vmem:[#allocation13 + $0x4e0] sm:$0xff]
    %v5695 = vld [vmem:[#allocation13 + $0x4e8] sm:$0xff]
    %v5696 = vld [vmem:[#allocation13 + $0x4f0] sm:$0xff]
    %v5697 = vld [vmem:[#allocation13 + $0x4f8] sm:$0xff]
    %v5698 = vld [vmem:[#allocation13 + $0x500] sm:$0xff]
    %v5699 = vld [vmem:[#allocation13 + $0x508] sm:$0xff]
    %v5700 = vld [vmem:[#allocation13 + $0x510] sm:$0xff]
    %v5701 = vld [vmem:[#allocation13 + $0x518] sm:$0xff]
    %v5702 = vld [vmem:[#allocation13 + $0x520] sm:$0xff]
    %v5703 = vld [vmem:[#allocation13 + $0x528] sm:$0xff]
    %v5704 = vld [vmem:[#allocation13 + $0x530] sm:$0xff]
    %v5705 = vld [vmem:[#allocation13 + $0x538] sm:$0xff]
    %v5706 = vld [vmem:[#allocation13 + $0x540] sm:$0xff]
    %v5707 = vld [vmem:[#allocation13 + $0x548] sm:$0xff]
    %v5708 = vld [vmem:[#allocation13 + $0x550] sm:$0xff]
    %v5709 = vld [vmem:[#allocation13 + $0x558] sm:$0xff]
    %v5710 = vld [vmem:[#allocation13 + $0x560] sm:$0xff]
    %v5711 = vld [vmem:[#allocation13 + $0x568] sm:$0xff]
    %v5712 = vld [vmem:[#allocation13 + $0x570] sm:$0xff]
    %v5713 = vld [vmem:[#allocation13 + $0x578] sm:$0xff]
    %v5714 = vld [vmem:[#allocation13 + $0x580] sm:$0xff]
    %v5715 = vld [vmem:[#allocation13 + $0x588] sm:$0xff]
    %v5716 = vld [vmem:[#allocation13 + $0x590] sm:$0xff]
    %v5717 = vld [vmem:[#allocation13 + $0x598] sm:$0xff]
    %v5718 = vld [vmem:[#allocation13 + $0x5a0] sm:$0xff]
    %v5719 = vld [vmem:[#allocation13 + $0x5a8] sm:$0xff]
    %v5720 = vld [vmem:[#allocation13 + $0x5b0] sm:$0xff]
    %v5721 = vld [vmem:[#allocation13 + $0x5b8] sm:$0xff]
    %v5722 = vld [vmem:[#allocation13 + $0x5c0] sm:$0xff]
    %v5723 = vld [vmem:[#allocation13 + $0x5c8] sm:$0xff]
    %v5724 = vld [vmem:[#allocation13 + $0x5d0] sm:$0xff]
    %v5725 = vld [vmem:[#allocation13 + $0x5d8] sm:$0xff]
    %v5726 = vld [vmem:[#allocation13 + $0x5e0] sm:$0xff]
    %v5727 = vld [vmem:[#allocation13 + $0x5e8] sm:$0xff]
    %v5728 = vld [vmem:[#allocation13 + $0x5f0] sm:$0xff]
    %v5729 = vld [vmem:[#allocation13 + $0x5f8] sm:$0xff]
    %v5730 = vld [vmem:[#allocation13 + $0x600] sm:$0xff]
    %v5731 = vld [vmem:[#allocation13 + $0x608] sm:$0xff]
    %v5732 = vld [vmem:[#allocation13 + $0x610] sm:$0xff]
    %v5733 = vld [vmem:[#allocation13 + $0x618] sm:$0xff]
    %v5734 = vld [vmem:[#allocation13 + $0x620] sm:$0xff]
    %v5735 = vld [vmem:[#allocation13 + $0x628] sm:$0xff]
    %v5736 = vld [vmem:[#allocation13 + $0x630] sm:$0xff]
    %v5737 = vld [vmem:[#allocation13 + $0x638] sm:$0xff]
    %v5738 = vld [vmem:[#allocation13 + $0x640] sm:$0xff]
    %v5739 = vld [vmem:[#allocation13 + $0x648] sm:$0xff]
    %v5740 = vld [vmem:[#allocation13 + $0x650] sm:$0xff]
    %v5741 = vld [vmem:[#allocation13 + $0x658] sm:$0xff]
    %v5742 = vld [vmem:[#allocation13 + $0x660] sm:$0xff]
    %v5743 = vld [vmem:[#allocation13 + $0x668] sm:$0xff]
    %v5744 = vld [vmem:[#allocation13 + $0x670] sm:$0xff]
    %v5745 = vld [vmem:[#allocation13 + $0x678] sm:$0xff]
    %v5746 = vld [vmem:[#allocation13 + $0x680] sm:$0xff]
    %v5747 = vld [vmem:[#allocation13 + $0x688] sm:$0xff]
    %v5748 = vld [vmem:[#allocation13 + $0x690] sm:$0xff]
    %v5749 = vld [vmem:[#allocation13 + $0x698] sm:$0xff]
    %v5750 = vld [vmem:[#allocation13 + $0x6a0] sm:$0xff]
    %v5751 = vld [vmem:[#allocation13 + $0x6a8] sm:$0xff]
    %v5752 = vld [vmem:[#allocation13 + $0x6b0] sm:$0xff]
    %v5753 = vld [vmem:[#allocation13 + $0x6b8] sm:$0xff]
    %v5754 = vld [vmem:[#allocation13 + $0x6c0] sm:$0xff]
    %v5755 = vld [vmem:[#allocation13 + $0x6c8] sm:$0xff]
    %v5756 = vld [vmem:[#allocation13 + $0x6d0] sm:$0xff]
    %v5757 = vld [vmem:[#allocation13 + $0x6d8] sm:$0xff]
    %v5758 = vld [vmem:[#allocation13 + $0x6e0] sm:$0xff]
    %v5759 = vld [vmem:[#allocation13 + $0x6e8] sm:$0xff]
    %v5760 = vld [vmem:[#allocation13 + $0x6f0] sm:$0xff]
    %v5761 = vld [vmem:[#allocation13 + $0x6f8] sm:$0xff]
    %v5762 = vld [vmem:[#allocation13 + $0x700] sm:$0xff]
    %v5763 = vld [vmem:[#allocation13 + $0x708] sm:$0xff]
    %v5764 = vld [vmem:[#allocation13 + $0x710] sm:$0xff]
    %v5765 = vld [vmem:[#allocation13 + $0x718] sm:$0xff]
    %v5766 = vld [vmem:[#allocation13 + $0x720] sm:$0xff]
    %v5767 = vld [vmem:[#allocation13 + $0x728] sm:$0xff]
    %v5768 = vld [vmem:[#allocation13 + $0x730] sm:$0xff]
    %v5769 = vld [vmem:[#allocation13 + $0x738] sm:$0xff]
    %v5770 = vld [vmem:[#allocation13 + $0x740] sm:$0xff]
    %v5771 = vld [vmem:[#allocation13 + $0x748] sm:$0xff]
    %v5772 = vld [vmem:[#allocation13 + $0x750] sm:$0xff]
    %v5773 = vld [vmem:[#allocation13 + $0x758] sm:$0xff]
    %v5774 = vld [vmem:[#allocation13 + $0x760] sm:$0xff]
    %v5775 = vld [vmem:[#allocation13 + $0x768] sm:$0xff]
    %v5776 = vld [vmem:[#allocation13 + $0x770] sm:$0xff]
    %v5777 = vld [vmem:[#allocation13 + $0x778] sm:$0xff]
    %v5778 = vld [vmem:[#allocation13 + $0x780] sm:$0xff]
    %v5779 = vld [vmem:[#allocation13 + $0x788] sm:$0xff]
    %v5780 = vld [vmem:[#allocation13 + $0x790] sm:$0xff]
    %v5781 = vld [vmem:[#allocation13 + $0x798] sm:$0xff]
    %v5782 = vld [vmem:[#allocation13 + $0x7a0] sm:$0xff]
    %v5783 = vld [vmem:[#allocation13 + $0x7a8] sm:$0xff]
    %v5784 = vld [vmem:[#allocation13 + $0x7b0] sm:$0xff]
    %v5785 = vld [vmem:[#allocation13 + $0x7b8] sm:$0xff]
    %v5786 = vld [vmem:[#allocation13 + $0x7c0] sm:$0xff]
    %v5787 = vld [vmem:[#allocation13 + $0x7c8] sm:$0xff]
    %v5788 = vld [vmem:[#allocation13 + $0x7d0] sm:$0xff]
    %v5789 = vld [vmem:[#allocation13 + $0x7d8] sm:$0xff]
    %v5790 = vld [vmem:[#allocation13 + $0x7e0] sm:$0xff]
    %v5791 = vld [vmem:[#allocation13 + $0x7e8] sm:$0xff]
    %v5792 = vld [vmem:[#allocation13 + $0x7f0] sm:$0xff]
    %v5793 = vld [vmem:[#allocation13 + $0x7f8] sm:$0xff]
    %v5922 = vunpack.c.l.b16 %v5666
    %v5923 = vunpack.c.h.b16 %v5666
    %v5924 = vunpack.c.l.b16 %v5667
    %v5925 = vunpack.c.h.b16 %v5667
    %v5926 = vunpack.c.l.b16 %v5668
    %v5927 = vunpack.c.h.b16 %v5668
    %v5928 = vunpack.c.l.b16 %v5669
    %v5929 = vunpack.c.h.b16 %v5669
    %v5930 = vunpack.c.l.b16 %v5670
    %v5931 = vunpack.c.h.b16 %v5670
    %v5932 = vunpack.c.l.b16 %v5671
    %v5933 = vunpack.c.h.b16 %v5671
    %v5934 = vunpack.c.l.b16 %v5672
    %v5935 = vunpack.c.h.b16 %v5672
    %v5936 = vunpack.c.l.b16 %v5673
    %v5937 = vunpack.c.h.b16 %v5673
    %v5938 = vunpack.c.l.b16 %v5674
    %v5939 = vunpack.c.h.b16 %v5674
    %v5940 = vunpack.c.l.b16 %v5675
    %v5941 = vunpack.c.h.b16 %v5675
    %v5942 = vunpack.c.l.b16 %v5676
    %v5943 = vunpack.c.h.b16 %v5676
    %v5944 = vunpack.c.l.b16 %v5677
    %v5945 = vunpack.c.h.b16 %v5677
    %v5946 = vunpack.c.l.b16 %v5678
    %v5947 = vunpack.c.h.b16 %v5678
    %v5948 = vunpack.c.l.b16 %v5679
    %v5949 = vunpack.c.h.b16 %v5679
    %v5950 = vunpack.c.l.b16 %v5680
    %v5951 = vunpack.c.h.b16 %v5680
    %v5952 = vunpack.c.l.b16 %v5681
    %v5953 = vunpack.c.h.b16 %v5681
    %v5954 = vunpack.c.l.b16 %v5682
    %v5955 = vunpack.c.h.b16 %v5682
    %v5956 = vunpack.c.l.b16 %v5683
    %v5957 = vunpack.c.h.b16 %v5683
    %v5958 = vunpack.c.l.b16 %v5684
    %v5959 = vunpack.c.h.b16 %v5684
    %v5960 = vunpack.c.l.b16 %v5685
    %v5961 = vunpack.c.h.b16 %v5685
    %v5962 = vunpack.c.l.b16 %v5686
    %v5963 = vunpack.c.h.b16 %v5686
    %v5964 = vunpack.c.l.b16 %v5687
    %v5965 = vunpack.c.h.b16 %v5687
    %v5966 = vunpack.c.l.b16 %v5688
    %v5967 = vunpack.c.h.b16 %v5688
    %v5968 = vunpack.c.l.b16 %v5689
    %v5969 = vunpack.c.h.b16 %v5689
    %v5970 = vunpack.c.l.b16 %v5690
    %v5971 = vunpack.c.h.b16 %v5690
    %v5972 = vunpack.c.l.b16 %v5691
    %v5973 = vunpack.c.h.b16 %v5691
    %v5974 = vunpack.c.l.b16 %v5692
    %v5975 = vunpack.c.h.b16 %v5692
    %v5976 = vunpack.c.l.b16 %v5693
    %v5977 = vunpack.c.h.b16 %v5693
    %v5978 = vunpack.c.l.b16 %v5694
    %v5979 = vunpack.c.h.b16 %v5694
    %v5980 = vunpack.c.l.b16 %v5695
    %v5981 = vunpack.c.h.b16 %v5695
    %v5982 = vunpack.c.l.b16 %v5696
    %v5983 = vunpack.c.h.b16 %v5696
    %v5984 = vunpack.c.l.b16 %v5697
    %v5985 = vunpack.c.h.b16 %v5697
    %v5986 = vunpack.c.l.b16 %v5698
    %v5987 = vunpack.c.h.b16 %v5698
    %v5988 = vunpack.c.l.b16 %v5699
    %v5989 = vunpack.c.h.b16 %v5699
    %v5990 = vunpack.c.l.b16 %v5700
    %v5991 = vunpack.c.h.b16 %v5700
    %v5992 = vunpack.c.l.b16 %v5701
    %v5993 = vunpack.c.h.b16 %v5701
    %v5994 = vunpack.c.l.b16 %v5702
    %v5995 = vunpack.c.h.b16 %v5702
    %v5996 = vunpack.c.l.b16 %v5703
    %v5997 = vunpack.c.h.b16 %v5703
    %v5998 = vunpack.c.l.b16 %v5704
    %v5999 = vunpack.c.h.b16 %v5704
    %v6000 = vunpack.c.l.b16 %v5705
    %v6001 = vunpack.c.h.b16 %v5705
    %v6002 = vunpack.c.l.b16 %v5706
    %v6003 = vunpack.c.h.b16 %v5706
    %v6004 = vunpack.c.l.b16 %v5707
    %v6005 = vunpack.c.h.b16 %v5707
    %v6006 = vunpack.c.l.b16 %v5708
    %v6007 = vunpack.c.h.b16 %v5708
    %v6008 = vunpack.c.l.b16 %v5709
    %v6009 = vunpack.c.h.b16 %v5709
    %v6010 = vunpack.c.l.b16 %v5710
    %v6011 = vunpack.c.h.b16 %v5710
    %v6012 = vunpack.c.l.b16 %v5711
    %v6013 = vunpack.c.h.b16 %v5711
    %v6014 = vunpack.c.l.b16 %v5712
    %v6015 = vunpack.c.h.b16 %v5712
    %v6016 = vunpack.c.l.b16 %v5713
    %v6017 = vunpack.c.h.b16 %v5713
    %v6018 = vunpack.c.l.b16 %v5714
    %v6019 = vunpack.c.h.b16 %v5714
    %v6020 = vunpack.c.l.b16 %v5715
    %v6021 = vunpack.c.h.b16 %v5715
    %v6022 = vunpack.c.l.b16 %v5716
    %v6023 = vunpack.c.h.b16 %v5716
    %v6024 = vunpack.c.l.b16 %v5717
    %v6025 = vunpack.c.h.b16 %v5717
    %v6026 = vunpack.c.l.b16 %v5718
    %v6027 = vunpack.c.h.b16 %v5718
    %v6028 = vunpack.c.l.b16 %v5719
    %v6029 = vunpack.c.h.b16 %v5719
    %v6030 = vunpack.c.l.b16 %v5720
    %v6031 = vunpack.c.h.b16 %v5720
    %v6032 = vunpack.c.l.b16 %v5721
    %v6033 = vunpack.c.h.b16 %v5721
    %v6034 = vunpack.c.l.b16 %v5722
    %v6035 = vunpack.c.h.b16 %v5722
    %v6036 = vunpack.c.l.b16 %v5723
    %v6037 = vunpack.c.h.b16 %v5723
    %v6038 = vunpack.c.l.b16 %v5724
    %v6039 = vunpack.c.h.b16 %v5724
    %v6040 = vunpack.c.l.b16 %v5725
    %v6041 = vunpack.c.h.b16 %v5725
    %v6042 = vunpack.c.l.b16 %v5726
    %v6043 = vunpack.c.h.b16 %v5726
    %v6044 = vunpack.c.l.b16 %v5727
    %v6045 = vunpack.c.h.b16 %v5727
    %v6046 = vunpack.c.l.b16 %v5728
    %v6047 = vunpack.c.h.b16 %v5728
    %v6048 = vunpack.c.l.b16 %v5729
    %v6049 = vunpack.c.h.b16 %v5729
    %v6050 = vunpack.c.l.b16 %v5730
    %v6051 = vunpack.c.h.b16 %v5730
    %v6052 = vunpack.c.l.b16 %v5731
    %v6053 = vunpack.c.h.b16 %v5731
    %v6054 = vunpack.c.l.b16 %v5732
    %v6055 = vunpack.c.h.b16 %v5732
    %v6056 = vunpack.c.l.b16 %v5733
    %v6057 = vunpack.c.h.b16 %v5733
    %v6058 = vunpack.c.l.b16 %v5734
    %v6059 = vunpack.c.h.b16 %v5734
    %v6060 = vunpack.c.l.b16 %v5735
    %v6061 = vunpack.c.h.b16 %v5735
    %v6062 = vunpack.c.l.b16 %v5736
    %v6063 = vunpack.c.h.b16 %v5736
    %v6064 = vunpack.c.l.b16 %v5737
    %v6065 = vunpack.c.h.b16 %v5737
    %v6066 = vunpack.c.l.b16 %v5738
    %v6067 = vunpack.c.h.b16 %v5738
    %v6068 = vunpack.c.l.b16 %v5739
    %v6069 = vunpack.c.h.b16 %v5739
    %v6070 = vunpack.c.l.b16 %v5740
    %v6071 = vunpack.c.h.b16 %v5740
    %v6072 = vunpack.c.l.b16 %v5741
    %v6073 = vunpack.c.h.b16 %v5741
    %v6074 = vunpack.c.l.b16 %v5742
    %v6075 = vunpack.c.h.b16 %v5742
    %v6076 = vunpack.c.l.b16 %v5743
    %v6077 = vunpack.c.h.b16 %v5743
    %v6078 = vunpack.c.l.b16 %v5744
    %v6079 = vunpack.c.h.b16 %v5744
    %v6080 = vunpack.c.l.b16 %v5745
    %v6081 = vunpack.c.h.b16 %v5745
    %v6082 = vunpack.c.l.b16 %v5746
    %v6083 = vunpack.c.h.b16 %v5746
    %v6084 = vunpack.c.l.b16 %v5747
    %v6085 = vunpack.c.h.b16 %v5747
    %v6086 = vunpack.c.l.b16 %v5748
    %v6087 = vunpack.c.h.b16 %v5748
    %v6088 = vunpack.c.l.b16 %v5749
    %v6089 = vunpack.c.h.b16 %v5749
    %v6090 = vunpack.c.l.b16 %v5750
    %v6091 = vunpack.c.h.b16 %v5750
    %v6092 = vunpack.c.l.b16 %v5751
    %v6093 = vunpack.c.h.b16 %v5751
    %v6094 = vunpack.c.l.b16 %v5752
    %v6095 = vunpack.c.h.b16 %v5752
    %v6096 = vunpack.c.l.b16 %v5753
    %v6097 = vunpack.c.h.b16 %v5753
    %v6098 = vunpack.c.l.b16 %v5754
    %v6099 = vunpack.c.h.b16 %v5754
    %v6100 = vunpack.c.l.b16 %v5755
    %v6101 = vunpack.c.h.b16 %v5755
    %v6102 = vunpack.c.l.b16 %v5756
    %v6103 = vunpack.c.h.b16 %v5756
    %v6104 = vunpack.c.l.b16 %v5757
    %v6105 = vunpack.c.h.b16 %v5757
    %v6106 = vunpack.c.l.b16 %v5758
    %v6107 = vunpack.c.h.b16 %v5758
    %v6108 = vunpack.c.l.b16 %v5759
    %v6109 = vunpack.c.h.b16 %v5759
    %v6110 = vunpack.c.l.b16 %v5760
    %v6111 = vunpack.c.h.b16 %v5760
    %v6112 = vunpack.c.l.b16 %v5761
    %v6113 = vunpack.c.h.b16 %v5761
    %v6114 = vunpack.c.l.b16 %v5762
    %v6115 = vunpack.c.h.b16 %v5762
    %v6116 = vunpack.c.l.b16 %v5763
    %v6117 = vunpack.c.h.b16 %v5763
    %v6118 = vunpack.c.l.b16 %v5764
    %v6119 = vunpack.c.h.b16 %v5764
    %v6120 = vunpack.c.l.b16 %v5765
    %v6121 = vunpack.c.h.b16 %v5765
    %v6122 = vunpack.c.l.b16 %v5766
    %v6123 = vunpack.c.h.b16 %v5766
    %v6124 = vunpack.c.l.b16 %v5767
    %v6125 = vunpack.c.h.b16 %v5767
    %v6126 = vunpack.c.l.b16 %v5768
    %v6127 = vunpack.c.h.b16 %v5768
    %v6128 = vunpack.c.l.b16 %v5769
    %v6129 = vunpack.c.h.b16 %v5769
    %v6130 = vunpack.c.l.b16 %v5770
    %v6131 = vunpack.c.h.b16 %v5770
    %v6132 = vunpack.c.l.b16 %v5771
    %v6133 = vunpack.c.h.b16 %v5771
    %v6134 = vunpack.c.l.b16 %v5772
    %v6135 = vunpack.c.h.b16 %v5772
    %v6136 = vunpack.c.l.b16 %v5773
    %v6137 = vunpack.c.h.b16 %v5773
    %v6138 = vunpack.c.l.b16 %v5774
    %v6139 = vunpack.c.h.b16 %v5774
    %v6140 = vunpack.c.l.b16 %v5775
    %v6141 = vunpack.c.h.b16 %v5775
    %v6142 = vunpack.c.l.b16 %v5776
    %v6143 = vunpack.c.h.b16 %v5776
    %v6144 = vunpack.c.l.b16 %v5777
    %v6145 = vunpack.c.h.b16 %v5777
    %v6146 = vunpack.c.l.b16 %v5778
    %v6147 = vunpack.c.h.b16 %v5778
    %v6148 = vunpack.c.l.b16 %v5779
    %v6149 = vunpack.c.h.b16 %v5779
    %v6150 = vunpack.c.l.b16 %v5780
    %v6151 = vunpack.c.h.b16 %v5780
    %v6152 = vunpack.c.l.b16 %v5781
    %v6153 = vunpack.c.h.b16 %v5781
    %v6154 = vunpack.c.l.b16 %v5782
    %v6155 = vunpack.c.h.b16 %v5782
    %v6156 = vunpack.c.l.b16 %v5783
    %v6157 = vunpack.c.h.b16 %v5783
    %v6158 = vunpack.c.l.b16 %v5784
    %v6159 = vunpack.c.h.b16 %v5784
    %v6160 = vunpack.c.l.b16 %v5785
    %v6161 = vunpack.c.h.b16 %v5785
    %v6162 = vunpack.c.l.b16 %v5786
    %v6163 = vunpack.c.h.b16 %v5786
    %v6164 = vunpack.c.l.b16 %v5787
    %v6165 = vunpack.c.h.b16 %v5787
    %v6166 = vunpack.c.l.b16 %v5788
    %v6167 = vunpack.c.h.b16 %v5788
    %v6168 = vunpack.c.l.b16 %v5789
    %v6169 = vunpack.c.h.b16 %v5789
    %v6170 = vunpack.c.l.b16 %v5790
    %v6171 = vunpack.c.h.b16 %v5790
    %v6172 = vunpack.c.l.b16 %v5791
    %v6173 = vunpack.c.h.b16 %v5791
    %v6174 = vunpack.c.l.b16 %v5792
    %v6175 = vunpack.c.h.b16 %v5792
    %v6176 = vunpack.c.l.b16 %v5793
    %v6177 = vunpack.c.h.b16 %v5793
    %v6178 = vpack.c.b16 %v5926, %v5922
    %v6179 = vpack.c.b16 %v5927, %v5923
    %v6180 = vpack.c.b16 %v5928, %v5924
    %v6181 = vpack.c.b16 %v5929, %v5925
    %v6182 = vpack.c.b16 %v5934, %v5930
    %v6183 = vpack.c.b16 %v5935, %v5931
    %v6184 = vpack.c.b16 %v5936, %v5932
    %v6185 = vpack.c.b16 %v5937, %v5933
    %v6186 = vpack.c.b16 %v5942, %v5938
    %v6187 = vpack.c.b16 %v5943, %v5939
    %v6188 = vpack.c.b16 %v5944, %v5940
    %v6189 = vpack.c.b16 %v5945, %v5941
    %v6190 = vpack.c.b16 %v5950, %v5946
    %v6191 = vpack.c.b16 %v5951, %v5947
    %v6192 = vpack.c.b16 %v5952, %v5948
    %v6193 = vpack.c.b16 %v5953, %v5949
    %v6194 = vpack.c.b16 %v5958, %v5954
    %v6195 = vpack.c.b16 %v5959, %v5955
    %v6196 = vpack.c.b16 %v5960, %v5956
    %v6197 = vpack.c.b16 %v5961, %v5957
    %v6198 = vpack.c.b16 %v5966, %v5962
    %v6199 = vpack.c.b16 %v5967, %v5963
    %v6200 = vpack.c.b16 %v5968, %v5964
    %v6201 = vpack.c.b16 %v5969, %v5965
    %v6202 = vpack.c.b16 %v5974, %v5970
    %v6203 = vpack.c.b16 %v5975, %v5971
    %v6204 = vpack.c.b16 %v5976, %v5972
    %v6205 = vpack.c.b16 %v5977, %v5973
    %v6206 = vpack.c.b16 %v5982, %v5978
    %v6207 = vpack.c.b16 %v5983, %v5979
    %v6208 = vpack.c.b16 %v5984, %v5980
    %v6209 = vpack.c.b16 %v5985, %v5981
    %v6210 = vpack.c.b16 %v5990, %v5986
    %v6211 = vpack.c.b16 %v5991, %v5987
    %v6212 = vpack.c.b16 %v5992, %v5988
    %v6213 = vpack.c.b16 %v5993, %v5989
    %v6214 = vpack.c.b16 %v5998, %v5994
    %v6215 = vpack.c.b16 %v5999, %v5995
    %v6216 = vpack.c.b16 %v6000, %v5996
    %v6217 = vpack.c.b16 %v6001, %v5997
    %v6218 = vpack.c.b16 %v6006, %v6002
    %v6219 = vpack.c.b16 %v6007, %v6003
    %v6220 = vpack.c.b16 %v6008, %v6004
    %v6221 = vpack.c.b16 %v6009, %v6005
    %v6222 = vpack.c.b16 %v6014, %v6010
    %v6223 = vpack.c.b16 %v6015, %v6011
    %v6224 = vpack.c.b16 %v6016, %v6012
    %v6225 = vpack.c.b16 %v6017, %v6013
    %v6226 = vpack.c.b16 %v6022, %v6018
    %v6227 = vpack.c.b16 %v6023, %v6019
    %v6228 = vpack.c.b16 %v6024, %v6020
    %v6229 = vpack.c.b16 %v6025, %v6021
    %v6230 = vpack.c.b16 %v6030, %v6026
    %v6231 = vpack.c.b16 %v6031, %v6027
    %v6232 = vpack.c.b16 %v6032, %v6028
    %v6233 = vpack.c.b16 %v6033, %v6029
    %v6234 = vpack.c.b16 %v6038, %v6034
    %v6235 = vpack.c.b16 %v6039, %v6035
    %v6236 = vpack.c.b16 %v6040, %v6036
    %v6237 = vpack.c.b16 %v6041, %v6037
    %v6238 = vpack.c.b16 %v6046, %v6042
    %v6239 = vpack.c.b16 %v6047, %v6043
    %v6240 = vpack.c.b16 %v6048, %v6044
    %v6241 = vpack.c.b16 %v6049, %v6045
    %v6242 = vpack.c.b16 %v6054, %v6050
    %v6243 = vpack.c.b16 %v6055, %v6051
    %v6244 = vpack.c.b16 %v6056, %v6052
    %v6245 = vpack.c.b16 %v6057, %v6053
    %v6246 = vpack.c.b16 %v6062, %v6058
    %v6247 = vpack.c.b16 %v6063, %v6059
    %v6248 = vpack.c.b16 %v6064, %v6060
    %v6249 = vpack.c.b16 %v6065, %v6061
    %v6250 = vpack.c.b16 %v6070, %v6066
    %v6251 = vpack.c.b16 %v6071, %v6067
    %v6252 = vpack.c.b16 %v6072, %v6068
    %v6253 = vpack.c.b16 %v6073, %v6069
    %v6254 = vpack.c.b16 %v6078, %v6074
    %v6255 = vpack.c.b16 %v6079, %v6075
    %v6256 = vpack.c.b16 %v6080, %v6076
    %v6257 = vpack.c.b16 %v6081, %v6077
    %v6258 = vpack.c.b16 %v6086, %v6082
    %v6259 = vpack.c.b16 %v6087, %v6083
    %v6260 = vpack.c.b16 %v6088, %v6084
    %v6261 = vpack.c.b16 %v6089, %v6085
    %v6262 = vpack.c.b16 %v6094, %v6090
    %v6263 = vpack.c.b16 %v6095, %v6091
    %v6264 = vpack.c.b16 %v6096, %v6092
    %v6265 = vpack.c.b16 %v6097, %v6093
    %v6266 = vpack.c.b16 %v6102, %v6098
    %v6267 = vpack.c.b16 %v6103, %v6099
    %v6268 = vpack.c.b16 %v6104, %v6100
    %v6269 = vpack.c.b16 %v6105, %v6101
    %v6270 = vpack.c.b16 %v6110, %v6106
    %v6271 = vpack.c.b16 %v6111, %v6107
    %v6272 = vpack.c.b16 %v6112, %v6108
    %v6273 = vpack.c.b16 %v6113, %v6109
    %v6274 = vpack.c.b16 %v6118, %v6114
    %v6275 = vpack.c.b16 %v6119, %v6115
    %v6276 = vpack.c.b16 %v6120, %v6116
    %v6277 = vpack.c.b16 %v6121, %v6117
    %v6278 = vpack.c.b16 %v6126, %v6122
    %v6279 = vpack.c.b16 %v6127, %v6123
    %v6280 = vpack.c.b16 %v6128, %v6124
    %v6281 = vpack.c.b16 %v6129, %v6125
    %v6282 = vpack.c.b16 %v6134, %v6130
    %v6283 = vpack.c.b16 %v6135, %v6131
    %v6284 = vpack.c.b16 %v6136, %v6132
    %v6285 = vpack.c.b16 %v6137, %v6133
    %v6286 = vpack.c.b16 %v6142, %v6138
    %v6287 = vpack.c.b16 %v6143, %v6139
    %v6288 = vpack.c.b16 %v6144, %v6140
    %v6289 = vpack.c.b16 %v6145, %v6141
    %v6290 = vpack.c.b16 %v6150, %v6146
    %v6291 = vpack.c.b16 %v6151, %v6147
    %v6292 = vpack.c.b16 %v6152, %v6148
    %v6293 = vpack.c.b16 %v6153, %v6149
    %v6294 = vpack.c.b16 %v6158, %v6154
    %v6295 = vpack.c.b16 %v6159, %v6155
    %v6296 = vpack.c.b16 %v6160, %v6156
    %v6297 = vpack.c.b16 %v6161, %v6157
    %v6298 = vpack.c.b16 %v6166, %v6162
    %v6299 = vpack.c.b16 %v6167, %v6163
    %v6300 = vpack.c.b16 %v6168, %v6164
    %v6301 = vpack.c.b16 %v6169, %v6165
    %v6302 = vpack.c.b16 %v6174, %v6170
    %v6303 = vpack.c.b16 %v6175, %v6171
    %v6304 = vpack.c.b16 %v6176, %v6172
    %v6305 = vpack.c.b16 %v6177, %v6173
    %6434 = vmatprep.subr.bf16.mxu0 %v6207
    %6435 = vmatpush1.bf16.msra.mxu0 %v6206
    %6436 = vmatprep.subr.bf16.mxu0 %v6203
    %6437 = vmatpush1.bf16.msra.mxu0 %v6202
    %6438 = vmatprep.subr.bf16.mxu0 %v6199
    %6439 = vmatpush1.bf16.msra.mxu0 %v6198
    %6440 = vmatprep.subr.bf16.mxu0 %v6195
    %6441 = vmatpush1.bf16.msra.mxu0 %v6194
    %6442 = vmatprep.subr.bf16.mxu0 %v6191
    %6443 = vmatpush1.bf16.msra.mxu0 %v6190
    %6444 = vmatprep.subr.bf16.mxu0 %v6187
    %6445 = vmatpush1.bf16.msra.mxu0 %v6186
    %6446 = vmatprep.subr.bf16.mxu0 %v6183
    %6447 = vmatpush1.bf16.msra.mxu0 %v6182
    %6448 = vmatprep.subr.bf16.mxu0 %v6179
    %6449 = vmatpush1.bf16.msra.mxu0 %v6178
    %6450 = vmatprep.subr.bf16.mxu0 %v6239
    %6451 = vmatpush2.bf16.msra.mxu0 %v6238
    %6452 = vmatprep.subr.bf16.mxu0 %v6235
    %6453 = vmatpush2.bf16.msra.mxu0 %v6234
    %6454 = vmatprep.subr.bf16.mxu0 %v6231
    %6455 = vmatpush2.bf16.msra.mxu0 %v6230
    %6456 = vmatprep.subr.bf16.mxu0 %v6227
    %6457 = vmatpush2.bf16.msra.mxu0 %v6226
    %6458 = vmatprep.subr.bf16.mxu0 %v6223
    %6459 = vmatpush2.bf16.msra.mxu0 %v6222
    %6460 = vmatprep.subr.bf16.mxu0 %v6219
    %6461 = vmatpush2.bf16.msra.mxu0 %v6218
    %6462 = vmatprep.subr.bf16.mxu0 %v6215
    %6463 = vmatpush2.bf16.msra.mxu0 %v6214
    %6464 = vmatprep.subr.bf16.mxu0 %v6211
    %6465 = vmatpush2.bf16.msra.mxu0 %v6210
    %6466 = vmatprep.mubr.bf16.mxu0 %v5663
    %6467 = vmatmul.mubr.bf16.gmra.mxu0 %v5662
    %v6468 = vpop.f32.mrf.mxu0
    %v6469 = vadd.f32 0.0, %v6468
    %v6470 = vpop.f32.mrf.mxu0
    %v6471 = vadd.f32 0.0, %v6470
    %v6472 = vpop.f32.mrf.mxu0
    %v6473 = vpop.f32.mrf.mxu0
    %6474 = vdwg.mxu0
    %6475 = vmatprep.subr.bf16.mxu0 %v6271
    %6476 = vmatpush1.bf16.msra.mxu0 %v6270
    %6477 = vmatprep.subr.bf16.mxu0 %v6267
    %6478 = vmatpush1.bf16.msra.mxu0 %v6266
    %6479 = vmatprep.subr.bf16.mxu0 %v6263
    %6480 = vmatpush1.bf16.msra.mxu0 %v6262
    %6481 = vmatprep.subr.bf16.mxu0 %v6259
    %6482 = vmatpush1.bf16.msra.mxu0 %v6258
    %6483 = vmatprep.subr.bf16.mxu0 %v6255
    %6484 = vmatpush1.bf16.msra.mxu0 %v6254
    %6485 = vmatprep.subr.bf16.mxu0 %v6251
    %6486 = vmatpush1.bf16.msra.mxu0 %v6250
    %6487 = vmatprep.subr.bf16.mxu0 %v6247
    %6488 = vmatpush1.bf16.msra.mxu0 %v6246
    %6489 = vmatprep.subr.bf16.mxu0 %v6243
    %6490 = vmatpush1.bf16.msra.mxu0 %v6242
    %6491 = vmatprep.subr.bf16.mxu0 %v6303
    %6492 = vmatpush2.bf16.msra.mxu0 %v6302
    %6493 = vmatprep.subr.bf16.mxu0 %v6299
    %6494 = vmatpush2.bf16.msra.mxu0 %v6298
    %6495 = vmatprep.subr.bf16.mxu0 %v6295
    %6496 = vmatpush2.bf16.msra.mxu0 %v6294
    %6497 = vmatprep.subr.bf16.mxu0 %v6291
    %6498 = vmatpush2.bf16.msra.mxu0 %v6290
    %6499 = vmatprep.subr.bf16.mxu0 %v6287
    %6500 = vmatpush2.bf16.msra.mxu0 %v6286
    %6501 = vmatprep.subr.bf16.mxu0 %v6283
    %6502 = vmatpush2.bf16.msra.mxu0 %v6282
    %6503 = vmatprep.subr.bf16.mxu0 %v6279
    %6504 = vmatpush2.bf16.msra.mxu0 %v6278
    %6505 = vmatprep.subr.bf16.mxu0 %v6275
    %6506 = vmatpush2.bf16.msra.mxu0 %v6274
    %6507 = vmatprep.mubr.bf16.mxu0 %v5665
    %6508 = vmatmul.mubr.bf16.gmra.mxu0 %v5664
    %v6509 = vpop.f32.mrf.mxu0
    %v6510 = vadd.f32 %v6469, %v6509
    %v6511 = vpop.f32.mrf.mxu0
    %v6512 = vadd.f32 %v6471, %v6511
    %v6513 = vpop.f32.mrf.mxu0
    %v6514 = vpop.f32.mrf.mxu0
    %6515 = vdwg.mxu0
    %6516 = vmatprep.subr.bf16.mxu0 %v6209
    %6517 = vmatpush1.bf16.msra.mxu0 %v6208
    %6518 = vmatprep.subr.bf16.mxu0 %v6205
    %6519 = vmatpush1.bf16.msra.mxu0 %v6204
    %6520 = vmatprep.subr.bf16.mxu0 %v6201
    %6521 = vmatpush1.bf16.msra.mxu0 %v6200
    %6522 = vmatprep.subr.bf16.mxu0 %v6197
    %6523 = vmatpush1.bf16.msra.mxu0 %v6196
    %6524 = vmatprep.subr.bf16.mxu0 %v6193
    %6525 = vmatpush1.bf16.msra.mxu0 %v6192
    %6526 = vmatprep.subr.bf16.mxu0 %v6189
    %6527 = vmatpush1.bf16.msra.mxu0 %v6188
    %6528 = vmatprep.subr.bf16.mxu0 %v6185
    %6529 = vmatpush1.bf16.msra.mxu0 %v6184
    %6530 = vmatprep.subr.bf16.mxu0 %v6181
    %6531 = vmatpush1.bf16.msra.mxu0 %v6180
    %6532 = vmatprep.subr.bf16.mxu0 %v6241
    %6533 = vmatpush2.bf16.msra.mxu0 %v6240
    %6534 = vmatprep.subr.bf16.mxu0 %v6237
    %6535 = vmatpush2.bf16.msra.mxu0 %v6236
    %6536 = vmatprep.subr.bf16.mxu0 %v6233
    %6537 = vmatpush2.bf16.msra.mxu0 %v6232
    %6538 = vmatprep.subr.bf16.mxu0 %v6229
    %6539 = vmatpush2.bf16.msra.mxu0 %v6228
    %6540 = vmatprep.subr.bf16.mxu0 %v6225
    %6541 = vmatpush2.bf16.msra.mxu0 %v6224
    %6542 = vmatprep.subr.bf16.mxu0 %v6221
    %6543 = vmatpush2.bf16.msra.mxu0 %v6220
    %6544 = vmatprep.subr.bf16.mxu0 %v6217
    %6545 = vmatpush2.bf16.msra.mxu0 %v6216
    %6546 = vmatprep.subr.bf16.mxu0 %v6213
    %6547 = vmatpush2.bf16.msra.mxu0 %v6212
    %6548 = vmatprep.mubr.bf16.mxu0 %v5663
    %6549 = vmatmul.mubr.bf16.gmra.mxu0 %v5662
    %v6550 = vpop.f32.mrf.mxu0
    %v6551 = vadd.f32 0.0, %v6550
    %v6552 = vpop.f32.mrf.mxu0
    %v6553 = vadd.f32 0.0, %v6552
    %v6554 = vpop.f32.mrf.mxu0
    %v6555 = vpop.f32.mrf.mxu0
    %6556 = vdwg.mxu0
    %6557 = vmatprep.subr.bf16.mxu0 %v6273
    %6558 = vmatpush1.bf16.msra.mxu0 %v6272
    %6559 = vmatprep.subr.bf16.mxu0 %v6269
    %6560 = vmatpush1.bf16.msra.mxu0 %v6268
    %6561 = vmatprep.subr.bf16.mxu0 %v6265
    %6562 = vmatpush1.bf16.msra.mxu0 %v6264
    %6563 = vmatprep.subr.bf16.mxu0 %v6261
    %6564 = vmatpush1.bf16.msra.mxu0 %v6260
    %6565 = vmatprep.subr.bf16.mxu0 %v6257
    %6566 = vmatpush1.bf16.msra.mxu0 %v6256
    %6567 = vmatprep.subr.bf16.mxu0 %v6253
    %6568 = vmatpush1.bf16.msra.mxu0 %v6252
    %6569 = vmatprep.subr.bf16.mxu0 %v6249
    %6570 = vmatpush1.bf16.msra.mxu0 %v6248
    %6571 = vmatprep.subr.bf16.mxu0 %v6245
    %6572 = vmatpush1.bf16.msra.mxu0 %v6244
    %6573 = vmatprep.subr.bf16.mxu0 %v6305
    %6574 = vmatpush2.bf16.msra.mxu0 %v6304
    %6575 = vmatprep.subr.bf16.mxu0 %v6301
    %6576 = vmatpush2.bf16.msra.mxu0 %v6300
    %6577 = vmatprep.subr.bf16.mxu0 %v6297
    %6578 = vmatpush2.bf16.msra.mxu0 %v6296
    %6579 = vmatprep.subr.bf16.mxu0 %v6293
    %6580 = vmatpush2.bf16.msra.mxu0 %v6292
    %6581 = vmatprep.subr.bf16.mxu0 %v6289
    %6582 = vmatpush2.bf16.msra.mxu0 %v6288
    %6583 = vmatprep.subr.bf16.mxu0 %v6285
    %6584 = vmatpush2.bf16.msra.mxu0 %v6284
    %6585 = vmatprep.subr.bf16.mxu0 %v6281
    %6586 = vmatpush2.bf16.msra.mxu0 %v6280
    %6587 = vmatprep.subr.bf16.mxu0 %v6277
    %6588 = vmatpush2.bf16.msra.mxu0 %v6276
    %6589 = vmatprep.mubr.bf16.mxu0 %v5665
    %6590 = vmatmul.mubr.bf16.gmra.mxu0 %v5664
    %v6591 = vpop.f32.mrf.mxu0
    %v6592 = vadd.f32 %v6551, %v6591
    %v6593 = vpop.f32.mrf.mxu0
    %v6594 = vadd.f32 %v6553, %v6593
    %v6595 = vpop.f32.mrf.mxu0
    %v6596 = vpop.f32.mrf.mxu0
    %6597 = vdwg.mxu0
    %v6726 = vunpack.c.l.b16 %v5534
    %v6727 = vunpack.c.h.b16 %v5534
    %v6728 = vunpack.c.l.b16 %v5535
    %v6729 = vunpack.c.h.b16 %v5535
    %v6730 = vunpack.c.l.b16 %v5536
    %v6731 = vunpack.c.h.b16 %v5536
    %v6732 = vunpack.c.l.b16 %v5537
    %v6733 = vunpack.c.h.b16 %v5537
    %v6734 = vunpack.c.l.b16 %v5538
    %v6735 = vunpack.c.h.b16 %v5538
    %v6736 = vunpack.c.l.b16 %v5539
    %v6737 = vunpack.c.h.b16 %v5539
    %v6738 = vunpack.c.l.b16 %v5540
    %v6739 = vunpack.c.h.b16 %v5540
    %v6740 = vunpack.c.l.b16 %v5541
    %v6741 = vunpack.c.h.b16 %v5541
    %v6742 = vunpack.c.l.b16 %v5542
    %v6743 = vunpack.c.h.b16 %v5542
    %v6744 = vunpack.c.l.b16 %v5543
    %v6745 = vunpack.c.h.b16 %v5543
    %v6746 = vunpack.c.l.b16 %v5544
    %v6747 = vunpack.c.h.b16 %v5544
    %v6748 = vunpack.c.l.b16 %v5545
    %v6749 = vunpack.c.h.b16 %v5545
    %v6750 = vunpack.c.l.b16 %v5546
    %v6751 = vunpack.c.h.b16 %v5546
    %v6752 = vunpack.c.l.b16 %v5547
    %v6753 = vunpack.c.h.b16 %v5547
    %v6754 = vunpack.c.l.b16 %v5548
    %v6755 = vunpack.c.h.b16 %v5548
    %v6756 = vunpack.c.l.b16 %v5549
    %v6757 = vunpack.c.h.b16 %v5549
    %v6758 = vunpack.c.l.b16 %v5550
    %v6759 = vunpack.c.h.b16 %v5550
    %v6760 = vunpack.c.l.b16 %v5551
    %v6761 = vunpack.c.h.b16 %v5551
    %v6762 = vunpack.c.l.b16 %v5552
    %v6763 = vunpack.c.h.b16 %v5552
    %v6764 = vunpack.c.l.b16 %v5553
    %v6765 = vunpack.c.h.b16 %v5553
    %v6766 = vunpack.c.l.b16 %v5554
    %v6767 = vunpack.c.h.b16 %v5554
    %v6768 = vunpack.c.l.b16 %v5555
    %v6769 = vunpack.c.h.b16 %v5555
    %v6770 = vunpack.c.l.b16 %v5556
    %v6771 = vunpack.c.h.b16 %v5556
    %v6772 = vunpack.c.l.b16 %v5557
    %v6773 = vunpack.c.h.b16 %v5557
    %v6774 = vunpack.c.l.b16 %v5558
    %v6775 = vunpack.c.h.b16 %v5558
    %v6776 = vunpack.c.l.b16 %v5559
    %v6777 = vunpack.c.h.b16 %v5559
    %v6778 = vunpack.c.l.b16 %v5560
    %v6779 = vunpack.c.h.b16 %v5560
    %v6780 = vunpack.c.l.b16 %v5561
    %v6781 = vunpack.c.h.b16 %v5561
    %v6782 = vunpack.c.l.b16 %v5562
    %v6783 = vunpack.c.h.b16 %v5562
    %v6784 = vunpack.c.l.b16 %v5563
    %v6785 = vunpack.c.h.b16 %v5563
    %v6786 = vunpack.c.l.b16 %v5564
    %v6787 = vunpack.c.h.b16 %v5564
    %v6788 = vunpack.c.l.b16 %v5565
    %v6789 = vunpack.c.h.b16 %v5565
    %v6790 = vunpack.c.l.b16 %v5566
    %v6791 = vunpack.c.h.b16 %v5566
    %v6792 = vunpack.c.l.b16 %v5567
    %v6793 = vunpack.c.h.b16 %v5567
    %v6794 = vunpack.c.l.b16 %v5568
    %v6795 = vunpack.c.h.b16 %v5568
    %v6796 = vunpack.c.l.b16 %v5569
    %v6797 = vunpack.c.h.b16 %v5569
    %v6798 = vunpack.c.l.b16 %v5570
    %v6799 = vunpack.c.h.b16 %v5570
    %v6800 = vunpack.c.l.b16 %v5571
    %v6801 = vunpack.c.h.b16 %v5571
    %v6802 = vunpack.c.l.b16 %v5572
    %v6803 = vunpack.c.h.b16 %v5572
    %v6804 = vunpack.c.l.b16 %v5573
    %v6805 = vunpack.c.h.b16 %v5573
    %v6806 = vunpack.c.l.b16 %v5574
    %v6807 = vunpack.c.h.b16 %v5574
    %v6808 = vunpack.c.l.b16 %v5575
    %v6809 = vunpack.c.h.b16 %v5575
    %v6810 = vunpack.c.l.b16 %v5576
    %v6811 = vunpack.c.h.b16 %v5576
    %v6812 = vunpack.c.l.b16 %v5577
    %v6813 = vunpack.c.h.b16 %v5577
    %v6814 = vunpack.c.l.b16 %v5578
    %v6815 = vunpack.c.h.b16 %v5578
    %v6816 = vunpack.c.l.b16 %v5579
    %v6817 = vunpack.c.h.b16 %v5579
    %v6818 = vunpack.c.l.b16 %v5580
    %v6819 = vunpack.c.h.b16 %v5580
    %v6820 = vunpack.c.l.b16 %v5581
    %v6821 = vunpack.c.h.b16 %v5581
    %v6822 = vunpack.c.l.b16 %v5582
    %v6823 = vunpack.c.h.b16 %v5582
    %v6824 = vunpack.c.l.b16 %v5583
    %v6825 = vunpack.c.h.b16 %v5583
    %v6826 = vunpack.c.l.b16 %v5584
    %v6827 = vunpack.c.h.b16 %v5584
    %v6828 = vunpack.c.l.b16 %v5585
    %v6829 = vunpack.c.h.b16 %v5585
    %v6830 = vunpack.c.l.b16 %v5586
    %v6831 = vunpack.c.h.b16 %v5586
    %v6832 = vunpack.c.l.b16 %v5587
    %v6833 = vunpack.c.h.b16 %v5587
    %v6834 = vunpack.c.l.b16 %v5588
    %v6835 = vunpack.c.h.b16 %v5588
    %v6836 = vunpack.c.l.b16 %v5589
    %v6837 = vunpack.c.h.b16 %v5589
    %v6838 = vunpack.c.l.b16 %v5590
    %v6839 = vunpack.c.h.b16 %v5590
    %v6840 = vunpack.c.l.b16 %v5591
    %v6841 = vunpack.c.h.b16 %v5591
    %v6842 = vunpack.c.l.b16 %v5592
    %v6843 = vunpack.c.h.b16 %v5592
    %v6844 = vunpack.c.l.b16 %v5593
    %v6845 = vunpack.c.h.b16 %v5593
    %v6846 = vunpack.c.l.b16 %v5594
    %v6847 = vunpack.c.h.b16 %v5594
    %v6848 = vunpack.c.l.b16 %v5595
    %v6849 = vunpack.c.h.b16 %v5595
    %v6850 = vunpack.c.l.b16 %v5596
    %v6851 = vunpack.c.h.b16 %v5596
    %v6852 = vunpack.c.l.b16 %v5597
    %v6853 = vunpack.c.h.b16 %v5597
    %v6854 = vunpack.c.l.b16 %v5598
    %v6855 = vunpack.c.h.b16 %v5598
    %v6856 = vunpack.c.l.b16 %v5599
    %v6857 = vunpack.c.h.b16 %v5599
    %v6858 = vunpack.c.l.b16 %v5600
    %v6859 = vunpack.c.h.b16 %v5600
    %v6860 = vunpack.c.l.b16 %v5601
    %v6861 = vunpack.c.h.b16 %v5601
    %v6862 = vunpack.c.l.b16 %v5602
    %v6863 = vunpack.c.h.b16 %v5602
    %v6864 = vunpack.c.l.b16 %v5603
    %v6865 = vunpack.c.h.b16 %v5603
    %v6866 = vunpack.c.l.b16 %v5604
    %v6867 = vunpack.c.h.b16 %v5604
    %v6868 = vunpack.c.l.b16 %v5605
    %v6869 = vunpack.c.h.b16 %v5605
    %v6870 = vunpack.c.l.b16 %v5606
    %v6871 = vunpack.c.h.b16 %v5606
    %v6872 = vunpack.c.l.b16 %v5607
    %v6873 = vunpack.c.h.b16 %v5607
    %v6874 = vunpack.c.l.b16 %v5608
    %v6875 = vunpack.c.h.b16 %v5608
    %v6876 = vunpack.c.l.b16 %v5609
    %v6877 = vunpack.c.h.b16 %v5609
    %v6878 = vunpack.c.l.b16 %v5610
    %v6879 = vunpack.c.h.b16 %v5610
    %v6880 = vunpack.c.l.b16 %v5611
    %v6881 = vunpack.c.h.b16 %v5611
    %v6882 = vunpack.c.l.b16 %v5612
    %v6883 = vunpack.c.h.b16 %v5612
    %v6884 = vunpack.c.l.b16 %v5613
    %v6885 = vunpack.c.h.b16 %v5613
    %v6886 = vunpack.c.l.b16 %v5614
    %v6887 = vunpack.c.h.b16 %v5614
    %v6888 = vunpack.c.l.b16 %v5615
    %v6889 = vunpack.c.h.b16 %v5615
    %v6890 = vunpack.c.l.b16 %v5616
    %v6891 = vunpack.c.h.b16 %v5616
    %v6892 = vunpack.c.l.b16 %v5617
    %v6893 = vunpack.c.h.b16 %v5617
    %v6894 = vunpack.c.l.b16 %v5618
    %v6895 = vunpack.c.h.b16 %v5618
    %v6896 = vunpack.c.l.b16 %v5619
    %v6897 = vunpack.c.h.b16 %v5619
    %v6898 = vunpack.c.l.b16 %v5620
    %v6899 = vunpack.c.h.b16 %v5620
    %v6900 = vunpack.c.l.b16 %v5621
    %v6901 = vunpack.c.h.b16 %v5621
    %v6902 = vunpack.c.l.b16 %v5622
    %v6903 = vunpack.c.h.b16 %v5622
    %v6904 = vunpack.c.l.b16 %v5623
    %v6905 = vunpack.c.h.b16 %v5623
    %v6906 = vunpack.c.l.b16 %v5624
    %v6907 = vunpack.c.h.b16 %v5624
    %v6908 = vunpack.c.l.b16 %v5625
    %v6909 = vunpack.c.h.b16 %v5625
    %v6910 = vunpack.c.l.b16 %v5626
    %v6911 = vunpack.c.h.b16 %v5626
    %v6912 = vunpack.c.l.b16 %v5627
    %v6913 = vunpack.c.h.b16 %v5627
    %v6914 = vunpack.c.l.b16 %v5628
    %v6915 = vunpack.c.h.b16 %v5628
    %v6916 = vunpack.c.l.b16 %v5629
    %v6917 = vunpack.c.h.b16 %v5629
    %v6918 = vunpack.c.l.b16 %v5630
    %v6919 = vunpack.c.h.b16 %v5630
    %v6920 = vunpack.c.l.b16 %v5631
    %v6921 = vunpack.c.h.b16 %v5631
    %v6922 = vunpack.c.l.b16 %v5632
    %v6923 = vunpack.c.h.b16 %v5632
    %v6924 = vunpack.c.l.b16 %v5633
    %v6925 = vunpack.c.h.b16 %v5633
    %v6926 = vunpack.c.l.b16 %v5634
    %v6927 = vunpack.c.h.b16 %v5634
    %v6928 = vunpack.c.l.b16 %v5635
    %v6929 = vunpack.c.h.b16 %v5635
    %v6930 = vunpack.c.l.b16 %v5636
    %v6931 = vunpack.c.h.b16 %v5636
    %v6932 = vunpack.c.l.b16 %v5637
    %v6933 = vunpack.c.h.b16 %v5637
    %v6934 = vunpack.c.l.b16 %v5638
    %v6935 = vunpack.c.h.b16 %v5638
    %v6936 = vunpack.c.l.b16 %v5639
    %v6937 = vunpack.c.h.b16 %v5639
    %v6938 = vunpack.c.l.b16 %v5640
    %v6939 = vunpack.c.h.b16 %v5640
    %v6940 = vunpack.c.l.b16 %v5641
    %v6941 = vunpack.c.h.b16 %v5641
    %v6942 = vunpack.c.l.b16 %v5642
    %v6943 = vunpack.c.h.b16 %v5642
    %v6944 = vunpack.c.l.b16 %v5643
    %v6945 = vunpack.c.h.b16 %v5643
    %v6946 = vunpack.c.l.b16 %v5644
    %v6947 = vunpack.c.h.b16 %v5644
    %v6948 = vunpack.c.l.b16 %v5645
    %v6949 = vunpack.c.h.b16 %v5645
    %v6950 = vunpack.c.l.b16 %v5646
    %v6951 = vunpack.c.h.b16 %v5646
    %v6952 = vunpack.c.l.b16 %v5647
    %v6953 = vunpack.c.h.b16 %v5647
    %v6954 = vunpack.c.l.b16 %v5648
    %v6955 = vunpack.c.h.b16 %v5648
    %v6956 = vunpack.c.l.b16 %v5649
    %v6957 = vunpack.c.h.b16 %v5649
    %v6958 = vunpack.c.l.b16 %v5650
    %v6959 = vunpack.c.h.b16 %v5650
    %v6960 = vunpack.c.l.b16 %v5651
    %v6961 = vunpack.c.h.b16 %v5651
    %v6962 = vunpack.c.l.b16 %v5652
    %v6963 = vunpack.c.h.b16 %v5652
    %v6964 = vunpack.c.l.b16 %v5653
    %v6965 = vunpack.c.h.b16 %v5653
    %v6966 = vunpack.c.l.b16 %v5654
    %v6967 = vunpack.c.h.b16 %v5654
    %v6968 = vunpack.c.l.b16 %v5655
    %v6969 = vunpack.c.h.b16 %v5655
    %v6970 = vunpack.c.l.b16 %v5656
    %v6971 = vunpack.c.h.b16 %v5656
    %v6972 = vunpack.c.l.b16 %v5657
    %v6973 = vunpack.c.h.b16 %v5657
    %v6974 = vunpack.c.l.b16 %v5658
    %v6975 = vunpack.c.h.b16 %v5658
    %v6976 = vunpack.c.l.b16 %v5659
    %v6977 = vunpack.c.h.b16 %v5659
    %v6978 = vunpack.c.l.b16 %v5660
    %v6979 = vunpack.c.h.b16 %v5660
    %v6980 = vunpack.c.l.b16 %v5661
    %v6981 = vunpack.c.h.b16 %v5661
    %v6982 = vpack.c.b16 %v6730, %v6726
    %v6983 = vpack.c.b16 %v6731, %v6727
    %v6984 = vpack.c.b16 %v6732, %v6728
    %v6985 = vpack.c.b16 %v6733, %v6729
    %v6986 = vpack.c.b16 %v6738, %v6734
    %v6987 = vpack.c.b16 %v6739, %v6735
    %v6988 = vpack.c.b16 %v6740, %v6736
    %v6989 = vpack.c.b16 %v6741, %v6737
    %v6990 = vpack.c.b16 %v6746, %v6742
    %v6991 = vpack.c.b16 %v6747, %v6743
    %v6992 = vpack.c.b16 %v6748, %v6744
    %v6993 = vpack.c.b16 %v6749, %v6745
    %v6994 = vpack.c.b16 %v6754, %v6750
    %v6995 = vpack.c.b16 %v6755, %v6751
    %v6996 = vpack.c.b16 %v6756, %v6752
    %v6997 = vpack.c.b16 %v6757, %v6753
    %v6998 = vpack.c.b16 %v6762, %v6758
    %v6999 = vpack.c.b16 %v6763, %v6759
    %v7000 = vpack.c.b16 %v6764, %v6760
    %v7001 = vpack.c.b16 %v6765, %v6761
    %v7002 = vpack.c.b16 %v6770, %v6766
    %v7003 = vpack.c.b16 %v6771, %v6767
    %v7004 = vpack.c.b16 %v6772, %v6768
    %v7005 = vpack.c.b16 %v6773, %v6769
    %v7006 = vpack.c.b16 %v6778, %v6774
    %v7007 = vpack.c.b16 %v6779, %v6775
    %v7008 = vpack.c.b16 %v6780, %v6776
    %v7009 = vpack.c.b16 %v6781, %v6777
    %v7010 = vpack.c.b16 %v6786, %v6782
    %v7011 = vpack.c.b16 %v6787, %v6783
    %v7012 = vpack.c.b16 %v6788, %v6784
    %v7013 = vpack.c.b16 %v6789, %v6785
    %v7014 = vpack.c.b16 %v6794, %v6790
    %v7015 = vpack.c.b16 %v6795, %v6791
    %v7016 = vpack.c.b16 %v6796, %v6792
    %v7017 = vpack.c.b16 %v6797, %v6793
    %v7018 = vpack.c.b16 %v6802, %v6798
    %v7019 = vpack.c.b16 %v6803, %v6799
    %v7020 = vpack.c.b16 %v6804, %v6800
    %v7021 = vpack.c.b16 %v6805, %v6801
    %v7022 = vpack.c.b16 %v6810, %v6806
    %v7023 = vpack.c.b16 %v6811, %v6807
    %v7024 = vpack.c.b16 %v6812, %v6808
    %v7025 = vpack.c.b16 %v6813, %v6809
    %v7026 = vpack.c.b16 %v6818, %v6814
    %v7027 = vpack.c.b16 %v6819, %v6815
    %v7028 = vpack.c.b16 %v6820, %v6816
    %v7029 = vpack.c.b16 %v6821, %v6817
    %v7030 = vpack.c.b16 %v6826, %v6822
    %v7031 = vpack.c.b16 %v6827, %v6823
    %v7032 = vpack.c.b16 %v6828, %v6824
    %v7033 = vpack.c.b16 %v6829, %v6825
    %v7034 = vpack.c.b16 %v6834, %v6830
    %v7035 = vpack.c.b16 %v6835, %v6831
    %v7036 = vpack.c.b16 %v6836, %v6832
    %v7037 = vpack.c.b16 %v6837, %v6833
    %v7038 = vpack.c.b16 %v6842, %v6838
    %v7039 = vpack.c.b16 %v6843, %v6839
    %v7040 = vpack.c.b16 %v6844, %v6840
    %v7041 = vpack.c.b16 %v6845, %v6841
    %v7042 = vpack.c.b16 %v6850, %v6846
    %v7043 = vpack.c.b16 %v6851, %v6847
    %v7044 = vpack.c.b16 %v6852, %v6848
    %v7045 = vpack.c.b16 %v6853, %v6849
    %v7046 = vpack.c.b16 %v6858, %v6854
    %v7047 = vpack.c.b16 %v6859, %v6855
    %v7048 = vpack.c.b16 %v6860, %v6856
    %v7049 = vpack.c.b16 %v6861, %v6857
    %v7050 = vpack.c.b16 %v6866, %v6862
    %v7051 = vpack.c.b16 %v6867, %v6863
    %v7052 = vpack.c.b16 %v6868, %v6864
    %v7053 = vpack.c.b16 %v6869, %v6865
    %v7054 = vpack.c.b16 %v6874, %v6870
    %v7055 = vpack.c.b16 %v6875, %v6871
    %v7056 = vpack.c.b16 %v6876, %v6872
    %v7057 = vpack.c.b16 %v6877, %v6873
    %v7058 = vpack.c.b16 %v6882, %v6878
    %v7059 = vpack.c.b16 %v6883, %v6879
    %v7060 = vpack.c.b16 %v6884, %v6880
    %v7061 = vpack.c.b16 %v6885, %v6881
    %v7062 = vpack.c.b16 %v6890, %v6886
    %v7063 = vpack.c.b16 %v6891, %v6887
    %v7064 = vpack.c.b16 %v6892, %v6888
    %v7065 = vpack.c.b16 %v6893, %v6889
    %v7066 = vpack.c.b16 %v6898, %v6894
    %v7067 = vpack.c.b16 %v6899, %v6895
    %v7068 = vpack.c.b16 %v6900, %v6896
    %v7069 = vpack.c.b16 %v6901, %v6897
    %v7070 = vpack.c.b16 %v6906, %v6902
    %v7071 = vpack.c.b16 %v6907, %v6903
    %v7072 = vpack.c.b16 %v6908, %v6904
    %v7073 = vpack.c.b16 %v6909, %v6905
    %v7074 = vpack.c.b16 %v6914, %v6910
    %v7075 = vpack.c.b16 %v6915, %v6911
    %v7076 = vpack.c.b16 %v6916, %v6912
    %v7077 = vpack.c.b16 %v6917, %v6913
    %v7078 = vpack.c.b16 %v6922, %v6918
    %v7079 = vpack.c.b16 %v6923, %v6919
    %v7080 = vpack.c.b16 %v6924, %v6920
    %v7081 = vpack.c.b16 %v6925, %v6921
    %v7082 = vpack.c.b16 %v6930, %v6926
    %v7083 = vpack.c.b16 %v6931, %v6927
    %v7084 = vpack.c.b16 %v6932, %v6928
    %v7085 = vpack.c.b16 %v6933, %v6929
    %v7086 = vpack.c.b16 %v6938, %v6934
    %v7087 = vpack.c.b16 %v6939, %v6935
    %v7088 = vpack.c.b16 %v6940, %v6936
    %v7089 = vpack.c.b16 %v6941, %v6937
    %v7090 = vpack.c.b16 %v6946, %v6942
    %v7091 = vpack.c.b16 %v6947, %v6943
    %v7092 = vpack.c.b16 %v6948, %v6944
    %v7093 = vpack.c.b16 %v6949, %v6945
    %v7094 = vpack.c.b16 %v6954, %v6950
    %v7095 = vpack.c.b16 %v6955, %v6951
    %v7096 = vpack.c.b16 %v6956, %v6952
    %v7097 = vpack.c.b16 %v6957, %v6953
    %v7098 = vpack.c.b16 %v6962, %v6958
    %v7099 = vpack.c.b16 %v6963, %v6959
    %v7100 = vpack.c.b16 %v6964, %v6960
    %v7101 = vpack.c.b16 %v6965, %v6961
    %v7102 = vpack.c.b16 %v6970, %v6966
    %v7103 = vpack.c.b16 %v6971, %v6967
    %v7104 = vpack.c.b16 %v6972, %v6968
    %v7105 = vpack.c.b16 %v6973, %v6969
    %v7106 = vpack.c.b16 %v6978, %v6974
    %v7107 = vpack.c.b16 %v6979, %v6975
    %v7108 = vpack.c.b16 %v6980, %v6976
    %v7109 = vpack.c.b16 %v6981, %v6977
    %7238 = vmatprep.subr.bf16.mxu0 %v7011
    %7239 = vmatpush1.bf16.msra.mxu0 %v7010
    %7240 = vmatprep.subr.bf16.mxu0 %v7007
    %7241 = vmatpush1.bf16.msra.mxu0 %v7006
    %7242 = vmatprep.subr.bf16.mxu0 %v7003
    %7243 = vmatpush1.bf16.msra.mxu0 %v7002
    %7244 = vmatprep.subr.bf16.mxu0 %v6999
    %7245 = vmatpush1.bf16.msra.mxu0 %v6998
    %7246 = vmatprep.subr.bf16.mxu0 %v6995
    %7247 = vmatpush1.bf16.msra.mxu0 %v6994
    %7248 = vmatprep.subr.bf16.mxu0 %v6991
    %7249 = vmatpush1.bf16.msra.mxu0 %v6990
    %7250 = vmatprep.subr.bf16.mxu0 %v6987
    %7251 = vmatpush1.bf16.msra.mxu0 %v6986
    %7252 = vmatprep.subr.bf16.mxu0 %v6983
    %7253 = vmatpush1.bf16.msra.mxu0 %v6982
    %7254 = vmatprep.subr.bf16.mxu0 %v7043
    %7255 = vmatpush2.bf16.msra.mxu0 %v7042
    %7256 = vmatprep.subr.bf16.mxu0 %v7039
    %7257 = vmatpush2.bf16.msra.mxu0 %v7038
    %7258 = vmatprep.subr.bf16.mxu0 %v7035
    %7259 = vmatpush2.bf16.msra.mxu0 %v7034
    %7260 = vmatprep.subr.bf16.mxu0 %v7031
    %7261 = vmatpush2.bf16.msra.mxu0 %v7030
    %7262 = vmatprep.subr.bf16.mxu0 %v7027
    %7263 = vmatpush2.bf16.msra.mxu0 %v7026
    %7264 = vmatprep.subr.bf16.mxu0 %v7023
    %7265 = vmatpush2.bf16.msra.mxu0 %v7022
    %7266 = vmatprep.subr.bf16.mxu0 %v7019
    %7267 = vmatpush2.bf16.msra.mxu0 %v7018
    %7268 = vmatprep.subr.bf16.mxu0 %v7015
    %7269 = vmatpush2.bf16.msra.mxu0 %v7014
    %7270 = vmatprep.mubr.bf16.mxu0 %v5251
    %7271 = vmatmul.mubr.bf16.gmra.mxu0 %v5250
    %v7272 = vpop.f32.mrf.mxu0
    %v7273 = vadd.f32 %v6510, %v7272
    %v7274 = vpop.f32.mrf.mxu0
    %v7275 = vadd.f32 %v6512, %v7274
    %v7276 = vpop.f32.mrf.mxu0
    %v7277 = vpop.f32.mrf.mxu0
    %7278 = vdwg.mxu0
    %7279 = vmatprep.subr.bf16.mxu0 %v7075
    %7280 = vmatpush1.bf16.msra.mxu0 %v7074
    %7281 = vmatprep.subr.bf16.mxu0 %v7071
    %7282 = vmatpush1.bf16.msra.mxu0 %v7070
    %7283 = vmatprep.subr.bf16.mxu0 %v7067
    %7284 = vmatpush1.bf16.msra.mxu0 %v7066
    %7285 = vmatprep.subr.bf16.mxu0 %v7063
    %7286 = vmatpush1.bf16.msra.mxu0 %v7062
    %7287 = vmatprep.subr.bf16.mxu0 %v7059
    %7288 = vmatpush1.bf16.msra.mxu0 %v7058
    %7289 = vmatprep.subr.bf16.mxu0 %v7055
    %7290 = vmatpush1.bf16.msra.mxu0 %v7054
    %7291 = vmatprep.subr.bf16.mxu0 %v7051
    %7292 = vmatpush1.bf16.msra.mxu0 %v7050
    %7293 = vmatprep.subr.bf16.mxu0 %v7047
    %7294 = vmatpush1.bf16.msra.mxu0 %v7046
    %7295 = vmatprep.subr.bf16.mxu0 %v7107
    %7296 = vmatpush2.bf16.msra.mxu0 %v7106
    %7297 = vmatprep.subr.bf16.mxu0 %v7103
    %7298 = vmatpush2.bf16.msra.mxu0 %v7102
    %7299 = vmatprep.subr.bf16.mxu0 %v7099
    %7300 = vmatpush2.bf16.msra.mxu0 %v7098
    %7301 = vmatprep.subr.bf16.mxu0 %v7095
    %7302 = vmatpush2.bf16.msra.mxu0 %v7094
    %7303 = vmatprep.subr.bf16.mxu0 %v7091
    %7304 = vmatpush2.bf16.msra.mxu0 %v7090
    %7305 = vmatprep.subr.bf16.mxu0 %v7087
    %7306 = vmatpush2.bf16.msra.mxu0 %v7086
    %7307 = vmatprep.subr.bf16.mxu0 %v7083
    %7308 = vmatpush2.bf16.msra.mxu0 %v7082
    %7309 = vmatprep.subr.bf16.mxu0 %v7079
    %7310 = vmatpush2.bf16.msra.mxu0 %v7078
    %7311 = vmatprep.mubr.bf16.mxu0 %v5253
    %7312 = vmatmul.mubr.bf16.gmra.mxu0 %v5252
    %v7313 = vpop.f32.mrf.mxu0
    %v7314 = vadd.f32 %v7273, %v7313
    %v7315 = vpop.f32.mrf.mxu0
    %v7316 = vadd.f32 %v7275, %v7315
    %v7317 = vpop.f32.mrf.mxu0
    %v7318 = vpop.f32.mrf.mxu0
    %7319 = vdwg.mxu0
    %7320 = vmatprep.subr.bf16.mxu0 %v7013
    %7321 = vmatpush1.bf16.msra.mxu0 %v7012
    %7322 = vmatprep.subr.bf16.mxu0 %v7009
    %7323 = vmatpush1.bf16.msra.mxu0 %v7008
    %7324 = vmatprep.subr.bf16.mxu0 %v7005
    %7325 = vmatpush1.bf16.msra.mxu0 %v7004
    %7326 = vmatprep.subr.bf16.mxu0 %v7001
    %7327 = vmatpush1.bf16.msra.mxu0 %v7000
    %7328 = vmatprep.subr.bf16.mxu0 %v6997
    %7329 = vmatpush1.bf16.msra.mxu0 %v6996
    %7330 = vmatprep.subr.bf16.mxu0 %v6993
    %7331 = vmatpush1.bf16.msra.mxu0 %v6992
    %7332 = vmatprep.subr.bf16.mxu0 %v6989
    %7333 = vmatpush1.bf16.msra.mxu0 %v6988
    %7334 = vmatprep.subr.bf16.mxu0 %v6985
    %7335 = vmatpush1.bf16.msra.mxu0 %v6984
    %7336 = vmatprep.subr.bf16.mxu0 %v7045
    %7337 = vmatpush2.bf16.msra.mxu0 %v7044
    %7338 = vmatprep.subr.bf16.mxu0 %v7041
    %7339 = vmatpush2.bf16.msra.mxu0 %v7040
    %7340 = vmatprep.subr.bf16.mxu0 %v7037
    %7341 = vmatpush2.bf16.msra.mxu0 %v7036
    %7342 = vmatprep.subr.bf16.mxu0 %v7033
    %7343 = vmatpush2.bf16.msra.mxu0 %v7032
    %7344 = vmatprep.subr.bf16.mxu0 %v7029
    %7345 = vmatpush2.bf16.msra.mxu0 %v7028
    %7346 = vmatprep.subr.bf16.mxu0 %v7025
    %7347 = vmatpush2.bf16.msra.mxu0 %v7024
    %7348 = vmatprep.subr.bf16.mxu0 %v7021
    %7349 = vmatpush2.bf16.msra.mxu0 %v7020
    %7350 = vmatprep.subr.bf16.mxu0 %v7017
    %7351 = vmatpush2.bf16.msra.mxu0 %v7016
    %7352 = vmatprep.mubr.bf16.mxu0 %v5251
    %7353 = vmatmul.mubr.bf16.gmra.mxu0 %v5250
    %v7354 = vpop.f32.mrf.mxu0
    %v7355 = vadd.f32 %v6592, %v7354
    %v7356 = vpop.f32.mrf.mxu0
    %v7357 = vadd.f32 %v6594, %v7356
    %v7358 = vpop.f32.mrf.mxu0
    %v7359 = vpop.f32.mrf.mxu0
    %7360 = vdwg.mxu0
    %7361 = vmatprep.subr.bf16.mxu0 %v7077
    %7362 = vmatpush1.bf16.msra.mxu0 %v7076
    %7363 = vmatprep.subr.bf16.mxu0 %v7073
    %7364 = vmatpush1.bf16.msra.mxu0 %v7072
    %7365 = vmatprep.subr.bf16.mxu0 %v7069
    %7366 = vmatpush1.bf16.msra.mxu0 %v7068
    %7367 = vmatprep.subr.bf16.mxu0 %v7065
    %7368 = vmatpush1.bf16.msra.mxu0 %v7064
    %7369 = vmatprep.subr.bf16.mxu0 %v7061
    %7370 = vmatpush1.bf16.msra.mxu0 %v7060
    %7371 = vmatprep.subr.bf16.mxu0 %v7057
    %7372 = vmatpush1.bf16.msra.mxu0 %v7056
    %7373 = vmatprep.subr.bf16.mxu0 %v7053
    %7374 = vmatpush1.bf16.msra.mxu0 %v7052
    %7375 = vmatprep.subr.bf16.mxu0 %v7049
    %7376 = vmatpush1.bf16.msra.mxu0 %v7048
    %7377 = vmatprep.subr.bf16.mxu0 %v7109
    %7378 = vmatpush2.bf16.msra.mxu0 %v7108
    %7379 = vmatprep.subr.bf16.mxu0 %v7105
    %7380 = vmatpush2.bf16.msra.mxu0 %v7104
    %7381 = vmatprep.subr.bf16.mxu0 %v7101
    %7382 = vmatpush2.bf16.msra.mxu0 %v7100
    %7383 = vmatprep.subr.bf16.mxu0 %v7097
    %7384 = vmatpush2.bf16.msra.mxu0 %v7096
    %7385 = vmatprep.subr.bf16.mxu0 %v7093
    %7386 = vmatpush2.bf16.msra.mxu0 %v7092
    %7387 = vmatprep.subr.bf16.mxu0 %v7089
    %7388 = vmatpush2.bf16.msra.mxu0 %v7088
    %7389 = vmatprep.subr.bf16.mxu0 %v7085
    %7390 = vmatpush2.bf16.msra.mxu0 %v7084
    %7391 = vmatprep.subr.bf16.mxu0 %v7081
    %7392 = vmatpush2.bf16.msra.mxu0 %v7080
    %7393 = vmatprep.mubr.bf16.mxu0 %v5253
    %7394 = vmatmul.mubr.bf16.gmra.mxu0 %v5252
    %v7395 = vpop.f32.mrf.mxu0
    %v7396 = vadd.f32 %v7355, %v7395
    %v7397 = vpop.f32.mrf.mxu0
    %v7398 = vadd.f32 %v7357, %v7397
    %v7399 = vpop.f32.mrf.mxu0
    %v7400 = vpop.f32.mrf.mxu0
    %7401 = vdwg.mxu0
    %v7402 = vld [vmem:[%s14] sm:$0xf]
    %v7404 = vlaneseq
    %v7405 = vshrl.u32 %v7404, 7
    %v7406 = vsub.s32 0, %v7405
    %v7407 = vrot.slane %v7402, %v7406
    %v7408 = vlaneseq
    %v7409 = vshrl.u32 %v7408, 7
    %v7410 = vsub.s32 1, %v7409
    %v7411 = vrot.slane %v7402, %v7410
    %v7412 = vlaneseq
    %v7413 = vshrl.u32 %v7412, 7
    %v7414 = vsub.s32 2, %v7413
    %v7415 = vrot.slane %v7402, %v7414
    %v7416 = vlaneseq
    %v7417 = vshrl.u32 %v7416, 7
    %v7418 = vsub.s32 3, %v7417
    %v7419 = vrot.slane %v7402, %v7418
    %v7424 = vadd.f32 %v7314, %v7407
    %v7425 = vadd.f32 %v7316, %v7411
    %v7426 = vadd.f32 %v7396, %v7415
    %v7427 = vadd.f32 %v7398, %v7419
    %v7428 = vtanh.pop %v7424
    %v7429 = vtanh.pop %v7425
    %v7430 = vtanh.pop %v7426
    %v7431 = vtanh.pop %v7427
    %7432 = vst [vmem:[%s15] sm:$0x1f] %v7428
    %7433 = vst [vmem:[%s15 + $0x8] sm:$0x1f] %v7429
    %7434 = vst [vmem:[%s15 + $0x10] sm:$0x1f] %v7430
    %7435 = vst [vmem:[%s15 + $0x18] sm:$0x1f] %v7431
    %7436 = vst [vmem:[%s16] sm:$0x1f] %v5450
    %s7437 = sld [smem:[#allocation4 + $0x1]]
    %p7438 = scmp.gt.s32.totalorder %s7437, 1
    %s7439 = scalar_select %p7438, %s7437, 1
    %s7440 = sld [smem:[#allocation5 + $0x1]]
    %p7441 = scmp.gt.s32.totalorder %s7440, 1
    %s7442 = scalar_select %p7441, %s7440, 1
    %vm7451 = vcmask 1041408
    %v7452 = vrot.slane %v1113, 6
    %v7453 = vrot.slane %v1117, 6
    %v7454 = vsel %vm7451, %v7452, %v7453
    %v7455 = vrot.slane %v1114, 6
    %v7456 = vrot.slane %v1118, 6
    %v7457 = vsel %vm7451, %v7455, %v7456
    %v7458 = vrot.slane %v1115, 6
    %v7459 = vrot.slane %v1119, 6
    %v7460 = vsel %vm7451, %v7458, %v7459
    %v7461 = vrot.slane %v1116, 6
    %v7462 = vrot.slane %v1120, 6
    %v7463 = vsel %vm7451, %v7461, %v7462
    %7468 = vst [vmem:[#allocation2] sm:$0x3f] %v7454
    %7469 = vst [vmem:[#allocation2 + $0x8] sm:$0x3f] %v7457
    %7470 = vst [vmem:[#allocation2 + $0x10] sm:$0x3f] %v7460
    %7471 = vst [vmem:[#allocation2 + $0x18] sm:$0x3f] %v7463
    %vm7476 = vcmask 1043456
    %v7477 = vrot.slane %v2159, 4
    %v7478 = vrot.slane %v2160, 4
    %v7479 = vrot.slane %v2161, 4
    %v7480 = vrot.slane %v2162, 4
    %v7481 = vrot.slane %v2163, 4
    %v7482 = vsel %vm7476, %v7477, %v7481
    %v7483 = vrot.slane %v2164, 4
    %v7484 = vsel %vm7476, %v7478, %v7483
    %v7485 = vrot.slane %v2165, 4
    %v7486 = vsel %vm7476, %v7479, %v7485
    %v7487 = vrot.slane %v2166, 4
    %v7488 = vsel %vm7476, %v7480, %v7487
    %7497 = vst [vmem:[#allocation2] sm:$0xc0] %v7477
    %7498 = vst [vmem:[#allocation2 + $0x8] sm:$0xc0] %v7478
    %7499 = vst [vmem:[#allocation2 + $0x10] sm:$0xc0] %v7479
    %7500 = vst [vmem:[#allocation2 + $0x18] sm:$0xc0] %v7480
    %7501 = vst [vmem:[#allocation2 + $0x20] sm:$0xff] %v7482
    %7502 = vst [vmem:[#allocation2 + $0x28] sm:$0xff] %v7484
    %7503 = vst [vmem:[#allocation2 + $0x30] sm:$0xff] %v7486
    %7504 = vst [vmem:[#allocation2 + $0x38] sm:$0xff] %v7488
    %s7505 = ssub.s32 %s7439, 1
    %s7506 = sshra.s32 %s7505, 3
    %s7507 = sand.u32 %s7505, 7
    %s7508 = sshra.s32 %s7505, 3
    %s7509 = sand.u32 %s7505, 7
    %s7510 = smul.u32 %s7506, 4
    %s7511 = smul.u32 %s7510, 8
    %s7512 = sadd.s32 %s7511, %s7509
    %s7513 = scalar_lea.vmem [#allocation2], %s7512
    %v7514 = vld [vmem:[%s7513] ss:$8 sm:$0xf]
    %s7515 = sadd.s32 %s7442, 5
    %s7516 = sshra.s32 %s7515, 3
    %s7517 = sand.u32 %s7515, 7
    %s7518 = sshra.s32 %s7515, 3
    %s7519 = sand.u32 %s7515, 7
    %s7520 = smul.u32 %s7516, 4
    %s7521 = smul.u32 %s7520, 8
    %s7522 = sadd.s32 %s7521, %s7519
    %s7523 = scalar_lea.vmem [#allocation2], %s7522
    %v7524 = vld [vmem:[%s7523] ss:$8 sm:$0xf]
    %v7526 = vlaneseq
    %v7527 = vshrl.u32 %v7526, 7
    %v7528 = vsub.s32 0, %v7527
    %v7529 = vrot.slane %v7514, %v7528
    %v7530 = vlaneseq
    %v7531 = vshrl.u32 %v7530, 7
    %v7532 = vsub.s32 1, %v7531
    %v7533 = vrot.slane %v7514, %v7532
    %v7534 = vlaneseq
    %v7535 = vshrl.u32 %v7534, 7
    %v7536 = vsub.s32 2, %v7535
    %v7537 = vrot.slane %v7514, %v7536
    %v7538 = vlaneseq
    %v7539 = vshrl.u32 %v7538, 7
    %v7540 = vsub.s32 3, %v7539
    %v7541 = vrot.slane %v7514, %v7540
    %v7546 = vpack.c.bf16 %v7529, %v7529
    %v7547 = vpack.c.bf16 %v7533, %v7533
    %v7548 = vpack.c.bf16 %v7537, %v7537
    %v7549 = vpack.c.bf16 %v7541, %v7541
    %v7550 = vld [vmem:[#allocation10] sm:$0xff]
    %v7551 = vld [vmem:[#allocation10 + $0x8] sm:$0xff]
    %v7552 = vld [vmem:[#allocation10 + $0x10] sm:$0xff]
    %v7553 = vld [vmem:[#allocation10 + $0x18] sm:$0xff]
    %v7554 = vld [vmem:[#allocation10 + $0x20] sm:$0xff]
    %v7555 = vld [vmem:[#allocation10 + $0x28] sm:$0xff]
    %v7556 = vld [vmem:[#allocation10 + $0x30] sm:$0xff]
    %v7557 = vld [vmem:[#allocation10 + $0x38] sm:$0xff]
    %v7558 = vld [vmem:[#allocation10 + $0x40] sm:$0xff]
    %v7559 = vld [vmem:[#allocation10 + $0x48] sm:$0xff]
    %v7560 = vld [vmem:[#allocation10 + $0x50] sm:$0xff]
    %v7561 = vld [vmem:[#allocation10 + $0x58] sm:$0xff]
    %v7562 = vld [vmem:[#allocation10 + $0x60] sm:$0xff]
    %v7563 = vld [vmem:[#allocation10 + $0x68] sm:$0xff]
    %v7564 = vld [vmem:[#allocation10 + $0x70] sm:$0xff]
    %v7565 = vld [vmem:[#allocation10 + $0x78] sm:$0xff]
    %v7566 = vld [vmem:[#allocation10 + $0x80] sm:$0xff]
    %v7567 = vld [vmem:[#allocation10 + $0x88] sm:$0xff]
    %v7568 = vld [vmem:[#allocation10 + $0x90] sm:$0xff]
    %v7569 = vld [vmem:[#allocation10 + $0x98] sm:$0xff]
    %v7570 = vld [vmem:[#allocation10 + $0xa0] sm:$0xff]
    %v7571 = vld [vmem:[#allocation10 + $0xa8] sm:$0xff]
    %v7572 = vld [vmem:[#allocation10 + $0xb0] sm:$0xff]
    %v7573 = vld [vmem:[#allocation10 + $0xb8] sm:$0xff]
    %v7574 = vld [vmem:[#allocation10 + $0xc0] sm:$0xff]
    %v7575 = vld [vmem:[#allocation10 + $0xc8] sm:$0xff]
    %v7576 = vld [vmem:[#allocation10 + $0xd0] sm:$0xff]
    %v7577 = vld [vmem:[#allocation10 + $0xd8] sm:$0xff]
    %v7578 = vld [vmem:[#allocation10 + $0xe0] sm:$0xff]
    %v7579 = vld [vmem:[#allocation10 + $0xe8] sm:$0xff]
    %v7580 = vld [vmem:[#allocation10 + $0xf0] sm:$0xff]
    %v7581 = vld [vmem:[#allocation10 + $0xf8] sm:$0xff]
    %v7582 = vld [vmem:[#allocation10 + $0x100] sm:$0xff]
    %v7583 = vld [vmem:[#allocation10 + $0x108] sm:$0xff]
    %v7584 = vld [vmem:[#allocation10 + $0x110] sm:$0xff]
    %v7585 = vld [vmem:[#allocation10 + $0x118] sm:$0xff]
    %v7586 = vld [vmem:[#allocation10 + $0x120] sm:$0xff]
    %v7587 = vld [vmem:[#allocation10 + $0x128] sm:$0xff]
    %v7588 = vld [vmem:[#allocation10 + $0x130] sm:$0xff]
    %v7589 = vld [vmem:[#allocation10 + $0x138] sm:$0xff]
    %v7590 = vld [vmem:[#allocation10 + $0x140] sm:$0xff]
    %v7591 = vld [vmem:[#allocation10 + $0x148] sm:$0xff]
    %v7592 = vld [vmem:[#allocation10 + $0x150] sm:$0xff]
    %v7593 = vld [vmem:[#allocation10 + $0x158] sm:$0xff]
    %v7594 = vld [vmem:[#allocation10 + $0x160] sm:$0xff]
    %v7595 = vld [vmem:[#allocation10 + $0x168] sm:$0xff]
    %v7596 = vld [vmem:[#allocation10 + $0x170] sm:$0xff]
    %v7597 = vld [vmem:[#allocation10 + $0x178] sm:$0xff]
    %v7598 = vld [vmem:[#allocation10 + $0x180] sm:$0xff]
    %v7599 = vld [vmem:[#allocation10 + $0x188] sm:$0xff]
    %v7600 = vld [vmem:[#allocation10 + $0x190] sm:$0xff]
    %v7601 = vld [vmem:[#allocation10 + $0x198] sm:$0xff]
    %v7602 = vld [vmem:[#allocation10 + $0x1a0] sm:$0xff]
    %v7603 = vld [vmem:[#allocation10 + $0x1a8] sm:$0xff]
    %v7604 = vld [vmem:[#allocation10 + $0x1b0] sm:$0xff]
    %v7605 = vld [vmem:[#allocation10 + $0x1b8] sm:$0xff]
    %v7606 = vld [vmem:[#allocation10 + $0x1c0] sm:$0xff]
    %v7607 = vld [vmem:[#allocation10 + $0x1c8] sm:$0xff]
    %v7608 = vld [vmem:[#allocation10 + $0x1d0] sm:$0xff]
    %v7609 = vld [vmem:[#allocation10 + $0x1d8] sm:$0xff]
    %v7610 = vld [vmem:[#allocation10 + $0x1e0] sm:$0xff]
    %v7611 = vld [vmem:[#allocation10 + $0x1e8] sm:$0xff]
    %v7612 = vld [vmem:[#allocation10 + $0x1f0] sm:$0xff]
    %v7613 = vld [vmem:[#allocation10 + $0x1f8] sm:$0xff]
    %v7614 = vld [vmem:[#allocation10 + $0x200] sm:$0xff]
    %v7615 = vld [vmem:[#allocation10 + $0x208] sm:$0xff]
    %v7616 = vld [vmem:[#allocation10 + $0x210] sm:$0xff]
    %v7617 = vld [vmem:[#allocation10 + $0x218] sm:$0xff]
    %v7618 = vld [vmem:[#allocation10 + $0x220] sm:$0xff]
    %v7619 = vld [vmem:[#allocation10 + $0x228] sm:$0xff]
    %v7620 = vld [vmem:[#allocation10 + $0x230] sm:$0xff]
    %v7621 = vld [vmem:[#allocation10 + $0x238] sm:$0xff]
    %v7622 = vld [vmem:[#allocation10 + $0x240] sm:$0xff]
    %v7623 = vld [vmem:[#allocation10 + $0x248] sm:$0xff]
    %v7624 = vld [vmem:[#allocation10 + $0x250] sm:$0xff]
    %v7625 = vld [vmem:[#allocation10 + $0x258] sm:$0xff]
    %v7626 = vld [vmem:[#allocation10 + $0x260] sm:$0xff]
    %v7627 = vld [vmem:[#allocation10 + $0x268] sm:$0xff]
    %v7628 = vld [vmem:[#allocation10 + $0x270] sm:$0xff]
    %v7629 = vld [vmem:[#allocation10 + $0x278] sm:$0xff]
    %v7630 = vld [vmem:[#allocation10 + $0x280] sm:$0xff]
    %v7631 = vld [vmem:[#allocation10 + $0x288] sm:$0xff]
    %v7632 = vld [vmem:[#allocation10 + $0x290] sm:$0xff]
    %v7633 = vld [vmem:[#allocation10 + $0x298] sm:$0xff]
    %v7634 = vld [vmem:[#allocation10 + $0x2a0] sm:$0xff]
    %v7635 = vld [vmem:[#allocation10 + $0x2a8] sm:$0xff]
    %v7636 = vld [vmem:[#allocation10 + $0x2b0] sm:$0xff]
    %v7637 = vld [vmem:[#allocation10 + $0x2b8] sm:$0xff]
    %v7638 = vld [vmem:[#allocation10 + $0x2c0] sm:$0xff]
    %v7639 = vld [vmem:[#allocation10 + $0x2c8] sm:$0xff]
    %v7640 = vld [vmem:[#allocation10 + $0x2d0] sm:$0xff]
    %v7641 = vld [vmem:[#allocation10 + $0x2d8] sm:$0xff]
    %v7642 = vld [vmem:[#allocation10 + $0x2e0] sm:$0xff]
    %v7643 = vld [vmem:[#allocation10 + $0x2e8] sm:$0xff]
    %v7644 = vld [vmem:[#allocation10 + $0x2f0] sm:$0xff]
    %v7645 = vld [vmem:[#allocation10 + $0x2f8] sm:$0xff]
    %v7646 = vld [vmem:[#allocation10 + $0x300] sm:$0xff]
    %v7647 = vld [vmem:[#allocation10 + $0x308] sm:$0xff]
    %v7648 = vld [vmem:[#allocation10 + $0x310] sm:$0xff]
    %v7649 = vld [vmem:[#allocation10 + $0x318] sm:$0xff]
    %v7650 = vld [vmem:[#allocation10 + $0x320] sm:$0xff]
    %v7651 = vld [vmem:[#allocation10 + $0x328] sm:$0xff]
    %v7652 = vld [vmem:[#allocation10 + $0x330] sm:$0xff]
    %v7653 = vld [vmem:[#allocation10 + $0x338] sm:$0xff]
    %v7654 = vld [vmem:[#allocation10 + $0x340] sm:$0xff]
    %v7655 = vld [vmem:[#allocation10 + $0x348] sm:$0xff]
    %v7656 = vld [vmem:[#allocation10 + $0x350] sm:$0xff]
    %v7657 = vld [vmem:[#allocation10 + $0x358] sm:$0xff]
    %v7658 = vld [vmem:[#allocation10 + $0x360] sm:$0xff]
    %v7659 = vld [vmem:[#allocation10 + $0x368] sm:$0xff]
    %v7660 = vld [vmem:[#allocation10 + $0x370] sm:$0xff]
    %v7661 = vld [vmem:[#allocation10 + $0x378] sm:$0xff]
    %v7662 = vld [vmem:[#allocation10 + $0x380] sm:$0xff]
    %v7663 = vld [vmem:[#allocation10 + $0x388] sm:$0xff]
    %v7664 = vld [vmem:[#allocation10 + $0x390] sm:$0xff]
    %v7665 = vld [vmem:[#allocation10 + $0x398] sm:$0xff]
    %v7666 = vld [vmem:[#allocation10 + $0x3a0] sm:$0xff]
    %v7667 = vld [vmem:[#allocation10 + $0x3a8] sm:$0xff]
    %v7668 = vld [vmem:[#allocation10 + $0x3b0] sm:$0xff]
    %v7669 = vld [vmem:[#allocation10 + $0x3b8] sm:$0xff]
    %v7670 = vld [vmem:[#allocation10 + $0x3c0] sm:$0xff]
    %v7671 = vld [vmem:[#allocation10 + $0x3c8] sm:$0xff]
    %v7672 = vld [vmem:[#allocation10 + $0x3d0] sm:$0xff]
    %v7673 = vld [vmem:[#allocation10 + $0x3d8] sm:$0xff]
    %v7674 = vld [vmem:[#allocation10 + $0x3e0] sm:$0xff]
    %v7675 = vld [vmem:[#allocation10 + $0x3e8] sm:$0xff]
    %v7676 = vld [vmem:[#allocation10 + $0x3f0] sm:$0xff]
    %v7677 = vld [vmem:[#allocation10 + $0x3f8] sm:$0xff]
    %v7679 = vlaneseq
    %v7680 = vshrl.u32 %v7679, 7
    %v7681 = vsub.s32 0, %v7680
    %v7682 = vrot.slane %v7524, %v7681
    %v7683 = vlaneseq
    %v7684 = vshrl.u32 %v7683, 7
    %v7685 = vsub.s32 1, %v7684
    %v7686 = vrot.slane %v7524, %v7685
    %v7687 = vlaneseq
    %v7688 = vshrl.u32 %v7687, 7
    %v7689 = vsub.s32 2, %v7688
    %v7690 = vrot.slane %v7524, %v7689
    %v7691 = vlaneseq
    %v7692 = vshrl.u32 %v7691, 7
    %v7693 = vsub.s32 3, %v7692
    %v7694 = vrot.slane %v7524, %v7693
    %v7699 = vpack.c.bf16 %v7682, %v7682
    %v7700 = vpack.c.bf16 %v7686, %v7686
    %v7701 = vpack.c.bf16 %v7690, %v7690
    %v7702 = vpack.c.bf16 %v7694, %v7694
    %v7703 = vld [vmem:[#allocation10 + $0x400] sm:$0xff]
    %v7704 = vld [vmem:[#allocation10 + $0x408] sm:$0xff]
    %v7705 = vld [vmem:[#allocation10 + $0x410] sm:$0xff]
    %v7706 = vld [vmem:[#allocation10 + $0x418] sm:$0xff]
    %v7707 = vld [vmem:[#allocation10 + $0x420] sm:$0xff]
    %v7708 = vld [vmem:[#allocation10 + $0x428] sm:$0xff]
    %v7709 = vld [vmem:[#allocation10 + $0x430] sm:$0xff]
    %v7710 = vld [vmem:[#allocation10 + $0x438] sm:$0xff]
    %v7711 = vld [vmem:[#allocation10 + $0x440] sm:$0xff]
    %v7712 = vld [vmem:[#allocation10 + $0x448] sm:$0xff]
    %v7713 = vld [vmem:[#allocation10 + $0x450] sm:$0xff]
    %v7714 = vld [vmem:[#allocation10 + $0x458] sm:$0xff]
    %v7715 = vld [vmem:[#allocation10 + $0x460] sm:$0xff]
    %v7716 = vld [vmem:[#allocation10 + $0x468] sm:$0xff]
    %v7717 = vld [vmem:[#allocation10 + $0x470] sm:$0xff]
    %v7718 = vld [vmem:[#allocation10 + $0x478] sm:$0xff]
    %v7719 = vld [vmem:[#allocation10 + $0x480] sm:$0xff]
    %v7720 = vld [vmem:[#allocation10 + $0x488] sm:$0xff]
    %v7721 = vld [vmem:[#allocation10 + $0x490] sm:$0xff]
    %v7722 = vld [vmem:[#allocation10 + $0x498] sm:$0xff]
    %v7723 = vld [vmem:[#allocation10 + $0x4a0] sm:$0xff]
    %v7724 = vld [vmem:[#allocation10 + $0x4a8] sm:$0xff]
    %v7725 = vld [vmem:[#allocation10 + $0x4b0] sm:$0xff]
    %v7726 = vld [vmem:[#allocation10 + $0x4b8] sm:$0xff]
    %v7727 = vld [vmem:[#allocation10 + $0x4c0] sm:$0xff]
    %v7728 = vld [vmem:[#allocation10 + $0x4c8] sm:$0xff]
    %v7729 = vld [vmem:[#allocation10 + $0x4d0] sm:$0xff]
    %v7730 = vld [vmem:[#allocation10 + $0x4d8] sm:$0xff]
    %v7731 = vld [vmem:[#allocation10 + $0x4e0] sm:$0xff]
    %v7732 = vld [vmem:[#allocation10 + $0x4e8] sm:$0xff]
    %v7733 = vld [vmem:[#allocation10 + $0x4f0] sm:$0xff]
    %v7734 = vld [vmem:[#allocation10 + $0x4f8] sm:$0xff]
    %v7735 = vld [vmem:[#allocation10 + $0x500] sm:$0xff]
    %v7736 = vld [vmem:[#allocation10 + $0x508] sm:$0xff]
    %v7737 = vld [vmem:[#allocation10 + $0x510] sm:$0xff]
    %v7738 = vld [vmem:[#allocation10 + $0x518] sm:$0xff]
    %v7739 = vld [vmem:[#allocation10 + $0x520] sm:$0xff]
    %v7740 = vld [vmem:[#allocation10 + $0x528] sm:$0xff]
    %v7741 = vld [vmem:[#allocation10 + $0x530] sm:$0xff]
    %v7742 = vld [vmem:[#allocation10 + $0x538] sm:$0xff]
    %v7743 = vld [vmem:[#allocation10 + $0x540] sm:$0xff]
    %v7744 = vld [vmem:[#allocation10 + $0x548] sm:$0xff]
    %v7745 = vld [vmem:[#allocation10 + $0x550] sm:$0xff]
    %v7746 = vld [vmem:[#allocation10 + $0x558] sm:$0xff]
    %v7747 = vld [vmem:[#allocation10 + $0x560] sm:$0xff]
    %v7748 = vld [vmem:[#allocation10 + $0x568] sm:$0xff]
    %v7749 = vld [vmem:[#allocation10 + $0x570] sm:$0xff]
    %v7750 = vld [vmem:[#allocation10 + $0x578] sm:$0xff]
    %v7751 = vld [vmem:[#allocation10 + $0x580] sm:$0xff]
    %v7752 = vld [vmem:[#allocation10 + $0x588] sm:$0xff]
    %v7753 = vld [vmem:[#allocation10 + $0x590] sm:$0xff]
    %v7754 = vld [vmem:[#allocation10 + $0x598] sm:$0xff]
    %v7755 = vld [vmem:[#allocation10 + $0x5a0] sm:$0xff]
    %v7756 = vld [vmem:[#allocation10 + $0x5a8] sm:$0xff]
    %v7757 = vld [vmem:[#allocation10 + $0x5b0] sm:$0xff]
    %v7758 = vld [vmem:[#allocation10 + $0x5b8] sm:$0xff]
    %v7759 = vld [vmem:[#allocation10 + $0x5c0] sm:$0xff]
    %v7760 = vld [vmem:[#allocation10 + $0x5c8] sm:$0xff]
    %v7761 = vld [vmem:[#allocation10 + $0x5d0] sm:$0xff]
    %v7762 = vld [vmem:[#allocation10 + $0x5d8] sm:$0xff]
    %v7763 = vld [vmem:[#allocation10 + $0x5e0] sm:$0xff]
    %v7764 = vld [vmem:[#allocation10 + $0x5e8] sm:$0xff]
    %v7765 = vld [vmem:[#allocation10 + $0x5f0] sm:$0xff]
    %v7766 = vld [vmem:[#allocation10 + $0x5f8] sm:$0xff]
    %v7767 = vld [vmem:[#allocation10 + $0x600] sm:$0xff]
    %v7768 = vld [vmem:[#allocation10 + $0x608] sm:$0xff]
    %v7769 = vld [vmem:[#allocation10 + $0x610] sm:$0xff]
    %v7770 = vld [vmem:[#allocation10 + $0x618] sm:$0xff]
    %v7771 = vld [vmem:[#allocation10 + $0x620] sm:$0xff]
    %v7772 = vld [vmem:[#allocation10 + $0x628] sm:$0xff]
    %v7773 = vld [vmem:[#allocation10 + $0x630] sm:$0xff]
    %v7774 = vld [vmem:[#allocation10 + $0x638] sm:$0xff]
    %v7775 = vld [vmem:[#allocation10 + $0x640] sm:$0xff]
    %v7776 = vld [vmem:[#allocation10 + $0x648] sm:$0xff]
    %v7777 = vld [vmem:[#allocation10 + $0x650] sm:$0xff]
    %v7778 = vld [vmem:[#allocation10 + $0x658] sm:$0xff]
    %v7779 = vld [vmem:[#allocation10 + $0x660] sm:$0xff]
    %v7780 = vld [vmem:[#allocation10 + $0x668] sm:$0xff]
    %v7781 = vld [vmem:[#allocation10 + $0x670] sm:$0xff]
    %v7782 = vld [vmem:[#allocation10 + $0x678] sm:$0xff]
    %v7783 = vld [vmem:[#allocation10 + $0x680] sm:$0xff]
    %v7784 = vld [vmem:[#allocation10 + $0x688] sm:$0xff]
    %v7785 = vld [vmem:[#allocation10 + $0x690] sm:$0xff]
    %v7786 = vld [vmem:[#allocation10 + $0x698] sm:$0xff]
    %v7787 = vld [vmem:[#allocation10 + $0x6a0] sm:$0xff]
    %v7788 = vld [vmem:[#allocation10 + $0x6a8] sm:$0xff]
    %v7789 = vld [vmem:[#allocation10 + $0x6b0] sm:$0xff]
    %v7790 = vld [vmem:[#allocation10 + $0x6b8] sm:$0xff]
    %v7791 = vld [vmem:[#allocation10 + $0x6c0] sm:$0xff]
    %v7792 = vld [vmem:[#allocation10 + $0x6c8] sm:$0xff]
    %v7793 = vld [vmem:[#allocation10 + $0x6d0] sm:$0xff]
    %v7794 = vld [vmem:[#allocation10 + $0x6d8] sm:$0xff]
    %v7795 = vld [vmem:[#allocation10 + $0x6e0] sm:$0xff]
    %v7796 = vld [vmem:[#allocation10 + $0x6e8] sm:$0xff]
    %v7797 = vld [vmem:[#allocation10 + $0x6f0] sm:$0xff]
    %v7798 = vld [vmem:[#allocation10 + $0x6f8] sm:$0xff]
    %v7799 = vld [vmem:[#allocation10 + $0x700] sm:$0xff]
    %v7800 = vld [vmem:[#allocation10 + $0x708] sm:$0xff]
    %v7801 = vld [vmem:[#allocation10 + $0x710] sm:$0xff]
    %v7802 = vld [vmem:[#allocation10 + $0x718] sm:$0xff]
    %v7803 = vld [vmem:[#allocation10 + $0x720] sm:$0xff]
    %v7804 = vld [vmem:[#allocation10 + $0x728] sm:$0xff]
    %v7805 = vld [vmem:[#allocation10 + $0x730] sm:$0xff]
    %v7806 = vld [vmem:[#allocation10 + $0x738] sm:$0xff]
    %v7807 = vld [vmem:[#allocation10 + $0x740] sm:$0xff]
    %v7808 = vld [vmem:[#allocation10 + $0x748] sm:$0xff]
    %v7809 = vld [vmem:[#allocation10 + $0x750] sm:$0xff]
    %v7810 = vld [vmem:[#allocation10 + $0x758] sm:$0xff]
    %v7811 = vld [vmem:[#allocation10 + $0x760] sm:$0xff]
    %v7812 = vld [vmem:[#allocation10 + $0x768] sm:$0xff]
    %v7813 = vld [vmem:[#allocation10 + $0x770] sm:$0xff]
    %v7814 = vld [vmem:[#allocation10 + $0x778] sm:$0xff]
    %v7815 = vld [vmem:[#allocation10 + $0x780] sm:$0xff]
    %v7816 = vld [vmem:[#allocation10 + $0x788] sm:$0xff]
    %v7817 = vld [vmem:[#allocation10 + $0x790] sm:$0xff]
    %v7818 = vld [vmem:[#allocation10 + $0x798] sm:$0xff]
    %v7819 = vld [vmem:[#allocation10 + $0x7a0] sm:$0xff]
    %v7820 = vld [vmem:[#allocation10 + $0x7a8] sm:$0xff]
    %v7821 = vld [vmem:[#allocation10 + $0x7b0] sm:$0xff]
    %v7822 = vld [vmem:[#allocation10 + $0x7b8] sm:$0xff]
    %v7823 = vld [vmem:[#allocation10 + $0x7c0] sm:$0xff]
    %v7824 = vld [vmem:[#allocation10 + $0x7c8] sm:$0xff]
    %v7825 = vld [vmem:[#allocation10 + $0x7d0] sm:$0xff]
    %v7826 = vld [vmem:[#allocation10 + $0x7d8] sm:$0xff]
    %v7827 = vld [vmem:[#allocation10 + $0x7e0] sm:$0xff]
    %v7828 = vld [vmem:[#allocation10 + $0x7e8] sm:$0xff]
    %v7829 = vld [vmem:[#allocation10 + $0x7f0] sm:$0xff]
    %v7830 = vld [vmem:[#allocation10 + $0x7f8] sm:$0xff]
    %v7959 = vunpack.c.l.b16 %v7703
    %v7960 = vunpack.c.h.b16 %v7703
    %v7961 = vunpack.c.l.b16 %v7704
    %v7962 = vunpack.c.h.b16 %v7704
    %v7963 = vunpack.c.l.b16 %v7705
    %v7964 = vunpack.c.h.b16 %v7705
    %v7965 = vunpack.c.l.b16 %v7706
    %v7966 = vunpack.c.h.b16 %v7706
    %v7967 = vunpack.c.l.b16 %v7707
    %v7968 = vunpack.c.h.b16 %v7707
    %v7969 = vunpack.c.l.b16 %v7708
    %v7970 = vunpack.c.h.b16 %v7708
    %v7971 = vunpack.c.l.b16 %v7709
    %v7972 = vunpack.c.h.b16 %v7709
    %v7973 = vunpack.c.l.b16 %v7710
    %v7974 = vunpack.c.h.b16 %v7710
    %v7975 = vunpack.c.l.b16 %v7711
    %v7976 = vunpack.c.h.b16 %v7711
    %v7977 = vunpack.c.l.b16 %v7712
    %v7978 = vunpack.c.h.b16 %v7712
    %v7979 = vunpack.c.l.b16 %v7713
    %v7980 = vunpack.c.h.b16 %v7713
    %v7981 = vunpack.c.l.b16 %v7714
    %v7982 = vunpack.c.h.b16 %v7714
    %v7983 = vunpack.c.l.b16 %v7715
    %v7984 = vunpack.c.h.b16 %v7715
    %v7985 = vunpack.c.l.b16 %v7716
    %v7986 = vunpack.c.h.b16 %v7716
    %v7987 = vunpack.c.l.b16 %v7717
    %v7988 = vunpack.c.h.b16 %v7717
    %v7989 = vunpack.c.l.b16 %v7718
    %v7990 = vunpack.c.h.b16 %v7718
    %v7991 = vunpack.c.l.b16 %v7719
    %v7992 = vunpack.c.h.b16 %v7719
    %v7993 = vunpack.c.l.b16 %v7720
    %v7994 = vunpack.c.h.b16 %v7720
    %v7995 = vunpack.c.l.b16 %v7721
    %v7996 = vunpack.c.h.b16 %v7721
    %v7997 = vunpack.c.l.b16 %v7722
    %v7998 = vunpack.c.h.b16 %v7722
    %v7999 = vunpack.c.l.b16 %v7723
    %v8000 = vunpack.c.h.b16 %v7723
    %v8001 = vunpack.c.l.b16 %v7724
    %v8002 = vunpack.c.h.b16 %v7724
    %v8003 = vunpack.c.l.b16 %v7725
    %v8004 = vunpack.c.h.b16 %v7725
    %v8005 = vunpack.c.l.b16 %v7726
    %v8006 = vunpack.c.h.b16 %v7726
    %v8007 = vunpack.c.l.b16 %v7727
    %v8008 = vunpack.c.h.b16 %v7727
    %v8009 = vunpack.c.l.b16 %v7728
    %v8010 = vunpack.c.h.b16 %v7728
    %v8011 = vunpack.c.l.b16 %v7729
    %v8012 = vunpack.c.h.b16 %v7729
    %v8013 = vunpack.c.l.b16 %v7730
    %v8014 = vunpack.c.h.b16 %v7730
    %v8015 = vunpack.c.l.b16 %v7731
    %v8016 = vunpack.c.h.b16 %v7731
    %v8017 = vunpack.c.l.b16 %v7732
    %v8018 = vunpack.c.h.b16 %v7732
    %v8019 = vunpack.c.l.b16 %v7733
    %v8020 = vunpack.c.h.b16 %v7733
    %v8021 = vunpack.c.l.b16 %v7734
    %v8022 = vunpack.c.h.b16 %v7734
    %v8023 = vunpack.c.l.b16 %v7735
    %v8024 = vunpack.c.h.b16 %v7735
    %v8025 = vunpack.c.l.b16 %v7736
    %v8026 = vunpack.c.h.b16 %v7736
    %v8027 = vunpack.c.l.b16 %v7737
    %v8028 = vunpack.c.h.b16 %v7737
    %v8029 = vunpack.c.l.b16 %v7738
    %v8030 = vunpack.c.h.b16 %v7738
    %v8031 = vunpack.c.l.b16 %v7739
    %v8032 = vunpack.c.h.b16 %v7739
    %v8033 = vunpack.c.l.b16 %v7740
    %v8034 = vunpack.c.h.b16 %v7740
    %v8035 = vunpack.c.l.b16 %v7741
    %v8036 = vunpack.c.h.b16 %v7741
    %v8037 = vunpack.c.l.b16 %v7742
    %v8038 = vunpack.c.h.b16 %v7742
    %v8039 = vunpack.c.l.b16 %v7743
    %v8040 = vunpack.c.h.b16 %v7743
    %v8041 = vunpack.c.l.b16 %v7744
    %v8042 = vunpack.c.h.b16 %v7744
    %v8043 = vunpack.c.l.b16 %v7745
    %v8044 = vunpack.c.h.b16 %v7745
    %v8045 = vunpack.c.l.b16 %v7746
    %v8046 = vunpack.c.h.b16 %v7746
    %v8047 = vunpack.c.l.b16 %v7747
    %v8048 = vunpack.c.h.b16 %v7747
    %v8049 = vunpack.c.l.b16 %v7748
    %v8050 = vunpack.c.h.b16 %v7748
    %v8051 = vunpack.c.l.b16 %v7749
    %v8052 = vunpack.c.h.b16 %v7749
    %v8053 = vunpack.c.l.b16 %v7750
    %v8054 = vunpack.c.h.b16 %v7750
    %v8055 = vunpack.c.l.b16 %v7751
    %v8056 = vunpack.c.h.b16 %v7751
    %v8057 = vunpack.c.l.b16 %v7752
    %v8058 = vunpack.c.h.b16 %v7752
    %v8059 = vunpack.c.l.b16 %v7753
    %v8060 = vunpack.c.h.b16 %v7753
    %v8061 = vunpack.c.l.b16 %v7754
    %v8062 = vunpack.c.h.b16 %v7754
    %v8063 = vunpack.c.l.b16 %v7755
    %v8064 = vunpack.c.h.b16 %v7755
    %v8065 = vunpack.c.l.b16 %v7756
    %v8066 = vunpack.c.h.b16 %v7756
    %v8067 = vunpack.c.l.b16 %v7757
    %v8068 = vunpack.c.h.b16 %v7757
    %v8069 = vunpack.c.l.b16 %v7758
    %v8070 = vunpack.c.h.b16 %v7758
    %v8071 = vunpack.c.l.b16 %v7759
    %v8072 = vunpack.c.h.b16 %v7759
    %v8073 = vunpack.c.l.b16 %v7760
    %v8074 = vunpack.c.h.b16 %v7760
    %v8075 = vunpack.c.l.b16 %v7761
    %v8076 = vunpack.c.h.b16 %v7761
    %v8077 = vunpack.c.l.b16 %v7762
    %v8078 = vunpack.c.h.b16 %v7762
    %v8079 = vunpack.c.l.b16 %v7763
    %v8080 = vunpack.c.h.b16 %v7763
    %v8081 = vunpack.c.l.b16 %v7764
    %v8082 = vunpack.c.h.b16 %v7764
    %v8083 = vunpack.c.l.b16 %v7765
    %v8084 = vunpack.c.h.b16 %v7765
    %v8085 = vunpack.c.l.b16 %v7766
    %v8086 = vunpack.c.h.b16 %v7766
    %v8087 = vunpack.c.l.b16 %v7767
    %v8088 = vunpack.c.h.b16 %v7767
    %v8089 = vunpack.c.l.b16 %v7768
    %v8090 = vunpack.c.h.b16 %v7768
    %v8091 = vunpack.c.l.b16 %v7769
    %v8092 = vunpack.c.h.b16 %v7769
    %v8093 = vunpack.c.l.b16 %v7770
    %v8094 = vunpack.c.h.b16 %v7770
    %v8095 = vunpack.c.l.b16 %v7771
    %v8096 = vunpack.c.h.b16 %v7771
    %v8097 = vunpack.c.l.b16 %v7772
    %v8098 = vunpack.c.h.b16 %v7772
    %v8099 = vunpack.c.l.b16 %v7773
    %v8100 = vunpack.c.h.b16 %v7773
    %v8101 = vunpack.c.l.b16 %v7774
    %v8102 = vunpack.c.h.b16 %v7774
    %v8103 = vunpack.c.l.b16 %v7775
    %v8104 = vunpack.c.h.b16 %v7775
    %v8105 = vunpack.c.l.b16 %v7776
    %v8106 = vunpack.c.h.b16 %v7776
    %v8107 = vunpack.c.l.b16 %v7777
    %v8108 = vunpack.c.h.b16 %v7777
    %v8109 = vunpack.c.l.b16 %v7778
    %v8110 = vunpack.c.h.b16 %v7778
    %v8111 = vunpack.c.l.b16 %v7779
    %v8112 = vunpack.c.h.b16 %v7779
    %v8113 = vunpack.c.l.b16 %v7780
    %v8114 = vunpack.c.h.b16 %v7780
    %v8115 = vunpack.c.l.b16 %v7781
    %v8116 = vunpack.c.h.b16 %v7781
    %v8117 = vunpack.c.l.b16 %v7782
    %v8118 = vunpack.c.h.b16 %v7782
    %v8119 = vunpack.c.l.b16 %v7783
    %v8120 = vunpack.c.h.b16 %v7783
    %v8121 = vunpack.c.l.b16 %v7784
    %v8122 = vunpack.c.h.b16 %v7784
    %v8123 = vunpack.c.l.b16 %v7785
    %v8124 = vunpack.c.h.b16 %v7785
    %v8125 = vunpack.c.l.b16 %v7786
    %v8126 = vunpack.c.h.b16 %v7786
    %v8127 = vunpack.c.l.b16 %v7787
    %v8128 = vunpack.c.h.b16 %v7787
    %v8129 = vunpack.c.l.b16 %v7788
    %v8130 = vunpack.c.h.b16 %v7788
    %v8131 = vunpack.c.l.b16 %v7789
    %v8132 = vunpack.c.h.b16 %v7789
    %v8133 = vunpack.c.l.b16 %v7790
    %v8134 = vunpack.c.h.b16 %v7790
    %v8135 = vunpack.c.l.b16 %v7791
    %v8136 = vunpack.c.h.b16 %v7791
    %v8137 = vunpack.c.l.b16 %v7792
    %v8138 = vunpack.c.h.b16 %v7792
    %v8139 = vunpack.c.l.b16 %v7793
    %v8140 = vunpack.c.h.b16 %v7793
    %v8141 = vunpack.c.l.b16 %v7794
    %v8142 = vunpack.c.h.b16 %v7794
    %v8143 = vunpack.c.l.b16 %v7795
    %v8144 = vunpack.c.h.b16 %v7795
    %v8145 = vunpack.c.l.b16 %v7796
    %v8146 = vunpack.c.h.b16 %v7796
    %v8147 = vunpack.c.l.b16 %v7797
    %v8148 = vunpack.c.h.b16 %v7797
    %v8149 = vunpack.c.l.b16 %v7798
    %v8150 = vunpack.c.h.b16 %v7798
    %v8151 = vunpack.c.l.b16 %v7799
    %v8152 = vunpack.c.h.b16 %v7799
    %v8153 = vunpack.c.l.b16 %v7800
    %v8154 = vunpack.c.h.b16 %v7800
    %v8155 = vunpack.c.l.b16 %v7801
    %v8156 = vunpack.c.h.b16 %v7801
    %v8157 = vunpack.c.l.b16 %v7802
    %v8158 = vunpack.c.h.b16 %v7802
    %v8159 = vunpack.c.l.b16 %v7803
    %v8160 = vunpack.c.h.b16 %v7803
    %v8161 = vunpack.c.l.b16 %v7804
    %v8162 = vunpack.c.h.b16 %v7804
    %v8163 = vunpack.c.l.b16 %v7805
    %v8164 = vunpack.c.h.b16 %v7805
    %v8165 = vunpack.c.l.b16 %v7806
    %v8166 = vunpack.c.h.b16 %v7806
    %v8167 = vunpack.c.l.b16 %v7807
    %v8168 = vunpack.c.h.b16 %v7807
    %v8169 = vunpack.c.l.b16 %v7808
    %v8170 = vunpack.c.h.b16 %v7808
    %v8171 = vunpack.c.l.b16 %v7809
    %v8172 = vunpack.c.h.b16 %v7809
    %v8173 = vunpack.c.l.b16 %v7810
    %v8174 = vunpack.c.h.b16 %v7810
    %v8175 = vunpack.c.l.b16 %v7811
    %v8176 = vunpack.c.h.b16 %v7811
    %v8177 = vunpack.c.l.b16 %v7812
    %v8178 = vunpack.c.h.b16 %v7812
    %v8179 = vunpack.c.l.b16 %v7813
    %v8180 = vunpack.c.h.b16 %v7813
    %v8181 = vunpack.c.l.b16 %v7814
    %v8182 = vunpack.c.h.b16 %v7814
    %v8183 = vunpack.c.l.b16 %v7815
    %v8184 = vunpack.c.h.b16 %v7815
    %v8185 = vunpack.c.l.b16 %v7816
    %v8186 = vunpack.c.h.b16 %v7816
    %v8187 = vunpack.c.l.b16 %v7817
    %v8188 = vunpack.c.h.b16 %v7817
    %v8189 = vunpack.c.l.b16 %v7818
    %v8190 = vunpack.c.h.b16 %v7818
    %v8191 = vunpack.c.l.b16 %v7819
    %v8192 = vunpack.c.h.b16 %v7819
    %v8193 = vunpack.c.l.b16 %v7820
    %v8194 = vunpack.c.h.b16 %v7820
    %v8195 = vunpack.c.l.b16 %v7821
    %v8196 = vunpack.c.h.b16 %v7821
    %v8197 = vunpack.c.l.b16 %v7822
    %v8198 = vunpack.c.h.b16 %v7822
    %v8199 = vunpack.c.l.b16 %v7823
    %v8200 = vunpack.c.h.b16 %v7823
    %v8201 = vunpack.c.l.b16 %v7824
    %v8202 = vunpack.c.h.b16 %v7824
    %v8203 = vunpack.c.l.b16 %v7825
    %v8204 = vunpack.c.h.b16 %v7825
    %v8205 = vunpack.c.l.b16 %v7826
    %v8206 = vunpack.c.h.b16 %v7826
    %v8207 = vunpack.c.l.b16 %v7827
    %v8208 = vunpack.c.h.b16 %v7827
    %v8209 = vunpack.c.l.b16 %v7828
    %v8210 = vunpack.c.h.b16 %v7828
    %v8211 = vunpack.c.l.b16 %v7829
    %v8212 = vunpack.c.h.b16 %v7829
    %v8213 = vunpack.c.l.b16 %v7830
    %v8214 = vunpack.c.h.b16 %v7830
    %v8215 = vpack.c.b16 %v7963, %v7959
    %v8216 = vpack.c.b16 %v7964, %v7960
    %v8217 = vpack.c.b16 %v7965, %v7961
    %v8218 = vpack.c.b16 %v7966, %v7962
    %v8219 = vpack.c.b16 %v7971, %v7967
    %v8220 = vpack.c.b16 %v7972, %v7968
    %v8221 = vpack.c.b16 %v7973, %v7969
    %v8222 = vpack.c.b16 %v7974, %v7970
    %v8223 = vpack.c.b16 %v7979, %v7975
    %v8224 = vpack.c.b16 %v7980, %v7976
    %v8225 = vpack.c.b16 %v7981, %v7977
    %v8226 = vpack.c.b16 %v7982, %v7978
    %v8227 = vpack.c.b16 %v7987, %v7983
    %v8228 = vpack.c.b16 %v7988, %v7984
    %v8229 = vpack.c.b16 %v7989, %v7985
    %v8230 = vpack.c.b16 %v7990, %v7986
    %v8231 = vpack.c.b16 %v7995, %v7991
    %v8232 = vpack.c.b16 %v7996, %v7992
    %v8233 = vpack.c.b16 %v7997, %v7993
    %v8234 = vpack.c.b16 %v7998, %v7994
    %v8235 = vpack.c.b16 %v8003, %v7999
    %v8236 = vpack.c.b16 %v8004, %v8000
    %v8237 = vpack.c.b16 %v8005, %v8001
    %v8238 = vpack.c.b16 %v8006, %v8002
    %v8239 = vpack.c.b16 %v8011, %v8007
    %v8240 = vpack.c.b16 %v8012, %v8008
    %v8241 = vpack.c.b16 %v8013, %v8009
    %v8242 = vpack.c.b16 %v8014, %v8010
    %v8243 = vpack.c.b16 %v8019, %v8015
    %v8244 = vpack.c.b16 %v8020, %v8016
    %v8245 = vpack.c.b16 %v8021, %v8017
    %v8246 = vpack.c.b16 %v8022, %v8018
    %v8247 = vpack.c.b16 %v8027, %v8023
    %v8248 = vpack.c.b16 %v8028, %v8024
    %v8249 = vpack.c.b16 %v8029, %v8025
    %v8250 = vpack.c.b16 %v8030, %v8026
    %v8251 = vpack.c.b16 %v8035, %v8031
    %v8252 = vpack.c.b16 %v8036, %v8032
    %v8253 = vpack.c.b16 %v8037, %v8033
    %v8254 = vpack.c.b16 %v8038, %v8034
    %v8255 = vpack.c.b16 %v8043, %v8039
    %v8256 = vpack.c.b16 %v8044, %v8040
    %v8257 = vpack.c.b16 %v8045, %v8041
    %v8258 = vpack.c.b16 %v8046, %v8042
    %v8259 = vpack.c.b16 %v8051, %v8047
    %v8260 = vpack.c.b16 %v8052, %v8048
    %v8261 = vpack.c.b16 %v8053, %v8049
    %v8262 = vpack.c.b16 %v8054, %v8050
    %v8263 = vpack.c.b16 %v8059, %v8055
    %v8264 = vpack.c.b16 %v8060, %v8056
    %v8265 = vpack.c.b16 %v8061, %v8057
    %v8266 = vpack.c.b16 %v8062, %v8058
    %v8267 = vpack.c.b16 %v8067, %v8063
    %v8268 = vpack.c.b16 %v8068, %v8064
    %v8269 = vpack.c.b16 %v8069, %v8065
    %v8270 = vpack.c.b16 %v8070, %v8066
    %v8271 = vpack.c.b16 %v8075, %v8071
    %v8272 = vpack.c.b16 %v8076, %v8072
    %v8273 = vpack.c.b16 %v8077, %v8073
    %v8274 = vpack.c.b16 %v8078, %v8074
    %v8275 = vpack.c.b16 %v8083, %v8079
    %v8276 = vpack.c.b16 %v8084, %v8080
    %v8277 = vpack.c.b16 %v8085, %v8081
    %v8278 = vpack.c.b16 %v8086, %v8082
    %v8279 = vpack.c.b16 %v8091, %v8087
    %v8280 = vpack.c.b16 %v8092, %v8088
    %v8281 = vpack.c.b16 %v8093, %v8089
    %v8282 = vpack.c.b16 %v8094, %v8090
    %v8283 = vpack.c.b16 %v8099, %v8095
    %v8284 = vpack.c.b16 %v8100, %v8096
    %v8285 = vpack.c.b16 %v8101, %v8097
    %v8286 = vpack.c.b16 %v8102, %v8098
    %v8287 = vpack.c.b16 %v8107, %v8103
    %v8288 = vpack.c.b16 %v8108, %v8104
    %v8289 = vpack.c.b16 %v8109, %v8105
    %v8290 = vpack.c.b16 %v8110, %v8106
    %v8291 = vpack.c.b16 %v8115, %v8111
    %v8292 = vpack.c.b16 %v8116, %v8112
    %v8293 = vpack.c.b16 %v8117, %v8113
    %v8294 = vpack.c.b16 %v8118, %v8114
    %v8295 = vpack.c.b16 %v8123, %v8119
    %v8296 = vpack.c.b16 %v8124, %v8120
    %v8297 = vpack.c.b16 %v8125, %v8121
    %v8298 = vpack.c.b16 %v8126, %v8122
    %v8299 = vpack.c.b16 %v8131, %v8127
    %v8300 = vpack.c.b16 %v8132, %v8128
    %v8301 = vpack.c.b16 %v8133, %v8129
    %v8302 = vpack.c.b16 %v8134, %v8130
    %v8303 = vpack.c.b16 %v8139, %v8135
    %v8304 = vpack.c.b16 %v8140, %v8136
    %v8305 = vpack.c.b16 %v8141, %v8137
    %v8306 = vpack.c.b16 %v8142, %v8138
    %v8307 = vpack.c.b16 %v8147, %v8143
    %v8308 = vpack.c.b16 %v8148, %v8144
    %v8309 = vpack.c.b16 %v8149, %v8145
    %v8310 = vpack.c.b16 %v8150, %v8146
    %v8311 = vpack.c.b16 %v8155, %v8151
    %v8312 = vpack.c.b16 %v8156, %v8152
    %v8313 = vpack.c.b16 %v8157, %v8153
    %v8314 = vpack.c.b16 %v8158, %v8154
    %v8315 = vpack.c.b16 %v8163, %v8159
    %v8316 = vpack.c.b16 %v8164, %v8160
    %v8317 = vpack.c.b16 %v8165, %v8161
    %v8318 = vpack.c.b16 %v8166, %v8162
    %v8319 = vpack.c.b16 %v8171, %v8167
    %v8320 = vpack.c.b16 %v8172, %v8168
    %v8321 = vpack.c.b16 %v8173, %v8169
    %v8322 = vpack.c.b16 %v8174, %v8170
    %v8323 = vpack.c.b16 %v8179, %v8175
    %v8324 = vpack.c.b16 %v8180, %v8176
    %v8325 = vpack.c.b16 %v8181, %v8177
    %v8326 = vpack.c.b16 %v8182, %v8178
    %v8327 = vpack.c.b16 %v8187, %v8183
    %v8328 = vpack.c.b16 %v8188, %v8184
    %v8329 = vpack.c.b16 %v8189, %v8185
    %v8330 = vpack.c.b16 %v8190, %v8186
    %v8331 = vpack.c.b16 %v8195, %v8191
    %v8332 = vpack.c.b16 %v8196, %v8192
    %v8333 = vpack.c.b16 %v8197, %v8193
    %v8334 = vpack.c.b16 %v8198, %v8194
    %v8335 = vpack.c.b16 %v8203, %v8199
    %v8336 = vpack.c.b16 %v8204, %v8200
    %v8337 = vpack.c.b16 %v8205, %v8201
    %v8338 = vpack.c.b16 %v8206, %v8202
    %v8339 = vpack.c.b16 %v8211, %v8207
    %v8340 = vpack.c.b16 %v8212, %v8208
    %v8341 = vpack.c.b16 %v8213, %v8209
    %v8342 = vpack.c.b16 %v8214, %v8210
    %8471 = vmatprep.subr.bf16.mxu0 %v8244
    %8472 = vmatpush1.bf16.msra.mxu0 %v8243
    %8473 = vmatprep.subr.bf16.mxu0 %v8240
    %8474 = vmatpush1.bf16.msra.mxu0 %v8239
    %8475 = vmatprep.subr.bf16.mxu0 %v8236
    %8476 = vmatpush1.bf16.msra.mxu0 %v8235
    %8477 = vmatprep.subr.bf16.mxu0 %v8232
    %8478 = vmatpush1.bf16.msra.mxu0 %v8231
    %8479 = vmatprep.subr.bf16.mxu0 %v8228
    %8480 = vmatpush1.bf16.msra.mxu0 %v8227
    %8481 = vmatprep.subr.bf16.mxu0 %v8224
    %8482 = vmatpush1.bf16.msra.mxu0 %v8223
    %8483 = vmatprep.subr.bf16.mxu0 %v8220
    %8484 = vmatpush1.bf16.msra.mxu0 %v8219
    %8485 = vmatprep.subr.bf16.mxu0 %v8216
    %8486 = vmatpush1.bf16.msra.mxu0 %v8215
    %8487 = vmatprep.subr.bf16.mxu0 %v8276
    %8488 = vmatpush2.bf16.msra.mxu0 %v8275
    %8489 = vmatprep.subr.bf16.mxu0 %v8272
    %8490 = vmatpush2.bf16.msra.mxu0 %v8271
    %8491 = vmatprep.subr.bf16.mxu0 %v8268
    %8492 = vmatpush2.bf16.msra.mxu0 %v8267
    %8493 = vmatprep.subr.bf16.mxu0 %v8264
    %8494 = vmatpush2.bf16.msra.mxu0 %v8263
    %8495 = vmatprep.subr.bf16.mxu0 %v8260
    %8496 = vmatpush2.bf16.msra.mxu0 %v8259
    %8497 = vmatprep.subr.bf16.mxu0 %v8256
    %8498 = vmatpush2.bf16.msra.mxu0 %v8255
    %8499 = vmatprep.subr.bf16.mxu0 %v8252
    %8500 = vmatpush2.bf16.msra.mxu0 %v8251
    %8501 = vmatprep.subr.bf16.mxu0 %v8248
    %8502 = vmatpush2.bf16.msra.mxu0 %v8247
    %8503 = vmatprep.mubr.bf16.mxu0 %v7700
    %8504 = vmatmul.mubr.bf16.gmra.mxu0 %v7699
    %v8505 = vpop.f32.mrf.mxu0
    %v8506 = vadd.f32 0.0, %v8505
    %v8507 = vpop.f32.mrf.mxu0
    %v8508 = vadd.f32 0.0, %v8507
    %v8509 = vpop.f32.mrf.mxu0
    %v8510 = vpop.f32.mrf.mxu0
    %8511 = vdwg.mxu0
    %8512 = vmatprep.subr.bf16.mxu0 %v8308
    %8513 = vmatpush1.bf16.msra.mxu0 %v8307
    %8514 = vmatprep.subr.bf16.mxu0 %v8304
    %8515 = vmatpush1.bf16.msra.mxu0 %v8303
    %8516 = vmatprep.subr.bf16.mxu0 %v8300
    %8517 = vmatpush1.bf16.msra.mxu0 %v8299
    %8518 = vmatprep.subr.bf16.mxu0 %v8296
    %8519 = vmatpush1.bf16.msra.mxu0 %v8295
    %8520 = vmatprep.subr.bf16.mxu0 %v8292
    %8521 = vmatpush1.bf16.msra.mxu0 %v8291
    %8522 = vmatprep.subr.bf16.mxu0 %v8288
    %8523 = vmatpush1.bf16.msra.mxu0 %v8287
    %8524 = vmatprep.subr.bf16.mxu0 %v8284
    %8525 = vmatpush1.bf16.msra.mxu0 %v8283
    %8526 = vmatprep.subr.bf16.mxu0 %v8280
    %8527 = vmatpush1.bf16.msra.mxu0 %v8279
    %8528 = vmatprep.subr.bf16.mxu0 %v8340
    %8529 = vmatpush2.bf16.msra.mxu0 %v8339
    %8530 = vmatprep.subr.bf16.mxu0 %v8336
    %8531 = vmatpush2.bf16.msra.mxu0 %v8335
    %8532 = vmatprep.subr.bf16.mxu0 %v8332
    %8533 = vmatpush2.bf16.msra.mxu0 %v8331
    %8534 = vmatprep.subr.bf16.mxu0 %v8328
    %8535 = vmatpush2.bf16.msra.mxu0 %v8327
    %8536 = vmatprep.subr.bf16.mxu0 %v8324
    %8537 = vmatpush2.bf16.msra.mxu0 %v8323
    %8538 = vmatprep.subr.bf16.mxu0 %v8320
    %8539 = vmatpush2.bf16.msra.mxu0 %v8319
    %8540 = vmatprep.subr.bf16.mxu0 %v8316
    %8541 = vmatpush2.bf16.msra.mxu0 %v8315
    %8542 = vmatprep.subr.bf16.mxu0 %v8312
    %8543 = vmatpush2.bf16.msra.mxu0 %v8311
    %8544 = vmatprep.mubr.bf16.mxu0 %v7702
    %8545 = vmatmul.mubr.bf16.gmra.mxu0 %v7701
    %v8546 = vpop.f32.mrf.mxu0
    %v8547 = vadd.f32 %v8506, %v8546
    %v8548 = vpop.f32.mrf.mxu0
    %v8549 = vadd.f32 %v8508, %v8548
    %v8550 = vpop.f32.mrf.mxu0
    %v8551 = vpop.f32.mrf.mxu0
    %8552 = vdwg.mxu0
    %8553 = vmatprep.subr.bf16.mxu0 %v8246
    %8554 = vmatpush1.bf16.msra.mxu0 %v8245
    %8555 = vmatprep.subr.bf16.mxu0 %v8242
    %8556 = vmatpush1.bf16.msra.mxu0 %v8241
    %8557 = vmatprep.subr.bf16.mxu0 %v8238
    %8558 = vmatpush1.bf16.msra.mxu0 %v8237
    %8559 = vmatprep.subr.bf16.mxu0 %v8234
    %8560 = vmatpush1.bf16.msra.mxu0 %v8233
    %8561 = vmatprep.subr.bf16.mxu0 %v8230
    %8562 = vmatpush1.bf16.msra.mxu0 %v8229
    %8563 = vmatprep.subr.bf16.mxu0 %v8226
    %8564 = vmatpush1.bf16.msra.mxu0 %v8225
    %8565 = vmatprep.subr.bf16.mxu0 %v8222
    %8566 = vmatpush1.bf16.msra.mxu0 %v8221
    %8567 = vmatprep.subr.bf16.mxu0 %v8218
    %8568 = vmatpush1.bf16.msra.mxu0 %v8217
    %8569 = vmatprep.subr.bf16.mxu0 %v8278
    %8570 = vmatpush2.bf16.msra.mxu0 %v8277
    %8571 = vmatprep.subr.bf16.mxu0 %v8274
    %8572 = vmatpush2.bf16.msra.mxu0 %v8273
    %8573 = vmatprep.subr.bf16.mxu0 %v8270
    %8574 = vmatpush2.bf16.msra.mxu0 %v8269
    %8575 = vmatprep.subr.bf16.mxu0 %v8266
    %8576 = vmatpush2.bf16.msra.mxu0 %v8265
    %8577 = vmatprep.subr.bf16.mxu0 %v8262
    %8578 = vmatpush2.bf16.msra.mxu0 %v8261
    %8579 = vmatprep.subr.bf16.mxu0 %v8258
    %8580 = vmatpush2.bf16.msra.mxu0 %v8257
    %8581 = vmatprep.subr.bf16.mxu0 %v8254
    %8582 = vmatpush2.bf16.msra.mxu0 %v8253
    %8583 = vmatprep.subr.bf16.mxu0 %v8250
    %8584 = vmatpush2.bf16.msra.mxu0 %v8249
    %8585 = vmatprep.mubr.bf16.mxu0 %v7700
    %8586 = vmatmul.mubr.bf16.gmra.mxu0 %v7699
    %v8587 = vpop.f32.mrf.mxu0
    %v8588 = vadd.f32 0.0, %v8587
    %v8589 = vpop.f32.mrf.mxu0
    %v8590 = vadd.f32 0.0, %v8589
    %v8591 = vpop.f32.mrf.mxu0
    %v8592 = vpop.f32.mrf.mxu0
    %8593 = vdwg.mxu0
    %8594 = vmatprep.subr.bf16.mxu0 %v8310
    %8595 = vmatpush1.bf16.msra.mxu0 %v8309
    %8596 = vmatprep.subr.bf16.mxu0 %v8306
    %8597 = vmatpush1.bf16.msra.mxu0 %v8305
    %8598 = vmatprep.subr.bf16.mxu0 %v8302
    %8599 = vmatpush1.bf16.msra.mxu0 %v8301
    %8600 = vmatprep.subr.bf16.mxu0 %v8298
    %8601 = vmatpush1.bf16.msra.mxu0 %v8297
    %8602 = vmatprep.subr.bf16.mxu0 %v8294
    %8603 = vmatpush1.bf16.msra.mxu0 %v8293
    %8604 = vmatprep.subr.bf16.mxu0 %v8290
    %8605 = vmatpush1.bf16.msra.mxu0 %v8289
    %8606 = vmatprep.subr.bf16.mxu0 %v8286
    %8607 = vmatpush1.bf16.msra.mxu0 %v8285
    %8608 = vmatprep.subr.bf16.mxu0 %v8282
    %8609 = vmatpush1.bf16.msra.mxu0 %v8281
    %8610 = vmatprep.subr.bf16.mxu0 %v8342
    %8611 = vmatpush2.bf16.msra.mxu0 %v8341
    %8612 = vmatprep.subr.bf16.mxu0 %v8338
    %8613 = vmatpush2.bf16.msra.mxu0 %v8337
    %8614 = vmatprep.subr.bf16.mxu0 %v8334
    %8615 = vmatpush2.bf16.msra.mxu0 %v8333
    %8616 = vmatprep.subr.bf16.mxu0 %v8330
    %8617 = vmatpush2.bf16.msra.mxu0 %v8329
    %8618 = vmatprep.subr.bf16.mxu0 %v8326
    %8619 = vmatpush2.bf16.msra.mxu0 %v8325
    %8620 = vmatprep.subr.bf16.mxu0 %v8322
    %8621 = vmatpush2.bf16.msra.mxu0 %v8321
    %8622 = vmatprep.subr.bf16.mxu0 %v8318
    %8623 = vmatpush2.bf16.msra.mxu0 %v8317
    %8624 = vmatprep.subr.bf16.mxu0 %v8314
    %8625 = vmatpush2.bf16.msra.mxu0 %v8313
    %8626 = vmatprep.mubr.bf16.mxu0 %v7702
    %8627 = vmatmul.mubr.bf16.gmra.mxu0 %v7701
    %v8628 = vpop.f32.mrf.mxu0
    %v8629 = vadd.f32 %v8588, %v8628
    %v8630 = vpop.f32.mrf.mxu0
    %v8631 = vadd.f32 %v8590, %v8630
    %v8632 = vpop.f32.mrf.mxu0
    %v8633 = vpop.f32.mrf.mxu0
    %8634 = vdwg.mxu0
    %v8763 = vunpack.c.l.b16 %v7550
    %v8764 = vunpack.c.h.b16 %v7550
    %v8765 = vunpack.c.l.b16 %v7551
    %v8766 = vunpack.c.h.b16 %v7551
    %v8767 = vunpack.c.l.b16 %v7552
    %v8768 = vunpack.c.h.b16 %v7552
    %v8769 = vunpack.c.l.b16 %v7553
    %v8770 = vunpack.c.h.b16 %v7553
    %v8771 = vunpack.c.l.b16 %v7554
    %v8772 = vunpack.c.h.b16 %v7554
    %v8773 = vunpack.c.l.b16 %v7555
    %v8774 = vunpack.c.h.b16 %v7555
    %v8775 = vunpack.c.l.b16 %v7556
    %v8776 = vunpack.c.h.b16 %v7556
    %v8777 = vunpack.c.l.b16 %v7557
    %v8778 = vunpack.c.h.b16 %v7557
    %v8779 = vunpack.c.l.b16 %v7558
    %v8780 = vunpack.c.h.b16 %v7558
    %v8781 = vunpack.c.l.b16 %v7559
    %v8782 = vunpack.c.h.b16 %v7559
    %v8783 = vunpack.c.l.b16 %v7560
    %v8784 = vunpack.c.h.b16 %v7560
    %v8785 = vunpack.c.l.b16 %v7561
    %v8786 = vunpack.c.h.b16 %v7561
    %v8787 = vunpack.c.l.b16 %v7562
    %v8788 = vunpack.c.h.b16 %v7562
    %v8789 = vunpack.c.l.b16 %v7563
    %v8790 = vunpack.c.h.b16 %v7563
    %v8791 = vunpack.c.l.b16 %v7564
    %v8792 = vunpack.c.h.b16 %v7564
    %v8793 = vunpack.c.l.b16 %v7565
    %v8794 = vunpack.c.h.b16 %v7565
    %v8795 = vunpack.c.l.b16 %v7566
    %v8796 = vunpack.c.h.b16 %v7566
    %v8797 = vunpack.c.l.b16 %v7567
    %v8798 = vunpack.c.h.b16 %v7567
    %v8799 = vunpack.c.l.b16 %v7568
    %v8800 = vunpack.c.h.b16 %v7568
    %v8801 = vunpack.c.l.b16 %v7569
    %v8802 = vunpack.c.h.b16 %v7569
    %v8803 = vunpack.c.l.b16 %v7570
    %v8804 = vunpack.c.h.b16 %v7570
    %v8805 = vunpack.c.l.b16 %v7571
    %v8806 = vunpack.c.h.b16 %v7571
    %v8807 = vunpack.c.l.b16 %v7572
    %v8808 = vunpack.c.h.b16 %v7572
    %v8809 = vunpack.c.l.b16 %v7573
    %v8810 = vunpack.c.h.b16 %v7573
    %v8811 = vunpack.c.l.b16 %v7574
    %v8812 = vunpack.c.h.b16 %v7574
    %v8813 = vunpack.c.l.b16 %v7575
    %v8814 = vunpack.c.h.b16 %v7575
    %v8815 = vunpack.c.l.b16 %v7576
    %v8816 = vunpack.c.h.b16 %v7576
    %v8817 = vunpack.c.l.b16 %v7577
    %v8818 = vunpack.c.h.b16 %v7577
    %v8819 = vunpack.c.l.b16 %v7578
    %v8820 = vunpack.c.h.b16 %v7578
    %v8821 = vunpack.c.l.b16 %v7579
    %v8822 = vunpack.c.h.b16 %v7579
    %v8823 = vunpack.c.l.b16 %v7580
    %v8824 = vunpack.c.h.b16 %v7580
    %v8825 = vunpack.c.l.b16 %v7581
    %v8826 = vunpack.c.h.b16 %v7581
    %v8827 = vunpack.c.l.b16 %v7582
    %v8828 = vunpack.c.h.b16 %v7582
    %v8829 = vunpack.c.l.b16 %v7583
    %v8830 = vunpack.c.h.b16 %v7583
    %v8831 = vunpack.c.l.b16 %v7584
    %v8832 = vunpack.c.h.b16 %v7584
    %v8833 = vunpack.c.l.b16 %v7585
    %v8834 = vunpack.c.h.b16 %v7585
    %v8835 = vunpack.c.l.b16 %v7586
    %v8836 = vunpack.c.h.b16 %v7586
    %v8837 = vunpack.c.l.b16 %v7587
    %v8838 = vunpack.c.h.b16 %v7587
    %v8839 = vunpack.c.l.b16 %v7588
    %v8840 = vunpack.c.h.b16 %v7588
    %v8841 = vunpack.c.l.b16 %v7589
    %v8842 = vunpack.c.h.b16 %v7589
    %v8843 = vunpack.c.l.b16 %v7590
    %v8844 = vunpack.c.h.b16 %v7590
    %v8845 = vunpack.c.l.b16 %v7591
    %v8846 = vunpack.c.h.b16 %v7591
    %v8847 = vunpack.c.l.b16 %v7592
    %v8848 = vunpack.c.h.b16 %v7592
    %v8849 = vunpack.c.l.b16 %v7593
    %v8850 = vunpack.c.h.b16 %v7593
    %v8851 = vunpack.c.l.b16 %v7594
    %v8852 = vunpack.c.h.b16 %v7594
    %v8853 = vunpack.c.l.b16 %v7595
    %v8854 = vunpack.c.h.b16 %v7595
    %v8855 = vunpack.c.l.b16 %v7596
    %v8856 = vunpack.c.h.b16 %v7596
    %v8857 = vunpack.c.l.b16 %v7597
    %v8858 = vunpack.c.h.b16 %v7597
    %v8859 = vunpack.c.l.b16 %v7598
    %v8860 = vunpack.c.h.b16 %v7598
    %v8861 = vunpack.c.l.b16 %v7599
    %v8862 = vunpack.c.h.b16 %v7599
    %v8863 = vunpack.c.l.b16 %v7600
    %v8864 = vunpack.c.h.b16 %v7600
    %v8865 = vunpack.c.l.b16 %v7601
    %v8866 = vunpack.c.h.b16 %v7601
    %v8867 = vunpack.c.l.b16 %v7602
    %v8868 = vunpack.c.h.b16 %v7602
    %v8869 = vunpack.c.l.b16 %v7603
    %v8870 = vunpack.c.h.b16 %v7603
    %v8871 = vunpack.c.l.b16 %v7604
    %v8872 = vunpack.c.h.b16 %v7604
    %v8873 = vunpack.c.l.b16 %v7605
    %v8874 = vunpack.c.h.b16 %v7605
    %v8875 = vunpack.c.l.b16 %v7606
    %v8876 = vunpack.c.h.b16 %v7606
    %v8877 = vunpack.c.l.b16 %v7607
    %v8878 = vunpack.c.h.b16 %v7607
    %v8879 = vunpack.c.l.b16 %v7608
    %v8880 = vunpack.c.h.b16 %v7608
    %v8881 = vunpack.c.l.b16 %v7609
    %v8882 = vunpack.c.h.b16 %v7609
    %v8883 = vunpack.c.l.b16 %v7610
    %v8884 = vunpack.c.h.b16 %v7610
    %v8885 = vunpack.c.l.b16 %v7611
    %v8886 = vunpack.c.h.b16 %v7611
    %v8887 = vunpack.c.l.b16 %v7612
    %v8888 = vunpack.c.h.b16 %v7612
    %v8889 = vunpack.c.l.b16 %v7613
    %v8890 = vunpack.c.h.b16 %v7613
    %v8891 = vunpack.c.l.b16 %v7614
    %v8892 = vunpack.c.h.b16 %v7614
    %v8893 = vunpack.c.l.b16 %v7615
    %v8894 = vunpack.c.h.b16 %v7615
    %v8895 = vunpack.c.l.b16 %v7616
    %v8896 = vunpack.c.h.b16 %v7616
    %v8897 = vunpack.c.l.b16 %v7617
    %v8898 = vunpack.c.h.b16 %v7617
    %v8899 = vunpack.c.l.b16 %v7618
    %v8900 = vunpack.c.h.b16 %v7618
    %v8901 = vunpack.c.l.b16 %v7619
    %v8902 = vunpack.c.h.b16 %v7619
    %v8903 = vunpack.c.l.b16 %v7620
    %v8904 = vunpack.c.h.b16 %v7620
    %v8905 = vunpack.c.l.b16 %v7621
    %v8906 = vunpack.c.h.b16 %v7621
    %v8907 = vunpack.c.l.b16 %v7622
    %v8908 = vunpack.c.h.b16 %v7622
    %v8909 = vunpack.c.l.b16 %v7623
    %v8910 = vunpack.c.h.b16 %v7623
    %v8911 = vunpack.c.l.b16 %v7624
    %v8912 = vunpack.c.h.b16 %v7624
    %v8913 = vunpack.c.l.b16 %v7625
    %v8914 = vunpack.c.h.b16 %v7625
    %v8915 = vunpack.c.l.b16 %v7626
    %v8916 = vunpack.c.h.b16 %v7626
    %v8917 = vunpack.c.l.b16 %v7627
    %v8918 = vunpack.c.h.b16 %v7627
    %v8919 = vunpack.c.l.b16 %v7628
    %v8920 = vunpack.c.h.b16 %v7628
    %v8921 = vunpack.c.l.b16 %v7629
    %v8922 = vunpack.c.h.b16 %v7629
    %v8923 = vunpack.c.l.b16 %v7630
    %v8924 = vunpack.c.h.b16 %v7630
    %v8925 = vunpack.c.l.b16 %v7631
    %v8926 = vunpack.c.h.b16 %v7631
    %v8927 = vunpack.c.l.b16 %v7632
    %v8928 = vunpack.c.h.b16 %v7632
    %v8929 = vunpack.c.l.b16 %v7633
    %v8930 = vunpack.c.h.b16 %v7633
    %v8931 = vunpack.c.l.b16 %v7634
    %v8932 = vunpack.c.h.b16 %v7634
    %v8933 = vunpack.c.l.b16 %v7635
    %v8934 = vunpack.c.h.b16 %v7635
    %v8935 = vunpack.c.l.b16 %v7636
    %v8936 = vunpack.c.h.b16 %v7636
    %v8937 = vunpack.c.l.b16 %v7637
    %v8938 = vunpack.c.h.b16 %v7637
    %v8939 = vunpack.c.l.b16 %v7638
    %v8940 = vunpack.c.h.b16 %v7638
    %v8941 = vunpack.c.l.b16 %v7639
    %v8942 = vunpack.c.h.b16 %v7639
    %v8943 = vunpack.c.l.b16 %v7640
    %v8944 = vunpack.c.h.b16 %v7640
    %v8945 = vunpack.c.l.b16 %v7641
    %v8946 = vunpack.c.h.b16 %v7641
    %v8947 = vunpack.c.l.b16 %v7642
    %v8948 = vunpack.c.h.b16 %v7642
    %v8949 = vunpack.c.l.b16 %v7643
    %v8950 = vunpack.c.h.b16 %v7643
    %v8951 = vunpack.c.l.b16 %v7644
    %v8952 = vunpack.c.h.b16 %v7644
    %v8953 = vunpack.c.l.b16 %v7645
    %v8954 = vunpack.c.h.b16 %v7645
    %v8955 = vunpack.c.l.b16 %v7646
    %v8956 = vunpack.c.h.b16 %v7646
    %v8957 = vunpack.c.l.b16 %v7647
    %v8958 = vunpack.c.h.b16 %v7647
    %v8959 = vunpack.c.l.b16 %v7648
    %v8960 = vunpack.c.h.b16 %v7648
    %v8961 = vunpack.c.l.b16 %v7649
    %v8962 = vunpack.c.h.b16 %v7649
    %v8963 = vunpack.c.l.b16 %v7650
    %v8964 = vunpack.c.h.b16 %v7650
    %v8965 = vunpack.c.l.b16 %v7651
    %v8966 = vunpack.c.h.b16 %v7651
    %v8967 = vunpack.c.l.b16 %v7652
    %v8968 = vunpack.c.h.b16 %v7652
    %v8969 = vunpack.c.l.b16 %v7653
    %v8970 = vunpack.c.h.b16 %v7653
    %v8971 = vunpack.c.l.b16 %v7654
    %v8972 = vunpack.c.h.b16 %v7654
    %v8973 = vunpack.c.l.b16 %v7655
    %v8974 = vunpack.c.h.b16 %v7655
    %v8975 = vunpack.c.l.b16 %v7656
    %v8976 = vunpack.c.h.b16 %v7656
    %v8977 = vunpack.c.l.b16 %v7657
    %v8978 = vunpack.c.h.b16 %v7657
    %v8979 = vunpack.c.l.b16 %v7658
    %v8980 = vunpack.c.h.b16 %v7658
    %v8981 = vunpack.c.l.b16 %v7659
    %v8982 = vunpack.c.h.b16 %v7659
    %v8983 = vunpack.c.l.b16 %v7660
    %v8984 = vunpack.c.h.b16 %v7660
    %v8985 = vunpack.c.l.b16 %v7661
    %v8986 = vunpack.c.h.b16 %v7661
    %v8987 = vunpack.c.l.b16 %v7662
    %v8988 = vunpack.c.h.b16 %v7662
    %v8989 = vunpack.c.l.b16 %v7663
    %v8990 = vunpack.c.h.b16 %v7663
    %v8991 = vunpack.c.l.b16 %v7664
    %v8992 = vunpack.c.h.b16 %v7664
    %v8993 = vunpack.c.l.b16 %v7665
    %v8994 = vunpack.c.h.b16 %v7665
    %v8995 = vunpack.c.l.b16 %v7666
    %v8996 = vunpack.c.h.b16 %v7666
    %v8997 = vunpack.c.l.b16 %v7667
    %v8998 = vunpack.c.h.b16 %v7667
    %v8999 = vunpack.c.l.b16 %v7668
    %v9000 = vunpack.c.h.b16 %v7668
    %v9001 = vunpack.c.l.b16 %v7669
    %v9002 = vunpack.c.h.b16 %v7669
    %v9003 = vunpack.c.l.b16 %v7670
    %v9004 = vunpack.c.h.b16 %v7670
    %v9005 = vunpack.c.l.b16 %v7671
    %v9006 = vunpack.c.h.b16 %v7671
    %v9007 = vunpack.c.l.b16 %v7672
    %v9008 = vunpack.c.h.b16 %v7672
    %v9009 = vunpack.c.l.b16 %v7673
    %v9010 = vunpack.c.h.b16 %v7673
    %v9011 = vunpack.c.l.b16 %v7674
    %v9012 = vunpack.c.h.b16 %v7674
    %v9013 = vunpack.c.l.b16 %v7675
    %v9014 = vunpack.c.h.b16 %v7675
    %v9015 = vunpack.c.l.b16 %v7676
    %v9016 = vunpack.c.h.b16 %v7676
    %v9017 = vunpack.c.l.b16 %v7677
    %v9018 = vunpack.c.h.b16 %v7677
    %v9019 = vpack.c.b16 %v8767, %v8763
    %v9020 = vpack.c.b16 %v8768, %v8764
    %v9021 = vpack.c.b16 %v8769, %v8765
    %v9022 = vpack.c.b16 %v8770, %v8766
    %v9023 = vpack.c.b16 %v8775, %v8771
    %v9024 = vpack.c.b16 %v8776, %v8772
    %v9025 = vpack.c.b16 %v8777, %v8773
    %v9026 = vpack.c.b16 %v8778, %v8774
    %v9027 = vpack.c.b16 %v8783, %v8779
    %v9028 = vpack.c.b16 %v8784, %v8780
    %v9029 = vpack.c.b16 %v8785, %v8781
    %v9030 = vpack.c.b16 %v8786, %v8782
    %v9031 = vpack.c.b16 %v8791, %v8787
    %v9032 = vpack.c.b16 %v8792, %v8788
    %v9033 = vpack.c.b16 %v8793, %v8789
    %v9034 = vpack.c.b16 %v8794, %v8790
    %v9035 = vpack.c.b16 %v8799, %v8795
    %v9036 = vpack.c.b16 %v8800, %v8796
    %v9037 = vpack.c.b16 %v8801, %v8797
    %v9038 = vpack.c.b16 %v8802, %v8798
    %v9039 = vpack.c.b16 %v8807, %v8803
    %v9040 = vpack.c.b16 %v8808, %v8804
    %v9041 = vpack.c.b16 %v8809, %v8805
    %v9042 = vpack.c.b16 %v8810, %v8806
    %v9043 = vpack.c.b16 %v8815, %v8811
    %v9044 = vpack.c.b16 %v8816, %v8812
    %v9045 = vpack.c.b16 %v8817, %v8813
    %v9046 = vpack.c.b16 %v8818, %v8814
    %v9047 = vpack.c.b16 %v8823, %v8819
    %v9048 = vpack.c.b16 %v8824, %v8820
    %v9049 = vpack.c.b16 %v8825, %v8821
    %v9050 = vpack.c.b16 %v8826, %v8822
    %v9051 = vpack.c.b16 %v8831, %v8827
    %v9052 = vpack.c.b16 %v8832, %v8828
    %v9053 = vpack.c.b16 %v8833, %v8829
    %v9054 = vpack.c.b16 %v8834, %v8830
    %v9055 = vpack.c.b16 %v8839, %v8835
    %v9056 = vpack.c.b16 %v8840, %v8836
    %v9057 = vpack.c.b16 %v8841, %v8837
    %v9058 = vpack.c.b16 %v8842, %v8838
    %v9059 = vpack.c.b16 %v8847, %v8843
    %v9060 = vpack.c.b16 %v8848, %v8844
    %v9061 = vpack.c.b16 %v8849, %v8845
    %v9062 = vpack.c.b16 %v8850, %v8846
    %v9063 = vpack.c.b16 %v8855, %v8851
    %v9064 = vpack.c.b16 %v8856, %v8852
    %v9065 = vpack.c.b16 %v8857, %v8853
    %v9066 = vpack.c.b16 %v8858, %v8854
    %v9067 = vpack.c.b16 %v8863, %v8859
    %v9068 = vpack.c.b16 %v8864, %v8860
    %v9069 = vpack.c.b16 %v8865, %v8861
    %v9070 = vpack.c.b16 %v8866, %v8862
    %v9071 = vpack.c.b16 %v8871, %v8867
    %v9072 = vpack.c.b16 %v8872, %v8868
    %v9073 = vpack.c.b16 %v8873, %v8869
    %v9074 = vpack.c.b16 %v8874, %v8870
    %v9075 = vpack.c.b16 %v8879, %v8875
    %v9076 = vpack.c.b16 %v8880, %v8876
    %v9077 = vpack.c.b16 %v8881, %v8877
    %v9078 = vpack.c.b16 %v8882, %v8878
    %v9079 = vpack.c.b16 %v8887, %v8883
    %v9080 = vpack.c.b16 %v8888, %v8884
    %v9081 = vpack.c.b16 %v8889, %v8885
    %v9082 = vpack.c.b16 %v8890, %v8886
    %v9083 = vpack.c.b16 %v8895, %v8891
    %v9084 = vpack.c.b16 %v8896, %v8892
    %v9085 = vpack.c.b16 %v8897, %v8893
    %v9086 = vpack.c.b16 %v8898, %v8894
    %v9087 = vpack.c.b16 %v8903, %v8899
    %v9088 = vpack.c.b16 %v8904, %v8900
    %v9089 = vpack.c.b16 %v8905, %v8901
    %v9090 = vpack.c.b16 %v8906, %v8902
    %v9091 = vpack.c.b16 %v8911, %v8907
    %v9092 = vpack.c.b16 %v8912, %v8908
    %v9093 = vpack.c.b16 %v8913, %v8909
    %v9094 = vpack.c.b16 %v8914, %v8910
    %v9095 = vpack.c.b16 %v8919, %v8915
    %v9096 = vpack.c.b16 %v8920, %v8916
    %v9097 = vpack.c.b16 %v8921, %v8917
    %v9098 = vpack.c.b16 %v8922, %v8918
    %v9099 = vpack.c.b16 %v8927, %v8923
    %v9100 = vpack.c.b16 %v8928, %v8924
    %v9101 = vpack.c.b16 %v8929, %v8925
    %v9102 = vpack.c.b16 %v8930, %v8926
    %v9103 = vpack.c.b16 %v8935, %v8931
    %v9104 = vpack.c.b16 %v8936, %v8932
    %v9105 = vpack.c.b16 %v8937, %v8933
    %v9106 = vpack.c.b16 %v8938, %v8934
    %v9107 = vpack.c.b16 %v8943, %v8939
    %v9108 = vpack.c.b16 %v8944, %v8940
    %v9109 = vpack.c.b16 %v8945, %v8941
    %v9110 = vpack.c.b16 %v8946, %v8942
    %v9111 = vpack.c.b16 %v8951, %v8947
    %v9112 = vpack.c.b16 %v8952, %v8948
    %v9113 = vpack.c.b16 %v8953, %v8949
    %v9114 = vpack.c.b16 %v8954, %v8950
    %v9115 = vpack.c.b16 %v8959, %v8955
    %v9116 = vpack.c.b16 %v8960, %v8956
    %v9117 = vpack.c.b16 %v8961, %v8957
    %v9118 = vpack.c.b16 %v8962, %v8958
    %v9119 = vpack.c.b16 %v8967, %v8963
    %v9120 = vpack.c.b16 %v8968, %v8964
    %v9121 = vpack.c.b16 %v8969, %v8965
    %v9122 = vpack.c.b16 %v8970, %v8966
    %v9123 = vpack.c.b16 %v8975, %v8971
    %v9124 = vpack.c.b16 %v8976, %v8972
    %v9125 = vpack.c.b16 %v8977, %v8973
    %v9126 = vpack.c.b16 %v8978, %v8974
    %v9127 = vpack.c.b16 %v8983, %v8979
    %v9128 = vpack.c.b16 %v8984, %v8980
    %v9129 = vpack.c.b16 %v8985, %v8981
    %v9130 = vpack.c.b16 %v8986, %v8982
    %v9131 = vpack.c.b16 %v8991, %v8987
    %v9132 = vpack.c.b16 %v8992, %v8988
    %v9133 = vpack.c.b16 %v8993, %v8989
    %v9134 = vpack.c.b16 %v8994, %v8990
    %v9135 = vpack.c.b16 %v8999, %v8995
    %v9136 = vpack.c.b16 %v9000, %v8996
    %v9137 = vpack.c.b16 %v9001, %v8997
    %v9138 = vpack.c.b16 %v9002, %v8998
    %v9139 = vpack.c.b16 %v9007, %v9003
    %v9140 = vpack.c.b16 %v9008, %v9004
    %v9141 = vpack.c.b16 %v9009, %v9005
    %v9142 = vpack.c.b16 %v9010, %v9006
    %v9143 = vpack.c.b16 %v9015, %v9011
    %v9144 = vpack.c.b16 %v9016, %v9012
    %v9145 = vpack.c.b16 %v9017, %v9013
    %v9146 = vpack.c.b16 %v9018, %v9014
    %9275 = vmatprep.subr.bf16.mxu0 %v9048
    %9276 = vmatpush1.bf16.msra.mxu0 %v9047
    %9277 = vmatprep.subr.bf16.mxu0 %v9044
    %9278 = vmatpush1.bf16.msra.mxu0 %v9043
    %9279 = vmatprep.subr.bf16.mxu0 %v9040
    %9280 = vmatpush1.bf16.msra.mxu0 %v9039
    %9281 = vmatprep.subr.bf16.mxu0 %v9036
    %9282 = vmatpush1.bf16.msra.mxu0 %v9035
    %9283 = vmatprep.subr.bf16.mxu0 %v9032
    %9284 = vmatpush1.bf16.msra.mxu0 %v9031
    %9285 = vmatprep.subr.bf16.mxu0 %v9028
    %9286 = vmatpush1.bf16.msra.mxu0 %v9027
    %9287 = vmatprep.subr.bf16.mxu0 %v9024
    %9288 = vmatpush1.bf16.msra.mxu0 %v9023
    %9289 = vmatprep.subr.bf16.mxu0 %v9020
    %9290 = vmatpush1.bf16.msra.mxu0 %v9019
    %9291 = vmatprep.subr.bf16.mxu0 %v9080
    %9292 = vmatpush2.bf16.msra.mxu0 %v9079
    %9293 = vmatprep.subr.bf16.mxu0 %v9076
    %9294 = vmatpush2.bf16.msra.mxu0 %v9075
    %9295 = vmatprep.subr.bf16.mxu0 %v9072
    %9296 = vmatpush2.bf16.msra.mxu0 %v9071
    %9297 = vmatprep.subr.bf16.mxu0 %v9068
    %9298 = vmatpush2.bf16.msra.mxu0 %v9067
    %9299 = vmatprep.subr.bf16.mxu0 %v9064
    %9300 = vmatpush2.bf16.msra.mxu0 %v9063
    %9301 = vmatprep.subr.bf16.mxu0 %v9060
    %9302 = vmatpush2.bf16.msra.mxu0 %v9059
    %9303 = vmatprep.subr.bf16.mxu0 %v9056
    %9304 = vmatpush2.bf16.msra.mxu0 %v9055
    %9305 = vmatprep.subr.bf16.mxu0 %v9052
    %9306 = vmatpush2.bf16.msra.mxu0 %v9051
    %9307 = vmatprep.mubr.bf16.mxu0 %v7547
    %9308 = vmatmul.mubr.bf16.gmra.mxu0 %v7546
    %v9309 = vpop.f32.mrf.mxu0
    %v9310 = vadd.f32 %v8547, %v9309
    %v9311 = vpop.f32.mrf.mxu0
    %v9312 = vadd.f32 %v8549, %v9311
    %v9313 = vpop.f32.mrf.mxu0
    %v9314 = vpop.f32.mrf.mxu0
    %9315 = vdwg.mxu0
    %9316 = vmatprep.subr.bf16.mxu0 %v9112
    %9317 = vmatpush1.bf16.msra.mxu0 %v9111
    %9318 = vmatprep.subr.bf16.mxu0 %v9108
    %9319 = vmatpush1.bf16.msra.mxu0 %v9107
    %9320 = vmatprep.subr.bf16.mxu0 %v9104
    %9321 = vmatpush1.bf16.msra.mxu0 %v9103
    %9322 = vmatprep.subr.bf16.mxu0 %v9100
    %9323 = vmatpush1.bf16.msra.mxu0 %v9099
    %9324 = vmatprep.subr.bf16.mxu0 %v9096
    %9325 = vmatpush1.bf16.msra.mxu0 %v9095
    %9326 = vmatprep.subr.bf16.mxu0 %v9092
    %9327 = vmatpush1.bf16.msra.mxu0 %v9091
    %9328 = vmatprep.subr.bf16.mxu0 %v9088
    %9329 = vmatpush1.bf16.msra.mxu0 %v9087
    %9330 = vmatprep.subr.bf16.mxu0 %v9084
    %9331 = vmatpush1.bf16.msra.mxu0 %v9083
    %9332 = vmatprep.subr.bf16.mxu0 %v9144
    %9333 = vmatpush2.bf16.msra.mxu0 %v9143
    %9334 = vmatprep.subr.bf16.mxu0 %v9140
    %9335 = vmatpush2.bf16.msra.mxu0 %v9139
    %9336 = vmatprep.subr.bf16.mxu0 %v9136
    %9337 = vmatpush2.bf16.msra.mxu0 %v9135
    %9338 = vmatprep.subr.bf16.mxu0 %v9132
    %9339 = vmatpush2.bf16.msra.mxu0 %v9131
    %9340 = vmatprep.subr.bf16.mxu0 %v9128
    %9341 = vmatpush2.bf16.msra.mxu0 %v9127
    %9342 = vmatprep.subr.bf16.mxu0 %v9124
    %9343 = vmatpush2.bf16.msra.mxu0 %v9123
    %9344 = vmatprep.subr.bf16.mxu0 %v9120
    %9345 = vmatpush2.bf16.msra.mxu0 %v9119
    %9346 = vmatprep.subr.bf16.mxu0 %v9116
    %9347 = vmatpush2.bf16.msra.mxu0 %v9115
    %9348 = vmatprep.mubr.bf16.mxu0 %v7549
    %9349 = vmatmul.mubr.bf16.gmra.mxu0 %v7548
    %v9350 = vpop.f32.mrf.mxu0
    %v9351 = vadd.f32 %v9310, %v9350
    %v9352 = vpop.f32.mrf.mxu0
    %v9353 = vadd.f32 %v9312, %v9352
    %v9354 = vpop.f32.mrf.mxu0
    %v9355 = vpop.f32.mrf.mxu0
    %9356 = vdwg.mxu0
    %9357 = vmatprep.subr.bf16.mxu0 %v9050
    %9358 = vmatpush1.bf16.msra.mxu0 %v9049
    %9359 = vmatprep.subr.bf16.mxu0 %v9046
    %9360 = vmatpush1.bf16.msra.mxu0 %v9045
    %9361 = vmatprep.subr.bf16.mxu0 %v9042
    %9362 = vmatpush1.bf16.msra.mxu0 %v9041
    %9363 = vmatprep.subr.bf16.mxu0 %v9038
    %9364 = vmatpush1.bf16.msra.mxu0 %v9037
    %9365 = vmatprep.subr.bf16.mxu0 %v9034
    %9366 = vmatpush1.bf16.msra.mxu0 %v9033
    %9367 = vmatprep.subr.bf16.mxu0 %v9030
    %9368 = vmatpush1.bf16.msra.mxu0 %v9029
    %9369 = vmatprep.subr.bf16.mxu0 %v9026
    %9370 = vmatpush1.bf16.msra.mxu0 %v9025
    %9371 = vmatprep.subr.bf16.mxu0 %v9022
    %9372 = vmatpush1.bf16.msra.mxu0 %v9021
    %9373 = vmatprep.subr.bf16.mxu0 %v9082
    %9374 = vmatpush2.bf16.msra.mxu0 %v9081
    %9375 = vmatprep.subr.bf16.mxu0 %v9078
    %9376 = vmatpush2.bf16.msra.mxu0 %v9077
    %9377 = vmatprep.subr.bf16.mxu0 %v9074
    %9378 = vmatpush2.bf16.msra.mxu0 %v9073
    %9379 = vmatprep.subr.bf16.mxu0 %v9070
    %9380 = vmatpush2.bf16.msra.mxu0 %v9069
    %9381 = vmatprep.subr.bf16.mxu0 %v9066
    %9382 = vmatpush2.bf16.msra.mxu0 %v9065
    %9383 = vmatprep.subr.bf16.mxu0 %v9062
    %9384 = vmatpush2.bf16.msra.mxu0 %v9061
    %9385 = vmatprep.subr.bf16.mxu0 %v9058
    %9386 = vmatpush2.bf16.msra.mxu0 %v9057
    %9387 = vmatprep.subr.bf16.mxu0 %v9054
    %9388 = vmatpush2.bf16.msra.mxu0 %v9053
    %9389 = vmatprep.mubr.bf16.mxu0 %v7547
    %9390 = vmatmul.mubr.bf16.gmra.mxu0 %v7546
    %v9391 = vpop.f32.mrf.mxu0
    %v9392 = vadd.f32 %v8629, %v9391
    %v9393 = vpop.f32.mrf.mxu0
    %v9394 = vadd.f32 %v8631, %v9393
    %v9395 = vpop.f32.mrf.mxu0
    %v9396 = vpop.f32.mrf.mxu0
    %9397 = vdwg.mxu0
    %9398 = vmatprep.subr.bf16.mxu0 %v9114
    %9399 = vmatpush1.bf16.msra.mxu0 %v9113
    %9400 = vmatprep.subr.bf16.mxu0 %v9110
    %9401 = vmatpush1.bf16.msra.mxu0 %v9109
    %9402 = vmatprep.subr.bf16.mxu0 %v9106
    %9403 = vmatpush1.bf16.msra.mxu0 %v9105
    %9404 = vmatprep.subr.bf16.mxu0 %v9102
    %9405 = vmatpush1.bf16.msra.mxu0 %v9101
    %9406 = vmatprep.subr.bf16.mxu0 %v9098
    %9407 = vmatpush1.bf16.msra.mxu0 %v9097
    %9408 = vmatprep.subr.bf16.mxu0 %v9094
    %9409 = vmatpush1.bf16.msra.mxu0 %v9093
    %9410 = vmatprep.subr.bf16.mxu0 %v9090
    %9411 = vmatpush1.bf16.msra.mxu0 %v9089
    %9412 = vmatprep.subr.bf16.mxu0 %v9086
    %9413 = vmatpush1.bf16.msra.mxu0 %v9085
    %9414 = vmatprep.subr.bf16.mxu0 %v9146
    %9415 = vmatpush2.bf16.msra.mxu0 %v9145
    %9416 = vmatprep.subr.bf16.mxu0 %v9142
    %9417 = vmatpush2.bf16.msra.mxu0 %v9141
    %9418 = vmatprep.subr.bf16.mxu0 %v9138
    %9419 = vmatpush2.bf16.msra.mxu0 %v9137
    %9420 = vmatprep.subr.bf16.mxu0 %v9134
    %9421 = vmatpush2.bf16.msra.mxu0 %v9133
    %9422 = vmatprep.subr.bf16.mxu0 %v9130
    %9423 = vmatpush2.bf16.msra.mxu0 %v9129
    %9424 = vmatprep.subr.bf16.mxu0 %v9126
    %9425 = vmatpush2.bf16.msra.mxu0 %v9125
    %9426 = vmatprep.subr.bf16.mxu0 %v9122
    %9427 = vmatpush2.bf16.msra.mxu0 %v9121
    %9428 = vmatprep.subr.bf16.mxu0 %v9118
    %9429 = vmatpush2.bf16.msra.mxu0 %v9117
    %9430 = vmatprep.mubr.bf16.mxu0 %v7549
    %9431 = vmatmul.mubr.bf16.gmra.mxu0 %v7548
    %v9432 = vpop.f32.mrf.mxu0
    %v9433 = vadd.f32 %v9392, %v9432
    %v9434 = vpop.f32.mrf.mxu0
    %v9435 = vadd.f32 %v9394, %v9434
    %v9436 = vpop.f32.mrf.mxu0
    %v9437 = vpop.f32.mrf.mxu0
    %9438 = vdwg.mxu0
    %v9439 = vld [vmem:[%s10] sm:$0xf]
    %v9441 = vlaneseq
    %v9442 = vshrl.u32 %v9441, 7
    %v9443 = vsub.s32 0, %v9442
    %v9444 = vrot.slane %v9439, %v9443
    %v9445 = vlaneseq
    %v9446 = vshrl.u32 %v9445, 7
    %v9447 = vsub.s32 1, %v9446
    %v9448 = vrot.slane %v9439, %v9447
    %v9449 = vlaneseq
    %v9450 = vshrl.u32 %v9449, 7
    %v9451 = vsub.s32 2, %v9450
    %v9452 = vrot.slane %v9439, %v9451
    %v9453 = vlaneseq
    %v9454 = vshrl.u32 %v9453, 7
    %v9455 = vsub.s32 3, %v9454
    %v9456 = vrot.slane %v9439, %v9455
    %v9461 = vadd.f32 %v9351, %v9444
    %v9462 = vadd.f32 %v9353, %v9448
    %v9463 = vadd.f32 %v9433, %v9452
    %v9464 = vadd.f32 %v9435, %v9456
    %v9465 = vlaneseq
    %v9466 = vshrl.u32 %v9465, 7
    %v9467 = vsub.s32 0, %v9466
    %v9468 = vrot.slane %v9461, %v9467
    %v9469 = vlaneseq
    %v9470 = vshrl.u32 %v9469, 7
    %v9471 = vsub.s32 0, %v9470
    %v9472 = vrot.slane %v9462, %v9471
    %v9473 = vlaneseq
    %v9474 = vshrl.u32 %v9473, 7
    %v9475 = vsub.s32 0, %v9474
    %v9476 = vrot.slane %v9463, %v9475
    %v9477 = vlaneseq
    %v9478 = vshrl.u32 %v9477, 7
    %v9479 = vsub.s32 0, %v9478
    %v9480 = vrot.slane %v9464, %v9479
    %v9481 = vadd.f32 %v3059, %v9468
    %v9482 = vadd.f32 %v3061, %v9472
    %v9483 = vadd.f32 %v3145, %v9476
    %v9484 = vadd.f32 %v3147, %v9480
    %v9485 = vadd.f32 %v3063, %v9468
    %v9486 = vadd.f32 %v3065, %v9472
    %v9487 = vadd.f32 %v3149, %v9476
    %v9488 = vadd.f32 %v3151, %v9480
    %v9489 = vtanh.pop %v9481
    %v9490 = vtanh.pop %v9482
    %v9491 = vtanh.pop %v9483
    %v9492 = vtanh.pop %v9484
    %v9493 = vtanh.pop %v9485
    %v9494 = vtanh.pop %v9486
    %v9495 = vtanh.pop %v9487
    %v9496 = vtanh.pop %v9488
    %v9497 = vpack.c.bf16 %v9493, %v9489
    %v9498 = vpack.c.bf16 %v9494, %v9490
    %v9499 = vpack.c.bf16 %v9495, %v9491
    %v9500 = vpack.c.bf16 %v9496, %v9492
    %v9501 = vld [vmem:[#allocation2] sm:$0xff]
    %v9502 = vld [vmem:[#allocation2 + $0x8] sm:$0xff]
    %v9503 = vld [vmem:[#allocation2 + $0x10] sm:$0xff]
    %v9504 = vld [vmem:[#allocation2 + $0x18] sm:$0xff]
    %v9505 = vld [vmem:[#allocation2 + $0x20] sm:$0xff]
    %v9506 = vld [vmem:[#allocation2 + $0x28] sm:$0xff]
    %v9507 = vld [vmem:[#allocation2 + $0x30] sm:$0xff]
    %v9508 = vld [vmem:[#allocation2 + $0x38] sm:$0xff]
    %v9509 = vld [vmem:[#allocation2 + $0x40] sm:$0xff]
    %v9510 = vld [vmem:[#allocation2 + $0x48] sm:$0xff]
    %v9511 = vld [vmem:[#allocation2 + $0x50] sm:$0xff]
    %v9512 = vld [vmem:[#allocation2 + $0x58] sm:$0xff]
    %v9513 = vld [vmem:[#allocation2 + $0x60] sm:$0xff]
    %v9514 = vld [vmem:[#allocation2 + $0x68] sm:$0xff]
    %v9515 = vld [vmem:[#allocation2 + $0x70] sm:$0xff]
    %v9516 = vld [vmem:[#allocation2 + $0x78] sm:$0xff]
    %v9517 = vld [vmem:[#allocation2 + $0x80] sm:$0xff]
    %v9518 = vld [vmem:[#allocation2 + $0x88] sm:$0xff]
    %v9519 = vld [vmem:[#allocation2 + $0x90] sm:$0xff]
    %v9520 = vld [vmem:[#allocation2 + $0x98] sm:$0xff]
    %v9521 = vld [vmem:[#allocation2 + $0xa0] sm:$0xff]
    %v9522 = vld [vmem:[#allocation2 + $0xa8] sm:$0xff]
    %v9523 = vld [vmem:[#allocation2 + $0xb0] sm:$0xff]
    %v9524 = vld [vmem:[#allocation2 + $0xb8] sm:$0xff]
    %v9525 = vld [vmem:[#allocation2 + $0xc0] sm:$0xff]
    %v9526 = vld [vmem:[#allocation2 + $0xc8] sm:$0xff]
    %v9527 = vld [vmem:[#allocation2 + $0xd0] sm:$0xff]
    %v9528 = vld [vmem:[#allocation2 + $0xd8] sm:$0xff]
    %v9529 = vld [vmem:[#allocation2 + $0xe0] sm:$0xff]
    %v9530 = vld [vmem:[#allocation2 + $0xe8] sm:$0xff]
    %v9531 = vld [vmem:[#allocation2 + $0xf0] sm:$0xff]
    %v9532 = vld [vmem:[#allocation2 + $0xf8] sm:$0xff]
    %v9533 = vld [vmem:[#allocation2 + $0x100] sm:$0xff]
    %v9534 = vld [vmem:[#allocation2 + $0x108] sm:$0xff]
    %v9535 = vld [vmem:[#allocation2 + $0x110] sm:$0xff]
    %v9536 = vld [vmem:[#allocation2 + $0x118] sm:$0xff]
    %v9537 = vld [vmem:[#allocation2 + $0x120] sm:$0xff]
    %v9538 = vld [vmem:[#allocation2 + $0x128] sm:$0xff]
    %v9539 = vld [vmem:[#allocation2 + $0x130] sm:$0xff]
    %v9540 = vld [vmem:[#allocation2 + $0x138] sm:$0xff]
    %v9541 = vld [vmem:[#allocation2 + $0x140] sm:$0xff]
    %v9542 = vld [vmem:[#allocation2 + $0x148] sm:$0xff]
    %v9543 = vld [vmem:[#allocation2 + $0x150] sm:$0xff]
    %v9544 = vld [vmem:[#allocation2 + $0x158] sm:$0xff]
    %v9545 = vld [vmem:[#allocation2 + $0x160] sm:$0xff]
    %v9546 = vld [vmem:[#allocation2 + $0x168] sm:$0xff]
    %v9547 = vld [vmem:[#allocation2 + $0x170] sm:$0xff]
    %v9548 = vld [vmem:[#allocation2 + $0x178] sm:$0xff]
    %v9549 = vld [vmem:[#allocation2 + $0x180] sm:$0xff]
    %v9550 = vld [vmem:[#allocation2 + $0x188] sm:$0xff]
    %v9551 = vld [vmem:[#allocation2 + $0x190] sm:$0xff]
    %v9552 = vld [vmem:[#allocation2 + $0x198] sm:$0xff]
    %v9553 = vld [vmem:[#allocation2 + $0x1a0] sm:$0xff]
    %v9554 = vld [vmem:[#allocation2 + $0x1a8] sm:$0xff]
    %v9555 = vld [vmem:[#allocation2 + $0x1b0] sm:$0xff]
    %v9556 = vld [vmem:[#allocation2 + $0x1b8] sm:$0xff]
    %v9557 = vld [vmem:[#allocation2 + $0x1c0] sm:$0xff]
    %v9558 = vld [vmem:[#allocation2 + $0x1c8] sm:$0xff]
    %v9559 = vld [vmem:[#allocation2 + $0x1d0] sm:$0xff]
    %v9560 = vld [vmem:[#allocation2 + $0x1d8] sm:$0xff]
    %v9561 = vld [vmem:[#allocation2 + $0x1e0] sm:$0xff]
    %v9562 = vld [vmem:[#allocation2 + $0x1e8] sm:$0xff]
    %v9563 = vld [vmem:[#allocation2 + $0x1f0] sm:$0xff]
    %v9564 = vld [vmem:[#allocation2 + $0x1f8] sm:$0xff]
    %v9565 = vpack.c.bf16 %v9505, %v9501
    %v9566 = vpack.c.bf16 %v9506, %v9502
    %v9567 = vpack.c.bf16 %v9507, %v9503
    %v9568 = vpack.c.bf16 %v9508, %v9504
    %v9569 = vpack.c.bf16 %v9513, %v9509
    %v9570 = vpack.c.bf16 %v9514, %v9510
    %v9571 = vpack.c.bf16 %v9515, %v9511
    %v9572 = vpack.c.bf16 %v9516, %v9512
    %v9573 = vpack.c.bf16 %v9521, %v9517
    %v9574 = vpack.c.bf16 %v9522, %v9518
    %v9575 = vpack.c.bf16 %v9523, %v9519
    %v9576 = vpack.c.bf16 %v9524, %v9520
    %v9577 = vpack.c.bf16 %v9529, %v9525
    %v9578 = vpack.c.bf16 %v9530, %v9526
    %v9579 = vpack.c.bf16 %v9531, %v9527
    %v9580 = vpack.c.bf16 %v9532, %v9528
    %v9581 = vpack.c.bf16 %v9537, %v9533
    %v9582 = vpack.c.bf16 %v9538, %v9534
    %v9583 = vpack.c.bf16 %v9539, %v9535
    %v9584 = vpack.c.bf16 %v9540, %v9536
    %v9585 = vpack.c.bf16 %v9545, %v9541
    %v9586 = vpack.c.bf16 %v9546, %v9542
    %v9587 = vpack.c.bf16 %v9547, %v9543
    %v9588 = vpack.c.bf16 %v9548, %v9544
    %v9589 = vpack.c.bf16 %v9553, %v9549
    %v9590 = vpack.c.bf16 %v9554, %v9550
    %v9591 = vpack.c.bf16 %v9555, %v9551
    %v9592 = vpack.c.bf16 %v9556, %v9552
    %v9593 = vpack.c.bf16 %v9561, %v9557
    %v9594 = vpack.c.bf16 %v9562, %v9558
    %v9595 = vpack.c.bf16 %v9563, %v9559
    %v9596 = vpack.c.bf16 %v9564, %v9560
    %v9598 = vshrl.u32 %v9497, 16
    %v9600 = vrot.slane %v9598, 2
    %v9601 = vshll.u32 %v9497, 16
    %v9603 = vrot.slane %v9601, 3
    %v9604 = vor.u32 %v9600, %v9603
    %v9606 = vshrl.u32 %v9498, 16
    %v9608 = vrot.slane %v9606, 2
    %v9609 = vshll.u32 %v9498, 16
    %v9611 = vrot.slane %v9609, 3
    %v9612 = vor.u32 %v9608, %v9611
    %v9614 = vshrl.u32 %v9499, 16
    %v9616 = vrot.slane %v9614, 2
    %v9617 = vshll.u32 %v9499, 16
    %v9619 = vrot.slane %v9617, 3
    %v9620 = vor.u32 %v9616, %v9619
    %v9622 = vshrl.u32 %v9500, 16
    %v9624 = vrot.slane %v9622, 2
    %v9625 = vshll.u32 %v9500, 16
    %v9627 = vrot.slane %v9625, 3
    %v9628 = vor.u32 %v9624, %v9627
    %9633 = vmatprep.subr.bf16.mxu0 %v9594
    %9634 = vmatpush1.bf16.xpose.msra.mxu0 %v9593
    %9635 = vmatprep.subr.bf16.mxu0 %v9590
    %9636 = vmatpush1.bf16.xpose.msra.mxu0 %v9589
    %9637 = vmatprep.subr.bf16.mxu0 %v9586
    %9638 = vmatpush1.bf16.xpose.msra.mxu0 %v9585
    %9639 = vmatprep.subr.bf16.mxu0 %v9582
    %9640 = vmatpush1.bf16.xpose.msra.mxu0 %v9581
    %9641 = vmatprep.subr.bf16.mxu0 %v9578
    %9642 = vmatpush1.bf16.xpose.msra.mxu0 %v9577
    %9643 = vmatprep.subr.bf16.mxu0 %v9574
    %9644 = vmatpush1.bf16.xpose.msra.mxu0 %v9573
    %9645 = vmatprep.subr.bf16.mxu0 %v9570
    %9646 = vmatpush1.bf16.xpose.msra.mxu0 %v9569
    %9647 = vmatprep.subr.bf16.mxu0 %v9566
    %9648 = vmatpush1.bf16.xpose.msra.mxu0 %v9565
    %9649 = vmatprep.subr.bf16.mxu0 0
    %9650 = vmatpush2.bf16.xpose.msra.mxu0 0
    %9651 = vmatprep.subr.bf16.mxu0 0
    %9652 = vmatpush2.bf16.xpose.msra.mxu0 0
    %9653 = vmatprep.subr.bf16.mxu0 0
    %9654 = vmatpush2.bf16.xpose.msra.mxu0 0
    %9655 = vmatprep.subr.bf16.mxu0 0
    %9656 = vmatpush2.bf16.xpose.msra.mxu0 0
    %9657 = vmatprep.subr.bf16.mxu0 0
    %9658 = vmatpush2.bf16.xpose.msra.mxu0 0
    %9659 = vmatprep.subr.bf16.mxu0 0
    %9660 = vmatpush2.bf16.xpose.msra.mxu0 0
    %9661 = vmatprep.subr.bf16.mxu0 0
    %9662 = vmatpush2.bf16.xpose.msra.mxu0 0
    %9663 = vmatprep.subr.bf16.mxu0 0
    %9664 = vmatpush2.bf16.xpose.msra.mxu0 0
    %9665 = vmatprep.mubr.bf16.mxu0 %v9612
    %9666 = vmatmul.mubr.bf16.gmra.mxu0 %v9604
    %v9667 = vpop.f32.mrf.mxu0
    %v9668 = vadd.f32 0.0, %v9667
    %v9669 = vpop.f32.mrf.mxu0
    %v9670 = vpop.f32.mrf.mxu0
    %v9671 = vpop.f32.mrf.mxu0
    %9672 = vdwg.mxu0
    %9673 = vmatprep.subr.bf16.mxu0 %v9596
    %9674 = vmatpush1.bf16.xpose.msra.mxu0 %v9595
    %9675 = vmatprep.subr.bf16.mxu0 %v9592
    %9676 = vmatpush1.bf16.xpose.msra.mxu0 %v9591
    %9677 = vmatprep.subr.bf16.mxu0 %v9588
    %9678 = vmatpush1.bf16.xpose.msra.mxu0 %v9587
    %9679 = vmatprep.subr.bf16.mxu0 %v9584
    %9680 = vmatpush1.bf16.xpose.msra.mxu0 %v9583
    %9681 = vmatprep.subr.bf16.mxu0 %v9580
    %9682 = vmatpush1.bf16.xpose.msra.mxu0 %v9579
    %9683 = vmatprep.subr.bf16.mxu0 %v9576
    %9684 = vmatpush1.bf16.xpose.msra.mxu0 %v9575
    %9685 = vmatprep.subr.bf16.mxu0 %v9572
    %9686 = vmatpush1.bf16.xpose.msra.mxu0 %v9571
    %9687 = vmatprep.subr.bf16.mxu0 %v9568
    %9688 = vmatpush1.bf16.xpose.msra.mxu0 %v9567
    %9689 = vmatprep.subr.bf16.mxu0 0
    %9690 = vmatpush2.bf16.xpose.msra.mxu0 0
    %9691 = vmatprep.subr.bf16.mxu0 0
    %9692 = vmatpush2.bf16.xpose.msra.mxu0 0
    %9693 = vmatprep.subr.bf16.mxu0 0
    %9694 = vmatpush2.bf16.xpose.msra.mxu0 0
    %9695 = vmatprep.subr.bf16.mxu0 0
    %9696 = vmatpush2.bf16.xpose.msra.mxu0 0
    %9697 = vmatprep.subr.bf16.mxu0 0
    %9698 = vmatpush2.bf16.xpose.msra.mxu0 0
    %9699 = vmatprep.subr.bf16.mxu0 0
    %9700 = vmatpush2.bf16.xpose.msra.mxu0 0
    %9701 = vmatprep.subr.bf16.mxu0 0
    %9702 = vmatpush2.bf16.xpose.msra.mxu0 0
    %9703 = vmatprep.subr.bf16.mxu0 0
    %9704 = vmatpush2.bf16.xpose.msra.mxu0 0
    %9705 = vmatprep.mubr.bf16.mxu0 %v9628
    %9706 = vmatmul.mubr.bf16.gmra.mxu0 %v9620
    %v9707 = vpop.f32.mrf.mxu0
    %v9708 = vadd.f32 %v9668, %v9707
    %v9709 = vpop.f32.mrf.mxu0
    %v9710 = vpop.f32.mrf.mxu0
    %v9711 = vpop.f32.mrf.mxu0
    %9712 = vdwg.mxu0
    %v9713 = vstv %s7439
    %vm9714 = vcmp.lt.s32.totalorder %v3218, %v9713
    %s9715 = sadd.s32 %s7442, 6
    %v9716 = vstv %s9715
    %vm9717 = vcmp.lt.s32.totalorder %v3218, %v9716
    %vm9718 = vmand %vm5432, %vm9717
    %vm9719 = vmor %vm9714, %vm9718
    %v9720 = vsel %vm9719, %v9708, -1e+30
    %v9721 = vsel %vm5439, %v9720, -inf
    %9722 = vmax.xlane.f32.xlu0 %v9721
    %v9723 = vpop.xlane.xlu0 %9722
    %v9724 = vsub.f32 %v9720, %v9723
    %v9725 = vmul.f32 %v9724, 1.442695
    %v9726 = vpow.pop %v9725
    %v9727 = vsel %vm5439, %v9726, 0.0
    %9728 = vadd.xlane.f32.xlu0 %v9727
    %v9729 = vpop.xlane.xlu0 %9728
    %v9730 = vrcp.pop %v9729
    %v9731 = vmul.f32 %v9726, %v9730
    %v9732 = vpack.c.bf16 %v9731, %v9731
    %9733 = vmatprep.subr.bf16.mxu0 %v9594
    %9734 = vmatpush1.bf16.msra.mxu0 %v9593
    %9735 = vmatprep.subr.bf16.mxu0 %v9590
    %9736 = vmatpush1.bf16.msra.mxu0 %v9589
    %9737 = vmatprep.subr.bf16.mxu0 %v9586
    %9738 = vmatpush1.bf16.msra.mxu0 %v9585
    %9739 = vmatprep.subr.bf16.mxu0 %v9582
    %9740 = vmatpush1.bf16.msra.mxu0 %v9581
    %9741 = vmatprep.subr.bf16.mxu0 %v9578
    %9742 = vmatpush1.bf16.msra.mxu0 %v9577
    %9743 = vmatprep.subr.bf16.mxu0 %v9574
    %9744 = vmatpush1.bf16.msra.mxu0 %v9573
    %9745 = vmatprep.subr.bf16.mxu0 %v9570
    %9746 = vmatpush1.bf16.msra.mxu0 %v9569
    %9747 = vmatprep.subr.bf16.mxu0 %v9566
    %9748 = vmatpush1.bf16.msra.mxu0 %v9565
    %9749 = vmatprep.subr.bf16.mxu0 0
    %9750 = vmatpush2.bf16.msra.mxu0 0
    %9751 = vmatprep.subr.bf16.mxu0 0
    %9752 = vmatpush2.bf16.msra.mxu0 0
    %9753 = vmatprep.subr.bf16.mxu0 0
    %9754 = vmatpush2.bf16.msra.mxu0 0
    %9755 = vmatprep.subr.bf16.mxu0 0
    %9756 = vmatpush2.bf16.msra.mxu0 0
    %9757 = vmatprep.subr.bf16.mxu0 0
    %9758 = vmatpush2.bf16.msra.mxu0 0
    %9759 = vmatprep.subr.bf16.mxu0 0
    %9760 = vmatpush2.bf16.msra.mxu0 0
    %9761 = vmatprep.subr.bf16.mxu0 0
    %9762 = vmatpush2.bf16.msra.mxu0 0
    %9763 = vmatprep.subr.bf16.mxu0 0
    %9764 = vmatpush2.bf16.msra.mxu0 0
    %9765 = vmatprep.mubr.bf16.mxu0 0
    %9766 = vmatmul.mubr.bf16.gmra.mxu0 %v9732
    %v9767 = vpop.f32.mrf.mxu0
    %v9768 = vadd.f32 0.0, %v9767
    %v9769 = vpop.f32.mrf.mxu0
    %v9770 = vadd.f32 0.0, %v9769
    %v9771 = vpop.f32.mrf.mxu0
    %v9772 = vpop.f32.mrf.mxu0
    %9773 = vdwg.mxu0
    %9774 = vmatprep.subr.bf16.mxu0 %v9596
    %9775 = vmatpush1.bf16.msra.mxu0 %v9595
    %9776 = vmatprep.subr.bf16.mxu0 %v9592
    %9777 = vmatpush1.bf16.msra.mxu0 %v9591
    %9778 = vmatprep.subr.bf16.mxu0 %v9588
    %9779 = vmatpush1.bf16.msra.mxu0 %v9587
    %9780 = vmatprep.subr.bf16.mxu0 %v9584
    %9781 = vmatpush1.bf16.msra.mxu0 %v9583
    %9782 = vmatprep.subr.bf16.mxu0 %v9580
    %9783 = vmatpush1.bf16.msra.mxu0 %v9579
    %9784 = vmatprep.subr.bf16.mxu0 %v9576
    %9785 = vmatpush1.bf16.msra.mxu0 %v9575
    %9786 = vmatprep.subr.bf16.mxu0 %v9572
    %9787 = vmatpush1.bf16.msra.mxu0 %v9571
    %9788 = vmatprep.subr.bf16.mxu0 %v9568
    %9789 = vmatpush1.bf16.msra.mxu0 %v9567
    %9790 = vmatprep.subr.bf16.mxu0 0
    %9791 = vmatpush2.bf16.msra.mxu0 0
    %9792 = vmatprep.subr.bf16.mxu0 0
    %9793 = vmatpush2.bf16.msra.mxu0 0
    %9794 = vmatprep.subr.bf16.mxu0 0
    %9795 = vmatpush2.bf16.msra.mxu0 0
    %9796 = vmatprep.subr.bf16.mxu0 0
    %9797 = vmatpush2.bf16.msra.mxu0 0
    %9798 = vmatprep.subr.bf16.mxu0 0
    %9799 = vmatpush2.bf16.msra.mxu0 0
    %9800 = vmatprep.subr.bf16.mxu0 0
    %9801 = vmatpush2.bf16.msra.mxu0 0
    %9802 = vmatprep.subr.bf16.mxu0 0
    %9803 = vmatpush2.bf16.msra.mxu0 0
    %9804 = vmatprep.subr.bf16.mxu0 0
    %9805 = vmatpush2.bf16.msra.mxu0 0
    %9806 = vmatprep.mubr.bf16.mxu0 0
    %9807 = vmatmul.mubr.bf16.gmra.mxu0 %v9732
    %v9808 = vpop.f32.mrf.mxu0
    %v9809 = vadd.f32 0.0, %v9808
    %v9810 = vpop.f32.mrf.mxu0
    %v9811 = vadd.f32 0.0, %v9810
    %v9812 = vpop.f32.mrf.mxu0
    %v9813 = vpop.f32.mrf.mxu0
    %9814 = vdwg.mxu0
    %v9815 = vld [vmem:[#allocation13] sm:$0xff]
    %v9816 = vld [vmem:[#allocation13 + $0x8] sm:$0xff]
    %v9817 = vld [vmem:[#allocation13 + $0x10] sm:$0xff]
    %v9818 = vld [vmem:[#allocation13 + $0x18] sm:$0xff]
    %v9819 = vld [vmem:[#allocation13 + $0x20] sm:$0xff]
    %v9820 = vld [vmem:[#allocation13 + $0x28] sm:$0xff]
    %v9821 = vld [vmem:[#allocation13 + $0x30] sm:$0xff]
    %v9822 = vld [vmem:[#allocation13 + $0x38] sm:$0xff]
    %v9823 = vld [vmem:[#allocation13 + $0x40] sm:$0xff]
    %v9824 = vld [vmem:[#allocation13 + $0x48] sm:$0xff]
    %v9825 = vld [vmem:[#allocation13 + $0x50] sm:$0xff]
    %v9826 = vld [vmem:[#allocation13 + $0x58] sm:$0xff]
    %v9827 = vld [vmem:[#allocation13 + $0x60] sm:$0xff]
    %v9828 = vld [vmem:[#allocation13 + $0x68] sm:$0xff]
    %v9829 = vld [vmem:[#allocation13 + $0x70] sm:$0xff]
    %v9830 = vld [vmem:[#allocation13 + $0x78] sm:$0xff]
    %v9831 = vld [vmem:[#allocation13 + $0x80] sm:$0xff]
    %v9832 = vld [vmem:[#allocation13 + $0x88] sm:$0xff]
    %v9833 = vld [vmem:[#allocation13 + $0x90] sm:$0xff]
    %v9834 = vld [vmem:[#allocation13 + $0x98] sm:$0xff]
    %v9835 = vld [vmem:[#allocation13 + $0xa0] sm:$0xff]
    %v9836 = vld [vmem:[#allocation13 + $0xa8] sm:$0xff]
    %v9837 = vld [vmem:[#allocation13 + $0xb0] sm:$0xff]
    %v9838 = vld [vmem:[#allocation13 + $0xb8] sm:$0xff]
    %v9839 = vld [vmem:[#allocation13 + $0xc0] sm:$0xff]
    %v9840 = vld [vmem:[#allocation13 + $0xc8] sm:$0xff]
    %v9841 = vld [vmem:[#allocation13 + $0xd0] sm:$0xff]
    %v9842 = vld [vmem:[#allocation13 + $0xd8] sm:$0xff]
    %v9843 = vld [vmem:[#allocation13 + $0xe0] sm:$0xff]
    %v9844 = vld [vmem:[#allocation13 + $0xe8] sm:$0xff]
    %v9845 = vld [vmem:[#allocation13 + $0xf0] sm:$0xff]
    %v9846 = vld [vmem:[#allocation13 + $0xf8] sm:$0xff]
    %v9847 = vld [vmem:[#allocation13 + $0x100] sm:$0xff]
    %v9848 = vld [vmem:[#allocation13 + $0x108] sm:$0xff]
    %v9849 = vld [vmem:[#allocation13 + $0x110] sm:$0xff]
    %v9850 = vld [vmem:[#allocation13 + $0x118] sm:$0xff]
    %v9851 = vld [vmem:[#allocation13 + $0x120] sm:$0xff]
    %v9852 = vld [vmem:[#allocation13 + $0x128] sm:$0xff]
    %v9853 = vld [vmem:[#allocation13 + $0x130] sm:$0xff]
    %v9854 = vld [vmem:[#allocation13 + $0x138] sm:$0xff]
    %v9855 = vld [vmem:[#allocation13 + $0x140] sm:$0xff]
    %v9856 = vld [vmem:[#allocation13 + $0x148] sm:$0xff]
    %v9857 = vld [vmem:[#allocation13 + $0x150] sm:$0xff]
    %v9858 = vld [vmem:[#allocation13 + $0x158] sm:$0xff]
    %v9859 = vld [vmem:[#allocation13 + $0x160] sm:$0xff]
    %v9860 = vld [vmem:[#allocation13 + $0x168] sm:$0xff]
    %v9861 = vld [vmem:[#allocation13 + $0x170] sm:$0xff]
    %v9862 = vld [vmem:[#allocation13 + $0x178] sm:$0xff]
    %v9863 = vld [vmem:[#allocation13 + $0x180] sm:$0xff]
    %v9864 = vld [vmem:[#allocation13 + $0x188] sm:$0xff]
    %v9865 = vld [vmem:[#allocation13 + $0x190] sm:$0xff]
    %v9866 = vld [vmem:[#allocation13 + $0x198] sm:$0xff]
    %v9867 = vld [vmem:[#allocation13 + $0x1a0] sm:$0xff]
    %v9868 = vld [vmem:[#allocation13 + $0x1a8] sm:$0xff]
    %v9869 = vld [vmem:[#allocation13 + $0x1b0] sm:$0xff]
    %v9870 = vld [vmem:[#allocation13 + $0x1b8] sm:$0xff]
    %v9871 = vld [vmem:[#allocation13 + $0x1c0] sm:$0xff]
    %v9872 = vld [vmem:[#allocation13 + $0x1c8] sm:$0xff]
    %v9873 = vld [vmem:[#allocation13 + $0x1d0] sm:$0xff]
    %v9874 = vld [vmem:[#allocation13 + $0x1d8] sm:$0xff]
    %v9875 = vld [vmem:[#allocation13 + $0x1e0] sm:$0xff]
    %v9876 = vld [vmem:[#allocation13 + $0x1e8] sm:$0xff]
    %v9877 = vld [vmem:[#allocation13 + $0x1f0] sm:$0xff]
    %v9878 = vld [vmem:[#allocation13 + $0x1f8] sm:$0xff]
    %v9879 = vld [vmem:[#allocation13 + $0x200] sm:$0xff]
    %v9880 = vld [vmem:[#allocation13 + $0x208] sm:$0xff]
    %v9881 = vld [vmem:[#allocation13 + $0x210] sm:$0xff]
    %v9882 = vld [vmem:[#allocation13 + $0x218] sm:$0xff]
    %v9883 = vld [vmem:[#allocation13 + $0x220] sm:$0xff]
    %v9884 = vld [vmem:[#allocation13 + $0x228] sm:$0xff]
    %v9885 = vld [vmem:[#allocation13 + $0x230] sm:$0xff]
    %v9886 = vld [vmem:[#allocation13 + $0x238] sm:$0xff]
    %v9887 = vld [vmem:[#allocation13 + $0x240] sm:$0xff]
    %v9888 = vld [vmem:[#allocation13 + $0x248] sm:$0xff]
    %v9889 = vld [vmem:[#allocation13 + $0x250] sm:$0xff]
    %v9890 = vld [vmem:[#allocation13 + $0x258] sm:$0xff]
    %v9891 = vld [vmem:[#allocation13 + $0x260] sm:$0xff]
    %v9892 = vld [vmem:[#allocation13 + $0x268] sm:$0xff]
    %v9893 = vld [vmem:[#allocation13 + $0x270] sm:$0xff]
    %v9894 = vld [vmem:[#allocation13 + $0x278] sm:$0xff]
    %v9895 = vld [vmem:[#allocation13 + $0x280] sm:$0xff]
    %v9896 = vld [vmem:[#allocation13 + $0x288] sm:$0xff]
    %v9897 = vld [vmem:[#allocation13 + $0x290] sm:$0xff]
    %v9898 = vld [vmem:[#allocation13 + $0x298] sm:$0xff]
    %v9899 = vld [vmem:[#allocation13 + $0x2a0] sm:$0xff]
    %v9900 = vld [vmem:[#allocation13 + $0x2a8] sm:$0xff]
    %v9901 = vld [vmem:[#allocation13 + $0x2b0] sm:$0xff]
    %v9902 = vld [vmem:[#allocation13 + $0x2b8] sm:$0xff]
    %v9903 = vld [vmem:[#allocation13 + $0x2c0] sm:$0xff]
    %v9904 = vld [vmem:[#allocation13 + $0x2c8] sm:$0xff]
    %v9905 = vld [vmem:[#allocation13 + $0x2d0] sm:$0xff]
    %v9906 = vld [vmem:[#allocation13 + $0x2d8] sm:$0xff]
    %v9907 = vld [vmem:[#allocation13 + $0x2e0] sm:$0xff]
    %v9908 = vld [vmem:[#allocation13 + $0x2e8] sm:$0xff]
    %v9909 = vld [vmem:[#allocation13 + $0x2f0] sm:$0xff]
    %v9910 = vld [vmem:[#allocation13 + $0x2f8] sm:$0xff]
    %v9911 = vld [vmem:[#allocation13 + $0x300] sm:$0xff]
    %v9912 = vld [vmem:[#allocation13 + $0x308] sm:$0xff]
    %v9913 = vld [vmem:[#allocation13 + $0x310] sm:$0xff]
    %v9914 = vld [vmem:[#allocation13 + $0x318] sm:$0xff]
    %v9915 = vld [vmem:[#allocation13 + $0x320] sm:$0xff]
    %v9916 = vld [vmem:[#allocation13 + $0x328] sm:$0xff]
    %v9917 = vld [vmem:[#allocation13 + $0x330] sm:$0xff]
    %v9918 = vld [vmem:[#allocation13 + $0x338] sm:$0xff]
    %v9919 = vld [vmem:[#allocation13 + $0x340] sm:$0xff]
    %v9920 = vld [vmem:[#allocation13 + $0x348] sm:$0xff]
    %v9921 = vld [vmem:[#allocation13 + $0x350] sm:$0xff]
    %v9922 = vld [vmem:[#allocation13 + $0x358] sm:$0xff]
    %v9923 = vld [vmem:[#allocation13 + $0x360] sm:$0xff]
    %v9924 = vld [vmem:[#allocation13 + $0x368] sm:$0xff]
    %v9925 = vld [vmem:[#allocation13 + $0x370] sm:$0xff]
    %v9926 = vld [vmem:[#allocation13 + $0x378] sm:$0xff]
    %v9927 = vld [vmem:[#allocation13 + $0x380] sm:$0xff]
    %v9928 = vld [vmem:[#allocation13 + $0x388] sm:$0xff]
    %v9929 = vld [vmem:[#allocation13 + $0x390] sm:$0xff]
    %v9930 = vld [vmem:[#allocation13 + $0x398] sm:$0xff]
    %v9931 = vld [vmem:[#allocation13 + $0x3a0] sm:$0xff]
    %v9932 = vld [vmem:[#allocation13 + $0x3a8] sm:$0xff]
    %v9933 = vld [vmem:[#allocation13 + $0x3b0] sm:$0xff]
    %v9934 = vld [vmem:[#allocation13 + $0x3b8] sm:$0xff]
    %v9935 = vld [vmem:[#allocation13 + $0x3c0] sm:$0xff]
    %v9936 = vld [vmem:[#allocation13 + $0x3c8] sm:$0xff]
    %v9937 = vld [vmem:[#allocation13 + $0x3d0] sm:$0xff]
    %v9938 = vld [vmem:[#allocation13 + $0x3d8] sm:$0xff]
    %v9939 = vld [vmem:[#allocation13 + $0x3e0] sm:$0xff]
    %v9940 = vld [vmem:[#allocation13 + $0x3e8] sm:$0xff]
    %v9941 = vld [vmem:[#allocation13 + $0x3f0] sm:$0xff]
    %v9942 = vld [vmem:[#allocation13 + $0x3f8] sm:$0xff]
    %v9943 = vpack.c.bf16 %v9768, %v9768
    %v9944 = vpack.c.bf16 %v9770, %v9770
    %v9945 = vpack.c.bf16 %v9809, %v9809
    %v9946 = vpack.c.bf16 %v9811, %v9811
    %v9947 = vld [vmem:[#allocation13 + $0x400] sm:$0xff]
    %v9948 = vld [vmem:[#allocation13 + $0x408] sm:$0xff]
    %v9949 = vld [vmem:[#allocation13 + $0x410] sm:$0xff]
    %v9950 = vld [vmem:[#allocation13 + $0x418] sm:$0xff]
    %v9951 = vld [vmem:[#allocation13 + $0x420] sm:$0xff]
    %v9952 = vld [vmem:[#allocation13 + $0x428] sm:$0xff]
    %v9953 = vld [vmem:[#allocation13 + $0x430] sm:$0xff]
    %v9954 = vld [vmem:[#allocation13 + $0x438] sm:$0xff]
    %v9955 = vld [vmem:[#allocation13 + $0x440] sm:$0xff]
    %v9956 = vld [vmem:[#allocation13 + $0x448] sm:$0xff]
    %v9957 = vld [vmem:[#allocation13 + $0x450] sm:$0xff]
    %v9958 = vld [vmem:[#allocation13 + $0x458] sm:$0xff]
    %v9959 = vld [vmem:[#allocation13 + $0x460] sm:$0xff]
    %v9960 = vld [vmem:[#allocation13 + $0x468] sm:$0xff]
    %v9961 = vld [vmem:[#allocation13 + $0x470] sm:$0xff]
    %v9962 = vld [vmem:[#allocation13 + $0x478] sm:$0xff]
    %v9963 = vld [vmem:[#allocation13 + $0x480] sm:$0xff]
    %v9964 = vld [vmem:[#allocation13 + $0x488] sm:$0xff]
    %v9965 = vld [vmem:[#allocation13 + $0x490] sm:$0xff]
    %v9966 = vld [vmem:[#allocation13 + $0x498] sm:$0xff]
    %v9967 = vld [vmem:[#allocation13 + $0x4a0] sm:$0xff]
    %v9968 = vld [vmem:[#allocation13 + $0x4a8] sm:$0xff]
    %v9969 = vld [vmem:[#allocation13 + $0x4b0] sm:$0xff]
    %v9970 = vld [vmem:[#allocation13 + $0x4b8] sm:$0xff]
    %v9971 = vld [vmem:[#allocation13 + $0x4c0] sm:$0xff]
    %v9972 = vld [vmem:[#allocation13 + $0x4c8] sm:$0xff]
    %v9973 = vld [vmem:[#allocation13 + $0x4d0] sm:$0xff]
    %v9974 = vld [vmem:[#allocation13 + $0x4d8] sm:$0xff]
    %v9975 = vld [vmem:[#allocation13 + $0x4e0] sm:$0xff]
    %v9976 = vld [vmem:[#allocation13 + $0x4e8] sm:$0xff]
    %v9977 = vld [vmem:[#allocation13 + $0x4f0] sm:$0xff]
    %v9978 = vld [vmem:[#allocation13 + $0x4f8] sm:$0xff]
    %v9979 = vld [vmem:[#allocation13 + $0x500] sm:$0xff]
    %v9980 = vld [vmem:[#allocation13 + $0x508] sm:$0xff]
    %v9981 = vld [vmem:[#allocation13 + $0x510] sm:$0xff]
    %v9982 = vld [vmem:[#allocation13 + $0x518] sm:$0xff]
    %v9983 = vld [vmem:[#allocation13 + $0x520] sm:$0xff]
    %v9984 = vld [vmem:[#allocation13 + $0x528] sm:$0xff]
    %v9985 = vld [vmem:[#allocation13 + $0x530] sm:$0xff]
    %v9986 = vld [vmem:[#allocation13 + $0x538] sm:$0xff]
    %v9987 = vld [vmem:[#allocation13 + $0x540] sm:$0xff]
    %v9988 = vld [vmem:[#allocation13 + $0x548] sm:$0xff]
    %v9989 = vld [vmem:[#allocation13 + $0x550] sm:$0xff]
    %v9990 = vld [vmem:[#allocation13 + $0x558] sm:$0xff]
    %v9991 = vld [vmem:[#allocation13 + $0x560] sm:$0xff]
    %v9992 = vld [vmem:[#allocation13 + $0x568] sm:$0xff]
    %v9993 = vld [vmem:[#allocation13 + $0x570] sm:$0xff]
    %v9994 = vld [vmem:[#allocation13 + $0x578] sm:$0xff]
    %v9995 = vld [vmem:[#allocation13 + $0x580] sm:$0xff]
    %v9996 = vld [vmem:[#allocation13 + $0x588] sm:$0xff]
    %v9997 = vld [vmem:[#allocation13 + $0x590] sm:$0xff]
    %v9998 = vld [vmem:[#allocation13 + $0x598] sm:$0xff]
    %v9999 = vld [vmem:[#allocation13 + $0x5a0] sm:$0xff]
    %v10000 = vld [vmem:[#allocation13 + $0x5a8] sm:$0xff]
    %v10001 = vld [vmem:[#allocation13 + $0x5b0] sm:$0xff]
    %v10002 = vld [vmem:[#allocation13 + $0x5b8] sm:$0xff]
    %v10003 = vld [vmem:[#allocation13 + $0x5c0] sm:$0xff]
    %v10004 = vld [vmem:[#allocation13 + $0x5c8] sm:$0xff]
    %v10005 = vld [vmem:[#allocation13 + $0x5d0] sm:$0xff]
    %v10006 = vld [vmem:[#allocation13 + $0x5d8] sm:$0xff]
    %v10007 = vld [vmem:[#allocation13 + $0x5e0] sm:$0xff]
    %v10008 = vld [vmem:[#allocation13 + $0x5e8] sm:$0xff]
    %v10009 = vld [vmem:[#allocation13 + $0x5f0] sm:$0xff]
    %v10010 = vld [vmem:[#allocation13 + $0x5f8] sm:$0xff]
    %v10011 = vld [vmem:[#allocation13 + $0x600] sm:$0xff]
    %v10012 = vld [vmem:[#allocation13 + $0x608] sm:$0xff]
    %v10013 = vld [vmem:[#allocation13 + $0x610] sm:$0xff]
    %v10014 = vld [vmem:[#allocation13 + $0x618] sm:$0xff]
    %v10015 = vld [vmem:[#allocation13 + $0x620] sm:$0xff]
    %v10016 = vld [vmem:[#allocation13 + $0x628] sm:$0xff]
    %v10017 = vld [vmem:[#allocation13 + $0x630] sm:$0xff]
    %v10018 = vld [vmem:[#allocation13 + $0x638] sm:$0xff]
    %v10019 = vld [vmem:[#allocation13 + $0x640] sm:$0xff]
    %v10020 = vld [vmem:[#allocation13 + $0x648] sm:$0xff]
    %v10021 = vld [vmem:[#allocation13 + $0x650] sm:$0xff]
    %v10022 = vld [vmem:[#allocation13 + $0x658] sm:$0xff]
    %v10023 = vld [vmem:[#allocation13 + $0x660] sm:$0xff]
    %v10024 = vld [vmem:[#allocation13 + $0x668] sm:$0xff]
    %v10025 = vld [vmem:[#allocation13 + $0x670] sm:$0xff]
    %v10026 = vld [vmem:[#allocation13 + $0x678] sm:$0xff]
    %v10027 = vld [vmem:[#allocation13 + $0x680] sm:$0xff]
    %v10028 = vld [vmem:[#allocation13 + $0x688] sm:$0xff]
    %v10029 = vld [vmem:[#allocation13 + $0x690] sm:$0xff]
    %v10030 = vld [vmem:[#allocation13 + $0x698] sm:$0xff]
    %v10031 = vld [vmem:[#allocation13 + $0x6a0] sm:$0xff]
    %v10032 = vld [vmem:[#allocation13 + $0x6a8] sm:$0xff]
    %v10033 = vld [vmem:[#allocation13 + $0x6b0] sm:$0xff]
    %v10034 = vld [vmem:[#allocation13 + $0x6b8] sm:$0xff]
    %v10035 = vld [vmem:[#allocation13 + $0x6c0] sm:$0xff]
    %v10036 = vld [vmem:[#allocation13 + $0x6c8] sm:$0xff]
    %v10037 = vld [vmem:[#allocation13 + $0x6d0] sm:$0xff]
    %v10038 = vld [vmem:[#allocation13 + $0x6d8] sm:$0xff]
    %v10039 = vld [vmem:[#allocation13 + $0x6e0] sm:$0xff]
    %v10040 = vld [vmem:[#allocation13 + $0x6e8] sm:$0xff]
    %v10041 = vld [vmem:[#allocation13 + $0x6f0] sm:$0xff]
    %v10042 = vld [vmem:[#allocation13 + $0x6f8] sm:$0xff]
    %v10043 = vld [vmem:[#allocation13 + $0x700] sm:$0xff]
    %v10044 = vld [vmem:[#allocation13 + $0x708] sm:$0xff]
    %v10045 = vld [vmem:[#allocation13 + $0x710] sm:$0xff]
    %v10046 = vld [vmem:[#allocation13 + $0x718] sm:$0xff]
    %v10047 = vld [vmem:[#allocation13 + $0x720] sm:$0xff]
    %v10048 = vld [vmem:[#allocation13 + $0x728] sm:$0xff]
    %v10049 = vld [vmem:[#allocation13 + $0x730] sm:$0xff]
    %v10050 = vld [vmem:[#allocation13 + $0x738] sm:$0xff]
    %v10051 = vld [vmem:[#allocation13 + $0x740] sm:$0xff]
    %v10052 = vld [vmem:[#allocation13 + $0x748] sm:$0xff]
    %v10053 = vld [vmem:[#allocation13 + $0x750] sm:$0xff]
    %v10054 = vld [vmem:[#allocation13 + $0x758] sm:$0xff]
    %v10055 = vld [vmem:[#allocation13 + $0x760] sm:$0xff]
    %v10056 = vld [vmem:[#allocation13 + $0x768] sm:$0xff]
    %v10057 = vld [vmem:[#allocation13 + $0x770] sm:$0xff]
    %v10058 = vld [vmem:[#allocation13 + $0x778] sm:$0xff]
    %v10059 = vld [vmem:[#allocation13 + $0x780] sm:$0xff]
    %v10060 = vld [vmem:[#allocation13 + $0x788] sm:$0xff]
    %v10061 = vld [vmem:[#allocation13 + $0x790] sm:$0xff]
    %v10062 = vld [vmem:[#allocation13 + $0x798] sm:$0xff]
    %v10063 = vld [vmem:[#allocation13 + $0x7a0] sm:$0xff]
    %v10064 = vld [vmem:[#allocation13 + $0x7a8] sm:$0xff]
    %v10065 = vld [vmem:[#allocation13 + $0x7b0] sm:$0xff]
    %v10066 = vld [vmem:[#allocation13 + $0x7b8] sm:$0xff]
    %v10067 = vld [vmem:[#allocation13 + $0x7c0] sm:$0xff]
    %v10068 = vld [vmem:[#allocation13 + $0x7c8] sm:$0xff]
    %v10069 = vld [vmem:[#allocation13 + $0x7d0] sm:$0xff]
    %v10070 = vld [vmem:[#allocation13 + $0x7d8] sm:$0xff]
    %v10071 = vld [vmem:[#allocation13 + $0x7e0] sm:$0xff]
    %v10072 = vld [vmem:[#allocation13 + $0x7e8] sm:$0xff]
    %v10073 = vld [vmem:[#allocation13 + $0x7f0] sm:$0xff]
    %v10074 = vld [vmem:[#allocation13 + $0x7f8] sm:$0xff]
    %v10203 = vunpack.c.l.b16 %v9947
    %v10204 = vunpack.c.h.b16 %v9947
    %v10205 = vunpack.c.l.b16 %v9948
    %v10206 = vunpack.c.h.b16 %v9948
    %v10207 = vunpack.c.l.b16 %v9949
    %v10208 = vunpack.c.h.b16 %v9949
    %v10209 = vunpack.c.l.b16 %v9950
    %v10210 = vunpack.c.h.b16 %v9950
    %v10211 = vunpack.c.l.b16 %v9951
    %v10212 = vunpack.c.h.b16 %v9951
    %v10213 = vunpack.c.l.b16 %v9952
    %v10214 = vunpack.c.h.b16 %v9952
    %v10215 = vunpack.c.l.b16 %v9953
    %v10216 = vunpack.c.h.b16 %v9953
    %v10217 = vunpack.c.l.b16 %v9954
    %v10218 = vunpack.c.h.b16 %v9954
    %v10219 = vunpack.c.l.b16 %v9955
    %v10220 = vunpack.c.h.b16 %v9955
    %v10221 = vunpack.c.l.b16 %v9956
    %v10222 = vunpack.c.h.b16 %v9956
    %v10223 = vunpack.c.l.b16 %v9957
    %v10224 = vunpack.c.h.b16 %v9957
    %v10225 = vunpack.c.l.b16 %v9958
    %v10226 = vunpack.c.h.b16 %v9958
    %v10227 = vunpack.c.l.b16 %v9959
    %v10228 = vunpack.c.h.b16 %v9959
    %v10229 = vunpack.c.l.b16 %v9960
    %v10230 = vunpack.c.h.b16 %v9960
    %v10231 = vunpack.c.l.b16 %v9961
    %v10232 = vunpack.c.h.b16 %v9961
    %v10233 = vunpack.c.l.b16 %v9962
    %v10234 = vunpack.c.h.b16 %v9962
    %v10235 = vunpack.c.l.b16 %v9963
    %v10236 = vunpack.c.h.b16 %v9963
    %v10237 = vunpack.c.l.b16 %v9964
    %v10238 = vunpack.c.h.b16 %v9964
    %v10239 = vunpack.c.l.b16 %v9965
    %v10240 = vunpack.c.h.b16 %v9965
    %v10241 = vunpack.c.l.b16 %v9966
    %v10242 = vunpack.c.h.b16 %v9966
    %v10243 = vunpack.c.l.b16 %v9967
    %v10244 = vunpack.c.h.b16 %v9967
    %v10245 = vunpack.c.l.b16 %v9968
    %v10246 = vunpack.c.h.b16 %v9968
    %v10247 = vunpack.c.l.b16 %v9969
    %v10248 = vunpack.c.h.b16 %v9969
    %v10249 = vunpack.c.l.b16 %v9970
    %v10250 = vunpack.c.h.b16 %v9970
    %v10251 = vunpack.c.l.b16 %v9971
    %v10252 = vunpack.c.h.b16 %v9971
    %v10253 = vunpack.c.l.b16 %v9972
    %v10254 = vunpack.c.h.b16 %v9972
    %v10255 = vunpack.c.l.b16 %v9973
    %v10256 = vunpack.c.h.b16 %v9973
    %v10257 = vunpack.c.l.b16 %v9974
    %v10258 = vunpack.c.h.b16 %v9974
    %v10259 = vunpack.c.l.b16 %v9975
    %v10260 = vunpack.c.h.b16 %v9975
    %v10261 = vunpack.c.l.b16 %v9976
    %v10262 = vunpack.c.h.b16 %v9976
    %v10263 = vunpack.c.l.b16 %v9977
    %v10264 = vunpack.c.h.b16 %v9977
    %v10265 = vunpack.c.l.b16 %v9978
    %v10266 = vunpack.c.h.b16 %v9978
    %v10267 = vunpack.c.l.b16 %v9979
    %v10268 = vunpack.c.h.b16 %v9979
    %v10269 = vunpack.c.l.b16 %v9980
    %v10270 = vunpack.c.h.b16 %v9980
    %v10271 = vunpack.c.l.b16 %v9981
    %v10272 = vunpack.c.h.b16 %v9981
    %v10273 = vunpack.c.l.b16 %v9982
    %v10274 = vunpack.c.h.b16 %v9982
    %v10275 = vunpack.c.l.b16 %v9983
    %v10276 = vunpack.c.h.b16 %v9983
    %v10277 = vunpack.c.l.b16 %v9984
    %v10278 = vunpack.c.h.b16 %v9984
    %v10279 = vunpack.c.l.b16 %v9985
    %v10280 = vunpack.c.h.b16 %v9985
    %v10281 = vunpack.c.l.b16 %v9986
    %v10282 = vunpack.c.h.b16 %v9986
    %v10283 = vunpack.c.l.b16 %v9987
    %v10284 = vunpack.c.h.b16 %v9987
    %v10285 = vunpack.c.l.b16 %v9988
    %v10286 = vunpack.c.h.b16 %v9988
    %v10287 = vunpack.c.l.b16 %v9989
    %v10288 = vunpack.c.h.b16 %v9989
    %v10289 = vunpack.c.l.b16 %v9990
    %v10290 = vunpack.c.h.b16 %v9990
    %v10291 = vunpack.c.l.b16 %v9991
    %v10292 = vunpack.c.h.b16 %v9991
    %v10293 = vunpack.c.l.b16 %v9992
    %v10294 = vunpack.c.h.b16 %v9992
    %v10295 = vunpack.c.l.b16 %v9993
    %v10296 = vunpack.c.h.b16 %v9993
    %v10297 = vunpack.c.l.b16 %v9994
    %v10298 = vunpack.c.h.b16 %v9994
    %v10299 = vunpack.c.l.b16 %v9995
    %v10300 = vunpack.c.h.b16 %v9995
    %v10301 = vunpack.c.l.b16 %v9996
    %v10302 = vunpack.c.h.b16 %v9996
    %v10303 = vunpack.c.l.b16 %v9997
    %v10304 = vunpack.c.h.b16 %v9997
    %v10305 = vunpack.c.l.b16 %v9998
    %v10306 = vunpack.c.h.b16 %v9998
    %v10307 = vunpack.c.l.b16 %v9999
    %v10308 = vunpack.c.h.b16 %v9999
    %v10309 = vunpack.c.l.b16 %v10000
    %v10310 = vunpack.c.h.b16 %v10000
    %v10311 = vunpack.c.l.b16 %v10001
    %v10312 = vunpack.c.h.b16 %v10001
    %v10313 = vunpack.c.l.b16 %v10002
    %v10314 = vunpack.c.h.b16 %v10002
    %v10315 = vunpack.c.l.b16 %v10003
    %v10316 = vunpack.c.h.b16 %v10003
    %v10317 = vunpack.c.l.b16 %v10004
    %v10318 = vunpack.c.h.b16 %v10004
    %v10319 = vunpack.c.l.b16 %v10005
    %v10320 = vunpack.c.h.b16 %v10005
    %v10321 = vunpack.c.l.b16 %v10006
    %v10322 = vunpack.c.h.b16 %v10006
    %v10323 = vunpack.c.l.b16 %v10007
    %v10324 = vunpack.c.h.b16 %v10007
    %v10325 = vunpack.c.l.b16 %v10008
    %v10326 = vunpack.c.h.b16 %v10008
    %v10327 = vunpack.c.l.b16 %v10009
    %v10328 = vunpack.c.h.b16 %v10009
    %v10329 = vunpack.c.l.b16 %v10010
    %v10330 = vunpack.c.h.b16 %v10010
    %v10331 = vunpack.c.l.b16 %v10011
    %v10332 = vunpack.c.h.b16 %v10011
    %v10333 = vunpack.c.l.b16 %v10012
    %v10334 = vunpack.c.h.b16 %v10012
    %v10335 = vunpack.c.l.b16 %v10013
    %v10336 = vunpack.c.h.b16 %v10013
    %v10337 = vunpack.c.l.b16 %v10014
    %v10338 = vunpack.c.h.b16 %v10014
    %v10339 = vunpack.c.l.b16 %v10015
    %v10340 = vunpack.c.h.b16 %v10015
    %v10341 = vunpack.c.l.b16 %v10016
    %v10342 = vunpack.c.h.b16 %v10016
    %v10343 = vunpack.c.l.b16 %v10017
    %v10344 = vunpack.c.h.b16 %v10017
    %v10345 = vunpack.c.l.b16 %v10018
    %v10346 = vunpack.c.h.b16 %v10018
    %v10347 = vunpack.c.l.b16 %v10019
    %v10348 = vunpack.c.h.b16 %v10019
    %v10349 = vunpack.c.l.b16 %v10020
    %v10350 = vunpack.c.h.b16 %v10020
    %v10351 = vunpack.c.l.b16 %v10021
    %v10352 = vunpack.c.h.b16 %v10021
    %v10353 = vunpack.c.l.b16 %v10022
    %v10354 = vunpack.c.h.b16 %v10022
    %v10355 = vunpack.c.l.b16 %v10023
    %v10356 = vunpack.c.h.b16 %v10023
    %v10357 = vunpack.c.l.b16 %v10024
    %v10358 = vunpack.c.h.b16 %v10024
    %v10359 = vunpack.c.l.b16 %v10025
    %v10360 = vunpack.c.h.b16 %v10025
    %v10361 = vunpack.c.l.b16 %v10026
    %v10362 = vunpack.c.h.b16 %v10026
    %v10363 = vunpack.c.l.b16 %v10027
    %v10364 = vunpack.c.h.b16 %v10027
    %v10365 = vunpack.c.l.b16 %v10028
    %v10366 = vunpack.c.h.b16 %v10028
    %v10367 = vunpack.c.l.b16 %v10029
    %v10368 = vunpack.c.h.b16 %v10029
    %v10369 = vunpack.c.l.b16 %v10030
    %v10370 = vunpack.c.h.b16 %v10030
    %v10371 = vunpack.c.l.b16 %v10031
    %v10372 = vunpack.c.h.b16 %v10031
    %v10373 = vunpack.c.l.b16 %v10032
    %v10374 = vunpack.c.h.b16 %v10032
    %v10375 = vunpack.c.l.b16 %v10033
    %v10376 = vunpack.c.h.b16 %v10033
    %v10377 = vunpack.c.l.b16 %v10034
    %v10378 = vunpack.c.h.b16 %v10034
    %v10379 = vunpack.c.l.b16 %v10035
    %v10380 = vunpack.c.h.b16 %v10035
    %v10381 = vunpack.c.l.b16 %v10036
    %v10382 = vunpack.c.h.b16 %v10036
    %v10383 = vunpack.c.l.b16 %v10037
    %v10384 = vunpack.c.h.b16 %v10037
    %v10385 = vunpack.c.l.b16 %v10038
    %v10386 = vunpack.c.h.b16 %v10038
    %v10387 = vunpack.c.l.b16 %v10039
    %v10388 = vunpack.c.h.b16 %v10039
    %v10389 = vunpack.c.l.b16 %v10040
    %v10390 = vunpack.c.h.b16 %v10040
    %v10391 = vunpack.c.l.b16 %v10041
    %v10392 = vunpack.c.h.b16 %v10041
    %v10393 = vunpack.c.l.b16 %v10042
    %v10394 = vunpack.c.h.b16 %v10042
    %v10395 = vunpack.c.l.b16 %v10043
    %v10396 = vunpack.c.h.b16 %v10043
    %v10397 = vunpack.c.l.b16 %v10044
    %v10398 = vunpack.c.h.b16 %v10044
    %v10399 = vunpack.c.l.b16 %v10045
    %v10400 = vunpack.c.h.b16 %v10045
    %v10401 = vunpack.c.l.b16 %v10046
    %v10402 = vunpack.c.h.b16 %v10046
    %v10403 = vunpack.c.l.b16 %v10047
    %v10404 = vunpack.c.h.b16 %v10047
    %v10405 = vunpack.c.l.b16 %v10048
    %v10406 = vunpack.c.h.b16 %v10048
    %v10407 = vunpack.c.l.b16 %v10049
    %v10408 = vunpack.c.h.b16 %v10049
    %v10409 = vunpack.c.l.b16 %v10050
    %v10410 = vunpack.c.h.b16 %v10050
    %v10411 = vunpack.c.l.b16 %v10051
    %v10412 = vunpack.c.h.b16 %v10051
    %v10413 = vunpack.c.l.b16 %v10052
    %v10414 = vunpack.c.h.b16 %v10052
    %v10415 = vunpack.c.l.b16 %v10053
    %v10416 = vunpack.c.h.b16 %v10053
    %v10417 = vunpack.c.l.b16 %v10054
    %v10418 = vunpack.c.h.b16 %v10054
    %v10419 = vunpack.c.l.b16 %v10055
    %v10420 = vunpack.c.h.b16 %v10055
    %v10421 = vunpack.c.l.b16 %v10056
    %v10422 = vunpack.c.h.b16 %v10056
    %v10423 = vunpack.c.l.b16 %v10057
    %v10424 = vunpack.c.h.b16 %v10057
    %v10425 = vunpack.c.l.b16 %v10058
    %v10426 = vunpack.c.h.b16 %v10058
    %v10427 = vunpack.c.l.b16 %v10059
    %v10428 = vunpack.c.h.b16 %v10059
    %v10429 = vunpack.c.l.b16 %v10060
    %v10430 = vunpack.c.h.b16 %v10060
    %v10431 = vunpack.c.l.b16 %v10061
    %v10432 = vunpack.c.h.b16 %v10061
    %v10433 = vunpack.c.l.b16 %v10062
    %v10434 = vunpack.c.h.b16 %v10062
    %v10435 = vunpack.c.l.b16 %v10063
    %v10436 = vunpack.c.h.b16 %v10063
    %v10437 = vunpack.c.l.b16 %v10064
    %v10438 = vunpack.c.h.b16 %v10064
    %v10439 = vunpack.c.l.b16 %v10065
    %v10440 = vunpack.c.h.b16 %v10065
    %v10441 = vunpack.c.l.b16 %v10066
    %v10442 = vunpack.c.h.b16 %v10066
    %v10443 = vunpack.c.l.b16 %v10067
    %v10444 = vunpack.c.h.b16 %v10067
    %v10445 = vunpack.c.l.b16 %v10068
    %v10446 = vunpack.c.h.b16 %v10068
    %v10447 = vunpack.c.l.b16 %v10069
    %v10448 = vunpack.c.h.b16 %v10069
    %v10449 = vunpack.c.l.b16 %v10070
    %v10450 = vunpack.c.h.b16 %v10070
    %v10451 = vunpack.c.l.b16 %v10071
    %v10452 = vunpack.c.h.b16 %v10071
    %v10453 = vunpack.c.l.b16 %v10072
    %v10454 = vunpack.c.h.b16 %v10072
    %v10455 = vunpack.c.l.b16 %v10073
    %v10456 = vunpack.c.h.b16 %v10073
    %v10457 = vunpack.c.l.b16 %v10074
    %v10458 = vunpack.c.h.b16 %v10074
    %v10459 = vpack.c.b16 %v10207, %v10203
    %v10460 = vpack.c.b16 %v10208, %v10204
    %v10461 = vpack.c.b16 %v10209, %v10205
    %v10462 = vpack.c.b16 %v10210, %v10206
    %v10463 = vpack.c.b16 %v10215, %v10211
    %v10464 = vpack.c.b16 %v10216, %v10212
    %v10465 = vpack.c.b16 %v10217, %v10213
    %v10466 = vpack.c.b16 %v10218, %v10214
    %v10467 = vpack.c.b16 %v10223, %v10219
    %v10468 = vpack.c.b16 %v10224, %v10220
    %v10469 = vpack.c.b16 %v10225, %v10221
    %v10470 = vpack.c.b16 %v10226, %v10222
    %v10471 = vpack.c.b16 %v10231, %v10227
    %v10472 = vpack.c.b16 %v10232, %v10228
    %v10473 = vpack.c.b16 %v10233, %v10229
    %v10474 = vpack.c.b16 %v10234, %v10230
    %v10475 = vpack.c.b16 %v10239, %v10235
    %v10476 = vpack.c.b16 %v10240, %v10236
    %v10477 = vpack.c.b16 %v10241, %v10237
    %v10478 = vpack.c.b16 %v10242, %v10238
    %v10479 = vpack.c.b16 %v10247, %v10243
    %v10480 = vpack.c.b16 %v10248, %v10244
    %v10481 = vpack.c.b16 %v10249, %v10245
    %v10482 = vpack.c.b16 %v10250, %v10246
    %v10483 = vpack.c.b16 %v10255, %v10251
    %v10484 = vpack.c.b16 %v10256, %v10252
    %v10485 = vpack.c.b16 %v10257, %v10253
    %v10486 = vpack.c.b16 %v10258, %v10254
    %v10487 = vpack.c.b16 %v10263, %v10259
    %v10488 = vpack.c.b16 %v10264, %v10260
    %v10489 = vpack.c.b16 %v10265, %v10261
    %v10490 = vpack.c.b16 %v10266, %v10262
    %v10491 = vpack.c.b16 %v10271, %v10267
    %v10492 = vpack.c.b16 %v10272, %v10268
    %v10493 = vpack.c.b16 %v10273, %v10269
    %v10494 = vpack.c.b16 %v10274, %v10270
    %v10495 = vpack.c.b16 %v10279, %v10275
    %v10496 = vpack.c.b16 %v10280, %v10276
    %v10497 = vpack.c.b16 %v10281, %v10277
    %v10498 = vpack.c.b16 %v10282, %v10278
    %v10499 = vpack.c.b16 %v10287, %v10283
    %v10500 = vpack.c.b16 %v10288, %v10284
    %v10501 = vpack.c.b16 %v10289, %v10285
    %v10502 = vpack.c.b16 %v10290, %v10286
    %v10503 = vpack.c.b16 %v10295, %v10291
    %v10504 = vpack.c.b16 %v10296, %v10292
    %v10505 = vpack.c.b16 %v10297, %v10293
    %v10506 = vpack.c.b16 %v10298, %v10294
    %v10507 = vpack.c.b16 %v10303, %v10299
    %v10508 = vpack.c.b16 %v10304, %v10300
    %v10509 = vpack.c.b16 %v10305, %v10301
    %v10510 = vpack.c.b16 %v10306, %v10302
    %v10511 = vpack.c.b16 %v10311, %v10307
    %v10512 = vpack.c.b16 %v10312, %v10308
    %v10513 = vpack.c.b16 %v10313, %v10309
    %v10514 = vpack.c.b16 %v10314, %v10310
    %v10515 = vpack.c.b16 %v10319, %v10315
    %v10516 = vpack.c.b16 %v10320, %v10316
    %v10517 = vpack.c.b16 %v10321, %v10317
    %v10518 = vpack.c.b16 %v10322, %v10318
    %v10519 = vpack.c.b16 %v10327, %v10323
    %v10520 = vpack.c.b16 %v10328, %v10324
    %v10521 = vpack.c.b16 %v10329, %v10325
    %v10522 = vpack.c.b16 %v10330, %v10326
    %v10523 = vpack.c.b16 %v10335, %v10331
    %v10524 = vpack.c.b16 %v10336, %v10332
    %v10525 = vpack.c.b16 %v10337, %v10333
    %v10526 = vpack.c.b16 %v10338, %v10334
    %v10527 = vpack.c.b16 %v10343, %v10339
    %v10528 = vpack.c.b16 %v10344, %v10340
    %v10529 = vpack.c.b16 %v10345, %v10341
    %v10530 = vpack.c.b16 %v10346, %v10342
    %v10531 = vpack.c.b16 %v10351, %v10347
    %v10532 = vpack.c.b16 %v10352, %v10348
    %v10533 = vpack.c.b16 %v10353, %v10349
    %v10534 = vpack.c.b16 %v10354, %v10350
    %v10535 = vpack.c.b16 %v10359, %v10355
    %v10536 = vpack.c.b16 %v10360, %v10356
    %v10537 = vpack.c.b16 %v10361, %v10357
    %v10538 = vpack.c.b16 %v10362, %v10358
    %v10539 = vpack.c.b16 %v10367, %v10363
    %v10540 = vpack.c.b16 %v10368, %v10364
    %v10541 = vpack.c.b16 %v10369, %v10365
    %v10542 = vpack.c.b16 %v10370, %v10366
    %v10543 = vpack.c.b16 %v10375, %v10371
    %v10544 = vpack.c.b16 %v10376, %v10372
    %v10545 = vpack.c.b16 %v10377, %v10373
    %v10546 = vpack.c.b16 %v10378, %v10374
    %v10547 = vpack.c.b16 %v10383, %v10379
    %v10548 = vpack.c.b16 %v10384, %v10380
    %v10549 = vpack.c.b16 %v10385, %v10381
    %v10550 = vpack.c.b16 %v10386, %v10382
    %v10551 = vpack.c.b16 %v10391, %v10387
    %v10552 = vpack.c.b16 %v10392, %v10388
    %v10553 = vpack.c.b16 %v10393, %v10389
    %v10554 = vpack.c.b16 %v10394, %v10390
    %v10555 = vpack.c.b16 %v10399, %v10395
    %v10556 = vpack.c.b16 %v10400, %v10396
    %v10557 = vpack.c.b16 %v10401, %v10397
    %v10558 = vpack.c.b16 %v10402, %v10398
    %v10559 = vpack.c.b16 %v10407, %v10403
    %v10560 = vpack.c.b16 %v10408, %v10404
    %v10561 = vpack.c.b16 %v10409, %v10405
    %v10562 = vpack.c.b16 %v10410, %v10406
    %v10563 = vpack.c.b16 %v10415, %v10411
    %v10564 = vpack.c.b16 %v10416, %v10412
    %v10565 = vpack.c.b16 %v10417, %v10413
    %v10566 = vpack.c.b16 %v10418, %v10414
    %v10567 = vpack.c.b16 %v10423, %v10419
    %v10568 = vpack.c.b16 %v10424, %v10420
    %v10569 = vpack.c.b16 %v10425, %v10421
    %v10570 = vpack.c.b16 %v10426, %v10422
    %v10571 = vpack.c.b16 %v10431, %v10427
    %v10572 = vpack.c.b16 %v10432, %v10428
    %v10573 = vpack.c.b16 %v10433, %v10429
    %v10574 = vpack.c.b16 %v10434, %v10430
    %v10575 = vpack.c.b16 %v10439, %v10435
    %v10576 = vpack.c.b16 %v10440, %v10436
    %v10577 = vpack.c.b16 %v10441, %v10437
    %v10578 = vpack.c.b16 %v10442, %v10438
    %v10579 = vpack.c.b16 %v10447, %v10443
    %v10580 = vpack.c.b16 %v10448, %v10444
    %v10581 = vpack.c.b16 %v10449, %v10445
    %v10582 = vpack.c.b16 %v10450, %v10446
    %v10583 = vpack.c.b16 %v10455, %v10451
    %v10584 = vpack.c.b16 %v10456, %v10452
    %v10585 = vpack.c.b16 %v10457, %v10453
    %v10586 = vpack.c.b16 %v10458, %v10454
    %10715 = vmatprep.subr.bf16.mxu0 %v10488
    %10716 = vmatpush1.bf16.msra.mxu0 %v10487
    %10717 = vmatprep.subr.bf16.mxu0 %v10484
    %10718 = vmatpush1.bf16.msra.mxu0 %v10483
    %10719 = vmatprep.subr.bf16.mxu0 %v10480
    %10720 = vmatpush1.bf16.msra.mxu0 %v10479
    %10721 = vmatprep.subr.bf16.mxu0 %v10476
    %10722 = vmatpush1.bf16.msra.mxu0 %v10475
    %10723 = vmatprep.subr.bf16.mxu0 %v10472
    %10724 = vmatpush1.bf16.msra.mxu0 %v10471
    %10725 = vmatprep.subr.bf16.mxu0 %v10468
    %10726 = vmatpush1.bf16.msra.mxu0 %v10467
    %10727 = vmatprep.subr.bf16.mxu0 %v10464
    %10728 = vmatpush1.bf16.msra.mxu0 %v10463
    %10729 = vmatprep.subr.bf16.mxu0 %v10460
    %10730 = vmatpush1.bf16.msra.mxu0 %v10459
    %10731 = vmatprep.subr.bf16.mxu0 %v10520
    %10732 = vmatpush2.bf16.msra.mxu0 %v10519
    %10733 = vmatprep.subr.bf16.mxu0 %v10516
    %10734 = vmatpush2.bf16.msra.mxu0 %v10515
    %10735 = vmatprep.subr.bf16.mxu0 %v10512
    %10736 = vmatpush2.bf16.msra.mxu0 %v10511
    %10737 = vmatprep.subr.bf16.mxu0 %v10508
    %10738 = vmatpush2.bf16.msra.mxu0 %v10507
    %10739 = vmatprep.subr.bf16.mxu0 %v10504
    %10740 = vmatpush2.bf16.msra.mxu0 %v10503
    %10741 = vmatprep.subr.bf16.mxu0 %v10500
    %10742 = vmatpush2.bf16.msra.mxu0 %v10499
    %10743 = vmatprep.subr.bf16.mxu0 %v10496
    %10744 = vmatpush2.bf16.msra.mxu0 %v10495
    %10745 = vmatprep.subr.bf16.mxu0 %v10492
    %10746 = vmatpush2.bf16.msra.mxu0 %v10491
    %10747 = vmatprep.mubr.bf16.mxu0 %v9944
    %10748 = vmatmul.mubr.bf16.gmra.mxu0 %v9943
    %v10749 = vpop.f32.mrf.mxu0
    %v10750 = vadd.f32 0.0, %v10749
    %v10751 = vpop.f32.mrf.mxu0
    %v10752 = vadd.f32 0.0, %v10751
    %v10753 = vpop.f32.mrf.mxu0
    %v10754 = vpop.f32.mrf.mxu0
    %10755 = vdwg.mxu0
    %10756 = vmatprep.subr.bf16.mxu0 %v10552
    %10757 = vmatpush1.bf16.msra.mxu0 %v10551
    %10758 = vmatprep.subr.bf16.mxu0 %v10548
    %10759 = vmatpush1.bf16.msra.mxu0 %v10547
    %10760 = vmatprep.subr.bf16.mxu0 %v10544
    %10761 = vmatpush1.bf16.msra.mxu0 %v10543
    %10762 = vmatprep.subr.bf16.mxu0 %v10540
    %10763 = vmatpush1.bf16.msra.mxu0 %v10539
    %10764 = vmatprep.subr.bf16.mxu0 %v10536
    %10765 = vmatpush1.bf16.msra.mxu0 %v10535
    %10766 = vmatprep.subr.bf16.mxu0 %v10532
    %10767 = vmatpush1.bf16.msra.mxu0 %v10531
    %10768 = vmatprep.subr.bf16.mxu0 %v10528
    %10769 = vmatpush1.bf16.msra.mxu0 %v10527
    %10770 = vmatprep.subr.bf16.mxu0 %v10524
    %10771 = vmatpush1.bf16.msra.mxu0 %v10523
    %10772 = vmatprep.subr.bf16.mxu0 %v10584
    %10773 = vmatpush2.bf16.msra.mxu0 %v10583
    %10774 = vmatprep.subr.bf16.mxu0 %v10580
    %10775 = vmatpush2.bf16.msra.mxu0 %v10579
    %10776 = vmatprep.subr.bf16.mxu0 %v10576
    %10777 = vmatpush2.bf16.msra.mxu0 %v10575
    %10778 = vmatprep.subr.bf16.mxu0 %v10572
    %10779 = vmatpush2.bf16.msra.mxu0 %v10571
    %10780 = vmatprep.subr.bf16.mxu0 %v10568
    %10781 = vmatpush2.bf16.msra.mxu0 %v10567
    %10782 = vmatprep.subr.bf16.mxu0 %v10564
    %10783 = vmatpush2.bf16.msra.mxu0 %v10563
    %10784 = vmatprep.subr.bf16.mxu0 %v10560
    %10785 = vmatpush2.bf16.msra.mxu0 %v10559
    %10786 = vmatprep.subr.bf16.mxu0 %v10556
    %10787 = vmatpush2.bf16.msra.mxu0 %v10555
    %10788 = vmatprep.mubr.bf16.mxu0 %v9946
    %10789 = vmatmul.mubr.bf16.gmra.mxu0 %v9945
    %v10790 = vpop.f32.mrf.mxu0
    %v10791 = vadd.f32 %v10750, %v10790
    %v10792 = vpop.f32.mrf.mxu0
    %v10793 = vadd.f32 %v10752, %v10792
    %v10794 = vpop.f32.mrf.mxu0
    %v10795 = vpop.f32.mrf.mxu0
    %10796 = vdwg.mxu0
    %10797 = vmatprep.subr.bf16.mxu0 %v10490
    %10798 = vmatpush1.bf16.msra.mxu0 %v10489
    %10799 = vmatprep.subr.bf16.mxu0 %v10486
    %10800 = vmatpush1.bf16.msra.mxu0 %v10485
    %10801 = vmatprep.subr.bf16.mxu0 %v10482
    %10802 = vmatpush1.bf16.msra.mxu0 %v10481
    %10803 = vmatprep.subr.bf16.mxu0 %v10478
    %10804 = vmatpush1.bf16.msra.mxu0 %v10477
    %10805 = vmatprep.subr.bf16.mxu0 %v10474
    %10806 = vmatpush1.bf16.msra.mxu0 %v10473
    %10807 = vmatprep.subr.bf16.mxu0 %v10470
    %10808 = vmatpush1.bf16.msra.mxu0 %v10469
    %10809 = vmatprep.subr.bf16.mxu0 %v10466
    %10810 = vmatpush1.bf16.msra.mxu0 %v10465
    %10811 = vmatprep.subr.bf16.mxu0 %v10462
    %10812 = vmatpush1.bf16.msra.mxu0 %v10461
    %10813 = vmatprep.subr.bf16.mxu0 %v10522
    %10814 = vmatpush2.bf16.msra.mxu0 %v10521
    %10815 = vmatprep.subr.bf16.mxu0 %v10518
    %10816 = vmatpush2.bf16.msra.mxu0 %v10517
    %10817 = vmatprep.subr.bf16.mxu0 %v10514
    %10818 = vmatpush2.bf16.msra.mxu0 %v10513
    %10819 = vmatprep.subr.bf16.mxu0 %v10510
    %10820 = vmatpush2.bf16.msra.mxu0 %v10509
    %10821 = vmatprep.subr.bf16.mxu0 %v10506
    %10822 = vmatpush2.bf16.msra.mxu0 %v10505
    %10823 = vmatprep.subr.bf16.mxu0 %v10502
    %10824 = vmatpush2.bf16.msra.mxu0 %v10501
    %10825 = vmatprep.subr.bf16.mxu0 %v10498
    %10826 = vmatpush2.bf16.msra.mxu0 %v10497
    %10827 = vmatprep.subr.bf16.mxu0 %v10494
    %10828 = vmatpush2.bf16.msra.mxu0 %v10493
    %10829 = vmatprep.mubr.bf16.mxu0 %v9944
    %10830 = vmatmul.mubr.bf16.gmra.mxu0 %v9943
    %v10831 = vpop.f32.mrf.mxu0
    %v10832 = vadd.f32 0.0, %v10831
    %v10833 = vpop.f32.mrf.mxu0
    %v10834 = vadd.f32 0.0, %v10833
    %v10835 = vpop.f32.mrf.mxu0
    %v10836 = vpop.f32.mrf.mxu0
    %10837 = vdwg.mxu0
    %10838 = vmatprep.subr.bf16.mxu0 %v10554
    %10839 = vmatpush1.bf16.msra.mxu0 %v10553
    %10840 = vmatprep.subr.bf16.mxu0 %v10550
    %10841 = vmatpush1.bf16.msra.mxu0 %v10549
    %10842 = vmatprep.subr.bf16.mxu0 %v10546
    %10843 = vmatpush1.bf16.msra.mxu0 %v10545
    %10844 = vmatprep.subr.bf16.mxu0 %v10542
    %10845 = vmatpush1.bf16.msra.mxu0 %v10541
    %10846 = vmatprep.subr.bf16.mxu0 %v10538
    %10847 = vmatpush1.bf16.msra.mxu0 %v10537
    %10848 = vmatprep.subr.bf16.mxu0 %v10534
    %10849 = vmatpush1.bf16.msra.mxu0 %v10533
    %10850 = vmatprep.subr.bf16.mxu0 %v10530
    %10851 = vmatpush1.bf16.msra.mxu0 %v10529
    %10852 = vmatprep.subr.bf16.mxu0 %v10526
    %10853 = vmatpush1.bf16.msra.mxu0 %v10525
    %10854 = vmatprep.subr.bf16.mxu0 %v10586
    %10855 = vmatpush2.bf16.msra.mxu0 %v10585
    %10856 = vmatprep.subr.bf16.mxu0 %v10582
    %10857 = vmatpush2.bf16.msra.mxu0 %v10581
    %10858 = vmatprep.subr.bf16.mxu0 %v10578
    %10859 = vmatpush2.bf16.msra.mxu0 %v10577
    %10860 = vmatprep.subr.bf16.mxu0 %v10574
    %10861 = vmatpush2.bf16.msra.mxu0 %v10573
    %10862 = vmatprep.subr.bf16.mxu0 %v10570
    %10863 = vmatpush2.bf16.msra.mxu0 %v10569
    %10864 = vmatprep.subr.bf16.mxu0 %v10566
    %10865 = vmatpush2.bf16.msra.mxu0 %v10565
    %10866 = vmatprep.subr.bf16.mxu0 %v10562
    %10867 = vmatpush2.bf16.msra.mxu0 %v10561
    %10868 = vmatprep.subr.bf16.mxu0 %v10558
    %10869 = vmatpush2.bf16.msra.mxu0 %v10557
    %10870 = vmatprep.mubr.bf16.mxu0 %v9946
    %10871 = vmatmul.mubr.bf16.gmra.mxu0 %v9945
    %v10872 = vpop.f32.mrf.mxu0
    %v10873 = vadd.f32 %v10832, %v10872
    %v10874 = vpop.f32.mrf.mxu0
    %v10875 = vadd.f32 %v10834, %v10874
    %v10876 = vpop.f32.mrf.mxu0
    %v10877 = vpop.f32.mrf.mxu0
    %10878 = vdwg.mxu0
    %v11007 = vunpack.c.l.b16 %v9815
    %v11008 = vunpack.c.h.b16 %v9815
    %v11009 = vunpack.c.l.b16 %v9816
    %v11010 = vunpack.c.h.b16 %v9816
    %v11011 = vunpack.c.l.b16 %v9817
    %v11012 = vunpack.c.h.b16 %v9817
    %v11013 = vunpack.c.l.b16 %v9818
    %v11014 = vunpack.c.h.b16 %v9818
    %v11015 = vunpack.c.l.b16 %v9819
    %v11016 = vunpack.c.h.b16 %v9819
    %v11017 = vunpack.c.l.b16 %v9820
    %v11018 = vunpack.c.h.b16 %v9820
    %v11019 = vunpack.c.l.b16 %v9821
    %v11020 = vunpack.c.h.b16 %v9821
    %v11021 = vunpack.c.l.b16 %v9822
    %v11022 = vunpack.c.h.b16 %v9822
    %v11023 = vunpack.c.l.b16 %v9823
    %v11024 = vunpack.c.h.b16 %v9823
    %v11025 = vunpack.c.l.b16 %v9824
    %v11026 = vunpack.c.h.b16 %v9824
    %v11027 = vunpack.c.l.b16 %v9825
    %v11028 = vunpack.c.h.b16 %v9825
    %v11029 = vunpack.c.l.b16 %v9826
    %v11030 = vunpack.c.h.b16 %v9826
    %v11031 = vunpack.c.l.b16 %v9827
    %v11032 = vunpack.c.h.b16 %v9827
    %v11033 = vunpack.c.l.b16 %v9828
    %v11034 = vunpack.c.h.b16 %v9828
    %v11035 = vunpack.c.l.b16 %v9829
    %v11036 = vunpack.c.h.b16 %v9829
    %v11037 = vunpack.c.l.b16 %v9830
    %v11038 = vunpack.c.h.b16 %v9830
    %v11039 = vunpack.c.l.b16 %v9831
    %v11040 = vunpack.c.h.b16 %v9831
    %v11041 = vunpack.c.l.b16 %v9832
    %v11042 = vunpack.c.h.b16 %v9832
    %v11043 = vunpack.c.l.b16 %v9833
    %v11044 = vunpack.c.h.b16 %v9833
    %v11045 = vunpack.c.l.b16 %v9834
    %v11046 = vunpack.c.h.b16 %v9834
    %v11047 = vunpack.c.l.b16 %v9835
    %v11048 = vunpack.c.h.b16 %v9835
    %v11049 = vunpack.c.l.b16 %v9836
    %v11050 = vunpack.c.h.b16 %v9836
    %v11051 = vunpack.c.l.b16 %v9837
    %v11052 = vunpack.c.h.b16 %v9837
    %v11053 = vunpack.c.l.b16 %v9838
    %v11054 = vunpack.c.h.b16 %v9838
    %v11055 = vunpack.c.l.b16 %v9839
    %v11056 = vunpack.c.h.b16 %v9839
    %v11057 = vunpack.c.l.b16 %v9840
    %v11058 = vunpack.c.h.b16 %v9840
    %v11059 = vunpack.c.l.b16 %v9841
    %v11060 = vunpack.c.h.b16 %v9841
    %v11061 = vunpack.c.l.b16 %v9842
    %v11062 = vunpack.c.h.b16 %v9842
    %v11063 = vunpack.c.l.b16 %v9843
    %v11064 = vunpack.c.h.b16 %v9843
    %v11065 = vunpack.c.l.b16 %v9844
    %v11066 = vunpack.c.h.b16 %v9844
    %v11067 = vunpack.c.l.b16 %v9845
    %v11068 = vunpack.c.h.b16 %v9845
    %v11069 = vunpack.c.l.b16 %v9846
    %v11070 = vunpack.c.h.b16 %v9846
    %v11071 = vunpack.c.l.b16 %v9847
    %v11072 = vunpack.c.h.b16 %v9847
    %v11073 = vunpack.c.l.b16 %v9848
    %v11074 = vunpack.c.h.b16 %v9848
    %v11075 = vunpack.c.l.b16 %v9849
    %v11076 = vunpack.c.h.b16 %v9849
    %v11077 = vunpack.c.l.b16 %v9850
    %v11078 = vunpack.c.h.b16 %v9850
    %v11079 = vunpack.c.l.b16 %v9851
    %v11080 = vunpack.c.h.b16 %v9851
    %v11081 = vunpack.c.l.b16 %v9852
    %v11082 = vunpack.c.h.b16 %v9852
    %v11083 = vunpack.c.l.b16 %v9853
    %v11084 = vunpack.c.h.b16 %v9853
    %v11085 = vunpack.c.l.b16 %v9854
    %v11086 = vunpack.c.h.b16 %v9854
    %v11087 = vunpack.c.l.b16 %v9855
    %v11088 = vunpack.c.h.b16 %v9855
    %v11089 = vunpack.c.l.b16 %v9856
    %v11090 = vunpack.c.h.b16 %v9856
    %v11091 = vunpack.c.l.b16 %v9857
    %v11092 = vunpack.c.h.b16 %v9857
    %v11093 = vunpack.c.l.b16 %v9858
    %v11094 = vunpack.c.h.b16 %v9858
    %v11095 = vunpack.c.l.b16 %v9859
    %v11096 = vunpack.c.h.b16 %v9859
    %v11097 = vunpack.c.l.b16 %v9860
    %v11098 = vunpack.c.h.b16 %v9860
    %v11099 = vunpack.c.l.b16 %v9861
    %v11100 = vunpack.c.h.b16 %v9861
    %v11101 = vunpack.c.l.b16 %v9862
    %v11102 = vunpack.c.h.b16 %v9862
    %v11103 = vunpack.c.l.b16 %v9863
    %v11104 = vunpack.c.h.b16 %v9863
    %v11105 = vunpack.c.l.b16 %v9864
    %v11106 = vunpack.c.h.b16 %v9864
    %v11107 = vunpack.c.l.b16 %v9865
    %v11108 = vunpack.c.h.b16 %v9865
    %v11109 = vunpack.c.l.b16 %v9866
    %v11110 = vunpack.c.h.b16 %v9866
    %v11111 = vunpack.c.l.b16 %v9867
    %v11112 = vunpack.c.h.b16 %v9867
    %v11113 = vunpack.c.l.b16 %v9868
    %v11114 = vunpack.c.h.b16 %v9868
    %v11115 = vunpack.c.l.b16 %v9869
    %v11116 = vunpack.c.h.b16 %v9869
    %v11117 = vunpack.c.l.b16 %v9870
    %v11118 = vunpack.c.h.b16 %v9870
    %v11119 = vunpack.c.l.b16 %v9871
    %v11120 = vunpack.c.h.b16 %v9871
    %v11121 = vunpack.c.l.b16 %v9872
    %v11122 = vunpack.c.h.b16 %v9872
    %v11123 = vunpack.c.l.b16 %v9873
    %v11124 = vunpack.c.h.b16 %v9873
    %v11125 = vunpack.c.l.b16 %v9874
    %v11126 = vunpack.c.h.b16 %v9874
    %v11127 = vunpack.c.l.b16 %v9875
    %v11128 = vunpack.c.h.b16 %v9875
    %v11129 = vunpack.c.l.b16 %v9876
    %v11130 = vunpack.c.h.b16 %v9876
    %v11131 = vunpack.c.l.b16 %v9877
    %v11132 = vunpack.c.h.b16 %v9877
    %v11133 = vunpack.c.l.b16 %v9878
    %v11134 = vunpack.c.h.b16 %v9878
    %v11135 = vunpack.c.l.b16 %v9879
    %v11136 = vunpack.c.h.b16 %v9879
    %v11137 = vunpack.c.l.b16 %v9880
    %v11138 = vunpack.c.h.b16 %v9880
    %v11139 = vunpack.c.l.b16 %v9881
    %v11140 = vunpack.c.h.b16 %v9881
    %v11141 = vunpack.c.l.b16 %v9882
    %v11142 = vunpack.c.h.b16 %v9882
    %v11143 = vunpack.c.l.b16 %v9883
    %v11144 = vunpack.c.h.b16 %v9883
    %v11145 = vunpack.c.l.b16 %v9884
    %v11146 = vunpack.c.h.b16 %v9884
    %v11147 = vunpack.c.l.b16 %v9885
    %v11148 = vunpack.c.h.b16 %v9885
    %v11149 = vunpack.c.l.b16 %v9886
    %v11150 = vunpack.c.h.b16 %v9886
    %v11151 = vunpack.c.l.b16 %v9887
    %v11152 = vunpack.c.h.b16 %v9887
    %v11153 = vunpack.c.l.b16 %v9888
    %v11154 = vunpack.c.h.b16 %v9888
    %v11155 = vunpack.c.l.b16 %v9889
    %v11156 = vunpack.c.h.b16 %v9889
    %v11157 = vunpack.c.l.b16 %v9890
    %v11158 = vunpack.c.h.b16 %v9890
    %v11159 = vunpack.c.l.b16 %v9891
    %v11160 = vunpack.c.h.b16 %v9891
    %v11161 = vunpack.c.l.b16 %v9892
    %v11162 = vunpack.c.h.b16 %v9892
    %v11163 = vunpack.c.l.b16 %v9893
    %v11164 = vunpack.c.h.b16 %v9893
    %v11165 = vunpack.c.l.b16 %v9894
    %v11166 = vunpack.c.h.b16 %v9894
    %v11167 = vunpack.c.l.b16 %v9895
    %v11168 = vunpack.c.h.b16 %v9895
    %v11169 = vunpack.c.l.b16 %v9896
    %v11170 = vunpack.c.h.b16 %v9896
    %v11171 = vunpack.c.l.b16 %v9897
    %v11172 = vunpack.c.h.b16 %v9897
    %v11173 = vunpack.c.l.b16 %v9898
    %v11174 = vunpack.c.h.b16 %v9898
    %v11175 = vunpack.c.l.b16 %v9899
    %v11176 = vunpack.c.h.b16 %v9899
    %v11177 = vunpack.c.l.b16 %v9900
    %v11178 = vunpack.c.h.b16 %v9900
    %v11179 = vunpack.c.l.b16 %v9901
    %v11180 = vunpack.c.h.b16 %v9901
    %v11181 = vunpack.c.l.b16 %v9902
    %v11182 = vunpack.c.h.b16 %v9902
    %v11183 = vunpack.c.l.b16 %v9903
    %v11184 = vunpack.c.h.b16 %v9903
    %v11185 = vunpack.c.l.b16 %v9904
    %v11186 = vunpack.c.h.b16 %v9904
    %v11187 = vunpack.c.l.b16 %v9905
    %v11188 = vunpack.c.h.b16 %v9905
    %v11189 = vunpack.c.l.b16 %v9906
    %v11190 = vunpack.c.h.b16 %v9906
    %v11191 = vunpack.c.l.b16 %v9907
    %v11192 = vunpack.c.h.b16 %v9907
    %v11193 = vunpack.c.l.b16 %v9908
    %v11194 = vunpack.c.h.b16 %v9908
    %v11195 = vunpack.c.l.b16 %v9909
    %v11196 = vunpack.c.h.b16 %v9909
    %v11197 = vunpack.c.l.b16 %v9910
    %v11198 = vunpack.c.h.b16 %v9910
    %v11199 = vunpack.c.l.b16 %v9911
    %v11200 = vunpack.c.h.b16 %v9911
    %v11201 = vunpack.c.l.b16 %v9912
    %v11202 = vunpack.c.h.b16 %v9912
    %v11203 = vunpack.c.l.b16 %v9913
    %v11204 = vunpack.c.h.b16 %v9913
    %v11205 = vunpack.c.l.b16 %v9914
    %v11206 = vunpack.c.h.b16 %v9914
    %v11207 = vunpack.c.l.b16 %v9915
    %v11208 = vunpack.c.h.b16 %v9915
    %v11209 = vunpack.c.l.b16 %v9916
    %v11210 = vunpack.c.h.b16 %v9916
    %v11211 = vunpack.c.l.b16 %v9917
    %v11212 = vunpack.c.h.b16 %v9917
    %v11213 = vunpack.c.l.b16 %v9918
    %v11214 = vunpack.c.h.b16 %v9918
    %v11215 = vunpack.c.l.b16 %v9919
    %v11216 = vunpack.c.h.b16 %v9919
    %v11217 = vunpack.c.l.b16 %v9920
    %v11218 = vunpack.c.h.b16 %v9920
    %v11219 = vunpack.c.l.b16 %v9921
    %v11220 = vunpack.c.h.b16 %v9921
    %v11221 = vunpack.c.l.b16 %v9922
    %v11222 = vunpack.c.h.b16 %v9922
    %v11223 = vunpack.c.l.b16 %v9923
    %v11224 = vunpack.c.h.b16 %v9923
    %v11225 = vunpack.c.l.b16 %v9924
    %v11226 = vunpack.c.h.b16 %v9924
    %v11227 = vunpack.c.l.b16 %v9925
    %v11228 = vunpack.c.h.b16 %v9925
    %v11229 = vunpack.c.l.b16 %v9926
    %v11230 = vunpack.c.h.b16 %v9926
    %v11231 = vunpack.c.l.b16 %v9927
    %v11232 = vunpack.c.h.b16 %v9927
    %v11233 = vunpack.c.l.b16 %v9928
    %v11234 = vunpack.c.h.b16 %v9928
    %v11235 = vunpack.c.l.b16 %v9929
    %v11236 = vunpack.c.h.b16 %v9929
    %v11237 = vunpack.c.l.b16 %v9930
    %v11238 = vunpack.c.h.b16 %v9930
    %v11239 = vunpack.c.l.b16 %v9931
    %v11240 = vunpack.c.h.b16 %v9931
    %v11241 = vunpack.c.l.b16 %v9932
    %v11242 = vunpack.c.h.b16 %v9932
    %v11243 = vunpack.c.l.b16 %v9933
    %v11244 = vunpack.c.h.b16 %v9933
    %v11245 = vunpack.c.l.b16 %v9934
    %v11246 = vunpack.c.h.b16 %v9934
    %v11247 = vunpack.c.l.b16 %v9935
    %v11248 = vunpack.c.h.b16 %v9935
    %v11249 = vunpack.c.l.b16 %v9936
    %v11250 = vunpack.c.h.b16 %v9936
    %v11251 = vunpack.c.l.b16 %v9937
    %v11252 = vunpack.c.h.b16 %v9937
    %v11253 = vunpack.c.l.b16 %v9938
    %v11254 = vunpack.c.h.b16 %v9938
    %v11255 = vunpack.c.l.b16 %v9939
    %v11256 = vunpack.c.h.b16 %v9939
    %v11257 = vunpack.c.l.b16 %v9940
    %v11258 = vunpack.c.h.b16 %v9940
    %v11259 = vunpack.c.l.b16 %v9941
    %v11260 = vunpack.c.h.b16 %v9941
    %v11261 = vunpack.c.l.b16 %v9942
    %v11262 = vunpack.c.h.b16 %v9942
    %v11263 = vpack.c.b16 %v11011, %v11007
    %v11264 = vpack.c.b16 %v11012, %v11008
    %v11265 = vpack.c.b16 %v11013, %v11009
    %v11266 = vpack.c.b16 %v11014, %v11010
    %v11267 = vpack.c.b16 %v11019, %v11015
    %v11268 = vpack.c.b16 %v11020, %v11016
    %v11269 = vpack.c.b16 %v11021, %v11017
    %v11270 = vpack.c.b16 %v11022, %v11018
    %v11271 = vpack.c.b16 %v11027, %v11023
    %v11272 = vpack.c.b16 %v11028, %v11024
    %v11273 = vpack.c.b16 %v11029, %v11025
    %v11274 = vpack.c.b16 %v11030, %v11026
    %v11275 = vpack.c.b16 %v11035, %v11031
    %v11276 = vpack.c.b16 %v11036, %v11032
    %v11277 = vpack.c.b16 %v11037, %v11033
    %v11278 = vpack.c.b16 %v11038, %v11034
    %v11279 = vpack.c.b16 %v11043, %v11039
    %v11280 = vpack.c.b16 %v11044, %v11040
    %v11281 = vpack.c.b16 %v11045, %v11041
    %v11282 = vpack.c.b16 %v11046, %v11042
    %v11283 = vpack.c.b16 %v11051, %v11047
    %v11284 = vpack.c.b16 %v11052, %v11048
    %v11285 = vpack.c.b16 %v11053, %v11049
    %v11286 = vpack.c.b16 %v11054, %v11050
    %v11287 = vpack.c.b16 %v11059, %v11055
    %v11288 = vpack.c.b16 %v11060, %v11056
    %v11289 = vpack.c.b16 %v11061, %v11057
    %v11290 = vpack.c.b16 %v11062, %v11058
    %v11291 = vpack.c.b16 %v11067, %v11063
    %v11292 = vpack.c.b16 %v11068, %v11064
    %v11293 = vpack.c.b16 %v11069, %v11065
    %v11294 = vpack.c.b16 %v11070, %v11066
    %v11295 = vpack.c.b16 %v11075, %v11071
    %v11296 = vpack.c.b16 %v11076, %v11072
    %v11297 = vpack.c.b16 %v11077, %v11073
    %v11298 = vpack.c.b16 %v11078, %v11074
    %v11299 = vpack.c.b16 %v11083, %v11079
    %v11300 = vpack.c.b16 %v11084, %v11080
    %v11301 = vpack.c.b16 %v11085, %v11081
    %v11302 = vpack.c.b16 %v11086, %v11082
    %v11303 = vpack.c.b16 %v11091, %v11087
    %v11304 = vpack.c.b16 %v11092, %v11088
    %v11305 = vpack.c.b16 %v11093, %v11089
    %v11306 = vpack.c.b16 %v11094, %v11090
    %v11307 = vpack.c.b16 %v11099, %v11095
    %v11308 = vpack.c.b16 %v11100, %v11096
    %v11309 = vpack.c.b16 %v11101, %v11097
    %v11310 = vpack.c.b16 %v11102, %v11098
    %v11311 = vpack.c.b16 %v11107, %v11103
    %v11312 = vpack.c.b16 %v11108, %v11104
    %v11313 = vpack.c.b16 %v11109, %v11105
    %v11314 = vpack.c.b16 %v11110, %v11106
    %v11315 = vpack.c.b16 %v11115, %v11111
    %v11316 = vpack.c.b16 %v11116, %v11112
    %v11317 = vpack.c.b16 %v11117, %v11113
    %v11318 = vpack.c.b16 %v11118, %v11114
    %v11319 = vpack.c.b16 %v11123, %v11119
    %v11320 = vpack.c.b16 %v11124, %v11120
    %v11321 = vpack.c.b16 %v11125, %v11121
    %v11322 = vpack.c.b16 %v11126, %v11122
    %v11323 = vpack.c.b16 %v11131, %v11127
    %v11324 = vpack.c.b16 %v11132, %v11128
    %v11325 = vpack.c.b16 %v11133, %v11129
    %v11326 = vpack.c.b16 %v11134, %v11130
    %v11327 = vpack.c.b16 %v11139, %v11135
    %v11328 = vpack.c.b16 %v11140, %v11136
    %v11329 = vpack.c.b16 %v11141, %v11137
    %v11330 = vpack.c.b16 %v11142, %v11138
    %v11331 = vpack.c.b16 %v11147, %v11143
    %v11332 = vpack.c.b16 %v11148, %v11144
    %v11333 = vpack.c.b16 %v11149, %v11145
    %v11334 = vpack.c.b16 %v11150, %v11146
    %v11335 = vpack.c.b16 %v11155, %v11151
    %v11336 = vpack.c.b16 %v11156, %v11152
    %v11337 = vpack.c.b16 %v11157, %v11153
    %v11338 = vpack.c.b16 %v11158, %v11154
    %v11339 = vpack.c.b16 %v11163, %v11159
    %v11340 = vpack.c.b16 %v11164, %v11160
    %v11341 = vpack.c.b16 %v11165, %v11161
    %v11342 = vpack.c.b16 %v11166, %v11162
    %v11343 = vpack.c.b16 %v11171, %v11167
    %v11344 = vpack.c.b16 %v11172, %v11168
    %v11345 = vpack.c.b16 %v11173, %v11169
    %v11346 = vpack.c.b16 %v11174, %v11170
    %v11347 = vpack.c.b16 %v11179, %v11175
    %v11348 = vpack.c.b16 %v11180, %v11176
    %v11349 = vpack.c.b16 %v11181, %v11177
    %v11350 = vpack.c.b16 %v11182, %v11178
    %v11351 = vpack.c.b16 %v11187, %v11183
    %v11352 = vpack.c.b16 %v11188, %v11184
    %v11353 = vpack.c.b16 %v11189, %v11185
    %v11354 = vpack.c.b16 %v11190, %v11186
    %v11355 = vpack.c.b16 %v11195, %v11191
    %v11356 = vpack.c.b16 %v11196, %v11192
    %v11357 = vpack.c.b16 %v11197, %v11193
    %v11358 = vpack.c.b16 %v11198, %v11194
    %v11359 = vpack.c.b16 %v11203, %v11199
    %v11360 = vpack.c.b16 %v11204, %v11200
    %v11361 = vpack.c.b16 %v11205, %v11201
    %v11362 = vpack.c.b16 %v11206, %v11202
    %v11363 = vpack.c.b16 %v11211, %v11207
    %v11364 = vpack.c.b16 %v11212, %v11208
    %v11365 = vpack.c.b16 %v11213, %v11209
    %v11366 = vpack.c.b16 %v11214, %v11210
    %v11367 = vpack.c.b16 %v11219, %v11215
    %v11368 = vpack.c.b16 %v11220, %v11216
    %v11369 = vpack.c.b16 %v11221, %v11217
    %v11370 = vpack.c.b16 %v11222, %v11218
    %v11371 = vpack.c.b16 %v11227, %v11223
    %v11372 = vpack.c.b16 %v11228, %v11224
    %v11373 = vpack.c.b16 %v11229, %v11225
    %v11374 = vpack.c.b16 %v11230, %v11226
    %v11375 = vpack.c.b16 %v11235, %v11231
    %v11376 = vpack.c.b16 %v11236, %v11232
    %v11377 = vpack.c.b16 %v11237, %v11233
    %v11378 = vpack.c.b16 %v11238, %v11234
    %v11379 = vpack.c.b16 %v11243, %v11239
    %v11380 = vpack.c.b16 %v11244, %v11240
    %v11381 = vpack.c.b16 %v11245, %v11241
    %v11382 = vpack.c.b16 %v11246, %v11242
    %v11383 = vpack.c.b16 %v11251, %v11247
    %v11384 = vpack.c.b16 %v11252, %v11248
    %v11385 = vpack.c.b16 %v11253, %v11249
    %v11386 = vpack.c.b16 %v11254, %v11250
    %v11387 = vpack.c.b16 %v11259, %v11255
    %v11388 = vpack.c.b16 %v11260, %v11256
    %v11389 = vpack.c.b16 %v11261, %v11257
    %v11390 = vpack.c.b16 %v11262, %v11258
    %11519 = vmatprep.subr.bf16.mxu0 %v11292
    %11520 = vmatpush1.bf16.msra.mxu0 %v11291
    %11521 = vmatprep.subr.bf16.mxu0 %v11288
    %11522 = vmatpush1.bf16.msra.mxu0 %v11287
    %11523 = vmatprep.subr.bf16.mxu0 %v11284
    %11524 = vmatpush1.bf16.msra.mxu0 %v11283
    %11525 = vmatprep.subr.bf16.mxu0 %v11280
    %11526 = vmatpush1.bf16.msra.mxu0 %v11279
    %11527 = vmatprep.subr.bf16.mxu0 %v11276
    %11528 = vmatpush1.bf16.msra.mxu0 %v11275
    %11529 = vmatprep.subr.bf16.mxu0 %v11272
    %11530 = vmatpush1.bf16.msra.mxu0 %v11271
    %11531 = vmatprep.subr.bf16.mxu0 %v11268
    %11532 = vmatpush1.bf16.msra.mxu0 %v11267
    %11533 = vmatprep.subr.bf16.mxu0 %v11264
    %11534 = vmatpush1.bf16.msra.mxu0 %v11263
    %11535 = vmatprep.subr.bf16.mxu0 %v11324
    %11536 = vmatpush2.bf16.msra.mxu0 %v11323
    %11537 = vmatprep.subr.bf16.mxu0 %v11320
    %11538 = vmatpush2.bf16.msra.mxu0 %v11319
    %11539 = vmatprep.subr.bf16.mxu0 %v11316
    %11540 = vmatpush2.bf16.msra.mxu0 %v11315
    %11541 = vmatprep.subr.bf16.mxu0 %v11312
    %11542 = vmatpush2.bf16.msra.mxu0 %v11311
    %11543 = vmatprep.subr.bf16.mxu0 %v11308
    %11544 = vmatpush2.bf16.msra.mxu0 %v11307
    %11545 = vmatprep.subr.bf16.mxu0 %v11304
    %11546 = vmatpush2.bf16.msra.mxu0 %v11303
    %11547 = vmatprep.subr.bf16.mxu0 %v11300
    %11548 = vmatpush2.bf16.msra.mxu0 %v11299
    %11549 = vmatprep.subr.bf16.mxu0 %v11296
    %11550 = vmatpush2.bf16.msra.mxu0 %v11295
    %11551 = vmatprep.mubr.bf16.mxu0 %v9612
    %11552 = vmatmul.mubr.bf16.gmra.mxu0 %v9604
    %v11553 = vpop.f32.mrf.mxu0
    %v11554 = vadd.f32 %v10791, %v11553
    %v11555 = vpop.f32.mrf.mxu0
    %v11556 = vadd.f32 %v10793, %v11555
    %v11557 = vpop.f32.mrf.mxu0
    %v11558 = vpop.f32.mrf.mxu0
    %11559 = vdwg.mxu0
    %11560 = vmatprep.subr.bf16.mxu0 %v11356
    %11561 = vmatpush1.bf16.msra.mxu0 %v11355
    %11562 = vmatprep.subr.bf16.mxu0 %v11352
    %11563 = vmatpush1.bf16.msra.mxu0 %v11351
    %11564 = vmatprep.subr.bf16.mxu0 %v11348
    %11565 = vmatpush1.bf16.msra.mxu0 %v11347
    %11566 = vmatprep.subr.bf16.mxu0 %v11344
    %11567 = vmatpush1.bf16.msra.mxu0 %v11343
    %11568 = vmatprep.subr.bf16.mxu0 %v11340
    %11569 = vmatpush1.bf16.msra.mxu0 %v11339
    %11570 = vmatprep.subr.bf16.mxu0 %v11336
    %11571 = vmatpush1.bf16.msra.mxu0 %v11335
    %11572 = vmatprep.subr.bf16.mxu0 %v11332
    %11573 = vmatpush1.bf16.msra.mxu0 %v11331
    %11574 = vmatprep.subr.bf16.mxu0 %v11328
    %11575 = vmatpush1.bf16.msra.mxu0 %v11327
    %11576 = vmatprep.subr.bf16.mxu0 %v11388
    %11577 = vmatpush2.bf16.msra.mxu0 %v11387
    %11578 = vmatprep.subr.bf16.mxu0 %v11384
    %11579 = vmatpush2.bf16.msra.mxu0 %v11383
    %11580 = vmatprep.subr.bf16.mxu0 %v11380
    %11581 = vmatpush2.bf16.msra.mxu0 %v11379
    %11582 = vmatprep.subr.bf16.mxu0 %v11376
    %11583 = vmatpush2.bf16.msra.mxu0 %v11375
    %11584 = vmatprep.subr.bf16.mxu0 %v11372
    %11585 = vmatpush2.bf16.msra.mxu0 %v11371
    %11586 = vmatprep.subr.bf16.mxu0 %v11368
    %11587 = vmatpush2.bf16.msra.mxu0 %v11367
    %11588 = vmatprep.subr.bf16.mxu0 %v11364
    %11589 = vmatpush2.bf16.msra.mxu0 %v11363
    %11590 = vmatprep.subr.bf16.mxu0 %v11360
    %11591 = vmatpush2.bf16.msra.mxu0 %v11359
    %11592 = vmatprep.mubr.bf16.mxu0 %v9628
    %11593 = vmatmul.mubr.bf16.gmra.mxu0 %v9620
    %v11594 = vpop.f32.mrf.mxu0
    %v11595 = vadd.f32 %v11554, %v11594
    %v11596 = vpop.f32.mrf.mxu0
    %v11597 = vadd.f32 %v11556, %v11596
    %v11598 = vpop.f32.mrf.mxu0
    %v11599 = vpop.f32.mrf.mxu0
    %11600 = vdwg.mxu0
    %11601 = vmatprep.subr.bf16.mxu0 %v11294
    %11602 = vmatpush1.bf16.msra.mxu0 %v11293
    %11603 = vmatprep.subr.bf16.mxu0 %v11290
    %11604 = vmatpush1.bf16.msra.mxu0 %v11289
    %11605 = vmatprep.subr.bf16.mxu0 %v11286
    %11606 = vmatpush1.bf16.msra.mxu0 %v11285
    %11607 = vmatprep.subr.bf16.mxu0 %v11282
    %11608 = vmatpush1.bf16.msra.mxu0 %v11281
    %11609 = vmatprep.subr.bf16.mxu0 %v11278
    %11610 = vmatpush1.bf16.msra.mxu0 %v11277
    %11611 = vmatprep.subr.bf16.mxu0 %v11274
    %11612 = vmatpush1.bf16.msra.mxu0 %v11273
    %11613 = vmatprep.subr.bf16.mxu0 %v11270
    %11614 = vmatpush1.bf16.msra.mxu0 %v11269
    %11615 = vmatprep.subr.bf16.mxu0 %v11266
    %11616 = vmatpush1.bf16.msra.mxu0 %v11265
    %11617 = vmatprep.subr.bf16.mxu0 %v11326
    %11618 = vmatpush2.bf16.msra.mxu0 %v11325
    %11619 = vmatprep.subr.bf16.mxu0 %v11322
    %11620 = vmatpush2.bf16.msra.mxu0 %v11321
    %11621 = vmatprep.subr.bf16.mxu0 %v11318
    %11622 = vmatpush2.bf16.msra.mxu0 %v11317
    %11623 = vmatprep.subr.bf16.mxu0 %v11314
    %11624 = vmatpush2.bf16.msra.mxu0 %v11313
    %11625 = vmatprep.subr.bf16.mxu0 %v11310
    %11626 = vmatpush2.bf16.msra.mxu0 %v11309
    %11627 = vmatprep.subr.bf16.mxu0 %v11306
    %11628 = vmatpush2.bf16.msra.mxu0 %v11305
    %11629 = vmatprep.subr.bf16.mxu0 %v11302
    %11630 = vmatpush2.bf16.msra.mxu0 %v11301
    %11631 = vmatprep.subr.bf16.mxu0 %v11298
    %11632 = vmatpush2.bf16.msra.mxu0 %v11297
    %11633 = vmatprep.mubr.bf16.mxu0 %v9612
    %11634 = vmatmul.mubr.bf16.gmra.mxu0 %v9604
    %v11635 = vpop.f32.mrf.mxu0
    %v11636 = vadd.f32 %v10873, %v11635
    %v11637 = vpop.f32.mrf.mxu0
    %v11638 = vadd.f32 %v10875, %v11637
    %v11639 = vpop.f32.mrf.mxu0
    %v11640 = vpop.f32.mrf.mxu0
    %11641 = vdwg.mxu0
    %11642 = vmatprep.subr.bf16.mxu0 %v11358
    %11643 = vmatpush1.bf16.msra.mxu0 %v11357
    %11644 = vmatprep.subr.bf16.mxu0 %v11354
    %11645 = vmatpush1.bf16.msra.mxu0 %v11353
    %11646 = vmatprep.subr.bf16.mxu0 %v11350
    %11647 = vmatpush1.bf16.msra.mxu0 %v11349
    %11648 = vmatprep.subr.bf16.mxu0 %v11346
    %11649 = vmatpush1.bf16.msra.mxu0 %v11345
    %11650 = vmatprep.subr.bf16.mxu0 %v11342
    %11651 = vmatpush1.bf16.msra.mxu0 %v11341
    %11652 = vmatprep.subr.bf16.mxu0 %v11338
    %11653 = vmatpush1.bf16.msra.mxu0 %v11337
    %11654 = vmatprep.subr.bf16.mxu0 %v11334
    %11655 = vmatpush1.bf16.msra.mxu0 %v11333
    %11656 = vmatprep.subr.bf16.mxu0 %v11330
    %11657 = vmatpush1.bf16.msra.mxu0 %v11329
    %11658 = vmatprep.subr.bf16.mxu0 %v11390
    %11659 = vmatpush2.bf16.msra.mxu0 %v11389
    %11660 = vmatprep.subr.bf16.mxu0 %v11386
    %11661 = vmatpush2.bf16.msra.mxu0 %v11385
    %11662 = vmatprep.subr.bf16.mxu0 %v11382
    %11663 = vmatpush2.bf16.msra.mxu0 %v11381
    %11664 = vmatprep.subr.bf16.mxu0 %v11378
    %11665 = vmatpush2.bf16.msra.mxu0 %v11377
    %11666 = vmatprep.subr.bf16.mxu0 %v11374
    %11667 = vmatpush2.bf16.msra.mxu0 %v11373
    %11668 = vmatprep.subr.bf16.mxu0 %v11370
    %11669 = vmatpush2.bf16.msra.mxu0 %v11369
    %11670 = vmatprep.subr.bf16.mxu0 %v11366
    %11671 = vmatpush2.bf16.msra.mxu0 %v11365
    %11672 = vmatprep.subr.bf16.mxu0 %v11362
    %11673 = vmatpush2.bf16.msra.mxu0 %v11361
    %11674 = vmatprep.mubr.bf16.mxu0 %v9628
    %11675 = vmatmul.mubr.bf16.gmra.mxu0 %v9620
    %v11676 = vpop.f32.mrf.mxu0
    %v11677 = vadd.f32 %v11636, %v11676
    %v11678 = vpop.f32.mrf.mxu0
    %v11679 = vadd.f32 %v11638, %v11678
    %v11680 = vpop.f32.mrf.mxu0
    %v11681 = vpop.f32.mrf.mxu0
    %11682 = vdwg.mxu0
    %v11683 = vld [vmem:[%s14] sm:$0xf]
    %v11685 = vlaneseq
    %v11686 = vshrl.u32 %v11685, 7
    %v11687 = vsub.s32 0, %v11686
    %v11688 = vrot.slane %v11683, %v11687
    %v11689 = vlaneseq
    %v11690 = vshrl.u32 %v11689, 7
    %v11691 = vsub.s32 1, %v11690
    %v11692 = vrot.slane %v11683, %v11691
    %v11693 = vlaneseq
    %v11694 = vshrl.u32 %v11693, 7
    %v11695 = vsub.s32 2, %v11694
    %v11696 = vrot.slane %v11683, %v11695
    %v11697 = vlaneseq
    %v11698 = vshrl.u32 %v11697, 7
    %v11699 = vsub.s32 3, %v11698
    %v11700 = vrot.slane %v11683, %v11699
    %v11705 = vadd.f32 %v11595, %v11688
    %v11706 = vadd.f32 %v11597, %v11692
    %v11707 = vadd.f32 %v11677, %v11696
    %v11708 = vadd.f32 %v11679, %v11700
    %v11709 = vtanh.pop %v11705
    %v11710 = vtanh.pop %v11706
    %v11711 = vtanh.pop %v11707
    %v11712 = vtanh.pop %v11708
    %s11713 = scalar_lea.vmem %s15, 32
    %11714 = vst [vmem:[%s11713] sm:$0x1f] %v11709
    %11715 = vst [vmem:[%s11713 + $0x8] sm:$0x1f] %v11710
    %11716 = vst [vmem:[%s11713 + $0x10] sm:$0x1f] %v11711
    %11717 = vst [vmem:[%s11713 + $0x18] sm:$0x1f] %v11712
    %s11718 = scalar_lea.vmem %s16, 8
    %11719 = vst [vmem:[%s11718] sm:$0x1f] %v9731
    // Predicated region
    $region74: #{forward.1} parent=1 // pred_check
      _
    $region75: #{forward.1} parent=1 // pred_check_branch
      %11721 = sbr.rel (0) target = $region77
    $region76: #{forward.1} parent=1 // pred_region
      _
    $region77: #{forward.1} parent=1 // pred_fallthru
      _
    // Predicated region
    $region78: #{forward.1} parent=1 // pred_check
      _
    $region79: #{forward.1} parent=1 // pred_check_branch
      %11723 = sbr.rel (0) target = $region81
    $region80: #{forward.1} parent=1 // pred_region
      _
    $region81: #{forward.1} parent=1 // pred_fallthru
      _
    // Predicated region
    $region82: #{forward.1} parent=1 // pred_check
      _
    $region83: #{forward.1} parent=1 // pred_check_branch
      %11725 = sbr.rel (0) target = $region85
    $region84: #{forward.1} parent=1 // pred_region
      _
    $region85: #{forward.1} parent=1 // pred_fallthru
      _
    // Predicated region
    $region86: #{forward.1} parent=1 // pred_check
      _
    $region87: #{forward.1} parent=1 // pred_check_branch
      %11727 = sbr.rel (0) target = $region89
    $region88: #{forward.1} parent=1 // pred_region
      _
    $region89: #{forward.1} parent=1 // pred_fallthru
      _
    %11728 = vsyncpa [#allocation7], 1
    %11729 = vsyncpa [#allocation9], 1
    %11730 = vsyncpa [#allocation12], 1

</llo_original>
